<compile_context>
chip_gen: v7x
topology: tpu7x:2x2x1
jax: 0.10.0
libtpu: 0.0.40
codegen_flags: <defaults>
</compile_context>

<pallas_src>
import functools
import itertools

import jax
import jax.numpy as jnp
from jax import lax
from jax.experimental import pallas as pl
from jax.experimental.pallas import tpu as pltpu

_CENTER = 13  # index of the (0,0,0) shift in itertools.product([-1,0,1], repeat=3)


def _relative_loss_kernel(na_ref,             # SMEM [B] int32 (scalar prefetch)
                          shifts_ref,         # VMEM [S, 3] shift table
                          cell_ref,           # VMEM [1, 3, 3]
                          xT_ref, xtT_ref,    # VMEM [1, 3, N]   (all atoms, transposed)
                          xsT_ref, xtsT_ref,  # VMEM [1, 3, TN]  (src-atom tile, transposed)
                          out_ref,            # VMEM [1, knn*3, TN]
                          *, N, S, TN, knn):
    f32 = jnp.float32
    i32 = jnp.int32
    BIG = jnp.float32(1e30)
    SENT = S * N

    b = pl.program_id(0)
    t = pl.program_id(1)
    na = na_ref[b]
    tile_start = t * TN

    @pl.when(tile_start >= na)                        # fully padded tile -> zeros
    def _pad():
        out_ref[0] = jnp.zeros((knn * 3, TN), f32)

    @pl.when(tile_start < na)
    def _compute():
        cell = cell_ref[0]                            # [3,3] rows = lattice vectors
        xT = xT_ref[0]                                # [3,N]
        xtT = xtT_ref[0]                              # [3,N]
        xsT = xsT_ref[0]                              # [3,TN]
        xtsT = xtsT_ref[0]                            # [3,TN]
        shifts = shifts_ref[...]                      # [S,3]

        # cartesian coordinates, kept transposed:  x_cart^T = cell^T @ x^T
        x_cart_T = lax.dot_general(cell, xT, (((0,), (0,)), ((), ())),
                                   preferred_element_type=f32)        # [3,N]
        xs_cart_T = lax.dot_general(cell, xsT, (((0,), (0,)), ((), ())),
                                    preferred_element_type=f32)       # [3,TN]
        sh_cart = jnp.dot(shifts, cell, preferred_element_type=f32)   # [S,3]

        # |xs_i - x_j - sh_s|^2  (up to a per-i constant, irrelevant for ranking):
        #   pair[i,j] + sj[s,j] + is_[i,s]
        G = lax.dot_general(xs_cart_T, x_cart_T, (((0,), (0,)), ((), ())),
                            preferred_element_type=f32)               # [TN,N]  xs_i . x_j
        H = lax.dot_general(xs_cart_T, sh_cart, (((0,), (1,)), ((), ())),
                            preferred_element_type=f32)               # [TN,S]  xs_i . sh_s
        H2 = lax.dot_general(sh_cart, x_cart_T, (((1,), (0,)), ((), ())),
                             preferred_element_type=f32)              # [S,N]   sh_s . x_j

        x_n2_row = jnp.sum(x_cart_T * x_cart_T, axis=0, keepdims=True)  # [1,N]
        sh_n2 = jnp.sum(sh_cart * sh_cart, axis=1, keepdims=True)       # [S,1]

        pair = x_n2_row - 2.0 * G                     # [TN,N]  (|xs_i|^2 dropped: per-row const)
        sj = 2.0 * H2 + sh_n2                         # [S,N]
        is_ = -2.0 * H                                # [TN,S]

        d2 = pair[:, None, :] + sj[None, :, :] + is_[:, :, None]        # [TN,S,N]

        # candidate index (shift-major: m = s*N + j) for deterministic tie-break
        s_iota = lax.broadcasted_iota(i32, (TN, S, N), 1)
        j_iota = lax.broadcasted_iota(i32, (TN, S, N), 2)
        m_idx = s_iota * N + j_iota

        # mask invalid candidates: self-edge at zero shift, padded dst atoms
        i_loc = lax.broadcasted_iota(i32, (TN, N), 0) + tile_start      # global src index
        j_2d = lax.broadcasted_iota(i32, (TN, N), 1)
        invalid = (((i_loc == j_2d)[:, None, :] & (s_iota == _CENTER))
                   | (j_2d >= na)[:, None, :])
        d2 = jnp.where(invalid, BIG, d2)

        # shift cancels exactly in e_tilde - e:  |delta[dst] - delta[src]|
        delta_T = xtT - xT                            # [3,N]
        delta_s_T = xtsT - xsT                        # [3,TN]

        diffs = []
        for _ in range(knn):
            min_v = jnp.min(jnp.min(d2, axis=2, keepdims=True), axis=1, keepdims=True)
            cand_i = jnp.where(d2 == min_v, m_idx, SENT)
            sel = jnp.min(jnp.min(cand_i, axis=2, keepdims=True), axis=1, keepdims=True)
            onehot = (m_idx == sel)                                      # exactly one hot per row
            oh_atoms = jnp.sum(onehot.astype(f32), axis=1)               # [TN,N]
            gathered_T = lax.dot_general(delta_T, oh_atoms, (((1,), (1,)), ((), ())),
                                         preferred_element_type=f32)    # [3,TN] = delta[dst]^T
            diffs.append(jnp.abs(gathered_T - delta_s_T))
            d2 = jnp.where(onehot, BIG, d2)                              # remove selected candidate

        res_T = jnp.concatenate(diffs, axis=0)                           # [knn*3, TN] lane-dense
        col_ok = (lax.broadcasted_iota(i32, (1, TN), 1) + tile_start) < na
        out_ref[0] = jnp.where(col_ok, res_T, 0.0)


def relative_loss(cell, x, x_tilde, num_atoms, knn=4):
    B, N, _ = x.shape
    shifts = jnp.array(list(itertools.product([-1, 0, 1], repeat=3)), jnp.float32)  # [27,3]
    S = shifts.shape[0]

    # Source atoms sit on the lane axis in-kernel, so tiles must be 128-aligned
    # (or cover the whole axis).  Pad N to a multiple of 128 when tiling is needed;
    # padded atoms are masked out of both selection and output.
    if N > 128:
        N_pad = -(-N // 128) * 128
        TN = 128
    else:
        N_pad, TN = N, N
    num_tiles = N_pad // TN

    if N_pad != N:
        pad = ((0, 0), (0, N_pad - N), (0, 0))
        x_p, xt_p = jnp.pad(x, pad), jnp.pad(x_tilde, pad)
    else:
        x_p, xt_p = x, x_tilde
    x_T = jnp.swapaxes(x_p, 1, 2)                      # [B, 3, N_pad]
    xt_T = jnp.swapaxes(xt_p, 1, 2)

    kernel = functools.partial(_relative_loss_kernel, N=N_pad, S=S, TN=TN, knn=knn)

    out = pl.pallas_call(
        kernel,
        out_shape=jax.ShapeDtypeStruct((B, knn * 3, N_pad), jnp.float32),
        grid_spec=pltpu.PrefetchScalarGridSpec(
            num_scalar_prefetch=1,
            grid=(B, num_tiles),
            in_specs=[
                pl.BlockSpec((S, 3), lambda b, t, na: (0, 0)),            # shift table
                pl.BlockSpec((1, 3, 3), lambda b, t, na: (b, 0, 0)),      # cell
                pl.BlockSpec((1, 3, N_pad), lambda b, t, na: (b, 0, 0)),  # x^T  (all atoms)
                pl.BlockSpec((1, 3, N_pad), lambda b, t, na: (b, 0, 0)),  # x_tilde^T (all atoms)
                pl.BlockSpec((1, 3, TN), lambda b, t, na: (b, 0, t)),     # x^T  (src tile)
                pl.BlockSpec((1, 3, TN), lambda b, t, na: (b, 0, t)),     # x_tilde^T (src tile)
            ],
            out_specs=pl.BlockSpec((1, knn * 3, TN), lambda b, t, na: (b, 0, t)),
        ),
        compiler_params=pltpu.CompilerParams(
            dimension_semantics=("parallel", "parallel"),
            vmem_limit_bytes=48 * 1024 * 1024),
    )(num_atoms.astype(jnp.int32), shifts, cell, x_T, xt_T, x_T, xt_T)

    # out: [B, knn*3, N_pad] -> [B, N, knn, 3]  (wrapper-side layout plumbing only)
    abs_all = jnp.swapaxes(out[:, :, :N], 1, 2).reshape(B, N, knn, 3)
    denom = (jnp.sum(num_atoms) * knn * 3).astype(jnp.float32)
    loss = jnp.sum(abs_all) / denom                  # F.l1_loss(..., reduction='mean')
    return loss, abs_all.reshape(B * N * knn, 3)     # per-edge |e_tilde_ij - e_ij|


# ---------------------------------------------------------------------------
# Pure-JAX reference (same candidate ordering), used only for validation.  It
# computes e / e_tilde explicitly (with the shift), so it also cross-checks the
# kernel's shift-cancellation shortcut.
def reference_relative_loss(cell, x, x_tilde, num_atoms, knn=4):
    B, N, _ = x.shape
    shifts = jnp.array(list(itertools.product([-1, 0, 1], repeat=3)), jnp.float32)
    S = shifts.shape[0]
    SENT = S * N

    def per_structure(cell_b, x_b, xt_b, na):
        x_cart = x_b @ cell_b
        sh_cart = shifts @ cell_b
        G = x_cart @ x_cart.T
        H = x_cart @ sh_cart.T
        H2 = sh_cart @ x_cart.T
        xn2 = jnp.sum(x_cart * x_cart, axis=1)
        sn2 = jnp.sum(sh_cart * sh_cart, axis=1)
        pair = xn2[:, None] + xn2[None, :] - 2.0 * G            # [N,N]
        sj = 2.0 * H2 + sn2[:, None]                            # [S,N]
        is_ = -2.0 * H                                          # [N,S]
        d2 = pair[:, None, :] + sj[None, :, :] + is_[:, :, None]  # [N,S,N]

        i_idx = jnp.arange(N)
        j_idx = jnp.arange(N)
        s_idx = jnp.arange(S)
        invalid = (((i_idx[:, None, None] == j_idx[None, None, :])
                    & (s_idx[None, :, None] == _CENTER))
                   | (j_idx[None, None, :] >= na))
        d2 = jnp.where(invalid, 1e30, d2)

        m_idx = s_idx[:, None] * N + j_idx[None, :]             # [S,N]
        row_valid = (i_idx < na)[:, None]
        outs = []
        for _ in range(knn):
            min_v = jnp.min(d2, axis=(1, 2), keepdims=True)
            sel = jnp.min(jnp.where(d2 == min_v, m_idx[None], SENT), axis=(1, 2))  # [N]
            j_sel = jnp.clip(sel % N, 0, N - 1)
            s_sel = jnp.clip(sel // N, 0, S - 1)
            e = x_b[j_sel] + shifts[s_sel] - x_b
            et = xt_b[j_sel] + shifts[s_sel] - xt_b
            outs.append(jnp.where(row_valid, jnp.abs(et - e), 0.0))
            d2 = jnp.where(m_idx[None] == sel[:, None, None], 1e30, d2)
        return jnp.stack(outs, axis=1)                          # [N, knn, 3]

    abs_all = jax.vmap(per_structure)(cell, x, x_tilde, num_atoms)
    denom = (jnp.sum(num_atoms) * knn * 3).astype(jnp.float32)
    loss = jnp.sum(abs_all) / denom
    return loss, abs_all.reshape(B * N * knn, 3)


if __name__ == "__main__":
    key = jax.random.PRNGKey(0)
    B, N, knn = 2, 8, 4
    k1, k2, k3 = jax.random.split(key, 3)

    cell = (4.0 * jnp.eye(3, dtype=jnp.float32)[None]
            + 0.3 * jax.random.normal(k1, (B, 3, 3), jnp.float32))
    x = jax.random.uniform(k2, (B, N, 3), jnp.float32)
    x_tilde = x + 0.05 * jax.random.normal(k3, (B, N, 3), jnp.float32)
    num_atoms = jnp.array([8, 6], dtype=jnp.int32)   # second structure is padded

    loss, abs_edges = relative_loss(cell, x, x_tilde, num_atoms, knn=knn)
    loss = jax.block_until_ready(loss)
    abs_edges = jax.block_until_ready(abs_edges)

    loss_ref, abs_ref = reference_relative_loss(cell, x, x_tilde, num_atoms, knn=knn)

    assert jnp.allclose(loss, loss_ref, atol=1e-5, rtol=1e-4), (float(loss), float(loss_ref))
    assert jnp.allclose(abs_edges, abs_ref, atol=1e-4), float(jnp.max(jnp.abs(abs_edges - abs_ref)))

    print("KERNEL_OK")
</pallas_src>

<mosaic_0001>
module attributes {stable_mosaic.version = 11 : i64} {
  func.func @_relative_loss_kernel(%arg0: i32, %arg1: i32, %arg2: memref<2xi32, #tpu.memory_space<smem>>, %arg3: memref<27x3xf32, #tpu.memory_space<vmem>>, %arg4: memref<1x3x3xf32, #tpu.memory_space<vmem>>, %arg5: memref<1x3x8xf32, #tpu.memory_space<vmem>>, %arg6: memref<1x3x8xf32, #tpu.memory_space<vmem>>, %arg7: memref<1x3x8xf32, #tpu.memory_space<vmem>>, %arg8: memref<1x3x8xf32, #tpu.memory_space<vmem>>, %arg9: memref<1x12x8xf32, #tpu.memory_space<vmem>>) attributes {dimension_semantics = [#tpu.dimension_semantics<parallel>, #tpu.dimension_semantics<parallel>], iteration_bounds = array<i64: 2, 1>, scalar_prefetch = 1 : i64, scratch_operands = 0 : i64, tpu.core_type = #tpu.core_type<tc>, window_params = [{pipeline_mode = #tpu.pipeline_mode<synchronous>, transform_indices = @transform_0, window_bounds = array<i64: 27, 3>}, {transform_indices = @transform_1, window_bounds = array<i64: 1, 3, 3>}, {transform_indices = @transform_2, window_bounds = array<i64: 1, 3, 8>}, {transform_indices = @transform_3, window_bounds = array<i64: 1, 3, 8>}, {transform_indices = @transform_4, window_bounds = array<i64: 1, 3, 8>}, {transform_indices = @transform_5, window_bounds = array<i64: 1, 3, 8>}, {transform_indices = @transform_6, window_bounds = array<i64: 1, 12, 8>}]} {
    %0 = arith.index_cast %arg0 : i32 to index
    %1 = memref.load %arg2[%0] : memref<2xi32, #tpu.memory_space<smem>>
    %c8_i32 = arith.constant 8 : i32
    %2 = arith.muli %arg1, %c8_i32 : i32
    %3 = arith.cmpi sge, %2, %1 : i32
    %4 = arith.extui %3 : i1 to i32
    %c0_i32 = arith.constant 0 : i32
    %5 = arith.cmpi ne, %4, %c0_i32 : i32
    scf.if %5 {
      %cst_1 = arith.constant 0.000000e+00 : f32
      %9 = vector.broadcast %cst_1 : f32 to vector<12x8xf32>
      %c0 = arith.constant 0 : index
      %c0_2 = arith.constant 0 : index
      %c0_3 = arith.constant 0 : index
      %10 = vector.load %arg9[%c0, %c0_2, %c0_3] : memref<1x12x8xf32, #tpu.memory_space<vmem>>, vector<1x12x8xf32>
      %11 = vector.shape_cast %10 : vector<1x12x8xf32> to vector<12x8xf32>
      %12 = vector.shape_cast %9 : vector<12x8xf32> to vector<1x12x8xf32>
      tpu.vector_store %arg9[%c0, %c0_2, %c0_3], %12 {strides = array<i32>} : memref<1x12x8xf32, #tpu.memory_space<vmem>>, vector<1x12x8xf32>,
    } else {
    }
    %6 = arith.cmpi slt, %2, %1 : i32
    %7 = arith.extui %6 : i1 to i32
    %cst = arith.constant 1.000000e+30 : f32
    %c0_i32_0 = arith.constant 0 : i32
    %8 = arith.cmpi ne, %7, %c0_i32_0 : i32
    scf.if %8 {
      %c0 = arith.constant 0 : index
      %c0_1 = arith.constant 0 : index
      %c0_2 = arith.constant 0 : index
      %9 = vector.load %arg4[%c0, %c0_1, %c0_2] : memref<1x3x3xf32, #tpu.memory_space<vmem>>, vector<1x3x3xf32>
      %10 = vector.shape_cast %9 : vector<1x3x3xf32> to vector<3x3xf32>
      %c0_3 = arith.constant 0 : index
      %c0_4 = arith.constant 0 : index
      %c0_5 = arith.constant 0 : index
      %11 = vector.load %arg5[%c0_3, %c0_4, %c0_5] : memref<1x3x8xf32, #tpu.memory_space<vmem>>, vector<1x3x8xf32>
      %12 = vector.shape_cast %11 : vector<1x3x8xf32> to vector<3x8xf32>
      %c0_6 = arith.constant 0 : index
      %c0_7 = arith.constant 0 : index
      %c0_8 = arith.constant 0 : index
      %13 = vector.load %arg6[%c0_6, %c0_7, %c0_8] : memref<1x3x8xf32, #tpu.memory_space<vmem>>, vector<1x3x8xf32>
      %14 = vector.shape_cast %13 : vector<1x3x8xf32> to vector<3x8xf32>
      %c0_9 = arith.constant 0 : index
      %c0_10 = arith.constant 0 : index
      %c0_11 = arith.constant 0 : index
      %15 = vector.load %arg7[%c0_9, %c0_10, %c0_11] : memref<1x3x8xf32, #tpu.memory_space<vmem>>, vector<1x3x8xf32>
      %16 = vector.shape_cast %15 : vector<1x3x8xf32> to vector<3x8xf32>
      %c0_12 = arith.constant 0 : index
      %c0_13 = arith.constant 0 : index
      %c0_14 = arith.constant 0 : index
      %17 = vector.load %arg8[%c0_12, %c0_13, %c0_14] : memref<1x3x8xf32, #tpu.memory_space<vmem>>, vector<1x3x8xf32>
      %18 = vector.shape_cast %17 : vector<1x3x8xf32> to vector<3x8xf32>
      %c0_15 = arith.constant 0 : index
      %c0_16 = arith.constant 0 : index
      %19 = vector.load %arg3[%c0_15, %c0_16] : memref<27x3xf32, #tpu.memory_space<vmem>>, vector<27x3xf32>
      %cst_17 = arith.constant dense<0.000000e+00> : vector<3x8xf32>
      %20 = tpu.matmul %10, %12, %cst_17 {dimension_numbers = #tpu.dot_dimension_numbers<[0], [0], [1], [1], [0, 1, 1, 1], [], []>} : vector<3x3xf32>, vector<3x8xf32>, vector<3x8xf32> -> vector<3x8xf32>
      %cst_18 = arith.constant dense<0.000000e+00> : vector<3x8xf32>
      %21 = tpu.matmul %10, %16, %cst_18 {dimension_numbers = #tpu.dot_dimension_numbers<[0], [0], [1], [1], [0, 1, 1, 1], [], []>} : vector<3x3xf32>, vector<3x8xf32>, vector<3x8xf32> -> vector<3x8xf32>
      %cst_19 = arith.constant dense<0.000000e+00> : vector<27x3xf32>
      %22 = tpu.matmul %19, %10, %cst_19 {dimension_numbers = #tpu.dot_dimension_numbers<[1], [0], [0], [1], [0, 0, 1, 1], [], []>} : vector<27x3xf32>, vector<3x3xf32>, vector<27x3xf32> -> vector<27x3xf32>
      %cst_20 = arith.constant dense<0.000000e+00> : vector<8x8xf32>
      %23 = tpu.matmul %21, %20, %cst_20 {dimension_numbers = #tpu.dot_dimension_numbers<[0], [0], [1], [1], [0, 1, 1, 1], [], []>} : vector<3x8xf32>, vector<3x8xf32>, vector<8x8xf32> -> vector<8x8xf32>
      %cst_21 = arith.constant dense<0.000000e+00> : vector<8x27xf32>
      %24 = tpu.matmul %21, %22, %cst_21 {dimension_numbers = #tpu.dot_dimension_numbers<[0], [1], [1], [0], [0, 1, 1, 0], [], []>} : vector<3x8xf32>, vector<27x3xf32>, vector<8x27xf32> -> vector<8x27xf32>
      %cst_22 = arith.constant dense<0.000000e+00> : vector<27x8xf32>
      %25 = tpu.matmul %22, %20, %cst_22 {dimension_numbers = #tpu.dot_dimension_numbers<[1], [0], [0], [1], [0, 0, 1, 1], [], []>} : vector<27x3xf32>, vector<3x8xf32>, vector<27x8xf32> -> vector<27x8xf32>
      %26 = arith.mulf %20, %20 : vector<3x8xf32>
      %cst_23 = arith.constant dense<0.000000e+00> : vector<8xf32>
      %27 = vector.multi_reduction <add>, %26, %cst_23 [0] : vector<3x8xf32> to vector<8xf32>
      %28 = vector.shape_cast %27 : vector<8xf32> to vector<1x8xf32>
      %29 = arith.mulf %22, %22 : vector<27x3xf32>
      %cst_24 = arith.constant dense<0.000000e+00> : vector<27xf32>
      %30 = vector.multi_reduction <add>, %29, %cst_24 [1] : vector<27x3xf32> to vector<27xf32>
      %31 = vector.shape_cast %30 : vector<27xf32> to vector<27x1xf32>
      %cst_25 = arith.constant 2.000000e+00 : f32
      %32 = vector.broadcast %cst_25 : f32 to vector<8x8xf32>
      %33 = arith.mulf %32, %23 : vector<8x8xf32>
      %34 = vector.broadcast %28 : vector<1x8xf32> to vector<8x8xf32>
      %35 = arith.subf %34, %33 : vector<8x8xf32>
      %cst_26 = arith.constant 2.000000e+00 : f32
      %36 = vector.broadcast %cst_26 : f32 to vector<27x8xf32>
      %37 = arith.mulf %36, %25 : vector<27x8xf32>
      %38 = vector.broadcast %31 : vector<27x1xf32> to vector<27x8xf32>
      %39 = arith.addf %37, %38 : vector<27x8xf32>
      %cst_27 = arith.constant -2.000000e+00 : f32
      %40 = vector.broadcast %cst_27 : f32 to vector<8x27xf32>
      %41 = arith.mulf %40, %24 : vector<8x27xf32>
      %42 = vector.shape_cast %35 : vector<8x8xf32> to vector<8x1x8xf32>
      %43 = vector.shape_cast %39 : vector<27x8xf32> to vector<1x27x8xf32>
      %44 = vector.broadcast %42 : vector<8x1x8xf32> to vector<8x27x8xf32>
      %45 = vector.broadcast %43 : vector<1x27x8xf32> to vector<8x27x8xf32>
      %46 = arith.addf %44, %45 : vector<8x27x8xf32>
      %47 = vector.shape_cast %41 : vector<8x27xf32> to vector<8x27x1xf32>
      %48 = vector.broadcast %47 : vector<8x27x1xf32> to vector<8x27x8xf32>
      %49 = arith.addf %46, %48 : vector<8x27x8xf32>
      %50 = tpu.iota {dimensions = array<i32: 1>} : vector<8x27x8xi32>
      %51 = tpu.iota {dimensions = array<i32: 2>} : vector<8x27x8xi32>
      %c8_i32_28 = arith.constant 8 : i32
      %52 = vector.broadcast %c8_i32_28 : i32 to vector<8x27x8xi32>
      %53 = arith.muli %50, %52 : vector<8x27x8xi32>
      %54 = arith.addi %53, %51 : vector<8x27x8xi32>
      %55 = tpu.iota {dimensions = array<i32: 0>} : vector<8x8xi32>
      %56 = vector.broadcast %2 : i32 to vector<8x8xi32>
      %57 = arith.addi %55, %56 : vector<8x8xi32>
      %58 = tpu.iota {dimensions = array<i32: 1>} : vector<8x8xi32>
      %59 = arith.cmpi eq, %57, %58 : vector<8x8xi32>
      %60 = vector.shape_cast %59 : vector<8x8xi1> to vector<8x1x8xi1>
      %c13_i32 = arith.constant 13 : i32
      %61 = vector.broadcast %c13_i32 : i32 to vector<8x27x8xi32>
      %62 = arith.cmpi eq, %50, %61 : vector<8x27x8xi32>
      %63 = vector.broadcast %60 : vector<8x1x8xi1> to vector<8x27x8xi1>
      %64 = arith.andi %63, %62 : vector<8x27x8xi1>
      %65 = vector.broadcast %1 : i32 to vector<8x8xi32>
      %66 = arith.cmpi sge, %58, %65 : vector<8x8xi32>
      %67 = vector.shape_cast %66 : vector<8x8xi1> to vector<8x1x8xi1>
      %68 = vector.broadcast %67 : vector<8x1x8xi1> to vector<8x27x8xi1>
      %69 = arith.ori %64, %68 : vector<8x27x8xi1>
      %70 = vector.broadcast %cst : f32 to vector<8x27x8xf32>
      %71 = arith.select %69, %70, %49 : vector<8x27x8xi1>, vector<8x27x8xf32>
      %72 = arith.subf %14, %12 : vector<3x8xf32>
      %73 = arith.subf %18, %16 : vector<3x8xf32>
      %cst_29 = arith.constant dense<0x7F800000> : vector<8x27xf32>
      %74 = vector.multi_reduction <minimumf>, %71, %cst_29 [2] : vector<8x27x8xf32> to vector<8x27xf32>
      %75 = vector.shape_cast %74 : vector<8x27xf32> to vector<8x27x1xf32>
      %cst_30 = arith.constant dense<0x7F800000> : vector<8x1xf32>
      %76 = vector.multi_reduction <minimumf>, %75, %cst_30 [1] : vector<8x27x1xf32> to vector<8x1xf32>
      %77 = vector.shape_cast %76 : vector<8x1xf32> to vector<8x1x1xf32>
      %78 = vector.broadcast %77 : vector<8x1x1xf32> to vector<8x27x8xf32>
      %79 = arith.cmpf oeq, %71, %78 : vector<8x27x8xf32>
      %c216_i32 = arith.constant 216 : i32
      %80 = vector.broadcast %c216_i32 : i32 to vector<8x27x8xi32>
      %81 = arith.select %79, %54, %80 : vector<8x27x8xi1>, vector<8x27x8xi32>
      %cst_31 = arith.constant dense<2147483647> : vector<8x27xi32>
      %82 = vector.multi_reduction <minsi>, %81, %cst_31 [2] : vector<8x27x8xi32> to vector<8x27xi32>
      %83 = vector.shape_cast %82 : vector<8x27xi32> to vector<8x27x1xi32>
      %cst_32 = arith.constant dense<2147483647> : vector<8x1xi32>
      %84 = vector.multi_reduction <minsi>, %83, %cst_32 [1] : vector<8x27x1xi32> to vector<8x1xi32>
      %85 = vector.shape_cast %84 : vector<8x1xi32> to vector<8x1x1xi32>
      %86 = vector.broadcast %85 : vector<8x1x1xi32> to vector<8x27x8xi32>
      %87 = arith.cmpi eq, %54, %86 : vector<8x27x8xi32>
      %88 = arith.extui %87 : vector<8x27x8xi1> to vector<8x27x8xi32>
      %89 = arith.sitofp %88 : vector<8x27x8xi32> to vector<8x27x8xf32>
      %cst_33 = arith.constant dense<0.000000e+00> : vector<8x8xf32>
      %90 = vector.multi_reduction <add>, %89, %cst_33 [1] : vector<8x27x8xf32> to vector<8x8xf32>
      %cst_34 = arith.constant dense<0.000000e+00> : vector<3x8xf32>
      %91 = tpu.matmul %72, %90, %cst_34 {dimension_numbers = #tpu.dot_dimension_numbers<[1], [1], [0], [0], [0, 0, 1, 0], [], []>} : vector<3x8xf32>, vector<8x8xf32>, vector<3x8xf32> -> vector<3x8xf32>
      %92 = arith.subf %91, %73 : vector<3x8xf32>
      %93 = math.absf %92 : vector<3x8xf32>
      %94 = vector.broadcast %cst : f32 to vector<8x27x8xf32>
      %95 = arith.select %87, %94, %71 : vector<8x27x8xi1>, vector<8x27x8xf32>
      %cst_35 = arith.constant dense<0x7F800000> : vector<8x27xf32>
      %96 = vector.multi_reduction <minimumf>, %95, %cst_35 [2] : vector<8x27x8xf32> to vector<8x27xf32>
      %97 = vector.shape_cast %96 : vector<8x27xf32> to vector<8x27x1xf32>
      %cst_36 = arith.constant dense<0x7F800000> : vector<8x1xf32>
      %98 = vector.multi_reduction <minimumf>, %97, %cst_36 [1] : vector<8x27x1xf32> to vector<8x1xf32>
      %99 = vector.shape_cast %98 : vector<8x1xf32> to vector<8x1x1xf32>
      %100 = vector.broadcast %99 : vector<8x1x1xf32> to vector<8x27x8xf32>
      %101 = arith.cmpf oeq, %95, %100 : vector<8x27x8xf32>
      %c216_i32_37 = arith.constant 216 : i32
      %102 = vector.broadcast %c216_i32_37 : i32 to vector<8x27x8xi32>
      %103 = arith.select %101, %54, %102 : vector<8x27x8xi1>, vector<8x27x8xi32>
      %cst_38 = arith.constant dense<2147483647> : vector<8x27xi32>
      %104 = vector.multi_reduction <minsi>, %103, %cst_38 [2] : vector<8x27x8xi32> to vector<8x27xi32>
      %105 = vector.shape_cast %104 : vector<8x27xi32> to vector<8x27x1xi32>
      %cst_39 = arith.constant dense<2147483647> : vector<8x1xi32>
      %106 = vector.multi_reduction <minsi>, %105, %cst_39 [1] : vector<8x27x1xi32> to vector<8x1xi32>
      %107 = vector.shape_cast %106 : vector<8x1xi32> to vector<8x1x1xi32>
      %108 = vector.broadcast %107 : vector<8x1x1xi32> to vector<8x27x8xi32>
      %109 = arith.cmpi eq, %54, %108 : vector<8x27x8xi32>
      %110 = arith.extui %109 : vector<8x27x8xi1> to vector<8x27x8xi32>
      %111 = arith.sitofp %110 : vector<8x27x8xi32> to vector<8x27x8xf32>
      %cst_40 = arith.constant dense<0.000000e+00> : vector<8x8xf32>
      %112 = vector.multi_reduction <add>, %111, %cst_40 [1] : vector<8x27x8xf32> to vector<8x8xf32>
      %cst_41 = arith.constant dense<0.000000e+00> : vector<3x8xf32>
      %113 = tpu.matmul %72, %112, %cst_41 {dimension_numbers = #tpu.dot_dimension_numbers<[1], [1], [0], [0], [0, 0, 1, 0], [], []>} : vector<3x8xf32>, vector<8x8xf32>, vector<3x8xf32> -> vector<3x8xf32>
      %114 = arith.subf %113, %73 : vector<3x8xf32>
      %115 = math.absf %114 : vector<3x8xf32>
      %116 = vector.broadcast %cst : f32 to vector<8x27x8xf32>
      %117 = arith.select %109, %116, %95 : vector<8x27x8xi1>, vector<8x27x8xf32>
      %cst_42 = arith.constant dense<0x7F800000> : vector<8x27xf32>
      %118 = vector.multi_reduction <minimumf>, %117, %cst_42 [2] : vector<8x27x8xf32> to vector<8x27xf32>
      %119 = vector.shape_cast %118 : vector<8x27xf32> to vector<8x27x1xf32>
      %cst_43 = arith.constant dense<0x7F800000> : vector<8x1xf32>
      %120 = vector.multi_reduction <minimumf>, %119, %cst_43 [1] : vector<8x27x1xf32> to vector<8x1xf32>
      %121 = vector.shape_cast %120 : vector<8x1xf32> to vector<8x1x1xf32>
      %122 = vector.broadcast %121 : vector<8x1x1xf32> to vector<8x27x8xf32>
      %123 = arith.cmpf oeq, %117, %122 : vector<8x27x8xf32>
      %c216_i32_44 = arith.constant 216 : i32
      %124 = vector.broadcast %c216_i32_44 : i32 to vector<8x27x8xi32>
      %125 = arith.select %123, %54, %124 : vector<8x27x8xi1>, vector<8x27x8xi32>
      %cst_45 = arith.constant dense<2147483647> : vector<8x27xi32>
      %126 = vector.multi_reduction <minsi>, %125, %cst_45 [2] : vector<8x27x8xi32> to vector<8x27xi32>
      %127 = vector.shape_cast %126 : vector<8x27xi32> to vector<8x27x1xi32>
      %cst_46 = arith.constant dense<2147483647> : vector<8x1xi32>
      %128 = vector.multi_reduction <minsi>, %127, %cst_46 [1] : vector<8x27x1xi32> to vector<8x1xi32>
      %129 = vector.shape_cast %128 : vector<8x1xi32> to vector<8x1x1xi32>
      %130 = vector.broadcast %129 : vector<8x1x1xi32> to vector<8x27x8xi32>
      %131 = arith.cmpi eq, %54, %130 : vector<8x27x8xi32>
      %132 = arith.extui %131 : vector<8x27x8xi1> to vector<8x27x8xi32>
      %133 = arith.sitofp %132 : vector<8x27x8xi32> to vector<8x27x8xf32>
      %cst_47 = arith.constant dense<0.000000e+00> : vector<8x8xf32>
      %134 = vector.multi_reduction <add>, %133, %cst_47 [1] : vector<8x27x8xf32> to vector<8x8xf32>
      %cst_48 = arith.constant dense<0.000000e+00> : vector<3x8xf32>
      %135 = tpu.matmul %72, %134, %cst_48 {dimension_numbers = #tpu.dot_dimension_numbers<[1], [1], [0], [0], [0, 0, 1, 0], [], []>} : vector<3x8xf32>, vector<8x8xf32>, vector<3x8xf32> -> vector<3x8xf32>
      %136 = arith.subf %135, %73 : vector<3x8xf32>
      %137 = math.absf %136 : vector<3x8xf32>
      %138 = vector.broadcast %cst : f32 to vector<8x27x8xf32>
      %139 = arith.select %131, %138, %117 : vector<8x27x8xi1>, vector<8x27x8xf32>
      %cst_49 = arith.constant dense<0x7F800000> : vector<8x27xf32>
      %140 = vector.multi_reduction <minimumf>, %139, %cst_49 [2] : vector<8x27x8xf32> to vector<8x27xf32>
      %141 = vector.shape_cast %140 : vector<8x27xf32> to vector<8x27x1xf32>
      %cst_50 = arith.constant dense<0x7F800000> : vector<8x1xf32>
      %142 = vector.multi_reduction <minimumf>, %141, %cst_50 [1] : vector<8x27x1xf32> to vector<8x1xf32>
      %143 = vector.shape_cast %142 : vector<8x1xf32> to vector<8x1x1xf32>
      %144 = vector.broadcast %143 : vector<8x1x1xf32> to vector<8x27x8xf32>
      %145 = arith.cmpf oeq, %139, %144 : vector<8x27x8xf32>
      %c216_i32_51 = arith.constant 216 : i32
      %146 = vector.broadcast %c216_i32_51 : i32 to vector<8x27x8xi32>
      %147 = arith.select %145, %54, %146 : vector<8x27x8xi1>, vector<8x27x8xi32>
      %cst_52 = arith.constant dense<2147483647> : vector<8x27xi32>
      %148 = vector.multi_reduction <minsi>, %147, %cst_52 [2] : vector<8x27x8xi32> to vector<8x27xi32>
      %149 = vector.shape_cast %148 : vector<8x27xi32> to vector<8x27x1xi32>
      %cst_53 = arith.constant dense<2147483647> : vector<8x1xi32>
      %150 = vector.multi_reduction <minsi>, %149, %cst_53 [1] : vector<8x27x1xi32> to vector<8x1xi32>
      %151 = vector.shape_cast %150 : vector<8x1xi32> to vector<8x1x1xi32>
      %152 = vector.broadcast %151 : vector<8x1x1xi32> to vector<8x27x8xi32>
      %153 = arith.cmpi eq, %54, %152 : vector<8x27x8xi32>
      %154 = arith.extui %153 : vector<8x27x8xi1> to vector<8x27x8xi32>
      %155 = arith.sitofp %154 : vector<8x27x8xi32> to vector<8x27x8xf32>
      %cst_54 = arith.constant dense<0.000000e+00> : vector<8x8xf32>
      %156 = vector.multi_reduction <add>, %155, %cst_54 [1] : vector<8x27x8xf32> to vector<8x8xf32>
      %cst_55 = arith.constant dense<0.000000e+00> : vector<3x8xf32>
      %157 = tpu.matmul %72, %156, %cst_55 {dimension_numbers = #tpu.dot_dimension_numbers<[1], [1], [0], [0], [0, 0, 1, 0], [], []>} : vector<3x8xf32>, vector<8x8xf32>, vector<3x8xf32> -> vector<3x8xf32>
      %158 = arith.subf %157, %73 : vector<3x8xf32>
      %159 = math.absf %158 : vector<3x8xf32>
      %160 = tpu.concatenate %93, %115, %137, %159 in 0 : vector<3x8xf32>, vector<3x8xf32>, vector<3x8xf32>, vector<3x8xf32> -> vector<12x8xf32>
      %161 = tpu.iota {dimensions = array<i32: 1>} : vector<1x8xi32>
      %162 = vector.broadcast %2 : i32 to vector<1x8xi32>
      %163 = arith.addi %161, %162 : vector<1x8xi32>
      %164 = vector.broadcast %1 : i32 to vector<1x8xi32>
      %165 = arith.cmpi slt, %163, %164 : vector<1x8xi32>
      %cst_56 = arith.constant 0.000000e+00 : f32
      %166 = vector.shape_cast %165 : vector<1x8xi1> to vector<1x8xi1>
      %167 = vector.broadcast %166 : vector<1x8xi1> to vector<12x8xi1>
      %168 = vector.broadcast %cst_56 : f32 to vector<12x8xf32>
      %169 = arith.select %167, %160, %168 : vector<12x8xi1>, vector<12x8xf32>
      %c0_57 = arith.constant 0 : index
      %c0_58 = arith.constant 0 : index
      %c0_59 = arith.constant 0 : index
      %170 = vector.load %arg9[%c0_57, %c0_58, %c0_59] : memref<1x12x8xf32, #tpu.memory_space<vmem>>, vector<1x12x8xf32>
      %171 = vector.shape_cast %170 : vector<1x12x8xf32> to vector<12x8xf32>
      %172 = vector.shape_cast %169 : vector<12x8xf32> to vector<1x12x8xf32>
      tpu.vector_store %arg9[%c0_57, %c0_58, %c0_59], %172 {strides = array<i32>} : memref<1x12x8xf32, #tpu.memory_space<vmem>>, vector<1x12x8xf32>,
    } else {
    }
    return
  }
  func.func @transform_0(%arg0: i32, %arg1: i32, %arg2: memref<2xi32, #tpu.memory_space<smem>>) -> (i32, i32) {
    %c0_i32 = arith.constant 0 : i32
    %c0_i32_0 = arith.constant 0 : i32
    %c0_i32_1 = arith.constant 0 : i32
    return %c0_i32, %c0_i32_0 : i32, i32
  }
  func.func @transform_1(%arg0: i32, %arg1: i32, %arg2: memref<2xi32, #tpu.memory_space<smem>>) -> (i32, i32, i32) {
    %c0_i32 = arith.constant 0 : i32
    %c0_i32_0 = arith.constant 0 : i32
    %c0_i32_1 = arith.constant 0 : i32
    return %arg0, %c0_i32, %c0_i32_0 : i32, i32, i32
  }
  func.func @transform_2(%arg0: i32, %arg1: i32, %arg2: memref<2xi32, #tpu.memory_space<smem>>) -> (i32, i32, i32) {
    %c0_i32 = arith.constant 0 : i32
    %c0_i32_0 = arith.constant 0 : i32
    %c0_i32_1 = arith.constant 0 : i32
    return %arg0, %c0_i32, %c0_i32_0 : i32, i32, i32
  }
  func.func @transform_3(%arg0: i32, %arg1: i32, %arg2: memref<2xi32, #tpu.memory_space<smem>>) -> (i32, i32, i32) {
    %c0_i32 = arith.constant 0 : i32
    %c0_i32_0 = arith.constant 0 : i32
    %c0_i32_1 = arith.constant 0 : i32
    return %arg0, %c0_i32, %c0_i32_0 : i32, i32, i32
  }
  func.func @transform_4(%arg0: i32, %arg1: i32, %arg2: memref<2xi32, #tpu.memory_space<smem>>) -> (i32, i32, i32) {
    %c0_i32 = arith.constant 0 : i32
    %c0_i32_0 = arith.constant 0 : i32
    return %arg0, %c0_i32, %arg1 : i32, i32, i32
  }
  func.func @transform_5(%arg0: i32, %arg1: i32, %arg2: memref<2xi32, #tpu.memory_space<smem>>) -> (i32, i32, i32) {
    %c0_i32 = arith.constant 0 : i32
    %c0_i32_0 = arith.constant 0 : i32
    return %arg0, %c0_i32, %arg1 : i32, i32, i32
  }
  func.func @transform_6(%arg0: i32, %arg1: i32, %arg2: memref<2xi32, #tpu.memory_space<smem>>) -> (i32, i32, i32) {
    %c0_i32 = arith.constant 0 : i32
    %c0_i32_0 = arith.constant 0 : i32
    return %arg0, %c0_i32, %arg1 : i32, i32, i32
  }
}

</mosaic_0001>

<llo_original>
// kernel: tpu_custom_call.1
$region0: #{tpu_custom_call.1}
  #allocation0 [shape = 'u32[]', space=smem, size = 0x4, offset = 0x4, fixed_abs, tag = 'smem constant byte address 0x4 - core index']
  #allocation1 [shape = 'u32[144,128]{1,0:T(1,128)}', space=vmem, size = 0x12000, scoped, tag = 'internal scratch']
  #allocation2 [shape = 's32[1]{0}', space=sflag, size = 0x4, scoped, tag = 'scoped memory for tpu_custom_call.1']
  #allocation3 [shape = 'u8[512]{0}', space=smem, size = 0x200, scoped, tag = 'prefetched SMEM operand 0']
  %s0 = inlined_call_operand.vmem [shape: s32[2], index: 0, kind: input, shape index: {}]
  %s1 = inlined_call_operand.vmem [shape: f32[27,3], index: 1, kind: input, shape index: {}]
  %s2 = inlined_call_operand.vmem [shape: f32[2,3,3], index: 2, kind: input, shape index: {}]
  %s3 = inlined_call_operand.vmem [shape: f32[2,3,8], index: 3, kind: input, shape index: {}]
  %s4 = inlined_call_operand.vmem [shape: f32[2,3,8], index: 4, kind: input, shape index: {}]
  %s5 = inlined_call_operand.vmem [shape: f32[2,3,8], index: 5, kind: input, shape index: {}]
  %s6 = inlined_call_operand.vmem [shape: f32[2,3,8], index: 6, kind: input, shape index: {}]
  %s7 = inlined_call_operand.vmem [shape: f32[2,12,8], index: 7, kind: output, shape index: {}]
  %s8 = sld [smem:[#allocation0]]
  $region65: #{tpu_custom_call.1} parent=0
    _
  %s10 = ssub.s32 1, %s8
  %s11 = scalar_select 0, %s10, %s8
  %s12 = sshll.u32 %s0, 4
  %s13 = int_to_ptr.vmem [resolvable:$true] %s12
  %15 = dma.vmem_to_smem %s13, 16, [#allocation3], [#allocation2]
  %16 = dma.done [#allocation2], 16
  %17 = sfence
  loop: start=0, step=1, limit=4
  $region2: #{tpu_custom_call.1} parent=0 // loop_pre_header
    _
  $region3: #{tpu_custom_call.1} parent=0 // loop_header
    %s19 = sphi 0, %s23
    %p20 = scmp.ge.s32.totalorder %s19, 4
    %s26 = sphi 0, %s38
    %s27 = sphi 0, %s34
    %s28 = sphi 0, %s26
    %s29 = sphi 0, %s27
    %s30 = sphi 0, %s28
    %s31 = sphi 0, %s29
    %s39 = sphi 0, %s39
    %s41 = sphi 0, %s39
    %s42 = sphi 0, %s41
    %s56 = sphi 0, %s42
    %s62 = sphi 0, %s64
    %s65 = sphi 0, %s62
    %s66 = sphi 0, %s65
    %s82 = sphi 0, %s66
    %s88 = sphi 0, %s90
    %s91 = sphi 0, %s88
    %s92 = sphi 0, %s91
    %s108 = sphi 0, %s92
    %s114 = sphi 0, %s116
    %s117 = sphi 0, %s114
    %s118 = sphi 0, %s117
    %s134 = sphi 0, %s118
    %s142 = sphi 0, %s144
    %s145 = sphi 0, %s142
    %s146 = sphi 0, %s145
    %s162 = sphi 0, %s146
    %s170 = sphi 0, %s172
    %s173 = sphi 0, %s170
    %s174 = sphi 0, %s173
    %s190 = sphi 0, %s174
    %s198 = sphi 0, %s200
    %s201 = sphi 0, %s198
    %s202 = sphi 0, %s201
    %s218 = sphi 0, %s202
  $region4: #{tpu_custom_call.1} parent=0 // loop_header_branch
    %22 = sbr.rel (%p20) target = $region8
  $region5: #{tpu_custom_call.1} parent=0 // loop_body
    %s24 = ssub.s32 %s19, 1
    %s25 = ssub.s32 %s19, 2
    %s32 = sadd.s32 1, %s27
    %p33 = scmp.ge.s32.totalorder %s32, 1
    %s34 = scalar_select %p33, 0, %s32
    %s35 = sadd.s32 1, %s26
    %s36 = scalar_select %p33, %s35, %s26
    %p37 = scmp.ge.s32.totalorder %s36, 2
    %s38 = scalar_select %p37, 0, %s36
    %s40 = sadd.s32 %s39, 1
    %p43 = scmp.eq.s32.totalorder %s19, 1
    %p44 = scmp.ne.s32.totalorder %s39, %s41
    %p45 = scmp.eq.s32.totalorder %s19, 0
    %p46 = por %p44, %p45
    %p47 = scmp.ne.s32.totalorder %s39, %s41
    %p48 = scmp.eq.s32.totalorder %s24, 1
    %p49 = por %p47, %p48
    %p50 = scmp.ne.s32.totalorder %s41, %s42
    %p51 = scmp.eq.s32.totalorder %s24, 0
    %p52 = por %p50, %p51
    %p53 = scmp.ne.s32.totalorder %s41, %s42
    %p54 = scmp.eq.s32.totalorder %s25, 1
    %p55 = por %p53, %p54
    %p57 = scmp.ne.s32.totalorder %s42, %s56
    %p58 = scmp.eq.s32.totalorder %s25, 0
    %p59 = por %p57, %p58
    %s60 = ssub.s32 %s26, %s38
    %p61 = scmp.eq.s32.totalorder %s60, 0
    %s63 = sadd.s32 %s62, 1
    %s64 = scalar_select %p61, %s62, %s63
    %p67 = pneg %p61
    %p68 = scmp.eq.s32.totalorder %s19, 1
    %p69 = por %p67, %p68
    %p70 = scmp.ne.s32.totalorder %s62, %s65
    %p71 = scmp.eq.s32.totalorder %s19, 0
    %p72 = por %p70, %p71
    %p73 = scmp.ne.s32.totalorder %s62, %s65
    %p74 = scmp.eq.s32.totalorder %s24, 1
    %p75 = por %p73, %p74
    %p76 = scmp.ne.s32.totalorder %s65, %s66
    %p77 = scmp.eq.s32.totalorder %s24, 0
    %p78 = por %p76, %p77
    %p79 = scmp.ne.s32.totalorder %s65, %s66
    %p80 = scmp.eq.s32.totalorder %s25, 1
    %p81 = por %p79, %p80
    %p83 = scmp.ne.s32.totalorder %s66, %s82
    %p84 = scmp.eq.s32.totalorder %s25, 0
    %p85 = por %p83, %p84
    %s86 = ssub.s32 %s26, %s38
    %p87 = scmp.eq.s32.totalorder %s86, 0
    %s89 = sadd.s32 %s88, 1
    %s90 = scalar_select %p87, %s88, %s89
    %p93 = pneg %p87
    %p94 = scmp.eq.s32.totalorder %s19, 1
    %p95 = por %p93, %p94
    %p96 = scmp.ne.s32.totalorder %s88, %s91
    %p97 = scmp.eq.s32.totalorder %s19, 0
    %p98 = por %p96, %p97
    %p99 = scmp.ne.s32.totalorder %s88, %s91
    %p100 = scmp.eq.s32.totalorder %s24, 1
    %p101 = por %p99, %p100
    %p102 = scmp.ne.s32.totalorder %s91, %s92
    %p103 = scmp.eq.s32.totalorder %s24, 0
    %p104 = por %p102, %p103
    %p105 = scmp.ne.s32.totalorder %s91, %s92
    %p106 = scmp.eq.s32.totalorder %s25, 1
    %p107 = por %p105, %p106
    %p109 = scmp.ne.s32.totalorder %s92, %s108
    %p110 = scmp.eq.s32.totalorder %s25, 0
    %p111 = por %p109, %p110
    %s112 = ssub.s32 %s26, %s38
    %p113 = scmp.eq.s32.totalorder %s112, 0
    %s115 = sadd.s32 %s114, 1
    %s116 = scalar_select %p113, %s114, %s115
    %p119 = pneg %p113
    %p120 = scmp.eq.s32.totalorder %s19, 1
    %p121 = por %p119, %p120
    %p122 = scmp.ne.s32.totalorder %s114, %s117
    %p123 = scmp.eq.s32.totalorder %s19, 0
    %p124 = por %p122, %p123
    %p125 = scmp.ne.s32.totalorder %s114, %s117
    %p126 = scmp.eq.s32.totalorder %s24, 1
    %p127 = por %p125, %p126
    %p128 = scmp.ne.s32.totalorder %s117, %s118
    %p129 = scmp.eq.s32.totalorder %s24, 0
    %p130 = por %p128, %p129
    %p131 = scmp.ne.s32.totalorder %s117, %s118
    %p132 = scmp.eq.s32.totalorder %s25, 1
    %p133 = por %p131, %p132
    %p135 = scmp.ne.s32.totalorder %s118, %s134
    %p136 = scmp.eq.s32.totalorder %s25, 0
    %p137 = por %p135, %p136
    %s138 = ssub.s32 %s26, %s38
    %s139 = ssub.s32 %s27, %s34
    %s140 = sor.u32 %s138, %s139
    %p141 = scmp.eq.s32.totalorder %s140, 0
    %s143 = sadd.s32 %s142, 1
    %s144 = scalar_select %p141, %s142, %s143
    %p147 = pneg %p141
    %p148 = scmp.eq.s32.totalorder %s19, 1
    %p149 = por %p147, %p148
    %p150 = scmp.ne.s32.totalorder %s142, %s145
    %p151 = scmp.eq.s32.totalorder %s19, 0
    %p152 = por %p150, %p151
    %p153 = scmp.ne.s32.totalorder %s142, %s145
    %p154 = scmp.eq.s32.totalorder %s24, 1
    %p155 = por %p153, %p154
    %p156 = scmp.ne.s32.totalorder %s145, %s146
    %p157 = scmp.eq.s32.totalorder %s24, 0
    %p158 = por %p156, %p157
    %p159 = scmp.ne.s32.totalorder %s145, %s146
    %p160 = scmp.eq.s32.totalorder %s25, 1
    %p161 = por %p159, %p160
    %p163 = scmp.ne.s32.totalorder %s146, %s162
    %p164 = scmp.eq.s32.totalorder %s25, 0
    %p165 = por %p163, %p164
    %s166 = ssub.s32 %s26, %s38
    %s167 = ssub.s32 %s27, %s34
    %s168 = sor.u32 %s166, %s167
    %p169 = scmp.eq.s32.totalorder %s168, 0
    %s171 = sadd.s32 %s170, 1
    %s172 = scalar_select %p169, %s170, %s171
    %p175 = pneg %p169
    %p176 = scmp.eq.s32.totalorder %s19, 1
    %p177 = por %p175, %p176
    %p178 = scmp.ne.s32.totalorder %s170, %s173
    %p179 = scmp.eq.s32.totalorder %s19, 0
    %p180 = por %p178, %p179
    %p181 = scmp.ne.s32.totalorder %s170, %s173
    %p182 = scmp.eq.s32.totalorder %s24, 1
    %p183 = por %p181, %p182
    %p184 = scmp.ne.s32.totalorder %s173, %s174
    %p185 = scmp.eq.s32.totalorder %s24, 0
    %p186 = por %p184, %p185
    %p187 = scmp.ne.s32.totalorder %s173, %s174
    %p188 = scmp.eq.s32.totalorder %s25, 1
    %p189 = por %p187, %p188
    %p191 = scmp.ne.s32.totalorder %s174, %s190
    %p192 = scmp.eq.s32.totalorder %s25, 0
    %p193 = por %p191, %p192
    %s194 = ssub.s32 %s26, %s38
    %s195 = ssub.s32 %s27, %s34
    %s196 = sor.u32 %s194, %s195
    %p197 = scmp.eq.s32.totalorder %s196, 0
    %s199 = sadd.s32 %s198, 1
    %s200 = scalar_select %p197, %s198, %s199
    %p203 = pneg %p197
    %p204 = scmp.eq.s32.totalorder %s19, 1
    %p205 = por %p203, %p204
    %p206 = scmp.ne.s32.totalorder %s198, %s201
    %p207 = scmp.eq.s32.totalorder %s19, 0
    %p208 = por %p206, %p207
    %p209 = scmp.ne.s32.totalorder %s198, %s201
    %p210 = scmp.eq.s32.totalorder %s24, 1
    %p211 = por %p209, %p210
    %p212 = scmp.ne.s32.totalorder %s201, %s202
    %p213 = scmp.eq.s32.totalorder %s24, 0
    %p214 = por %p212, %p213
    %p215 = scmp.ne.s32.totalorder %s201, %s202
    %p216 = scmp.eq.s32.totalorder %s25, 1
    %p217 = por %p215, %p216
    %p219 = scmp.ne.s32.totalorder %s202, %s218
    %p220 = scmp.eq.s32.totalorder %s25, 0
    %p221 = por %p219, %p220
    %p222 = scmp.le.s32.totalorder 1, %s19
    %p223 = scmp.lt.s32.totalorder %s19, 3
    %p224 = pnand %p222, %p223
    %p225 = pneg %p224
    // Predicated region
    $region9: #{tpu_custom_call.1} parent=5 // pred_check
      _
    $region10: #{tpu_custom_call.1} parent=5 // pred_check_branch
      %227 = sbr.rel (%p224) target = $region12
    $region11: #{tpu_custom_call.1} parent=5 // pred_region
      %s228 = ssub.s32 %s19, 1
      // Predicated region
      $region13: #{tpu_custom_call.1} parent=11 // pred_check
        %p229 = pneg %p52
      $region14: #{tpu_custom_call.1} parent=11 // pred_check_branch
        %231 = sbr.rel (%p229) target = $region16
      $region15: #{tpu_custom_call.1} parent=11 // pred_region
        _
      $region16: #{tpu_custom_call.1} parent=11 // pred_fallthru
        _
    $region12: #{tpu_custom_call.1} parent=5 // pred_fallthru
      _
    %p232 = scmp.lt.s32.totalorder %s19, 2
    // Predicated region
    $region17: #{tpu_custom_call.1} parent=5 // pred_check
      %p233 = pneg %p232
    $region18: #{tpu_custom_call.1} parent=5 // pred_check_branch
      %235 = sbr.rel (%p233) target = $region20
    $region19: #{tpu_custom_call.1} parent=5 // pred_region
      // Predicated region
      $region21: #{tpu_custom_call.1} parent=19 // pred_check
        %p236 = pneg %p72
      $region22: #{tpu_custom_call.1} parent=19 // pred_check_branch
        %238 = sbr.rel (%p236) target = $region24
      $region23: #{tpu_custom_call.1} parent=19 // pred_region
        %p239 = scmp.lt.s32.totalorder %s26, 1
        %s240 = scalar_select %p239, %s26, 1
        %s241 = smul.addr %s240, 4
        %s242 = scalar_lea.vmem %s2, %s241
      $region24: #{tpu_custom_call.1} parent=19 // pred_fallthru
        _
      // Predicated region
      $region25: #{tpu_custom_call.1} parent=19 // pred_check
        %p243 = pneg %p98
      $region26: #{tpu_custom_call.1} parent=19 // pred_check_branch
        %245 = sbr.rel (%p243) target = $region28
      $region27: #{tpu_custom_call.1} parent=19 // pred_region
        %p246 = scmp.lt.s32.totalorder %s26, 1
        %s247 = scalar_select %p246, %s26, 1
        %s248 = smul.addr %s247, 4
        %s249 = scalar_lea.vmem %s3, %s248
      $region28: #{tpu_custom_call.1} parent=19 // pred_fallthru
        _
      // Predicated region
      $region29: #{tpu_custom_call.1} parent=19 // pred_check
        %p250 = pneg %p124
      $region30: #{tpu_custom_call.1} parent=19 // pred_check_branch
        %252 = sbr.rel (%p250) target = $region32
      $region31: #{tpu_custom_call.1} parent=19 // pred_region
        %p253 = scmp.lt.s32.totalorder %s26, 1
        %s254 = scalar_select %p253, %s26, 1
        %s255 = smul.addr %s254, 4
        %s256 = scalar_lea.vmem %s4, %s255
      $region32: #{tpu_custom_call.1} parent=19 // pred_fallthru
        _
      // Predicated region
      $region33: #{tpu_custom_call.1} parent=19 // pred_check
        %p257 = pneg %p152
      $region34: #{tpu_custom_call.1} parent=19 // pred_check_branch
        %259 = sbr.rel (%p257) target = $region36
      $region35: #{tpu_custom_call.1} parent=19 // pred_region
        %p260 = scmp.lt.s32.totalorder %s26, 1
        %s261 = scalar_select %p260, %s26, 1
        %p262 = scmp.lt.s32.totalorder %s27, 0
        %s263 = scalar_select %p262, %s27, 0
        %s264 = sadd.s32 %s263, %s261
        %s265 = smul.addr %s264, 4
        %s266 = scalar_lea.vmem %s5, %s265
      $region36: #{tpu_custom_call.1} parent=19 // pred_fallthru
        _
      // Predicated region
      $region37: #{tpu_custom_call.1} parent=19 // pred_check
        %p267 = pneg %p180
      $region38: #{tpu_custom_call.1} parent=19 // pred_check_branch
        %269 = sbr.rel (%p267) target = $region40
      $region39: #{tpu_custom_call.1} parent=19 // pred_region
        %p270 = scmp.lt.s32.totalorder %s26, 1
        %s271 = scalar_select %p270, %s26, 1
        %p272 = scmp.lt.s32.totalorder %s27, 0
        %s273 = scalar_select %p272, %s27, 0
        %s274 = sadd.s32 %s273, %s271
        %s275 = smul.addr %s274, 4
        %s276 = scalar_lea.vmem %s6, %s275
      $region40: #{tpu_custom_call.1} parent=19 // pred_fallthru
        _
    $region20: #{tpu_custom_call.1} parent=5 // pred_fallthru
      _
    %p277 = scmp.le.s32.totalorder 1, %s19
    %p278 = scmp.lt.s32.totalorder %s19, 3
    %p279 = pnand %p277, %p278
    %p280 = pneg %p279
    // Predicated region
    $region41: #{tpu_custom_call.1} parent=5 // pred_check
      _
    $region42: #{tpu_custom_call.1} parent=5 // pred_check_branch
      %282 = sbr.rel (%p279) target = $region44
    $region43: #{tpu_custom_call.1} parent=5 // pred_region
      %s283 = ssub.s32 %s19, 1
      %p284 = pneg %p52
      %p285 = pneg %p49
      %p286 = scmp.lt.s32.totalorder %s28, 1
      %s287 = scalar_select %p286, %s28, 1
      %s288 = smul.addr %s287, 4
      %s289 = scalar_lea.vmem %s2, %s288
      %p290 = pneg %p78
      %p291 = pneg %p75
      %p292 = scmp.lt.s32.totalorder %s28, 1
      %s293 = scalar_select %p292, %s28, 1
      %s294 = smul.addr %s293, 4
      %s295 = scalar_lea.vmem %s3, %s294
      %p296 = pneg %p104
      %p297 = pneg %p101
      %p298 = scmp.lt.s32.totalorder %s28, 1
      %s299 = scalar_select %p298, %s28, 1
      %s300 = smul.addr %s299, 4
      %s301 = scalar_lea.vmem %s4, %s300
      %p302 = pneg %p130
      %p303 = pneg %p127
      %p304 = scmp.lt.s32.totalorder %s28, 1
      %s305 = scalar_select %p304, %s28, 1
      %p306 = scmp.lt.s32.totalorder %s29, 0
      %s307 = scalar_select %p306, %s29, 0
      %s308 = sadd.s32 %s307, %s305
      %s309 = smul.addr %s308, 4
      %s310 = scalar_lea.vmem %s5, %s309
      %p311 = pneg %p158
      %p312 = pneg %p155
      %p313 = scmp.lt.s32.totalorder %s28, 1
      %s314 = scalar_select %p313, %s28, 1
      %p315 = scmp.lt.s32.totalorder %s29, 0
      %s316 = scalar_select %p315, %s29, 0
      %s317 = sadd.s32 %s316, %s314
      %s318 = smul.addr %s317, 4
      %s319 = scalar_lea.vmem %s6, %s318
      %p320 = pneg %p186
      %p321 = pneg %p183
      %p322 = pneg %p214
      %p323 = pneg %p211
      %p324 = scmp.lt.s32.totalorder %s28, 1
      %s325 = scalar_select %p324, %s28, 1
      %p326 = scmp.lt.s32.totalorder %s29, 0
      %s327 = scalar_select %p326, %s29, 0
      %s328 = smul.addr %s325, 2
      %s329 = sadd.s32 %s327, %s328
      %s330 = smul.addr %s329, 8
      %s331 = scalar_lea.vmem %s7, %s330
      %p332 = scmp.lt.s32.totalorder %s28, 1
      %s333 = scalar_select %p332, %s28, 1
      %s334 = smul.addr %s333, 4
      %s335 = scalar_lea.vmem %s2, %s334
      %p336 = scmp.lt.s32.totalorder %s28, 1
      %s337 = scalar_select %p336, %s28, 1
      %s338 = smul.addr %s337, 4
      %s339 = scalar_lea.vmem %s3, %s338
      %p340 = scmp.lt.s32.totalorder %s28, 1
      %s341 = scalar_select %p340, %s28, 1
      %s342 = smul.addr %s341, 4
      %s343 = scalar_lea.vmem %s4, %s342
      %p344 = scmp.lt.s32.totalorder %s28, 1
      %s345 = scalar_select %p344, %s28, 1
      %p346 = scmp.lt.s32.totalorder %s29, 0
      %s347 = scalar_select %p346, %s29, 0
      %s348 = sadd.s32 %s347, %s345
      %s349 = smul.addr %s348, 4
      %s350 = scalar_lea.vmem %s5, %s349
      %p351 = scmp.lt.s32.totalorder %s28, 1
      %s352 = scalar_select %p351, %s28, 1
      %p353 = scmp.lt.s32.totalorder %s29, 0
      %s354 = scalar_select %p353, %s29, 0
      %s355 = sadd.s32 %s354, %s352
      %s356 = smul.addr %s355, 4
      %s357 = scalar_lea.vmem %s6, %s356
      %p358 = scmp.lt.s32.totalorder %s28, 1
      %s359 = scalar_select %p358, %s28, 1
      %p360 = scmp.lt.s32.totalorder %s29, 0
      %s361 = scalar_select %p360, %s29, 0
      %s362 = smul.addr %s359, 2
      %s363 = sadd.s32 %s361, %s362
      %s364 = smul.addr %s363, 8
      %s365 = scalar_lea.vmem %s7, %s364
      %s366 = sld [smem:[#allocation3 + %s28]]
      %s367 = smul.u32 %s29, 8
      %p368 = scmp.ge.s32.totalorder %s367, %s366
      // Predicated region
      $region45: #{tpu_custom_call.1} parent=43 // pred_check
        %p369 = pneg %p368
      $region46: #{tpu_custom_call.1} parent=43 // pred_check_branch
        %371 = sbr.rel (%p369) target = $region48
      $region47: #{tpu_custom_call.1} parent=43 // pred_region
        %vm372 = vcmask 64512
        %373 = vst.msk [vmem:[%s365] sm:$0xff] %vm372, 0.0
        %vm374 = vcmask 60416
        %375 = vst.msk [vmem:[%s365 + $0x8] sm:$0xf] %vm374, 0.0
      $region48: #{tpu_custom_call.1} parent=43 // pred_fallthru
        _
      %p376 = scmp.lt.s32.totalorder %s367, %s366
      // Predicated region
      $region49: #{tpu_custom_call.1} parent=43 // pred_check
        %p377 = pneg %p376
      $region50: #{tpu_custom_call.1} parent=43 // pred_check_branch
        %379 = sbr.rel (%p377) target = $region52
      $region51: #{tpu_custom_call.1} parent=43 // pred_region
        %v380 = vld [vmem:[%s335] sm:$0x7]
        %v381 = vld [vmem:[%s339] sm:$0x7]
        %v382 = vld [vmem:[%s343] sm:$0x7]
        %v383 = vld [vmem:[%s350] sm:$0x7]
        %v384 = vld [vmem:[%s357] sm:$0x7]
        %v385 = vld [vmem:[%s1] sm:$0xff]
        %v386 = vld [vmem:[%s1 + $0x8] sm:$0xff]
        %v387 = vld [vmem:[%s1 + $0x10] sm:$0xff]
        %v388 = vld [vmem:[%s1 + $0x18] sm:$0x7]
        %389 = vxpose.xlu0.b32.start [1/16] %v380, 128
        %390 = vxpose.xlu0.b32.cont [2/16] 0.0, 128
        %391 = vxpose.xlu0.b32.cont [3/16] 0.0, 128
        %392 = vxpose.xlu0.b32.cont [4/16] 0.0, 128
        %393 = vxpose.xlu0.b32.cont [5/16] 0.0, 128
        %394 = vxpose.xlu0.b32.cont [6/16] 0.0, 128
        %395 = vxpose.xlu0.b32.cont [7/16] 0.0, 128
        %396 = vxpose.xlu0.b32.cont [8/16] 0.0, 128
        %397 = vxpose.xlu0.b32.cont [9/16] 0.0, 128
        %398 = vxpose.xlu0.b32.cont [10/16] 0.0, 128
        %399 = vxpose.xlu0.b32.cont [11/16] 0.0, 128
        %400 = vxpose.xlu0.b32.cont [12/16] 0.0, 128
        %401 = vxpose.xlu0.b32.cont [13/16] 0.0, 128
        %402 = vxpose.xlu0.b32.cont [14/16] 0.0, 128
        %403 = vxpose.xlu0.b32.cont [15/16] 0.0, 128
        %404 = vxpose.xlu0.b32.end [16/16] 0.0, 128
        %v405 = vpop.trf.xlu0
        %v406 = vpop.trf.xlu0
        %v407 = vpop.trf.xlu0
        %v408 = vpop.trf.xlu0
        %v409 = vpop.trf.xlu0
        %v410 = vpop.trf.xlu0
        %v411 = vpop.trf.xlu0
        %v412 = vpop.trf.xlu0
        %v413 = vpop.trf.xlu0
        %v414 = vpop.trf.xlu0
        %v415 = vpop.trf.xlu0
        %v416 = vpop.trf.xlu0
        %v417 = vpop.trf.xlu0
        %v418 = vpop.trf.xlu0
        %v419 = vpop.trf.xlu0
        %v420 = vpop.trf.xlu0
        %vm421 = vcmask 23552
        %v423 = vsel %vm421, %v405, 0
        %vm425 = vcmask 1042432
        %v427 = vsel %vm425, %v381, 0
        %429 = vmatprep.subr.mxu0 0.0
        %430 = vmatpush1.msra.mxu0 %v427
        %431 = vmatprep.subr.mxu0 0.0
        %432 = vmatpush1.msra.mxu0 0.0
        %433 = vmatprep.subr.mxu0 0.0
        %434 = vmatpush1.msra.mxu0 0.0
        %435 = vmatprep.subr.mxu0 0.0
        %436 = vmatpush1.msra.mxu0 0.0
        %437 = vmatprep.subr.mxu0 0.0
        %438 = vmatpush1.msra.mxu0 0.0
        %439 = vmatprep.subr.mxu0 0.0
        %440 = vmatpush1.msra.mxu0 0.0
        %441 = vmatprep.subr.mxu0 0.0
        %442 = vmatpush1.msra.mxu0 0.0
        %443 = vmatprep.subr.mxu0 0.0
        %444 = vmatpush1.msra.mxu0 0.0
        %445 = vmatprep.subr.mxu0 0.0
        %446 = vmatpush1.msra.mxu0 0.0
        %447 = vmatprep.subr.mxu0 0.0
        %448 = vmatpush1.msra.mxu0 0.0
        %449 = vmatprep.subr.mxu0 0.0
        %450 = vmatpush1.msra.mxu0 0.0
        %451 = vmatprep.subr.mxu0 0.0
        %452 = vmatpush1.msra.mxu0 0.0
        %453 = vmatprep.subr.mxu0 0.0
        %454 = vmatpush1.msra.mxu0 0.0
        %455 = vmatprep.subr.mxu0 0.0
        %456 = vmatpush1.msra.mxu0 0.0
        %457 = vmatprep.subr.mxu0 0.0
        %458 = vmatpush1.msra.mxu0 0.0
        %459 = vmatprep.subr.mxu0 0.0
        %460 = vmatpush1.msra.mxu0 0.0
        %461 = vmatprep.subr.mxu0 0.0
        %462 = vmatpush1.msra.mxu0 0.0
        %463 = vmatprep.subr.mxu0 0.0
        %464 = vmatpush1.msra.mxu0 0.0
        %465 = vmatprep.subr.mxu0 0.0
        %466 = vmatpush1.msra.mxu0 0.0
        %467 = vmatprep.subr.mxu0 0.0
        %468 = vmatpush1.msra.mxu0 0.0
        %469 = vmatprep.subr.mxu0 0.0
        %470 = vmatpush1.msra.mxu0 0.0
        %471 = vmatprep.subr.mxu0 0.0
        %472 = vmatpush1.msra.mxu0 0.0
        %473 = vmatprep.subr.mxu0 0.0
        %474 = vmatpush1.msra.mxu0 0.0
        %475 = vmatprep.subr.mxu0 0.0
        %476 = vmatpush1.msra.mxu0 0.0
        %477 = vmatprep.subr.mxu0 0.0
        %478 = vmatpush1.msra.mxu0 0.0
        %479 = vmatprep.subr.mxu0 0.0
        %480 = vmatpush1.msra.mxu0 0.0
        %481 = vmatprep.subr.mxu0 0.0
        %482 = vmatpush1.msra.mxu0 0.0
        %483 = vmatprep.subr.mxu0 0.0
        %484 = vmatpush1.msra.mxu0 0.0
        %485 = vmatprep.subr.mxu0 0.0
        %486 = vmatpush1.msra.mxu0 0.0
        %487 = vmatprep.subr.mxu0 0.0
        %488 = vmatpush1.msra.mxu0 0.0
        %489 = vmatprep.subr.mxu0 0.0
        %490 = vmatpush1.msra.mxu0 0.0
        %491 = vmatprep.subr.mxu0 0.0
        %492 = vmatpush1.msra.mxu0 0.0
        %493 = vmatprep.mubr.f32.mxu0 0.0
        %494 = vmatmul.mubr.f32.gmra.mrb[0].mxu0 %v423
        %v495 = vpop.f32.mrb[0].mxu0
        %v496 = vadd.f32 0.0, %v495
        %v497 = vpop.f32.mrb[0].mxu0
        %498 = vdwg.mxu0
        %v500 = vsel %vm425, %v383, 0
        %502 = vmatprep.subr.mxu0 0.0
        %503 = vmatpush1.msra.mxu0 %v500
        %504 = vmatprep.subr.mxu0 0.0
        %505 = vmatpush1.msra.mxu0 0.0
        %506 = vmatprep.subr.mxu0 0.0
        %507 = vmatpush1.msra.mxu0 0.0
        %508 = vmatprep.subr.mxu0 0.0
        %509 = vmatpush1.msra.mxu0 0.0
        %510 = vmatprep.subr.mxu0 0.0
        %511 = vmatpush1.msra.mxu0 0.0
        %512 = vmatprep.subr.mxu0 0.0
        %513 = vmatpush1.msra.mxu0 0.0
        %514 = vmatprep.subr.mxu0 0.0
        %515 = vmatpush1.msra.mxu0 0.0
        %516 = vmatprep.subr.mxu0 0.0
        %517 = vmatpush1.msra.mxu0 0.0
        %518 = vmatprep.subr.mxu0 0.0
        %519 = vmatpush1.msra.mxu0 0.0
        %520 = vmatprep.subr.mxu0 0.0
        %521 = vmatpush1.msra.mxu0 0.0
        %522 = vmatprep.subr.mxu0 0.0
        %523 = vmatpush1.msra.mxu0 0.0
        %524 = vmatprep.subr.mxu0 0.0
        %525 = vmatpush1.msra.mxu0 0.0
        %526 = vmatprep.subr.mxu0 0.0
        %527 = vmatpush1.msra.mxu0 0.0
        %528 = vmatprep.subr.mxu0 0.0
        %529 = vmatpush1.msra.mxu0 0.0
        %530 = vmatprep.subr.mxu0 0.0
        %531 = vmatpush1.msra.mxu0 0.0
        %532 = vmatprep.subr.mxu0 0.0
        %533 = vmatpush1.msra.mxu0 0.0
        %534 = vmatprep.subr.mxu0 0.0
        %535 = vmatpush1.msra.mxu0 0.0
        %536 = vmatprep.subr.mxu0 0.0
        %537 = vmatpush1.msra.mxu0 0.0
        %538 = vmatprep.subr.mxu0 0.0
        %539 = vmatpush1.msra.mxu0 0.0
        %540 = vmatprep.subr.mxu0 0.0
        %541 = vmatpush1.msra.mxu0 0.0
        %542 = vmatprep.subr.mxu0 0.0
        %543 = vmatpush1.msra.mxu0 0.0
        %544 = vmatprep.subr.mxu0 0.0
        %545 = vmatpush1.msra.mxu0 0.0
        %546 = vmatprep.subr.mxu0 0.0
        %547 = vmatpush1.msra.mxu0 0.0
        %548 = vmatprep.subr.mxu0 0.0
        %549 = vmatpush1.msra.mxu0 0.0
        %550 = vmatprep.subr.mxu0 0.0
        %551 = vmatpush1.msra.mxu0 0.0
        %552 = vmatprep.subr.mxu0 0.0
        %553 = vmatpush1.msra.mxu0 0.0
        %554 = vmatprep.subr.mxu0 0.0
        %555 = vmatpush1.msra.mxu0 0.0
        %556 = vmatprep.subr.mxu0 0.0
        %557 = vmatpush1.msra.mxu0 0.0
        %558 = vmatprep.subr.mxu0 0.0
        %559 = vmatpush1.msra.mxu0 0.0
        %560 = vmatprep.subr.mxu0 0.0
        %561 = vmatpush1.msra.mxu0 0.0
        %562 = vmatprep.subr.mxu0 0.0
        %563 = vmatpush1.msra.mxu0 0.0
        %564 = vmatprep.subr.mxu0 0.0
        %565 = vmatpush1.msra.mxu0 0.0
        %566 = vmatprep.mubr.f32.mxu0 0.0
        %567 = vmatmul.mubr.f32.gmra.mrb[0].mxu0 %v423
        %v568 = vpop.f32.mrb[0].mxu0
        %v569 = vadd.f32 0.0, %v568
        %v570 = vpop.f32.mrb[0].mxu0
        %571 = vdwg.mxu0
        %v573 = vsel %vm421, %v385, 0
        %v576 = vsel %vm421, %v386, 0
        %v579 = vsel %vm421, %v387, 0
        %v582 = vsel %vm421, %v388, 0
        %v585 = vsel %vm425, %v380, 0
        %587 = vmatprep.subr.mxu0 0.0
        %588 = vmatpush1.msra.mxu0 %v585
        %589 = vmatprep.subr.mxu0 0.0
        %590 = vmatpush1.msra.mxu0 0.0
        %591 = vmatprep.subr.mxu0 0.0
        %592 = vmatpush1.msra.mxu0 0.0
        %593 = vmatprep.subr.mxu0 0.0
        %594 = vmatpush1.msra.mxu0 0.0
        %595 = vmatprep.subr.mxu0 0.0
        %596 = vmatpush1.msra.mxu0 0.0
        %597 = vmatprep.subr.mxu0 0.0
        %598 = vmatpush1.msra.mxu0 0.0
        %599 = vmatprep.subr.mxu0 0.0
        %600 = vmatpush1.msra.mxu0 0.0
        %601 = vmatprep.subr.mxu0 0.0
        %602 = vmatpush1.msra.mxu0 0.0
        %603 = vmatprep.subr.mxu0 0.0
        %604 = vmatpush1.msra.mxu0 0.0
        %605 = vmatprep.subr.mxu0 0.0
        %606 = vmatpush1.msra.mxu0 0.0
        %607 = vmatprep.subr.mxu0 0.0
        %608 = vmatpush1.msra.mxu0 0.0
        %609 = vmatprep.subr.mxu0 0.0
        %610 = vmatpush1.msra.mxu0 0.0
        %611 = vmatprep.subr.mxu0 0.0
        %612 = vmatpush1.msra.mxu0 0.0
        %613 = vmatprep.subr.mxu0 0.0
        %614 = vmatpush1.msra.mxu0 0.0
        %615 = vmatprep.subr.mxu0 0.0
        %616 = vmatpush1.msra.mxu0 0.0
        %617 = vmatprep.subr.mxu0 0.0
        %618 = vmatpush1.msra.mxu0 0.0
        %619 = vmatprep.subr.mxu0 0.0
        %620 = vmatpush1.msra.mxu0 0.0
        %621 = vmatprep.subr.mxu0 0.0
        %622 = vmatpush1.msra.mxu0 0.0
        %623 = vmatprep.subr.mxu0 0.0
        %624 = vmatpush1.msra.mxu0 0.0
        %625 = vmatprep.subr.mxu0 0.0
        %626 = vmatpush1.msra.mxu0 0.0
        %627 = vmatprep.subr.mxu0 0.0
        %628 = vmatpush1.msra.mxu0 0.0
        %629 = vmatprep.subr.mxu0 0.0
        %630 = vmatpush1.msra.mxu0 0.0
        %631 = vmatprep.subr.mxu0 0.0
        %632 = vmatpush1.msra.mxu0 0.0
        %633 = vmatprep.subr.mxu0 0.0
        %634 = vmatpush1.msra.mxu0 0.0
        %635 = vmatprep.subr.mxu0 0.0
        %636 = vmatpush1.msra.mxu0 0.0
        %637 = vmatprep.subr.mxu0 0.0
        %638 = vmatpush1.msra.mxu0 0.0
        %639 = vmatprep.subr.mxu0 0.0
        %640 = vmatpush1.msra.mxu0 0.0
        %641 = vmatprep.subr.mxu0 0.0
        %642 = vmatpush1.msra.mxu0 0.0
        %643 = vmatprep.subr.mxu0 0.0
        %644 = vmatpush1.msra.mxu0 0.0
        %645 = vmatprep.subr.mxu0 0.0
        %646 = vmatpush1.msra.mxu0 0.0
        %647 = vmatprep.subr.mxu0 0.0
        %648 = vmatpush1.msra.mxu0 0.0
        %649 = vmatprep.subr.mxu0 0.0
        %650 = vmatpush1.msra.mxu0 0.0
        %651 = vmatprep.mubr.f32.mxu0 0.0
        %652 = vmatmul.mubr.f32.gmra.mrb[0].mxu0 %v573
        %v653 = vpop.f32.mrb[0].mxu0
        %v654 = vadd.f32 0.0, %v653
        %v655 = vpop.f32.mrb[0].mxu0
        %656 = vmatprep.mubr.f32.mxu0 0.0
        %657 = vmatmul.mubr.f32.gmra.mrb[0].mxu0 %v576
        %v658 = vpop.f32.mrb[0].mxu0
        %v659 = vadd.f32 0.0, %v658
        %v660 = vpop.f32.mrb[0].mxu0
        %661 = vmatprep.mubr.f32.mxu0 0.0
        %662 = vmatmul.mubr.f32.gmra.mrb[0].mxu0 %v579
        %v663 = vpop.f32.mrb[0].mxu0
        %v664 = vadd.f32 0.0, %v663
        %v665 = vpop.f32.mrb[0].mxu0
        %666 = vmatprep.mubr.f32.mxu0 0.0
        %667 = vmatmul.mubr.f32.gmra.mrb[0].mxu0 %v582
        %v668 = vpop.f32.mrb[0].mxu0
        %v669 = vadd.f32 0.0, %v668
        %v670 = vpop.f32.mrb[0].mxu0
        %671 = vdwg.mxu0
        %672 = vxpose.xlu0.b32.start [1/16] %v569, 128
        %673 = vxpose.xlu0.b32.cont [2/16] 0.0, 128
        %674 = vxpose.xlu0.b32.cont [3/16] 0.0, 128
        %675 = vxpose.xlu0.b32.cont [4/16] 0.0, 128
        %676 = vxpose.xlu0.b32.cont [5/16] 0.0, 128
        %677 = vxpose.xlu0.b32.cont [6/16] 0.0, 128
        %678 = vxpose.xlu0.b32.cont [7/16] 0.0, 128
        %679 = vxpose.xlu0.b32.cont [8/16] 0.0, 128
        %680 = vxpose.xlu0.b32.cont [9/16] 0.0, 128
        %681 = vxpose.xlu0.b32.cont [10/16] 0.0, 128
        %682 = vxpose.xlu0.b32.cont [11/16] 0.0, 128
        %683 = vxpose.xlu0.b32.cont [12/16] 0.0, 128
        %684 = vxpose.xlu0.b32.cont [13/16] 0.0, 128
        %685 = vxpose.xlu0.b32.cont [14/16] 0.0, 128
        %686 = vxpose.xlu0.b32.cont [15/16] 0.0, 128
        %687 = vxpose.xlu0.b32.end [16/16] 0.0, 128
        %v688 = vpop.trf.xlu0
        %v689 = vpop.trf.xlu0
        %v690 = vpop.trf.xlu0
        %v691 = vpop.trf.xlu0
        %v692 = vpop.trf.xlu0
        %v693 = vpop.trf.xlu0
        %v694 = vpop.trf.xlu0
        %v695 = vpop.trf.xlu0
        %v696 = vpop.trf.xlu0
        %v697 = vpop.trf.xlu0
        %v698 = vpop.trf.xlu0
        %v699 = vpop.trf.xlu0
        %v700 = vpop.trf.xlu0
        %v701 = vpop.trf.xlu0
        %v702 = vpop.trf.xlu0
        %v703 = vpop.trf.xlu0
        %v705 = vsel %vm421, %v688, 0
        %v708 = vsel %vm425, %v496, 0
        %710 = vmatprep.subr.mxu0 0.0
        %711 = vmatpush1.msra.mxu0 %v708
        %712 = vmatprep.subr.mxu0 0.0
        %713 = vmatpush1.msra.mxu0 0.0
        %714 = vmatprep.subr.mxu0 0.0
        %715 = vmatpush1.msra.mxu0 0.0
        %716 = vmatprep.subr.mxu0 0.0
        %717 = vmatpush1.msra.mxu0 0.0
        %718 = vmatprep.subr.mxu0 0.0
        %719 = vmatpush1.msra.mxu0 0.0
        %720 = vmatprep.subr.mxu0 0.0
        %721 = vmatpush1.msra.mxu0 0.0
        %722 = vmatprep.subr.mxu0 0.0
        %723 = vmatpush1.msra.mxu0 0.0
        %724 = vmatprep.subr.mxu0 0.0
        %725 = vmatpush1.msra.mxu0 0.0
        %726 = vmatprep.subr.mxu0 0.0
        %727 = vmatpush1.msra.mxu0 0.0
        %728 = vmatprep.subr.mxu0 0.0
        %729 = vmatpush1.msra.mxu0 0.0
        %730 = vmatprep.subr.mxu0 0.0
        %731 = vmatpush1.msra.mxu0 0.0
        %732 = vmatprep.subr.mxu0 0.0
        %733 = vmatpush1.msra.mxu0 0.0
        %734 = vmatprep.subr.mxu0 0.0
        %735 = vmatpush1.msra.mxu0 0.0
        %736 = vmatprep.subr.mxu0 0.0
        %737 = vmatpush1.msra.mxu0 0.0
        %738 = vmatprep.subr.mxu0 0.0
        %739 = vmatpush1.msra.mxu0 0.0
        %740 = vmatprep.subr.mxu0 0.0
        %741 = vmatpush1.msra.mxu0 0.0
        %742 = vmatprep.subr.mxu0 0.0
        %743 = vmatpush1.msra.mxu0 0.0
        %744 = vmatprep.subr.mxu0 0.0
        %745 = vmatpush1.msra.mxu0 0.0
        %746 = vmatprep.subr.mxu0 0.0
        %747 = vmatpush1.msra.mxu0 0.0
        %748 = vmatprep.subr.mxu0 0.0
        %749 = vmatpush1.msra.mxu0 0.0
        %750 = vmatprep.subr.mxu0 0.0
        %751 = vmatpush1.msra.mxu0 0.0
        %752 = vmatprep.subr.mxu0 0.0
        %753 = vmatpush1.msra.mxu0 0.0
        %754 = vmatprep.subr.mxu0 0.0
        %755 = vmatpush1.msra.mxu0 0.0
        %756 = vmatprep.subr.mxu0 0.0
        %757 = vmatpush1.msra.mxu0 0.0
        %758 = vmatprep.subr.mxu0 0.0
        %759 = vmatpush1.msra.mxu0 0.0
        %760 = vmatprep.subr.mxu0 0.0
        %761 = vmatpush1.msra.mxu0 0.0
        %762 = vmatprep.subr.mxu0 0.0
        %763 = vmatpush1.msra.mxu0 0.0
        %764 = vmatprep.subr.mxu0 0.0
        %765 = vmatpush1.msra.mxu0 0.0
        %766 = vmatprep.subr.mxu0 0.0
        %767 = vmatpush1.msra.mxu0 0.0
        %768 = vmatprep.subr.mxu0 0.0
        %769 = vmatpush1.msra.mxu0 0.0
        %770 = vmatprep.subr.mxu0 0.0
        %771 = vmatpush1.msra.mxu0 0.0
        %772 = vmatprep.subr.mxu0 0.0
        %773 = vmatpush1.msra.mxu0 0.0
        %774 = vmatprep.mubr.f32.mxu0 0.0
        %775 = vmatmul.mubr.f32.gmra.mrb[0].mxu0 %v705
        %v776 = vpop.f32.mrb[0].mxu0
        %v777 = vadd.f32 0.0, %v776
        %v778 = vpop.f32.mrb[0].mxu0
        %779 = vdwg.mxu0
        %v781 = vsel %vm421, %v654, 0
        %v784 = vsel %vm421, %v659, 0
        %v787 = vsel %vm421, %v664, 0
        %v790 = vsel %vm421, %v669, 0
        %792 = vmatprep.subr.mxu0 0.0
        %793 = vmatpush1.xpose.msra.mxu0 %v781
        %794 = vmatprep.subr.mxu0 0.0
        %795 = vmatpush1.xpose.msra.mxu0 %v784
        %796 = vmatprep.subr.mxu0 0.0
        %797 = vmatpush1.xpose.msra.mxu0 %v787
        %798 = vmatprep.subr.mxu0 0.0
        %799 = vmatpush1.xpose.msra.mxu0 %v790
        %800 = vmatprep.subr.mxu0 0.0
        %801 = vmatpush1.xpose.msra.mxu0 0.0
        %802 = vmatprep.subr.mxu0 0.0
        %803 = vmatpush1.xpose.msra.mxu0 0.0
        %804 = vmatprep.subr.mxu0 0.0
        %805 = vmatpush1.xpose.msra.mxu0 0.0
        %806 = vmatprep.subr.mxu0 0.0
        %807 = vmatpush1.xpose.msra.mxu0 0.0
        %808 = vmatprep.subr.mxu0 0.0
        %809 = vmatpush1.xpose.msra.mxu0 0.0
        %810 = vmatprep.subr.mxu0 0.0
        %811 = vmatpush1.xpose.msra.mxu0 0.0
        %812 = vmatprep.subr.mxu0 0.0
        %813 = vmatpush1.xpose.msra.mxu0 0.0
        %814 = vmatprep.subr.mxu0 0.0
        %815 = vmatpush1.xpose.msra.mxu0 0.0
        %816 = vmatprep.subr.mxu0 0.0
        %817 = vmatpush1.xpose.msra.mxu0 0.0
        %818 = vmatprep.subr.mxu0 0.0
        %819 = vmatpush1.xpose.msra.mxu0 0.0
        %820 = vmatprep.subr.mxu0 0.0
        %821 = vmatpush1.xpose.msra.mxu0 0.0
        %822 = vmatprep.subr.mxu0 0.0
        %823 = vmatpush1.xpose.msra.mxu0 0.0
        %824 = vmatprep.subr.mxu0 0.0
        %825 = vmatpush1.xpose.msra.mxu0 0.0
        %826 = vmatprep.subr.mxu0 0.0
        %827 = vmatpush1.xpose.msra.mxu0 0.0
        %828 = vmatprep.subr.mxu0 0.0
        %829 = vmatpush1.xpose.msra.mxu0 0.0
        %830 = vmatprep.subr.mxu0 0.0
        %831 = vmatpush1.xpose.msra.mxu0 0.0
        %832 = vmatprep.subr.mxu0 0.0
        %833 = vmatpush1.xpose.msra.mxu0 0.0
        %834 = vmatprep.subr.mxu0 0.0
        %835 = vmatpush1.xpose.msra.mxu0 0.0
        %836 = vmatprep.subr.mxu0 0.0
        %837 = vmatpush1.xpose.msra.mxu0 0.0
        %838 = vmatprep.subr.mxu0 0.0
        %839 = vmatpush1.xpose.msra.mxu0 0.0
        %840 = vmatprep.subr.mxu0 0.0
        %841 = vmatpush1.xpose.msra.mxu0 0.0
        %842 = vmatprep.subr.mxu0 0.0
        %843 = vmatpush1.xpose.msra.mxu0 0.0
        %844 = vmatprep.subr.mxu0 0.0
        %845 = vmatpush1.xpose.msra.mxu0 0.0
        %846 = vmatprep.subr.mxu0 0.0
        %847 = vmatpush1.xpose.msra.mxu0 0.0
        %848 = vmatprep.subr.mxu0 0.0
        %849 = vmatpush1.xpose.msra.mxu0 0.0
        %850 = vmatprep.subr.mxu0 0.0
        %851 = vmatpush1.xpose.msra.mxu0 0.0
        %852 = vmatprep.subr.mxu0 0.0
        %853 = vmatpush1.xpose.msra.mxu0 0.0
        %854 = vmatprep.subr.mxu0 0.0
        %855 = vmatpush1.xpose.msra.mxu0 0.0
        %856 = vmatprep.mubr.f32.mxu0 0.0
        %857 = vmatmul.mubr.f32.gmra.mrb[0].mxu0 %v705
        %v858 = vpop.f32.mrb[0].mxu0
        %v859 = vadd.f32 0.0, %v858
        %v860 = vpop.f32.mrb[0].mxu0
        %861 = vdwg.mxu0
        %862 = vmatprep.subr.mxu0 0.0
        %863 = vmatpush1.msra.mxu0 %v708
        %864 = vmatprep.subr.mxu0 0.0
        %865 = vmatpush1.msra.mxu0 0.0
        %866 = vmatprep.subr.mxu0 0.0
        %867 = vmatpush1.msra.mxu0 0.0
        %868 = vmatprep.subr.mxu0 0.0
        %869 = vmatpush1.msra.mxu0 0.0
        %870 = vmatprep.subr.mxu0 0.0
        %871 = vmatpush1.msra.mxu0 0.0
        %872 = vmatprep.subr.mxu0 0.0
        %873 = vmatpush1.msra.mxu0 0.0
        %874 = vmatprep.subr.mxu0 0.0
        %875 = vmatpush1.msra.mxu0 0.0
        %876 = vmatprep.subr.mxu0 0.0
        %877 = vmatpush1.msra.mxu0 0.0
        %878 = vmatprep.subr.mxu0 0.0
        %879 = vmatpush1.msra.mxu0 0.0
        %880 = vmatprep.subr.mxu0 0.0
        %881 = vmatpush1.msra.mxu0 0.0
        %882 = vmatprep.subr.mxu0 0.0
        %883 = vmatpush1.msra.mxu0 0.0
        %884 = vmatprep.subr.mxu0 0.0
        %885 = vmatpush1.msra.mxu0 0.0
        %886 = vmatprep.subr.mxu0 0.0
        %887 = vmatpush1.msra.mxu0 0.0
        %888 = vmatprep.subr.mxu0 0.0
        %889 = vmatpush1.msra.mxu0 0.0
        %890 = vmatprep.subr.mxu0 0.0
        %891 = vmatpush1.msra.mxu0 0.0
        %892 = vmatprep.subr.mxu0 0.0
        %893 = vmatpush1.msra.mxu0 0.0
        %894 = vmatprep.subr.mxu0 0.0
        %895 = vmatpush1.msra.mxu0 0.0
        %896 = vmatprep.subr.mxu0 0.0
        %897 = vmatpush1.msra.mxu0 0.0
        %898 = vmatprep.subr.mxu0 0.0
        %899 = vmatpush1.msra.mxu0 0.0
        %900 = vmatprep.subr.mxu0 0.0
        %901 = vmatpush1.msra.mxu0 0.0
        %902 = vmatprep.subr.mxu0 0.0
        %903 = vmatpush1.msra.mxu0 0.0
        %904 = vmatprep.subr.mxu0 0.0
        %905 = vmatpush1.msra.mxu0 0.0
        %906 = vmatprep.subr.mxu0 0.0
        %907 = vmatpush1.msra.mxu0 0.0
        %908 = vmatprep.subr.mxu0 0.0
        %909 = vmatpush1.msra.mxu0 0.0
        %910 = vmatprep.subr.mxu0 0.0
        %911 = vmatpush1.msra.mxu0 0.0
        %912 = vmatprep.subr.mxu0 0.0
        %913 = vmatpush1.msra.mxu0 0.0
        %914 = vmatprep.subr.mxu0 0.0
        %915 = vmatpush1.msra.mxu0 0.0
        %916 = vmatprep.subr.mxu0 0.0
        %917 = vmatpush1.msra.mxu0 0.0
        %918 = vmatprep.subr.mxu0 0.0
        %919 = vmatpush1.msra.mxu0 0.0
        %920 = vmatprep.subr.mxu0 0.0
        %921 = vmatpush1.msra.mxu0 0.0
        %922 = vmatprep.subr.mxu0 0.0
        %923 = vmatpush1.msra.mxu0 0.0
        %924 = vmatprep.subr.mxu0 0.0
        %925 = vmatpush1.msra.mxu0 0.0
        %926 = vmatprep.mubr.f32.mxu0 0.0
        %927 = vmatmul.mubr.f32.gmra.mrb[0].mxu0 %v781
        %v928 = vpop.f32.mrb[0].mxu0
        %v929 = vadd.f32 0.0, %v928
        %v930 = vpop.f32.mrb[0].mxu0
        %931 = vmatprep.mubr.f32.mxu0 0.0
        %932 = vmatmul.mubr.f32.gmra.mrb[0].mxu0 %v784
        %v933 = vpop.f32.mrb[0].mxu0
        %v934 = vadd.f32 0.0, %v933
        %v935 = vpop.f32.mrb[0].mxu0
        %936 = vmatprep.mubr.f32.mxu0 0.0
        %937 = vmatmul.mubr.f32.gmra.mrb[0].mxu0 %v787
        %v938 = vpop.f32.mrb[0].mxu0
        %v939 = vadd.f32 0.0, %v938
        %v940 = vpop.f32.mrb[0].mxu0
        %941 = vmatprep.mubr.f32.mxu0 0.0
        %942 = vmatmul.mubr.f32.gmra.mrb[0].mxu0 %v790
        %v943 = vpop.f32.mrb[0].mxu0
        %v944 = vadd.f32 0.0, %v943
        %v945 = vpop.f32.mrb[0].mxu0
        %946 = vdwg.mxu0
        %v947 = vmul.f32 %v496, %v496
        %vm948 = vcmask 59392
        %v949 = vsel %vm948, %v947, 0.0
        %v950 = vrot.slane %v949, 4
        %v951 = vadd.f32 %v949, %v950
        %v952 = vrot.slane %v951, 2
        %v953 = vadd.f32 %v951, %v952
        %v954 = vrot.slane %v953, 1
        %v955 = vadd.f32 %v953, %v954
        %v956 = vmul.f32 %v654, %v654
        %v957 = vmul.f32 %v659, %v659
        %v958 = vmul.f32 %v664, %v664
        %v959 = vmul.f32 %v669, %v669
        %v960 = vsel %vm421, %v956, 0.0
        %961 = vadd.xlane.f32.xlu0 %v960
        %v962 = vpop.xlane.xlu0 %961
        %v963 = vsel %vm421, %v957, 0.0
        %964 = vadd.xlane.f32.xlu0 %v963
        %v965 = vpop.xlane.xlu0 %964
        %v966 = vsel %vm421, %v958, 0.0
        %967 = vadd.xlane.f32.xlu0 %v966
        %v968 = vpop.xlane.xlu0 %967
        %vm969 = vcmask 18432
        %v970 = vsel %vm969, %v959, 0.0
        %971 = vadd.xlane.f32.xlu0 %v970
        %v972 = vpop.xlane.xlu0 %971
        %v973 = vmul.f32 %v777, 2.0
        %v974 = vsub.f32 %v955, %v973
        %v975 = vmul.f32 %v929, 2.0
        %v976 = vmul.f32 %v934, 2.0
        %v977 = vmul.f32 %v939, 2.0
        %v978 = vmul.f32 %v944, 2.0
        %v979 = vadd.f32 %v975, %v962
        %v980 = vadd.f32 %v976, %v965
        %v981 = vadd.f32 %v977, %v968
        %v982 = vadd.f32 %v978, %v972
        %v983 = vmul.f32 %v859, -2.0
        %v985 = vcombine.high %v974, %v974
        %v987 = vunpack.c.l.s4 1966171168
        %v988 = vunpack.c.0.s8 %v987
        %v989 = vlaneseq
        %v990 = vshrl.u32 %v989, 7
        %v991 = vsub.s32 %v988, %v990
        %v992 = vrot.slane %v974, %v991
        %v994 = vunpack.c.l.s4 1966171168
        %v995 = vunpack.c.0.s8 %v994
        %v996 = vlaneseq
        %v997 = vshrl.u32 %v996, 7
        %v998 = vsub.s32 %v995, %v997
        %v999 = vrot.slane %v985, %v998
        %v1000 = vcombine.high %v992, %v992
        %v1001 = vcombine.high %v999, %v999
        %v1003 = vunpack.c.l.s4 1966171168
        %v1004 = vunpack.c.0.s8 %v1003
        %v1005 = vlaneseq
        %v1006 = vshrl.u32 %v1005, 7
        %v1007 = vsub.s32 %v1004, %v1006
        %v1008 = vrot.slane %v992, %v1007
        %v1010 = vunpack.c.l.s4 1966171168
        %v1011 = vunpack.c.0.s8 %v1010
        %v1012 = vlaneseq
        %v1013 = vshrl.u32 %v1012, 7
        %v1014 = vsub.s32 %v1011, %v1013
        %v1015 = vrot.slane %v999, %v1014
        %v1017 = vunpack.c.l.s4 1966171168
        %v1018 = vunpack.c.0.s8 %v1017
        %v1019 = vlaneseq
        %v1020 = vshrl.u32 %v1019, 7
        %v1021 = vsub.s32 %v1018, %v1020
        %v1022 = vrot.slane %v1000, %v1021
        %v1024 = vunpack.c.l.s4 1966171168
        %v1025 = vunpack.c.0.s8 %v1024
        %v1026 = vlaneseq
        %v1027 = vshrl.u32 %v1026, 7
        %v1028 = vsub.s32 %v1025, %v1027
        %v1029 = vrot.slane %v1001, %v1028
        %v1030 = vcombine.high %v1008, %v1008
        %v1031 = vcombine.high %v1015, %v1015
        %v1032 = vcombine.high %v1022, %v1022
        %v1033 = vcombine.high %v1029, %v1029
        %v1034 = vlaneseq
        %v1035 = vshrl.u32 %v1034, 7
        %v1036 = vsub.s32 0, %v1035
        %v1037 = vrot.slane %v1008, %v1036
        %v1038 = vlaneseq
        %v1039 = vshrl.u32 %v1038, 7
        %v1040 = vsub.s32 0, %v1039
        %v1041 = vrot.slane %v1022, %v1040
        %v1042 = vlaneseq
        %v1043 = vshrl.u32 %v1042, 7
        %v1044 = vsub.s32 0, %v1043
        %v1045 = vrot.slane %v1030, %v1044
        %v1046 = vlaneseq
        %v1047 = vshrl.u32 %v1046, 7
        %v1048 = vsub.s32 0, %v1047
        %v1049 = vrot.slane %v1032, %v1048
        %v1050 = vlaneseq
        %v1051 = vshrl.u32 %v1050, 7
        %v1052 = vsub.s32 0, %v1051
        %v1053 = vrot.slane %v1015, %v1052
        %v1054 = vlaneseq
        %v1055 = vshrl.u32 %v1054, 7
        %v1056 = vsub.s32 0, %v1055
        %v1057 = vrot.slane %v1029, %v1056
        %v1058 = vlaneseq
        %v1059 = vshrl.u32 %v1058, 7
        %v1060 = vsub.s32 0, %v1059
        %v1061 = vrot.slane %v1031, %v1060
        %v1062 = vlaneseq
        %v1063 = vshrl.u32 %v1062, 7
        %v1064 = vsub.s32 0, %v1063
        %v1065 = vrot.slane %v1033, %v1064
        %v1074 = vadd.f32 %v1037, %v979
        %v1075 = vadd.f32 %v1037, %v980
        %v1076 = vadd.f32 %v1037, %v981
        %v1077 = vadd.f32 %v1037, %v982
        %v1078 = vadd.f32 %v1041, %v979
        %v1079 = vadd.f32 %v1041, %v980
        %v1080 = vadd.f32 %v1041, %v981
        %v1081 = vadd.f32 %v1041, %v982
        %v1082 = vadd.f32 %v1045, %v979
        %v1083 = vadd.f32 %v1045, %v980
        %v1084 = vadd.f32 %v1045, %v981
        %v1085 = vadd.f32 %v1045, %v982
        %v1086 = vadd.f32 %v1049, %v979
        %v1087 = vadd.f32 %v1049, %v980
        %v1088 = vadd.f32 %v1049, %v981
        %v1089 = vadd.f32 %v1049, %v982
        %v1090 = vadd.f32 %v1053, %v979
        %v1091 = vadd.f32 %v1053, %v980
        %v1092 = vadd.f32 %v1053, %v981
        %v1093 = vadd.f32 %v1053, %v982
        %v1094 = vadd.f32 %v1057, %v979
        %v1095 = vadd.f32 %v1057, %v980
        %v1096 = vadd.f32 %v1057, %v981
        %v1097 = vadd.f32 %v1057, %v982
        %v1098 = vadd.f32 %v1061, %v979
        %v1099 = vadd.f32 %v1061, %v980
        %v1100 = vadd.f32 %v1061, %v981
        %v1101 = vadd.f32 %v1061, %v982
        %v1102 = vadd.f32 %v1065, %v979
        %v1103 = vadd.f32 %v1065, %v980
        %v1104 = vadd.f32 %v1065, %v981
        %v1105 = vadd.f32 %v1065, %v982
        %v1106 = vlaneseq
        %v1107 = vshrl.u32 %v1106, 7
        %v1108 = vsub.s32 0, %v1107
        %v1109 = vrot.slane %v983, %v1108
        %1111 = vbcast.lane.b32.xlu0 %v1109, 256
        %v1112 = vpop.permute.xlu0 %1111
        %s1114 = sor.u32 256, 8
        %1115 = vbcast.lane.b32.xlu0 %v1109, %s1114
        %v1116 = vpop.permute.xlu0 %1115
        %s1118 = sor.u32 256, 16
        %1119 = vbcast.lane.b32.xlu0 %v1109, %s1118
        %v1120 = vpop.permute.xlu0 %1119
        %s1122 = sor.u32 256, 24
        %1123 = vbcast.lane.b32.xlu0 %v1109, %s1122
        %v1124 = vpop.permute.xlu0 %1123
        %v1125 = vlaneseq
        %v1126 = vshrl.u32 %v1125, 7
        %v1127 = vsub.s32 1, %v1126
        %v1128 = vrot.slane %v983, %v1127
        %1130 = vbcast.lane.b32.xlu0 %v1128, 256
        %v1131 = vpop.permute.xlu0 %1130
        %s1133 = sor.u32 256, 8
        %1134 = vbcast.lane.b32.xlu0 %v1128, %s1133
        %v1135 = vpop.permute.xlu0 %1134
        %s1137 = sor.u32 256, 16
        %1138 = vbcast.lane.b32.xlu0 %v1128, %s1137
        %v1139 = vpop.permute.xlu0 %1138
        %s1141 = sor.u32 256, 24
        %1142 = vbcast.lane.b32.xlu0 %v1128, %s1141
        %v1143 = vpop.permute.xlu0 %1142
        %v1144 = vlaneseq
        %v1145 = vshrl.u32 %v1144, 7
        %v1146 = vsub.s32 2, %v1145
        %v1147 = vrot.slane %v983, %v1146
        %1149 = vbcast.lane.b32.xlu0 %v1147, 256
        %v1150 = vpop.permute.xlu0 %1149
        %s1152 = sor.u32 256, 8
        %1153 = vbcast.lane.b32.xlu0 %v1147, %s1152
        %v1154 = vpop.permute.xlu0 %1153
        %s1156 = sor.u32 256, 16
        %1157 = vbcast.lane.b32.xlu0 %v1147, %s1156
        %v1158 = vpop.permute.xlu0 %1157
        %s1160 = sor.u32 256, 24
        %1161 = vbcast.lane.b32.xlu0 %v1147, %s1160
        %v1162 = vpop.permute.xlu0 %1161
        %v1163 = vlaneseq
        %v1164 = vshrl.u32 %v1163, 7
        %v1165 = vsub.s32 3, %v1164
        %v1166 = vrot.slane %v983, %v1165
        %1168 = vbcast.lane.b32.xlu0 %v1166, 256
        %v1169 = vpop.permute.xlu0 %1168
        %s1171 = sor.u32 256, 8
        %1172 = vbcast.lane.b32.xlu0 %v1166, %s1171
        %v1173 = vpop.permute.xlu0 %1172
        %s1175 = sor.u32 256, 16
        %1176 = vbcast.lane.b32.xlu0 %v1166, %s1175
        %v1177 = vpop.permute.xlu0 %1176
        %s1179 = sor.u32 256, 24
        %1180 = vbcast.lane.b32.xlu0 %v1166, %s1179
        %v1181 = vpop.permute.xlu0 %1180
        %v1182 = vlaneseq
        %v1183 = vshrl.u32 %v1182, 7
        %v1184 = vsub.s32 4, %v1183
        %v1185 = vrot.slane %v983, %v1184
        %1187 = vbcast.lane.b32.xlu0 %v1185, 256
        %v1188 = vpop.permute.xlu0 %1187
        %s1190 = sor.u32 256, 8
        %1191 = vbcast.lane.b32.xlu0 %v1185, %s1190
        %v1192 = vpop.permute.xlu0 %1191
        %s1194 = sor.u32 256, 16
        %1195 = vbcast.lane.b32.xlu0 %v1185, %s1194
        %v1196 = vpop.permute.xlu0 %1195
        %s1198 = sor.u32 256, 24
        %1199 = vbcast.lane.b32.xlu0 %v1185, %s1198
        %v1200 = vpop.permute.xlu0 %1199
        %v1201 = vlaneseq
        %v1202 = vshrl.u32 %v1201, 7
        %v1203 = vsub.s32 5, %v1202
        %v1204 = vrot.slane %v983, %v1203
        %1206 = vbcast.lane.b32.xlu0 %v1204, 256
        %v1207 = vpop.permute.xlu0 %1206
        %s1209 = sor.u32 256, 8
        %1210 = vbcast.lane.b32.xlu0 %v1204, %s1209
        %v1211 = vpop.permute.xlu0 %1210
        %s1213 = sor.u32 256, 16
        %1214 = vbcast.lane.b32.xlu0 %v1204, %s1213
        %v1215 = vpop.permute.xlu0 %1214
        %s1217 = sor.u32 256, 24
        %1218 = vbcast.lane.b32.xlu0 %v1204, %s1217
        %v1219 = vpop.permute.xlu0 %1218
        %v1220 = vlaneseq
        %v1221 = vshrl.u32 %v1220, 7
        %v1222 = vsub.s32 6, %v1221
        %v1223 = vrot.slane %v983, %v1222
        %1225 = vbcast.lane.b32.xlu0 %v1223, 256
        %v1226 = vpop.permute.xlu0 %1225
        %s1228 = sor.u32 256, 8
        %1229 = vbcast.lane.b32.xlu0 %v1223, %s1228
        %v1230 = vpop.permute.xlu0 %1229
        %s1232 = sor.u32 256, 16
        %1233 = vbcast.lane.b32.xlu0 %v1223, %s1232
        %v1234 = vpop.permute.xlu0 %1233
        %s1236 = sor.u32 256, 24
        %1237 = vbcast.lane.b32.xlu0 %v1223, %s1236
        %v1238 = vpop.permute.xlu0 %1237
        %v1239 = vlaneseq
        %v1240 = vshrl.u32 %v1239, 7
        %v1241 = vsub.s32 7, %v1240
        %v1242 = vrot.slane %v983, %v1241
        %1244 = vbcast.lane.b32.xlu0 %v1242, 256
        %v1245 = vpop.permute.xlu0 %1244
        %s1247 = sor.u32 256, 8
        %1248 = vbcast.lane.b32.xlu0 %v1242, %s1247
        %v1249 = vpop.permute.xlu0 %1248
        %s1251 = sor.u32 256, 16
        %1252 = vbcast.lane.b32.xlu0 %v1242, %s1251
        %v1253 = vpop.permute.xlu0 %1252
        %s1255 = sor.u32 256, 24
        %1256 = vbcast.lane.b32.xlu0 %v1242, %s1255
        %v1257 = vpop.permute.xlu0 %1256
        %v1258 = vadd.f32 %v1074, %v1112
        %v1259 = vadd.f32 %v1075, %v1116
        %v1260 = vadd.f32 %v1076, %v1120
        %v1261 = vadd.f32 %v1077, %v1124
        %v1262 = vadd.f32 %v1078, %v1131
        %v1263 = vadd.f32 %v1079, %v1135
        %v1264 = vadd.f32 %v1080, %v1139
        %v1265 = vadd.f32 %v1081, %v1143
        %v1266 = vadd.f32 %v1082, %v1150
        %v1267 = vadd.f32 %v1083, %v1154
        %v1268 = vadd.f32 %v1084, %v1158
        %v1269 = vadd.f32 %v1085, %v1162
        %v1270 = vadd.f32 %v1086, %v1169
        %v1271 = vadd.f32 %v1087, %v1173
        %v1272 = vadd.f32 %v1088, %v1177
        %v1273 = vadd.f32 %v1089, %v1181
        %v1274 = vadd.f32 %v1090, %v1188
        %v1275 = vadd.f32 %v1091, %v1192
        %v1276 = vadd.f32 %v1092, %v1196
        %v1277 = vadd.f32 %v1093, %v1200
        %v1278 = vadd.f32 %v1094, %v1207
        %v1279 = vadd.f32 %v1095, %v1211
        %v1280 = vadd.f32 %v1096, %v1215
        %v1281 = vadd.f32 %v1097, %v1219
        %v1282 = vadd.f32 %v1098, %v1226
        %v1283 = vadd.f32 %v1099, %v1230
        %v1284 = vadd.f32 %v1100, %v1234
        %v1285 = vadd.f32 %v1101, %v1238
        %v1286 = vadd.f32 %v1102, %v1245
        %v1287 = vadd.f32 %v1103, %v1249
        %v1288 = vadd.f32 %v1104, %v1253
        %v1289 = vadd.f32 %v1105, %v1257
        %v1290 = vlaneseq
        %v1291 = vshrl.u32 %v1290, 7
        %v1292 = vadd.s32 %v1291, 8
        %v1293 = vadd.s32 %v1291, 16
        %v1294 = vadd.s32 %v1291, 24
        %v1295 = vlaneseq
        %v1296 = vand.u32 %v1295, 127
        %v1297 = vmul.u32 %v1291, 8
        %v1298 = vmul.u32 %v1292, 8
        %v1299 = vmul.u32 %v1293, 8
        %v1300 = vmul.u32 %v1294, 8
        %v1301 = vadd.s32 %v1297, %v1296
        %v1302 = vadd.s32 %v1298, %v1296
        %v1303 = vadd.s32 %v1299, %v1296
        %v1304 = vadd.s32 %v1300, %v1296
        %v1305 = vstv %s367
        %v1306 = vadd.s32 %v1291, %v1305
        %vm1307 = vcmp.eq.s32.totalorder %v1306, %v1296
        %v1308 = vsel %vm1307, 1, 0
        %v1309 = vcombine.high %v1308, %v1308
        %v1311 = vunpack.c.l.s4 1966171168
        %v1312 = vunpack.c.0.s8 %v1311
        %v1313 = vlaneseq
        %v1314 = vshrl.u32 %v1313, 7
        %v1315 = vsub.s32 %v1312, %v1314
        %v1316 = vrot.slane %v1308, %v1315
        %v1318 = vunpack.c.l.s4 1966171168
        %v1319 = vunpack.c.0.s8 %v1318
        %v1320 = vlaneseq
        %v1321 = vshrl.u32 %v1320, 7
        %v1322 = vsub.s32 %v1319, %v1321
        %v1323 = vrot.slane %v1309, %v1322
        %v1324 = vcombine.high %v1316, %v1316
        %v1325 = vcombine.high %v1323, %v1323
        %v1327 = vunpack.c.l.s4 1966171168
        %v1328 = vunpack.c.0.s8 %v1327
        %v1329 = vlaneseq
        %v1330 = vshrl.u32 %v1329, 7
        %v1331 = vsub.s32 %v1328, %v1330
        %v1332 = vrot.slane %v1316, %v1331
        %v1334 = vunpack.c.l.s4 1966171168
        %v1335 = vunpack.c.0.s8 %v1334
        %v1336 = vlaneseq
        %v1337 = vshrl.u32 %v1336, 7
        %v1338 = vsub.s32 %v1335, %v1337
        %v1339 = vrot.slane %v1323, %v1338
        %v1341 = vunpack.c.l.s4 1966171168
        %v1342 = vunpack.c.0.s8 %v1341
        %v1343 = vlaneseq
        %v1344 = vshrl.u32 %v1343, 7
        %v1345 = vsub.s32 %v1342, %v1344
        %v1346 = vrot.slane %v1324, %v1345
        %v1348 = vunpack.c.l.s4 1966171168
        %v1349 = vunpack.c.0.s8 %v1348
        %v1350 = vlaneseq
        %v1351 = vshrl.u32 %v1350, 7
        %v1352 = vsub.s32 %v1349, %v1351
        %v1353 = vrot.slane %v1325, %v1352
        %v1354 = vcombine.high %v1332, %v1332
        %v1355 = vcombine.high %v1339, %v1339
        %v1356 = vcombine.high %v1346, %v1346
        %v1357 = vcombine.high %v1353, %v1353
        %vm1358 = vcmp.ne.s32.totalorder %v1332, 0
        %vm1359 = vcmp.ne.s32.totalorder %v1346, 0
        %vm1360 = vcmp.ne.s32.totalorder %v1354, 0
        %vm1361 = vcmp.ne.s32.totalorder %v1356, 0
        %vm1362 = vcmp.ne.s32.totalorder %v1339, 0
        %vm1363 = vcmp.ne.s32.totalorder %v1353, 0
        %vm1364 = vcmp.ne.s32.totalorder %v1355, 0
        %vm1365 = vcmp.ne.s32.totalorder %v1357, 0
        %vm1366 = vcmp.eq.s32.totalorder %v1291, 13
        %vm1367 = vcmp.eq.s32.totalorder %v1292, 13
        %vm1368 = vcmp.eq.s32.totalorder %v1293, 13
        %vm1369 = vcmp.eq.s32.totalorder %v1294, 13
        %v1370 = vsel %vm1358, 1, 0
        %v1371 = vsel %vm1359, 1, 0
        %v1372 = vsel %vm1360, 1, 0
        %v1373 = vsel %vm1361, 1, 0
        %v1374 = vsel %vm1362, 1, 0
        %v1375 = vsel %vm1363, 1, 0
        %v1376 = vsel %vm1364, 1, 0
        %v1377 = vsel %vm1365, 1, 0
        %v1378 = vlaneseq
        %v1379 = vshrl.u32 %v1378, 7
        %v1380 = vsub.s32 0, %v1379
        %v1381 = vrot.slane %v1370, %v1380
        %v1382 = vlaneseq
        %v1383 = vshrl.u32 %v1382, 7
        %v1384 = vsub.s32 0, %v1383
        %v1385 = vrot.slane %v1371, %v1384
        %v1386 = vlaneseq
        %v1387 = vshrl.u32 %v1386, 7
        %v1388 = vsub.s32 0, %v1387
        %v1389 = vrot.slane %v1372, %v1388
        %v1390 = vlaneseq
        %v1391 = vshrl.u32 %v1390, 7
        %v1392 = vsub.s32 0, %v1391
        %v1393 = vrot.slane %v1373, %v1392
        %v1394 = vlaneseq
        %v1395 = vshrl.u32 %v1394, 7
        %v1396 = vsub.s32 0, %v1395
        %v1397 = vrot.slane %v1374, %v1396
        %v1398 = vlaneseq
        %v1399 = vshrl.u32 %v1398, 7
        %v1400 = vsub.s32 0, %v1399
        %v1401 = vrot.slane %v1375, %v1400
        %v1402 = vlaneseq
        %v1403 = vshrl.u32 %v1402, 7
        %v1404 = vsub.s32 0, %v1403
        %v1405 = vrot.slane %v1376, %v1404
        %v1406 = vlaneseq
        %v1407 = vshrl.u32 %v1406, 7
        %v1408 = vsub.s32 0, %v1407
        %v1409 = vrot.slane %v1377, %v1408
        %vm1410 = vcmp.eq.s32.totalorder %v1381, 1
        %vm1411 = vcmp.eq.s32.totalorder %v1385, 1
        %vm1412 = vcmp.eq.s32.totalorder %v1389, 1
        %vm1413 = vcmp.eq.s32.totalorder %v1393, 1
        %vm1414 = vcmp.eq.s32.totalorder %v1397, 1
        %vm1415 = vcmp.eq.s32.totalorder %v1401, 1
        %vm1416 = vcmp.eq.s32.totalorder %v1405, 1
        %vm1417 = vcmp.eq.s32.totalorder %v1409, 1
        %vm1418 = vmand %vm1410, %vm1366
        %vm1419 = vmand %vm1410, %vm1367
        %vm1420 = vmand %vm1410, %vm1368
        %vm1421 = vmand %vm1410, %vm1369
        %vm1422 = vmand %vm1411, %vm1366
        %vm1423 = vmand %vm1411, %vm1367
        %vm1424 = vmand %vm1411, %vm1368
        %vm1425 = vmand %vm1411, %vm1369
        %vm1426 = vmand %vm1412, %vm1366
        %vm1427 = vmand %vm1412, %vm1367
        %vm1428 = vmand %vm1412, %vm1368
        %vm1429 = vmand %vm1412, %vm1369
        %vm1430 = vmand %vm1413, %vm1366
        %vm1431 = vmand %vm1413, %vm1367
        %vm1432 = vmand %vm1413, %vm1368
        %vm1433 = vmand %vm1413, %vm1369
        %vm1434 = vmand %vm1414, %vm1366
        %vm1435 = vmand %vm1414, %vm1367
        %vm1436 = vmand %vm1414, %vm1368
        %vm1437 = vmand %vm1414, %vm1369
        %vm1438 = vmand %vm1415, %vm1366
        %vm1439 = vmand %vm1415, %vm1367
        %vm1440 = vmand %vm1415, %vm1368
        %vm1441 = vmand %vm1415, %vm1369
        %vm1442 = vmand %vm1416, %vm1366
        %vm1443 = vmand %vm1416, %vm1367
        %vm1444 = vmand %vm1416, %vm1368
        %vm1445 = vmand %vm1416, %vm1369
        %vm1446 = vmand %vm1417, %vm1366
        %vm1447 = vmand %vm1417, %vm1367
        %vm1448 = vmand %vm1417, %vm1368
        %vm1449 = vmand %vm1417, %vm1369
        %v1450 = vstv %s366
        %vm1451 = vcmp.ge.s32.totalorder %v1296, %v1450
        %v1452 = vsel %vm1451, 1, 0
        %v1453 = vcombine.high %v1452, %v1452
        %v1455 = vunpack.c.l.s4 1966171168
        %v1456 = vunpack.c.0.s8 %v1455
        %v1457 = vlaneseq
        %v1458 = vshrl.u32 %v1457, 7
        %v1459 = vsub.s32 %v1456, %v1458
        %v1460 = vrot.slane %v1452, %v1459
        %v1462 = vunpack.c.l.s4 1966171168
        %v1463 = vunpack.c.0.s8 %v1462
        %v1464 = vlaneseq
        %v1465 = vshrl.u32 %v1464, 7
        %v1466 = vsub.s32 %v1463, %v1465
        %v1467 = vrot.slane %v1453, %v1466
        %v1468 = vcombine.high %v1460, %v1460
        %v1469 = vcombine.high %v1467, %v1467
        %v1471 = vunpack.c.l.s4 1966171168
        %v1472 = vunpack.c.0.s8 %v1471
        %v1473 = vlaneseq
        %v1474 = vshrl.u32 %v1473, 7
        %v1475 = vsub.s32 %v1472, %v1474
        %v1476 = vrot.slane %v1460, %v1475
        %v1478 = vunpack.c.l.s4 1966171168
        %v1479 = vunpack.c.0.s8 %v1478
        %v1480 = vlaneseq
        %v1481 = vshrl.u32 %v1480, 7
        %v1482 = vsub.s32 %v1479, %v1481
        %v1483 = vrot.slane %v1467, %v1482
        %v1485 = vunpack.c.l.s4 1966171168
        %v1486 = vunpack.c.0.s8 %v1485
        %v1487 = vlaneseq
        %v1488 = vshrl.u32 %v1487, 7
        %v1489 = vsub.s32 %v1486, %v1488
        %v1490 = vrot.slane %v1468, %v1489
        %v1492 = vunpack.c.l.s4 1966171168
        %v1493 = vunpack.c.0.s8 %v1492
        %v1494 = vlaneseq
        %v1495 = vshrl.u32 %v1494, 7
        %v1496 = vsub.s32 %v1493, %v1495
        %v1497 = vrot.slane %v1469, %v1496
        %v1498 = vcombine.high %v1476, %v1476
        %v1499 = vcombine.high %v1483, %v1483
        %v1500 = vcombine.high %v1490, %v1490
        %v1501 = vcombine.high %v1497, %v1497
        %vm1502 = vcmp.ne.s32.totalorder %v1476, 0
        %vm1503 = vcmp.ne.s32.totalorder %v1490, 0
        %vm1504 = vcmp.ne.s32.totalorder %v1498, 0
        %vm1505 = vcmp.ne.s32.totalorder %v1500, 0
        %vm1506 = vcmp.ne.s32.totalorder %v1483, 0
        %vm1507 = vcmp.ne.s32.totalorder %v1497, 0
        %vm1508 = vcmp.ne.s32.totalorder %v1499, 0
        %vm1509 = vcmp.ne.s32.totalorder %v1501, 0
        %v1510 = vsel %vm1502, 1, 0
        %v1511 = vsel %vm1503, 1, 0
        %v1512 = vsel %vm1504, 1, 0
        %v1513 = vsel %vm1505, 1, 0
        %v1514 = vsel %vm1506, 1, 0
        %v1515 = vsel %vm1507, 1, 0
        %v1516 = vsel %vm1508, 1, 0
        %v1517 = vsel %vm1509, 1, 0
        %v1518 = vlaneseq
        %v1519 = vshrl.u32 %v1518, 7
        %v1520 = vsub.s32 0, %v1519
        %v1521 = vrot.slane %v1510, %v1520
        %v1522 = vlaneseq
        %v1523 = vshrl.u32 %v1522, 7
        %v1524 = vsub.s32 0, %v1523
        %v1525 = vrot.slane %v1511, %v1524
        %v1526 = vlaneseq
        %v1527 = vshrl.u32 %v1526, 7
        %v1528 = vsub.s32 0, %v1527
        %v1529 = vrot.slane %v1512, %v1528
        %v1530 = vlaneseq
        %v1531 = vshrl.u32 %v1530, 7
        %v1532 = vsub.s32 0, %v1531
        %v1533 = vrot.slane %v1513, %v1532
        %v1534 = vlaneseq
        %v1535 = vshrl.u32 %v1534, 7
        %v1536 = vsub.s32 0, %v1535
        %v1537 = vrot.slane %v1514, %v1536
        %v1538 = vlaneseq
        %v1539 = vshrl.u32 %v1538, 7
        %v1540 = vsub.s32 0, %v1539
        %v1541 = vrot.slane %v1515, %v1540
        %v1542 = vlaneseq
        %v1543 = vshrl.u32 %v1542, 7
        %v1544 = vsub.s32 0, %v1543
        %v1545 = vrot.slane %v1516, %v1544
        %v1546 = vlaneseq
        %v1547 = vshrl.u32 %v1546, 7
        %v1548 = vsub.s32 0, %v1547
        %v1549 = vrot.slane %v1517, %v1548
        %vm1550 = vcmp.eq.s32.totalorder %v1521, 1
        %vm1551 = vcmp.eq.s32.totalorder %v1525, 1
        %vm1552 = vcmp.eq.s32.totalorder %v1529, 1
        %vm1553 = vcmp.eq.s32.totalorder %v1533, 1
        %vm1554 = vcmp.eq.s32.totalorder %v1537, 1
        %vm1555 = vcmp.eq.s32.totalorder %v1541, 1
        %vm1556 = vcmp.eq.s32.totalorder %v1545, 1
        %vm1557 = vcmp.eq.s32.totalorder %v1549, 1
        %vm1558 = vmor %vm1418, %vm1550
        %vm1559 = vmor %vm1419, %vm1550
        %vm1560 = vmor %vm1420, %vm1550
        %vm1561 = vmor %vm1421, %vm1550
        %vm1562 = vmor %vm1422, %vm1551
        %vm1563 = vmor %vm1423, %vm1551
        %vm1564 = vmor %vm1424, %vm1551
        %vm1565 = vmor %vm1425, %vm1551
        %vm1566 = vmor %vm1426, %vm1552
        %vm1567 = vmor %vm1427, %vm1552
        %vm1568 = vmor %vm1428, %vm1552
        %vm1569 = vmor %vm1429, %vm1552
        %vm1570 = vmor %vm1430, %vm1553
        %vm1571 = vmor %vm1431, %vm1553
        %vm1572 = vmor %vm1432, %vm1553
        %vm1573 = vmor %vm1433, %vm1553
        %vm1574 = vmor %vm1434, %vm1554
        %vm1575 = vmor %vm1435, %vm1554
        %vm1576 = vmor %vm1436, %vm1554
        %vm1577 = vmor %vm1437, %vm1554
        %vm1578 = vmor %vm1438, %vm1555
        %vm1579 = vmor %vm1439, %vm1555
        %vm1580 = vmor %vm1440, %vm1555
        %vm1581 = vmor %vm1441, %vm1555
        %vm1582 = vmor %vm1442, %vm1556
        %vm1583 = vmor %vm1443, %vm1556
        %vm1584 = vmor %vm1444, %vm1556
        %vm1585 = vmor %vm1445, %vm1556
        %vm1586 = vmor %vm1446, %vm1557
        %vm1587 = vmor %vm1447, %vm1557
        %vm1588 = vmor %vm1448, %vm1557
        %vm1589 = vmor %vm1449, %vm1557
        %v1590 = vsel %vm1558, 1e+30, %v1258
        %v1591 = vsel %vm1559, 1e+30, %v1259
        %v1592 = vsel %vm1560, 1e+30, %v1260
        %v1593 = vsel %vm1561, 1e+30, %v1261
        %v1594 = vsel %vm1562, 1e+30, %v1262
        %v1595 = vsel %vm1563, 1e+30, %v1263
        %v1596 = vsel %vm1564, 1e+30, %v1264
        %v1597 = vsel %vm1565, 1e+30, %v1265
        %v1598 = vsel %vm1566, 1e+30, %v1266
        %v1599 = vsel %vm1567, 1e+30, %v1267
        %v1600 = vsel %vm1568, 1e+30, %v1268
        %v1601 = vsel %vm1569, 1e+30, %v1269
        %v1602 = vsel %vm1570, 1e+30, %v1270
        %v1603 = vsel %vm1571, 1e+30, %v1271
        %v1604 = vsel %vm1572, 1e+30, %v1272
        %v1605 = vsel %vm1573, 1e+30, %v1273
        %v1606 = vsel %vm1574, 1e+30, %v1274
        %v1607 = vsel %vm1575, 1e+30, %v1275
        %v1608 = vsel %vm1576, 1e+30, %v1276
        %v1609 = vsel %vm1577, 1e+30, %v1277
        %v1610 = vsel %vm1578, 1e+30, %v1278
        %v1611 = vsel %vm1579, 1e+30, %v1279
        %v1612 = vsel %vm1580, 1e+30, %v1280
        %v1613 = vsel %vm1581, 1e+30, %v1281
        %v1614 = vsel %vm1582, 1e+30, %v1282
        %v1615 = vsel %vm1583, 1e+30, %v1283
        %v1616 = vsel %vm1584, 1e+30, %v1284
        %v1617 = vsel %vm1585, 1e+30, %v1285
        %v1618 = vsel %vm1586, 1e+30, %v1286
        %v1619 = vsel %vm1587, 1e+30, %v1287
        %v1620 = vsel %vm1588, 1e+30, %v1288
        %v1621 = vsel %vm1589, 1e+30, %v1289
        %v1622 = vsub.f32 %v382, %v381
        %v1623 = vsub.f32 %v384, %v383
        %vm1624 = vcmask 64512
        %v1625 = vsel %vm1624, %v1590, inf
        %1626 = vmin.xlane.f32.xlu0 %v1625
        %v1627 = vpop.xlane.xlu0 %1626
        %v1628 = vsel %vm1624, %v1591, inf
        %1629 = vmin.xlane.f32.xlu0 %v1628
        %v1630 = vpop.xlane.xlu0 %1629
        %v1631 = vsel %vm1624, %v1592, inf
        %1632 = vmin.xlane.f32.xlu0 %v1631
        %v1633 = vpop.xlane.xlu0 %1632
        %v1634 = vsel %vm948, %v1593, inf
        %1635 = vmin.xlane.f32.xlu0 %v1634
        %v1636 = vpop.xlane.xlu0 %1635
        %v1637 = vsel %vm1624, %v1594, inf
        %1638 = vmin.xlane.f32.xlu0 %v1637
        %v1639 = vpop.xlane.xlu0 %1638
        %v1640 = vsel %vm1624, %v1595, inf
        %1641 = vmin.xlane.f32.xlu0 %v1640
        %v1642 = vpop.xlane.xlu0 %1641
        %v1643 = vsel %vm1624, %v1596, inf
        %1644 = vmin.xlane.f32.xlu0 %v1643
        %v1645 = vpop.xlane.xlu0 %1644
        %v1646 = vsel %vm948, %v1597, inf
        %1647 = vmin.xlane.f32.xlu0 %v1646
        %v1648 = vpop.xlane.xlu0 %1647
        %v1649 = vsel %vm1624, %v1598, inf
        %1650 = vmin.xlane.f32.xlu0 %v1649
        %v1651 = vpop.xlane.xlu0 %1650
        %v1652 = vsel %vm1624, %v1599, inf
        %1653 = vmin.xlane.f32.xlu0 %v1652
        %v1654 = vpop.xlane.xlu0 %1653
        %v1655 = vsel %vm1624, %v1600, inf
        %1656 = vmin.xlane.f32.xlu0 %v1655
        %v1657 = vpop.xlane.xlu0 %1656
        %v1658 = vsel %vm948, %v1601, inf
        %1659 = vmin.xlane.f32.xlu0 %v1658
        %v1660 = vpop.xlane.xlu0 %1659
        %v1661 = vsel %vm1624, %v1602, inf
        %1662 = vmin.xlane.f32.xlu0 %v1661
        %v1663 = vpop.xlane.xlu0 %1662
        %v1664 = vsel %vm1624, %v1603, inf
        %1665 = vmin.xlane.f32.xlu0 %v1664
        %v1666 = vpop.xlane.xlu0 %1665
        %v1667 = vsel %vm1624, %v1604, inf
        %1668 = vmin.xlane.f32.xlu0 %v1667
        %v1669 = vpop.xlane.xlu0 %1668
        %v1670 = vsel %vm948, %v1605, inf
        %1671 = vmin.xlane.f32.xlu0 %v1670
        %v1672 = vpop.xlane.xlu0 %1671
        %v1673 = vsel %vm1624, %v1606, inf
        %1674 = vmin.xlane.f32.xlu0 %v1673
        %v1675 = vpop.xlane.xlu0 %1674
        %v1676 = vsel %vm1624, %v1607, inf
        %1677 = vmin.xlane.f32.xlu0 %v1676
        %v1678 = vpop.xlane.xlu0 %1677
        %v1679 = vsel %vm1624, %v1608, inf
        %1680 = vmin.xlane.f32.xlu0 %v1679
        %v1681 = vpop.xlane.xlu0 %1680
        %v1682 = vsel %vm948, %v1609, inf
        %1683 = vmin.xlane.f32.xlu0 %v1682
        %v1684 = vpop.xlane.xlu0 %1683
        %v1685 = vsel %vm1624, %v1610, inf
        %1686 = vmin.xlane.f32.xlu0 %v1685
        %v1687 = vpop.xlane.xlu0 %1686
        %v1688 = vsel %vm1624, %v1611, inf
        %1689 = vmin.xlane.f32.xlu0 %v1688
        %v1690 = vpop.xlane.xlu0 %1689
        %v1691 = vsel %vm1624, %v1612, inf
        %1692 = vmin.xlane.f32.xlu0 %v1691
        %v1693 = vpop.xlane.xlu0 %1692
        %v1694 = vsel %vm948, %v1613, inf
        %1695 = vmin.xlane.f32.xlu0 %v1694
        %v1696 = vpop.xlane.xlu0 %1695
        %v1697 = vsel %vm1624, %v1614, inf
        %1698 = vmin.xlane.f32.xlu0 %v1697
        %v1699 = vpop.xlane.xlu0 %1698
        %v1700 = vsel %vm1624, %v1615, inf
        %1701 = vmin.xlane.f32.xlu0 %v1700
        %v1702 = vpop.xlane.xlu0 %1701
        %v1703 = vsel %vm1624, %v1616, inf
        %1704 = vmin.xlane.f32.xlu0 %v1703
        %v1705 = vpop.xlane.xlu0 %1704
        %v1706 = vsel %vm948, %v1617, inf
        %1707 = vmin.xlane.f32.xlu0 %v1706
        %v1708 = vpop.xlane.xlu0 %1707
        %v1709 = vsel %vm1624, %v1618, inf
        %1710 = vmin.xlane.f32.xlu0 %v1709
        %v1711 = vpop.xlane.xlu0 %1710
        %v1712 = vsel %vm1624, %v1619, inf
        %1713 = vmin.xlane.f32.xlu0 %v1712
        %v1714 = vpop.xlane.xlu0 %1713
        %v1715 = vsel %vm1624, %v1620, inf
        %1716 = vmin.xlane.f32.xlu0 %v1715
        %v1717 = vpop.xlane.xlu0 %1716
        %v1718 = vsel %vm948, %v1621, inf
        %1719 = vmin.xlane.f32.xlu0 %v1718
        %v1720 = vpop.xlane.xlu0 %1719
        %v1721 = vmin.f32 %v1627, %v1630
        %v1722 = vmin.f32 %v1721, %v1633
        %v1723 = vsel %vm425, %v1636, inf
        %v1724 = vmin.f32 %v1722, %v1723
        %v1725 = vrot.slane %v1724, 4
        %v1726 = vmin.f32 %v1724, %v1725
        %v1727 = vrot.slane %v1726, 2
        %v1728 = vmin.f32 %v1726, %v1727
        %v1729 = vrot.slane %v1728, 1
        %v1730 = vmin.f32 %v1728, %v1729
        %v1731 = vmin.f32 %v1639, %v1642
        %v1732 = vmin.f32 %v1731, %v1645
        %v1733 = vsel %vm425, %v1648, inf
        %v1734 = vmin.f32 %v1732, %v1733
        %v1735 = vrot.slane %v1734, 4
        %v1736 = vmin.f32 %v1734, %v1735
        %v1737 = vrot.slane %v1736, 2
        %v1738 = vmin.f32 %v1736, %v1737
        %v1739 = vrot.slane %v1738, 1
        %v1740 = vmin.f32 %v1738, %v1739
        %v1741 = vmin.f32 %v1651, %v1654
        %v1742 = vmin.f32 %v1741, %v1657
        %v1743 = vsel %vm425, %v1660, inf
        %v1744 = vmin.f32 %v1742, %v1743
        %v1745 = vrot.slane %v1744, 4
        %v1746 = vmin.f32 %v1744, %v1745
        %v1747 = vrot.slane %v1746, 2
        %v1748 = vmin.f32 %v1746, %v1747
        %v1749 = vrot.slane %v1748, 1
        %v1750 = vmin.f32 %v1748, %v1749
        %v1751 = vmin.f32 %v1663, %v1666
        %v1752 = vmin.f32 %v1751, %v1669
        %v1753 = vsel %vm425, %v1672, inf
        %v1754 = vmin.f32 %v1752, %v1753
        %v1755 = vrot.slane %v1754, 4
        %v1756 = vmin.f32 %v1754, %v1755
        %v1757 = vrot.slane %v1756, 2
        %v1758 = vmin.f32 %v1756, %v1757
        %v1759 = vrot.slane %v1758, 1
        %v1760 = vmin.f32 %v1758, %v1759
        %v1761 = vmin.f32 %v1675, %v1678
        %v1762 = vmin.f32 %v1761, %v1681
        %v1763 = vsel %vm425, %v1684, inf
        %v1764 = vmin.f32 %v1762, %v1763
        %v1765 = vrot.slane %v1764, 4
        %v1766 = vmin.f32 %v1764, %v1765
        %v1767 = vrot.slane %v1766, 2
        %v1768 = vmin.f32 %v1766, %v1767
        %v1769 = vrot.slane %v1768, 1
        %v1770 = vmin.f32 %v1768, %v1769
        %v1771 = vmin.f32 %v1687, %v1690
        %v1772 = vmin.f32 %v1771, %v1693
        %v1773 = vsel %vm425, %v1696, inf
        %v1774 = vmin.f32 %v1772, %v1773
        %v1775 = vrot.slane %v1774, 4
        %v1776 = vmin.f32 %v1774, %v1775
        %v1777 = vrot.slane %v1776, 2
        %v1778 = vmin.f32 %v1776, %v1777
        %v1779 = vrot.slane %v1778, 1
        %v1780 = vmin.f32 %v1778, %v1779
        %v1781 = vmin.f32 %v1699, %v1702
        %v1782 = vmin.f32 %v1781, %v1705
        %v1783 = vsel %vm425, %v1708, inf
        %v1784 = vmin.f32 %v1782, %v1783
        %v1785 = vrot.slane %v1784, 4
        %v1786 = vmin.f32 %v1784, %v1785
        %v1787 = vrot.slane %v1786, 2
        %v1788 = vmin.f32 %v1786, %v1787
        %v1789 = vrot.slane %v1788, 1
        %v1790 = vmin.f32 %v1788, %v1789
        %v1791 = vmin.f32 %v1711, %v1714
        %v1792 = vmin.f32 %v1791, %v1717
        %v1793 = vsel %vm425, %v1720, inf
        %v1794 = vmin.f32 %v1792, %v1793
        %v1795 = vrot.slane %v1794, 4
        %v1796 = vmin.f32 %v1794, %v1795
        %v1797 = vrot.slane %v1796, 2
        %v1798 = vmin.f32 %v1796, %v1797
        %v1799 = vrot.slane %v1798, 1
        %v1800 = vmin.f32 %v1798, %v1799
        %vm1801 = vcmp.eq.f32.partialorder %v1590, %v1730
        %vm1802 = vcmp.eq.f32.partialorder %v1591, %v1730
        %vm1803 = vcmp.eq.f32.partialorder %v1592, %v1730
        %vm1804 = vcmp.eq.f32.partialorder %v1593, %v1730
        %vm1805 = vcmp.eq.f32.partialorder %v1594, %v1740
        %vm1806 = vcmp.eq.f32.partialorder %v1595, %v1740
        %vm1807 = vcmp.eq.f32.partialorder %v1596, %v1740
        %vm1808 = vcmp.eq.f32.partialorder %v1597, %v1740
        %vm1809 = vcmp.eq.f32.partialorder %v1598, %v1750
        %vm1810 = vcmp.eq.f32.partialorder %v1599, %v1750
        %vm1811 = vcmp.eq.f32.partialorder %v1600, %v1750
        %vm1812 = vcmp.eq.f32.partialorder %v1601, %v1750
        %vm1813 = vcmp.eq.f32.partialorder %v1602, %v1760
        %vm1814 = vcmp.eq.f32.partialorder %v1603, %v1760
        %vm1815 = vcmp.eq.f32.partialorder %v1604, %v1760
        %vm1816 = vcmp.eq.f32.partialorder %v1605, %v1760
        %vm1817 = vcmp.eq.f32.partialorder %v1606, %v1770
        %vm1818 = vcmp.eq.f32.partialorder %v1607, %v1770
        %vm1819 = vcmp.eq.f32.partialorder %v1608, %v1770
        %vm1820 = vcmp.eq.f32.partialorder %v1609, %v1770
        %vm1821 = vcmp.eq.f32.partialorder %v1610, %v1780
        %vm1822 = vcmp.eq.f32.partialorder %v1611, %v1780
        %vm1823 = vcmp.eq.f32.partialorder %v1612, %v1780
        %vm1824 = vcmp.eq.f32.partialorder %v1613, %v1780
        %vm1825 = vcmp.eq.f32.partialorder %v1614, %v1790
        %vm1826 = vcmp.eq.f32.partialorder %v1615, %v1790
        %vm1827 = vcmp.eq.f32.partialorder %v1616, %v1790
        %vm1828 = vcmp.eq.f32.partialorder %v1617, %v1790
        %vm1829 = vcmp.eq.f32.partialorder %v1618, %v1800
        %vm1830 = vcmp.eq.f32.partialorder %v1619, %v1800
        %vm1831 = vcmp.eq.f32.partialorder %v1620, %v1800
        %vm1832 = vcmp.eq.f32.partialorder %v1621, %v1800
        %v1833 = vsel %vm1801, %v1301, 216
        %v1834 = vsel %vm1802, %v1302, 216
        %v1835 = vsel %vm1803, %v1303, 216
        %v1836 = vsel %vm1804, %v1304, 216
        %v1837 = vsel %vm1805, %v1301, 216
        %v1838 = vsel %vm1806, %v1302, 216
        %v1839 = vsel %vm1807, %v1303, 216
        %v1840 = vsel %vm1808, %v1304, 216
        %v1841 = vsel %vm1809, %v1301, 216
        %v1842 = vsel %vm1810, %v1302, 216
        %v1843 = vsel %vm1811, %v1303, 216
        %v1844 = vsel %vm1812, %v1304, 216
        %v1845 = vsel %vm1813, %v1301, 216
        %v1846 = vsel %vm1814, %v1302, 216
        %v1847 = vsel %vm1815, %v1303, 216
        %v1848 = vsel %vm1816, %v1304, 216
        %v1849 = vsel %vm1817, %v1301, 216
        %v1850 = vsel %vm1818, %v1302, 216
        %v1851 = vsel %vm1819, %v1303, 216
        %v1852 = vsel %vm1820, %v1304, 216
        %v1853 = vsel %vm1821, %v1301, 216
        %v1854 = vsel %vm1822, %v1302, 216
        %v1855 = vsel %vm1823, %v1303, 216
        %v1856 = vsel %vm1824, %v1304, 216
        %v1857 = vsel %vm1825, %v1301, 216
        %v1858 = vsel %vm1826, %v1302, 216
        %v1859 = vsel %vm1827, %v1303, 216
        %v1860 = vsel %vm1828, %v1304, 216
        %v1861 = vsel %vm1829, %v1301, 216
        %v1862 = vsel %vm1830, %v1302, 216
        %v1863 = vsel %vm1831, %v1303, 216
        %v1864 = vsel %vm1832, %v1304, 216
        %v1865 = vsel %vm1624, %v1833, 2147483647
        %v1866 = vand.u32 %v1865, 65535
        %v1867 = vshra.s32 %v1865, 16
        %v1868 = vcvt.s32.f32 %v1866
        %v1869 = vcvt.s32.f32 %v1867
        %1870 = vmin.xlane.f32.xlu0 %v1869
        %v1871 = vpop.xlane.xlu0 %1870
        %vm1872 = vcmp.eq.f32.partialorder %v1869, %v1871
        %v1873 = vsel %vm1872, %v1868, inf
        %1874 = vmin.xlane.f32.xlu0 %v1873
        %v1875 = vpop.xlane.xlu0 %1874
        %v1876 = vcvt.f32.s32 %v1875
        %v1877 = vcvt.f32.s32 %v1871
        %v1878 = vshll.u32 %v1877, 16
        %v1879 = vadd.s32 %v1878, %v1876
        %v1880 = vsel %vm1624, %v1834, 2147483647
        %v1881 = vand.u32 %v1880, 65535
        %v1882 = vshra.s32 %v1880, 16
        %v1883 = vcvt.s32.f32 %v1881
        %v1884 = vcvt.s32.f32 %v1882
        %1885 = vmin.xlane.f32.xlu0 %v1884
        %v1886 = vpop.xlane.xlu0 %1885
        %vm1887 = vcmp.eq.f32.partialorder %v1884, %v1886
        %v1888 = vsel %vm1887, %v1883, inf
        %1889 = vmin.xlane.f32.xlu0 %v1888
        %v1890 = vpop.xlane.xlu0 %1889
        %v1891 = vcvt.f32.s32 %v1890
        %v1892 = vcvt.f32.s32 %v1886
        %v1893 = vshll.u32 %v1892, 16
        %v1894 = vadd.s32 %v1893, %v1891
        %v1895 = vsel %vm1624, %v1835, 2147483647
        %v1896 = vand.u32 %v1895, 65535
        %v1897 = vshra.s32 %v1895, 16
        %v1898 = vcvt.s32.f32 %v1896
        %v1899 = vcvt.s32.f32 %v1897
        %1900 = vmin.xlane.f32.xlu0 %v1899
        %v1901 = vpop.xlane.xlu0 %1900
        %vm1902 = vcmp.eq.f32.partialorder %v1899, %v1901
        %v1903 = vsel %vm1902, %v1898, inf
        %1904 = vmin.xlane.f32.xlu0 %v1903
        %v1905 = vpop.xlane.xlu0 %1904
        %v1906 = vcvt.f32.s32 %v1905
        %v1907 = vcvt.f32.s32 %v1901
        %v1908 = vshll.u32 %v1907, 16
        %v1909 = vadd.s32 %v1908, %v1906
        %v1910 = vsel %vm948, %v1836, 2147483647
        %v1911 = vand.u32 %v1910, 65535
        %v1912 = vshra.s32 %v1910, 16
        %v1913 = vcvt.s32.f32 %v1911
        %v1914 = vcvt.s32.f32 %v1912
        %1915 = vmin.xlane.f32.xlu0 %v1914
        %v1916 = vpop.xlane.xlu0 %1915
        %vm1917 = vcmp.eq.f32.partialorder %v1914, %v1916
        %v1918 = vsel %vm1917, %v1913, inf
        %1919 = vmin.xlane.f32.xlu0 %v1918
        %v1920 = vpop.xlane.xlu0 %1919
        %v1921 = vcvt.f32.s32 %v1920
        %v1922 = vcvt.f32.s32 %v1916
        %v1923 = vshll.u32 %v1922, 16
        %v1924 = vadd.s32 %v1923, %v1921
        %v1925 = vsel %vm1624, %v1837, 2147483647
        %v1926 = vand.u32 %v1925, 65535
        %v1927 = vshra.s32 %v1925, 16
        %v1928 = vcvt.s32.f32 %v1926
        %v1929 = vcvt.s32.f32 %v1927
        %1930 = vmin.xlane.f32.xlu0 %v1929
        %v1931 = vpop.xlane.xlu0 %1930
        %vm1932 = vcmp.eq.f32.partialorder %v1929, %v1931
        %v1933 = vsel %vm1932, %v1928, inf
        %1934 = vmin.xlane.f32.xlu0 %v1933
        %v1935 = vpop.xlane.xlu0 %1934
        %v1936 = vcvt.f32.s32 %v1935
        %v1937 = vcvt.f32.s32 %v1931
        %v1938 = vshll.u32 %v1937, 16
        %v1939 = vadd.s32 %v1938, %v1936
        %v1940 = vsel %vm1624, %v1838, 2147483647
        %v1941 = vand.u32 %v1940, 65535
        %v1942 = vshra.s32 %v1940, 16
        %v1943 = vcvt.s32.f32 %v1941
        %v1944 = vcvt.s32.f32 %v1942
        %1945 = vmin.xlane.f32.xlu0 %v1944
        %v1946 = vpop.xlane.xlu0 %1945
        %vm1947 = vcmp.eq.f32.partialorder %v1944, %v1946
        %v1948 = vsel %vm1947, %v1943, inf
        %1949 = vmin.xlane.f32.xlu0 %v1948
        %v1950 = vpop.xlane.xlu0 %1949
        %v1951 = vcvt.f32.s32 %v1950
        %v1952 = vcvt.f32.s32 %v1946
        %v1953 = vshll.u32 %v1952, 16
        %v1954 = vadd.s32 %v1953, %v1951
        %v1955 = vsel %vm1624, %v1839, 2147483647
        %v1956 = vand.u32 %v1955, 65535
        %v1957 = vshra.s32 %v1955, 16
        %v1958 = vcvt.s32.f32 %v1956
        %v1959 = vcvt.s32.f32 %v1957
        %1960 = vmin.xlane.f32.xlu0 %v1959
        %v1961 = vpop.xlane.xlu0 %1960
        %vm1962 = vcmp.eq.f32.partialorder %v1959, %v1961
        %v1963 = vsel %vm1962, %v1958, inf
        %1964 = vmin.xlane.f32.xlu0 %v1963
        %v1965 = vpop.xlane.xlu0 %1964
        %v1966 = vcvt.f32.s32 %v1965
        %v1967 = vcvt.f32.s32 %v1961
        %v1968 = vshll.u32 %v1967, 16
        %v1969 = vadd.s32 %v1968, %v1966
        %v1970 = vsel %vm948, %v1840, 2147483647
        %v1971 = vand.u32 %v1970, 65535
        %v1972 = vshra.s32 %v1970, 16
        %v1973 = vcvt.s32.f32 %v1971
        %v1974 = vcvt.s32.f32 %v1972
        %1975 = vmin.xlane.f32.xlu0 %v1974
        %v1976 = vpop.xlane.xlu0 %1975
        %vm1977 = vcmp.eq.f32.partialorder %v1974, %v1976
        %v1978 = vsel %vm1977, %v1973, inf
        %1979 = vmin.xlane.f32.xlu0 %v1978
        %v1980 = vpop.xlane.xlu0 %1979
        %v1981 = vcvt.f32.s32 %v1980
        %v1982 = vcvt.f32.s32 %v1976
        %v1983 = vshll.u32 %v1982, 16
        %v1984 = vadd.s32 %v1983, %v1981
        %v1985 = vsel %vm1624, %v1841, 2147483647
        %v1986 = vand.u32 %v1985, 65535
        %v1987 = vshra.s32 %v1985, 16
        %v1988 = vcvt.s32.f32 %v1986
        %v1989 = vcvt.s32.f32 %v1987
        %1990 = vmin.xlane.f32.xlu0 %v1989
        %v1991 = vpop.xlane.xlu0 %1990
        %vm1992 = vcmp.eq.f32.partialorder %v1989, %v1991
        %v1993 = vsel %vm1992, %v1988, inf
        %1994 = vmin.xlane.f32.xlu0 %v1993
        %v1995 = vpop.xlane.xlu0 %1994
        %v1996 = vcvt.f32.s32 %v1995
        %v1997 = vcvt.f32.s32 %v1991
        %v1998 = vshll.u32 %v1997, 16
        %v1999 = vadd.s32 %v1998, %v1996
        %v2000 = vsel %vm1624, %v1842, 2147483647
        %v2001 = vand.u32 %v2000, 65535
        %v2002 = vshra.s32 %v2000, 16
        %v2003 = vcvt.s32.f32 %v2001
        %v2004 = vcvt.s32.f32 %v2002
        %2005 = vmin.xlane.f32.xlu0 %v2004
        %v2006 = vpop.xlane.xlu0 %2005
        %vm2007 = vcmp.eq.f32.partialorder %v2004, %v2006
        %v2008 = vsel %vm2007, %v2003, inf
        %2009 = vmin.xlane.f32.xlu0 %v2008
        %v2010 = vpop.xlane.xlu0 %2009
        %v2011 = vcvt.f32.s32 %v2010
        %v2012 = vcvt.f32.s32 %v2006
        %v2013 = vshll.u32 %v2012, 16
        %v2014 = vadd.s32 %v2013, %v2011
        %v2015 = vsel %vm1624, %v1843, 2147483647
        %v2016 = vand.u32 %v2015, 65535
        %v2017 = vshra.s32 %v2015, 16
        %v2018 = vcvt.s32.f32 %v2016
        %v2019 = vcvt.s32.f32 %v2017
        %2020 = vmin.xlane.f32.xlu0 %v2019
        %v2021 = vpop.xlane.xlu0 %2020
        %vm2022 = vcmp.eq.f32.partialorder %v2019, %v2021
        %v2023 = vsel %vm2022, %v2018, inf
        %2024 = vmin.xlane.f32.xlu0 %v2023
        %v2025 = vpop.xlane.xlu0 %2024
        %v2026 = vcvt.f32.s32 %v2025
        %v2027 = vcvt.f32.s32 %v2021
        %v2028 = vshll.u32 %v2027, 16
        %v2029 = vadd.s32 %v2028, %v2026
        %v2030 = vsel %vm948, %v1844, 2147483647
        %v2031 = vand.u32 %v2030, 65535
        %v2032 = vshra.s32 %v2030, 16
        %v2033 = vcvt.s32.f32 %v2031
        %v2034 = vcvt.s32.f32 %v2032
        %2035 = vmin.xlane.f32.xlu0 %v2034
        %v2036 = vpop.xlane.xlu0 %2035
        %vm2037 = vcmp.eq.f32.partialorder %v2034, %v2036
        %v2038 = vsel %vm2037, %v2033, inf
        %2039 = vmin.xlane.f32.xlu0 %v2038
        %v2040 = vpop.xlane.xlu0 %2039
        %v2041 = vcvt.f32.s32 %v2040
        %v2042 = vcvt.f32.s32 %v2036
        %v2043 = vshll.u32 %v2042, 16
        %v2044 = vadd.s32 %v2043, %v2041
        %v2045 = vsel %vm1624, %v1845, 2147483647
        %v2046 = vand.u32 %v2045, 65535
        %v2047 = vshra.s32 %v2045, 16
        %v2048 = vcvt.s32.f32 %v2046
        %v2049 = vcvt.s32.f32 %v2047
        %2050 = vmin.xlane.f32.xlu0 %v2049
        %v2051 = vpop.xlane.xlu0 %2050
        %vm2052 = vcmp.eq.f32.partialorder %v2049, %v2051
        %v2053 = vsel %vm2052, %v2048, inf
        %2054 = vmin.xlane.f32.xlu0 %v2053
        %v2055 = vpop.xlane.xlu0 %2054
        %v2056 = vcvt.f32.s32 %v2055
        %v2057 = vcvt.f32.s32 %v2051
        %v2058 = vshll.u32 %v2057, 16
        %v2059 = vadd.s32 %v2058, %v2056
        %v2060 = vsel %vm1624, %v1846, 2147483647
        %v2061 = vand.u32 %v2060, 65535
        %v2062 = vshra.s32 %v2060, 16
        %v2063 = vcvt.s32.f32 %v2061
        %v2064 = vcvt.s32.f32 %v2062
        %2065 = vmin.xlane.f32.xlu0 %v2064
        %v2066 = vpop.xlane.xlu0 %2065
        %vm2067 = vcmp.eq.f32.partialorder %v2064, %v2066
        %v2068 = vsel %vm2067, %v2063, inf
        %2069 = vmin.xlane.f32.xlu0 %v2068
        %v2070 = vpop.xlane.xlu0 %2069
        %v2071 = vcvt.f32.s32 %v2070
        %v2072 = vcvt.f32.s32 %v2066
        %v2073 = vshll.u32 %v2072, 16
        %v2074 = vadd.s32 %v2073, %v2071
        %v2075 = vsel %vm1624, %v1847, 2147483647
        %v2076 = vand.u32 %v2075, 65535
        %v2077 = vshra.s32 %v2075, 16
        %v2078 = vcvt.s32.f32 %v2076
        %v2079 = vcvt.s32.f32 %v2077
        %2080 = vmin.xlane.f32.xlu0 %v2079
        %v2081 = vpop.xlane.xlu0 %2080
        %vm2082 = vcmp.eq.f32.partialorder %v2079, %v2081
        %v2083 = vsel %vm2082, %v2078, inf
        %2084 = vmin.xlane.f32.xlu0 %v2083
        %v2085 = vpop.xlane.xlu0 %2084
        %v2086 = vcvt.f32.s32 %v2085
        %v2087 = vcvt.f32.s32 %v2081
        %v2088 = vshll.u32 %v2087, 16
        %v2089 = vadd.s32 %v2088, %v2086
        %v2090 = vsel %vm948, %v1848, 2147483647
        %v2091 = vand.u32 %v2090, 65535
        %v2092 = vshra.s32 %v2090, 16
        %v2093 = vcvt.s32.f32 %v2091
        %v2094 = vcvt.s32.f32 %v2092
        %2095 = vmin.xlane.f32.xlu0 %v2094
        %v2096 = vpop.xlane.xlu0 %2095
        %vm2097 = vcmp.eq.f32.partialorder %v2094, %v2096
        %v2098 = vsel %vm2097, %v2093, inf
        %2099 = vmin.xlane.f32.xlu0 %v2098
        %v2100 = vpop.xlane.xlu0 %2099
        %v2101 = vcvt.f32.s32 %v2100
        %v2102 = vcvt.f32.s32 %v2096
        %v2103 = vshll.u32 %v2102, 16
        %v2104 = vadd.s32 %v2103, %v2101
        %v2105 = vsel %vm1624, %v1849, 2147483647
        %v2106 = vand.u32 %v2105, 65535
        %v2107 = vshra.s32 %v2105, 16
        %v2108 = vcvt.s32.f32 %v2106
        %v2109 = vcvt.s32.f32 %v2107
        %2110 = vmin.xlane.f32.xlu0 %v2109
        %v2111 = vpop.xlane.xlu0 %2110
        %vm2112 = vcmp.eq.f32.partialorder %v2109, %v2111
        %v2113 = vsel %vm2112, %v2108, inf
        %2114 = vmin.xlane.f32.xlu0 %v2113
        %v2115 = vpop.xlane.xlu0 %2114
        %v2116 = vcvt.f32.s32 %v2115
        %v2117 = vcvt.f32.s32 %v2111
        %v2118 = vshll.u32 %v2117, 16
        %v2119 = vadd.s32 %v2118, %v2116
        %v2120 = vsel %vm1624, %v1850, 2147483647
        %v2121 = vand.u32 %v2120, 65535
        %v2122 = vshra.s32 %v2120, 16
        %v2123 = vcvt.s32.f32 %v2121
        %v2124 = vcvt.s32.f32 %v2122
        %2125 = vmin.xlane.f32.xlu0 %v2124
        %v2126 = vpop.xlane.xlu0 %2125
        %vm2127 = vcmp.eq.f32.partialorder %v2124, %v2126
        %v2128 = vsel %vm2127, %v2123, inf
        %2129 = vmin.xlane.f32.xlu0 %v2128
        %v2130 = vpop.xlane.xlu0 %2129
        %v2131 = vcvt.f32.s32 %v2130
        %v2132 = vcvt.f32.s32 %v2126
        %v2133 = vshll.u32 %v2132, 16
        %v2134 = vadd.s32 %v2133, %v2131
        %v2135 = vsel %vm1624, %v1851, 2147483647
        %v2136 = vand.u32 %v2135, 65535
        %v2137 = vshra.s32 %v2135, 16
        %v2138 = vcvt.s32.f32 %v2136
        %v2139 = vcvt.s32.f32 %v2137
        %2140 = vmin.xlane.f32.xlu0 %v2139
        %v2141 = vpop.xlane.xlu0 %2140
        %vm2142 = vcmp.eq.f32.partialorder %v2139, %v2141
        %v2143 = vsel %vm2142, %v2138, inf
        %2144 = vmin.xlane.f32.xlu0 %v2143
        %v2145 = vpop.xlane.xlu0 %2144
        %v2146 = vcvt.f32.s32 %v2145
        %v2147 = vcvt.f32.s32 %v2141
        %v2148 = vshll.u32 %v2147, 16
        %v2149 = vadd.s32 %v2148, %v2146
        %v2150 = vsel %vm948, %v1852, 2147483647
        %v2151 = vand.u32 %v2150, 65535
        %v2152 = vshra.s32 %v2150, 16
        %v2153 = vcvt.s32.f32 %v2151
        %v2154 = vcvt.s32.f32 %v2152
        %2155 = vmin.xlane.f32.xlu0 %v2154
        %v2156 = vpop.xlane.xlu0 %2155
        %vm2157 = vcmp.eq.f32.partialorder %v2154, %v2156
        %v2158 = vsel %vm2157, %v2153, inf
        %2159 = vmin.xlane.f32.xlu0 %v2158
        %v2160 = vpop.xlane.xlu0 %2159
        %v2161 = vcvt.f32.s32 %v2160
        %v2162 = vcvt.f32.s32 %v2156
        %v2163 = vshll.u32 %v2162, 16
        %v2164 = vadd.s32 %v2163, %v2161
        %v2165 = vsel %vm1624, %v1853, 2147483647
        %v2166 = vand.u32 %v2165, 65535
        %v2167 = vshra.s32 %v2165, 16
        %v2168 = vcvt.s32.f32 %v2166
        %v2169 = vcvt.s32.f32 %v2167
        %2170 = vmin.xlane.f32.xlu0 %v2169
        %v2171 = vpop.xlane.xlu0 %2170
        %vm2172 = vcmp.eq.f32.partialorder %v2169, %v2171
        %v2173 = vsel %vm2172, %v2168, inf
        %2174 = vmin.xlane.f32.xlu0 %v2173
        %v2175 = vpop.xlane.xlu0 %2174
        %v2176 = vcvt.f32.s32 %v2175
        %v2177 = vcvt.f32.s32 %v2171
        %v2178 = vshll.u32 %v2177, 16
        %v2179 = vadd.s32 %v2178, %v2176
        %v2180 = vsel %vm1624, %v1854, 2147483647
        %v2181 = vand.u32 %v2180, 65535
        %v2182 = vshra.s32 %v2180, 16
        %v2183 = vcvt.s32.f32 %v2181
        %v2184 = vcvt.s32.f32 %v2182
        %2185 = vmin.xlane.f32.xlu0 %v2184
        %v2186 = vpop.xlane.xlu0 %2185
        %vm2187 = vcmp.eq.f32.partialorder %v2184, %v2186
        %v2188 = vsel %vm2187, %v2183, inf
        %2189 = vmin.xlane.f32.xlu0 %v2188
        %v2190 = vpop.xlane.xlu0 %2189
        %v2191 = vcvt.f32.s32 %v2190
        %v2192 = vcvt.f32.s32 %v2186
        %v2193 = vshll.u32 %v2192, 16
        %v2194 = vadd.s32 %v2193, %v2191
        %v2195 = vsel %vm1624, %v1855, 2147483647
        %v2196 = vand.u32 %v2195, 65535
        %v2197 = vshra.s32 %v2195, 16
        %v2198 = vcvt.s32.f32 %v2196
        %v2199 = vcvt.s32.f32 %v2197
        %2200 = vmin.xlane.f32.xlu0 %v2199
        %v2201 = vpop.xlane.xlu0 %2200
        %vm2202 = vcmp.eq.f32.partialorder %v2199, %v2201
        %v2203 = vsel %vm2202, %v2198, inf
        %2204 = vmin.xlane.f32.xlu0 %v2203
        %v2205 = vpop.xlane.xlu0 %2204
        %v2206 = vcvt.f32.s32 %v2205
        %v2207 = vcvt.f32.s32 %v2201
        %v2208 = vshll.u32 %v2207, 16
        %v2209 = vadd.s32 %v2208, %v2206
        %v2210 = vsel %vm948, %v1856, 2147483647
        %v2211 = vand.u32 %v2210, 65535
        %v2212 = vshra.s32 %v2210, 16
        %v2213 = vcvt.s32.f32 %v2211
        %v2214 = vcvt.s32.f32 %v2212
        %2215 = vmin.xlane.f32.xlu0 %v2214
        %v2216 = vpop.xlane.xlu0 %2215
        %vm2217 = vcmp.eq.f32.partialorder %v2214, %v2216
        %v2218 = vsel %vm2217, %v2213, inf
        %2219 = vmin.xlane.f32.xlu0 %v2218
        %v2220 = vpop.xlane.xlu0 %2219
        %v2221 = vcvt.f32.s32 %v2220
        %v2222 = vcvt.f32.s32 %v2216
        %v2223 = vshll.u32 %v2222, 16
        %v2224 = vadd.s32 %v2223, %v2221
        %v2225 = vsel %vm1624, %v1857, 2147483647
        %v2226 = vand.u32 %v2225, 65535
        %v2227 = vshra.s32 %v2225, 16
        %v2228 = vcvt.s32.f32 %v2226
        %v2229 = vcvt.s32.f32 %v2227
        %2230 = vmin.xlane.f32.xlu0 %v2229
        %v2231 = vpop.xlane.xlu0 %2230
        %vm2232 = vcmp.eq.f32.partialorder %v2229, %v2231
        %v2233 = vsel %vm2232, %v2228, inf
        %2234 = vmin.xlane.f32.xlu0 %v2233
        %v2235 = vpop.xlane.xlu0 %2234
        %v2236 = vcvt.f32.s32 %v2235
        %v2237 = vcvt.f32.s32 %v2231
        %v2238 = vshll.u32 %v2237, 16
        %v2239 = vadd.s32 %v2238, %v2236
        %v2240 = vsel %vm1624, %v1858, 2147483647
        %v2241 = vand.u32 %v2240, 65535
        %v2242 = vshra.s32 %v2240, 16
        %v2243 = vcvt.s32.f32 %v2241
        %v2244 = vcvt.s32.f32 %v2242
        %2245 = vmin.xlane.f32.xlu0 %v2244
        %v2246 = vpop.xlane.xlu0 %2245
        %vm2247 = vcmp.eq.f32.partialorder %v2244, %v2246
        %v2248 = vsel %vm2247, %v2243, inf
        %2249 = vmin.xlane.f32.xlu0 %v2248
        %v2250 = vpop.xlane.xlu0 %2249
        %v2251 = vcvt.f32.s32 %v2250
        %v2252 = vcvt.f32.s32 %v2246
        %v2253 = vshll.u32 %v2252, 16
        %v2254 = vadd.s32 %v2253, %v2251
        %v2255 = vsel %vm1624, %v1859, 2147483647
        %v2256 = vand.u32 %v2255, 65535
        %v2257 = vshra.s32 %v2255, 16
        %v2258 = vcvt.s32.f32 %v2256
        %v2259 = vcvt.s32.f32 %v2257
        %2260 = vmin.xlane.f32.xlu0 %v2259
        %v2261 = vpop.xlane.xlu0 %2260
        %vm2262 = vcmp.eq.f32.partialorder %v2259, %v2261
        %v2263 = vsel %vm2262, %v2258, inf
        %2264 = vmin.xlane.f32.xlu0 %v2263
        %v2265 = vpop.xlane.xlu0 %2264
        %v2266 = vcvt.f32.s32 %v2265
        %v2267 = vcvt.f32.s32 %v2261
        %v2268 = vshll.u32 %v2267, 16
        %v2269 = vadd.s32 %v2268, %v2266
        %v2270 = vsel %vm948, %v1860, 2147483647
        %v2271 = vand.u32 %v2270, 65535
        %v2272 = vshra.s32 %v2270, 16
        %v2273 = vcvt.s32.f32 %v2271
        %v2274 = vcvt.s32.f32 %v2272
        %2275 = vmin.xlane.f32.xlu0 %v2274
        %v2276 = vpop.xlane.xlu0 %2275
        %vm2277 = vcmp.eq.f32.partialorder %v2274, %v2276
        %v2278 = vsel %vm2277, %v2273, inf
        %2279 = vmin.xlane.f32.xlu0 %v2278
        %v2280 = vpop.xlane.xlu0 %2279
        %v2281 = vcvt.f32.s32 %v2280
        %v2282 = vcvt.f32.s32 %v2276
        %v2283 = vshll.u32 %v2282, 16
        %v2284 = vadd.s32 %v2283, %v2281
        %v2285 = vsel %vm1624, %v1861, 2147483647
        %v2286 = vand.u32 %v2285, 65535
        %v2287 = vshra.s32 %v2285, 16
        %v2288 = vcvt.s32.f32 %v2286
        %v2289 = vcvt.s32.f32 %v2287
        %2290 = vmin.xlane.f32.xlu0 %v2289
        %v2291 = vpop.xlane.xlu0 %2290
        %vm2292 = vcmp.eq.f32.partialorder %v2289, %v2291
        %v2293 = vsel %vm2292, %v2288, inf
        %2294 = vmin.xlane.f32.xlu0 %v2293
        %v2295 = vpop.xlane.xlu0 %2294
        %v2296 = vcvt.f32.s32 %v2295
        %v2297 = vcvt.f32.s32 %v2291
        %v2298 = vshll.u32 %v2297, 16
        %v2299 = vadd.s32 %v2298, %v2296
        %v2300 = vsel %vm1624, %v1862, 2147483647
        %v2301 = vand.u32 %v2300, 65535
        %v2302 = vshra.s32 %v2300, 16
        %v2303 = vcvt.s32.f32 %v2301
        %v2304 = vcvt.s32.f32 %v2302
        %2305 = vmin.xlane.f32.xlu0 %v2304
        %v2306 = vpop.xlane.xlu0 %2305
        %vm2307 = vcmp.eq.f32.partialorder %v2304, %v2306
        %v2308 = vsel %vm2307, %v2303, inf
        %2309 = vmin.xlane.f32.xlu0 %v2308
        %v2310 = vpop.xlane.xlu0 %2309
        %v2311 = vcvt.f32.s32 %v2310
        %v2312 = vcvt.f32.s32 %v2306
        %v2313 = vshll.u32 %v2312, 16
        %v2314 = vadd.s32 %v2313, %v2311
        %v2315 = vsel %vm1624, %v1863, 2147483647
        %v2316 = vand.u32 %v2315, 65535
        %v2317 = vshra.s32 %v2315, 16
        %v2318 = vcvt.s32.f32 %v2316
        %v2319 = vcvt.s32.f32 %v2317
        %2320 = vmin.xlane.f32.xlu0 %v2319
        %v2321 = vpop.xlane.xlu0 %2320
        %vm2322 = vcmp.eq.f32.partialorder %v2319, %v2321
        %v2323 = vsel %vm2322, %v2318, inf
        %2324 = vmin.xlane.f32.xlu0 %v2323
        %v2325 = vpop.xlane.xlu0 %2324
        %v2326 = vcvt.f32.s32 %v2325
        %v2327 = vcvt.f32.s32 %v2321
        %v2328 = vshll.u32 %v2327, 16
        %v2329 = vadd.s32 %v2328, %v2326
        %v2330 = vsel %vm948, %v1864, 2147483647
        %v2331 = vand.u32 %v2330, 65535
        %v2332 = vshra.s32 %v2330, 16
        %v2333 = vcvt.s32.f32 %v2331
        %v2334 = vcvt.s32.f32 %v2332
        %2335 = vmin.xlane.f32.xlu0 %v2334
        %v2336 = vpop.xlane.xlu0 %2335
        %vm2337 = vcmp.eq.f32.partialorder %v2334, %v2336
        %v2338 = vsel %vm2337, %v2333, inf
        %2339 = vmin.xlane.f32.xlu0 %v2338
        %v2340 = vpop.xlane.xlu0 %2339
        %v2341 = vcvt.f32.s32 %v2340
        %v2342 = vcvt.f32.s32 %v2336
        %v2343 = vshll.u32 %v2342, 16
        %v2344 = vadd.s32 %v2343, %v2341
        %vm2345 = vcmp.lt.s32.totalorder %v1879, %v1894
        %v2346 = vsel %vm2345, %v1879, %v1894
        %vm2347 = vcmp.lt.s32.totalorder %v2346, %v1909
        %v2348 = vsel %vm2347, %v2346, %v1909
        %v2349 = vsel %vm425, %v1924, 2147483647
        %vm2350 = vcmp.lt.s32.totalorder %v2348, %v2349
        %v2351 = vsel %vm2350, %v2348, %v2349
        %v2352 = vrot.slane %v2351, 4
        %vm2353 = vcmp.lt.s32.totalorder %v2351, %v2352
        %v2354 = vsel %vm2353, %v2351, %v2352
        %v2355 = vrot.slane %v2354, 2
        %vm2356 = vcmp.lt.s32.totalorder %v2354, %v2355
        %v2357 = vsel %vm2356, %v2354, %v2355
        %v2358 = vrot.slane %v2357, 1
        %vm2359 = vcmp.lt.s32.totalorder %v2357, %v2358
        %v2360 = vsel %vm2359, %v2357, %v2358
        %vm2361 = vcmp.lt.s32.totalorder %v1939, %v1954
        %v2362 = vsel %vm2361, %v1939, %v1954
        %vm2363 = vcmp.lt.s32.totalorder %v2362, %v1969
        %v2364 = vsel %vm2363, %v2362, %v1969
        %v2365 = vsel %vm425, %v1984, 2147483647
        %vm2366 = vcmp.lt.s32.totalorder %v2364, %v2365
        %v2367 = vsel %vm2366, %v2364, %v2365
        %v2368 = vrot.slane %v2367, 4
        %vm2369 = vcmp.lt.s32.totalorder %v2367, %v2368
        %v2370 = vsel %vm2369, %v2367, %v2368
        %v2371 = vrot.slane %v2370, 2
        %vm2372 = vcmp.lt.s32.totalorder %v2370, %v2371
        %v2373 = vsel %vm2372, %v2370, %v2371
        %v2374 = vrot.slane %v2373, 1
        %vm2375 = vcmp.lt.s32.totalorder %v2373, %v2374
        %v2376 = vsel %vm2375, %v2373, %v2374
        %vm2377 = vcmp.lt.s32.totalorder %v1999, %v2014
        %v2378 = vsel %vm2377, %v1999, %v2014
        %vm2379 = vcmp.lt.s32.totalorder %v2378, %v2029
        %v2380 = vsel %vm2379, %v2378, %v2029
        %v2381 = vsel %vm425, %v2044, 2147483647
        %vm2382 = vcmp.lt.s32.totalorder %v2380, %v2381
        %v2383 = vsel %vm2382, %v2380, %v2381
        %v2384 = vrot.slane %v2383, 4
        %vm2385 = vcmp.lt.s32.totalorder %v2383, %v2384
        %v2386 = vsel %vm2385, %v2383, %v2384
        %v2387 = vrot.slane %v2386, 2
        %vm2388 = vcmp.lt.s32.totalorder %v2386, %v2387
        %v2389 = vsel %vm2388, %v2386, %v2387
        %v2390 = vrot.slane %v2389, 1
        %vm2391 = vcmp.lt.s32.totalorder %v2389, %v2390
        %v2392 = vsel %vm2391, %v2389, %v2390
        %vm2393 = vcmp.lt.s32.totalorder %v2059, %v2074
        %v2394 = vsel %vm2393, %v2059, %v2074
        %vm2395 = vcmp.lt.s32.totalorder %v2394, %v2089
        %v2396 = vsel %vm2395, %v2394, %v2089
        %v2397 = vsel %vm425, %v2104, 2147483647
        %vm2398 = vcmp.lt.s32.totalorder %v2396, %v2397
        %v2399 = vsel %vm2398, %v2396, %v2397
        %v2400 = vrot.slane %v2399, 4
        %vm2401 = vcmp.lt.s32.totalorder %v2399, %v2400
        %v2402 = vsel %vm2401, %v2399, %v2400
        %v2403 = vrot.slane %v2402, 2
        %vm2404 = vcmp.lt.s32.totalorder %v2402, %v2403
        %v2405 = vsel %vm2404, %v2402, %v2403
        %v2406 = vrot.slane %v2405, 1
        %vm2407 = vcmp.lt.s32.totalorder %v2405, %v2406
        %v2408 = vsel %vm2407, %v2405, %v2406
        %vm2409 = vcmp.lt.s32.totalorder %v2119, %v2134
        %v2410 = vsel %vm2409, %v2119, %v2134
        %vm2411 = vcmp.lt.s32.totalorder %v2410, %v2149
        %v2412 = vsel %vm2411, %v2410, %v2149
        %v2413 = vsel %vm425, %v2164, 2147483647
        %vm2414 = vcmp.lt.s32.totalorder %v2412, %v2413
        %v2415 = vsel %vm2414, %v2412, %v2413
        %v2416 = vrot.slane %v2415, 4
        %vm2417 = vcmp.lt.s32.totalorder %v2415, %v2416
        %v2418 = vsel %vm2417, %v2415, %v2416
        %v2419 = vrot.slane %v2418, 2
        %vm2420 = vcmp.lt.s32.totalorder %v2418, %v2419
        %v2421 = vsel %vm2420, %v2418, %v2419
        %v2422 = vrot.slane %v2421, 1
        %vm2423 = vcmp.lt.s32.totalorder %v2421, %v2422
        %v2424 = vsel %vm2423, %v2421, %v2422
        %vm2425 = vcmp.lt.s32.totalorder %v2179, %v2194
        %v2426 = vsel %vm2425, %v2179, %v2194
        %vm2427 = vcmp.lt.s32.totalorder %v2426, %v2209
        %v2428 = vsel %vm2427, %v2426, %v2209
        %v2429 = vsel %vm425, %v2224, 2147483647
        %vm2430 = vcmp.lt.s32.totalorder %v2428, %v2429
        %v2431 = vsel %vm2430, %v2428, %v2429
        %v2432 = vrot.slane %v2431, 4
        %vm2433 = vcmp.lt.s32.totalorder %v2431, %v2432
        %v2434 = vsel %vm2433, %v2431, %v2432
        %v2435 = vrot.slane %v2434, 2
        %vm2436 = vcmp.lt.s32.totalorder %v2434, %v2435
        %v2437 = vsel %vm2436, %v2434, %v2435
        %v2438 = vrot.slane %v2437, 1
        %vm2439 = vcmp.lt.s32.totalorder %v2437, %v2438
        %v2440 = vsel %vm2439, %v2437, %v2438
        %vm2441 = vcmp.lt.s32.totalorder %v2239, %v2254
        %v2442 = vsel %vm2441, %v2239, %v2254
        %vm2443 = vcmp.lt.s32.totalorder %v2442, %v2269
        %v2444 = vsel %vm2443, %v2442, %v2269
        %v2445 = vsel %vm425, %v2284, 2147483647
        %vm2446 = vcmp.lt.s32.totalorder %v2444, %v2445
        %v2447 = vsel %vm2446, %v2444, %v2445
        %v2448 = vrot.slane %v2447, 4
        %vm2449 = vcmp.lt.s32.totalorder %v2447, %v2448
        %v2450 = vsel %vm2449, %v2447, %v2448
        %v2451 = vrot.slane %v2450, 2
        %vm2452 = vcmp.lt.s32.totalorder %v2450, %v2451
        %v2453 = vsel %vm2452, %v2450, %v2451
        %v2454 = vrot.slane %v2453, 1
        %vm2455 = vcmp.lt.s32.totalorder %v2453, %v2454
        %v2456 = vsel %vm2455, %v2453, %v2454
        %vm2457 = vcmp.lt.s32.totalorder %v2299, %v2314
        %v2458 = vsel %vm2457, %v2299, %v2314
        %vm2459 = vcmp.lt.s32.totalorder %v2458, %v2329
        %v2460 = vsel %vm2459, %v2458, %v2329
        %v2461 = vsel %vm425, %v2344, 2147483647
        %vm2462 = vcmp.lt.s32.totalorder %v2460, %v2461
        %v2463 = vsel %vm2462, %v2460, %v2461
        %v2464 = vrot.slane %v2463, 4
        %vm2465 = vcmp.lt.s32.totalorder %v2463, %v2464
        %v2466 = vsel %vm2465, %v2463, %v2464
        %v2467 = vrot.slane %v2466, 2
        %vm2468 = vcmp.lt.s32.totalorder %v2466, %v2467
        %v2469 = vsel %vm2468, %v2466, %v2467
        %v2470 = vrot.slane %v2469, 1
        %vm2471 = vcmp.lt.s32.totalorder %v2469, %v2470
        %v2472 = vsel %vm2471, %v2469, %v2470
        %vm2473 = vcmp.eq.s32.totalorder %v1301, %v2360
        %vm2474 = vcmp.eq.s32.totalorder %v1302, %v2360
        %vm2475 = vcmp.eq.s32.totalorder %v1303, %v2360
        %vm2476 = vcmp.eq.s32.totalorder %v1304, %v2360
        %vm2477 = vcmp.eq.s32.totalorder %v1301, %v2376
        %vm2478 = vcmp.eq.s32.totalorder %v1302, %v2376
        %vm2479 = vcmp.eq.s32.totalorder %v1303, %v2376
        %vm2480 = vcmp.eq.s32.totalorder %v1304, %v2376
        %vm2481 = vcmp.eq.s32.totalorder %v1301, %v2392
        %vm2482 = vcmp.eq.s32.totalorder %v1302, %v2392
        %vm2483 = vcmp.eq.s32.totalorder %v1303, %v2392
        %vm2484 = vcmp.eq.s32.totalorder %v1304, %v2392
        %vm2485 = vcmp.eq.s32.totalorder %v1301, %v2408
        %vm2486 = vcmp.eq.s32.totalorder %v1302, %v2408
        %vm2487 = vcmp.eq.s32.totalorder %v1303, %v2408
        %vm2488 = vcmp.eq.s32.totalorder %v1304, %v2408
        %vm2489 = vcmp.eq.s32.totalorder %v1301, %v2424
        %vm2490 = vcmp.eq.s32.totalorder %v1302, %v2424
        %vm2491 = vcmp.eq.s32.totalorder %v1303, %v2424
        %vm2492 = vcmp.eq.s32.totalorder %v1304, %v2424
        %vm2493 = vcmp.eq.s32.totalorder %v1301, %v2440
        %vm2494 = vcmp.eq.s32.totalorder %v1302, %v2440
        %vm2495 = vcmp.eq.s32.totalorder %v1303, %v2440
        %vm2496 = vcmp.eq.s32.totalorder %v1304, %v2440
        %vm2497 = vcmp.eq.s32.totalorder %v1301, %v2456
        %vm2498 = vcmp.eq.s32.totalorder %v1302, %v2456
        %vm2499 = vcmp.eq.s32.totalorder %v1303, %v2456
        %vm2500 = vcmp.eq.s32.totalorder %v1304, %v2456
        %vm2501 = vcmp.eq.s32.totalorder %v1301, %v2472
        %vm2502 = vcmp.eq.s32.totalorder %v1302, %v2472
        %vm2503 = vcmp.eq.s32.totalorder %v1303, %v2472
        %vm2504 = vcmp.eq.s32.totalorder %v1304, %v2472
        %v2505 = vsel %vm2473, 1, 0
        %v2506 = vsel %vm2474, 1, 0
        %v2507 = vsel %vm2475, 1, 0
        %v2508 = vsel %vm2476, 1, 0
        %v2509 = vsel %vm2477, 1, 0
        %v2510 = vsel %vm2478, 1, 0
        %v2511 = vsel %vm2479, 1, 0
        %v2512 = vsel %vm2480, 1, 0
        %v2513 = vsel %vm2481, 1, 0
        %v2514 = vsel %vm2482, 1, 0
        %v2515 = vsel %vm2483, 1, 0
        %v2516 = vsel %vm2484, 1, 0
        %v2517 = vsel %vm2485, 1, 0
        %v2518 = vsel %vm2486, 1, 0
        %v2519 = vsel %vm2487, 1, 0
        %v2520 = vsel %vm2488, 1, 0
        %v2521 = vsel %vm2489, 1, 0
        %v2522 = vsel %vm2490, 1, 0
        %v2523 = vsel %vm2491, 1, 0
        %v2524 = vsel %vm2492, 1, 0
        %v2525 = vsel %vm2493, 1, 0
        %v2526 = vsel %vm2494, 1, 0
        %v2527 = vsel %vm2495, 1, 0
        %v2528 = vsel %vm2496, 1, 0
        %v2529 = vsel %vm2497, 1, 0
        %v2530 = vsel %vm2498, 1, 0
        %v2531 = vsel %vm2499, 1, 0
        %v2532 = vsel %vm2500, 1, 0
        %v2533 = vsel %vm2501, 1, 0
        %v2534 = vsel %vm2502, 1, 0
        %v2535 = vsel %vm2503, 1, 0
        %v2536 = vsel %vm2504, 1, 0
        %v2537 = vcvt.s32.f32 %v2505
        %v2538 = vcvt.s32.f32 %v2506
        %v2539 = vcvt.s32.f32 %v2507
        %v2540 = vcvt.s32.f32 %v2508
        %v2541 = vcvt.s32.f32 %v2509
        %v2542 = vcvt.s32.f32 %v2510
        %v2543 = vcvt.s32.f32 %v2511
        %v2544 = vcvt.s32.f32 %v2512
        %v2545 = vcvt.s32.f32 %v2513
        %v2546 = vcvt.s32.f32 %v2514
        %v2547 = vcvt.s32.f32 %v2515
        %v2548 = vcvt.s32.f32 %v2516
        %v2549 = vcvt.s32.f32 %v2517
        %v2550 = vcvt.s32.f32 %v2518
        %v2551 = vcvt.s32.f32 %v2519
        %v2552 = vcvt.s32.f32 %v2520
        %v2553 = vcvt.s32.f32 %v2521
        %v2554 = vcvt.s32.f32 %v2522
        %v2555 = vcvt.s32.f32 %v2523
        %v2556 = vcvt.s32.f32 %v2524
        %v2557 = vcvt.s32.f32 %v2525
        %v2558 = vcvt.s32.f32 %v2526
        %v2559 = vcvt.s32.f32 %v2527
        %v2560 = vcvt.s32.f32 %v2528
        %v2561 = vcvt.s32.f32 %v2529
        %v2562 = vcvt.s32.f32 %v2530
        %v2563 = vcvt.s32.f32 %v2531
        %v2564 = vcvt.s32.f32 %v2532
        %v2565 = vcvt.s32.f32 %v2533
        %v2566 = vcvt.s32.f32 %v2534
        %v2567 = vcvt.s32.f32 %v2535
        %v2568 = vcvt.s32.f32 %v2536
        %v2569 = vsel %vm1624, %v2537, 0.0
        %v2570 = vsel %vm1624, %v2538, 0.0
        %v2571 = vadd.f32 %v2569, %v2570
        %v2572 = vsel %vm1624, %v2539, 0.0
        %v2573 = vadd.f32 %v2571, %v2572
        %v2574 = vsel %vm948, %v2540, 0.0
        %v2575 = vadd.f32 %v2573, %v2574
        %v2576 = vrot.slane %v2575, 4
        %v2577 = vadd.f32 %v2575, %v2576
        %v2578 = vrot.slane %v2577, 2
        %v2579 = vadd.f32 %v2577, %v2578
        %v2580 = vrot.slane %v2579, 1
        %v2581 = vadd.f32 %v2579, %v2580
        %v2582 = vsel %vm1624, %v2541, 0.0
        %v2583 = vsel %vm1624, %v2542, 0.0
        %v2584 = vadd.f32 %v2582, %v2583
        %v2585 = vsel %vm1624, %v2543, 0.0
        %v2586 = vadd.f32 %v2584, %v2585
        %v2587 = vsel %vm948, %v2544, 0.0
        %v2588 = vadd.f32 %v2586, %v2587
        %v2589 = vrot.slane %v2588, 4
        %v2590 = vadd.f32 %v2588, %v2589
        %v2591 = vrot.slane %v2590, 2
        %v2592 = vadd.f32 %v2590, %v2591
        %v2593 = vrot.slane %v2592, 1
        %v2594 = vadd.f32 %v2592, %v2593
        %v2595 = vsel %vm1624, %v2545, 0.0
        %v2596 = vsel %vm1624, %v2546, 0.0
        %v2597 = vadd.f32 %v2595, %v2596
        %v2598 = vsel %vm1624, %v2547, 0.0
        %v2599 = vadd.f32 %v2597, %v2598
        %v2600 = vsel %vm948, %v2548, 0.0
        %v2601 = vadd.f32 %v2599, %v2600
        %v2602 = vrot.slane %v2601, 4
        %v2603 = vadd.f32 %v2601, %v2602
        %v2604 = vrot.slane %v2603, 2
        %v2605 = vadd.f32 %v2603, %v2604
        %v2606 = vrot.slane %v2605, 1
        %v2607 = vadd.f32 %v2605, %v2606
        %v2608 = vsel %vm1624, %v2549, 0.0
        %v2609 = vsel %vm1624, %v2550, 0.0
        %v2610 = vadd.f32 %v2608, %v2609
        %v2611 = vsel %vm1624, %v2551, 0.0
        %v2612 = vadd.f32 %v2610, %v2611
        %v2613 = vsel %vm948, %v2552, 0.0
        %v2614 = vadd.f32 %v2612, %v2613
        %v2615 = vrot.slane %v2614, 4
        %v2616 = vadd.f32 %v2614, %v2615
        %v2617 = vrot.slane %v2616, 2
        %v2618 = vadd.f32 %v2616, %v2617
        %v2619 = vrot.slane %v2618, 1
        %v2620 = vadd.f32 %v2618, %v2619
        %v2621 = vsel %vm1624, %v2553, 0.0
        %v2622 = vsel %vm1624, %v2554, 0.0
        %v2623 = vadd.f32 %v2621, %v2622
        %v2624 = vsel %vm1624, %v2555, 0.0
        %v2625 = vadd.f32 %v2623, %v2624
        %v2626 = vsel %vm948, %v2556, 0.0
        %v2627 = vadd.f32 %v2625, %v2626
        %v2628 = vrot.slane %v2627, 4
        %v2629 = vadd.f32 %v2627, %v2628
        %v2630 = vrot.slane %v2629, 2
        %v2631 = vadd.f32 %v2629, %v2630
        %v2632 = vrot.slane %v2631, 1
        %v2633 = vadd.f32 %v2631, %v2632
        %v2634 = vsel %vm1624, %v2557, 0.0
        %v2635 = vsel %vm1624, %v2558, 0.0
        %v2636 = vadd.f32 %v2634, %v2635
        %v2637 = vsel %vm1624, %v2559, 0.0
        %v2638 = vadd.f32 %v2636, %v2637
        %v2639 = vsel %vm948, %v2560, 0.0
        %v2640 = vadd.f32 %v2638, %v2639
        %v2641 = vrot.slane %v2640, 4
        %v2642 = vadd.f32 %v2640, %v2641
        %v2643 = vrot.slane %v2642, 2
        %v2644 = vadd.f32 %v2642, %v2643
        %v2645 = vrot.slane %v2644, 1
        %v2646 = vadd.f32 %v2644, %v2645
        %v2647 = vsel %vm1624, %v2561, 0.0
        %v2648 = vsel %vm1624, %v2562, 0.0
        %v2649 = vadd.f32 %v2647, %v2648
        %v2650 = vsel %vm1624, %v2563, 0.0
        %v2651 = vadd.f32 %v2649, %v2650
        %v2652 = vsel %vm948, %v2564, 0.0
        %v2653 = vadd.f32 %v2651, %v2652
        %v2654 = vrot.slane %v2653, 4
        %v2655 = vadd.f32 %v2653, %v2654
        %v2656 = vrot.slane %v2655, 2
        %v2657 = vadd.f32 %v2655, %v2656
        %v2658 = vrot.slane %v2657, 1
        %v2659 = vadd.f32 %v2657, %v2658
        %v2660 = vsel %vm1624, %v2565, 0.0
        %v2661 = vsel %vm1624, %v2566, 0.0
        %v2662 = vadd.f32 %v2660, %v2661
        %v2663 = vsel %vm1624, %v2567, 0.0
        %v2664 = vadd.f32 %v2662, %v2663
        %v2665 = vsel %vm948, %v2568, 0.0
        %v2666 = vadd.f32 %v2664, %v2665
        %v2667 = vrot.slane %v2666, 4
        %v2668 = vadd.f32 %v2666, %v2667
        %v2669 = vrot.slane %v2668, 2
        %v2670 = vadd.f32 %v2668, %v2669
        %v2671 = vrot.slane %v2670, 1
        %v2672 = vadd.f32 %v2670, %v2671
        %vm2681 = vcmask 1041409
        %v2682 = vsel %vm2681, %v2594, %v2581
        %vm2683 = vcmask 1042434
        %v2684 = vsel %vm2683, %v2607, %v2682
        %vm2685 = vcmask 1043459
        %v2686 = vsel %vm2685, %v2620, %v2684
        %vm2687 = vcmask 1044484
        %v2688 = vsel %vm2687, %v2633, %v2686
        %vm2689 = vcmask 1045509
        %v2690 = vsel %vm2689, %v2646, %v2688
        %vm2691 = vcmask 1046534
        %v2692 = vsel %vm2691, %v2659, %v2690
        %vm2693 = vcmask 1047559
        %v2694 = vsel %vm2693, %v2672, %v2692
        %v2696 = vsel %vm1624, %v1622, 0
        %v2698 = vsel %vm1624, %v2694, 0
        %2700 = vmatprep.subr.mxu0 0.0
        %2701 = vmatpush1.xpose.msra.mxu0 %v2698
        %2702 = vmatprep.subr.mxu0 0.0
        %2703 = vmatpush1.xpose.msra.mxu0 0.0
        %2704 = vmatprep.subr.mxu0 0.0
        %2705 = vmatpush1.xpose.msra.mxu0 0.0
        %2706 = vmatprep.subr.mxu0 0.0
        %2707 = vmatpush1.xpose.msra.mxu0 0.0
        %2708 = vmatprep.subr.mxu0 0.0
        %2709 = vmatpush1.xpose.msra.mxu0 0.0
        %2710 = vmatprep.subr.mxu0 0.0
        %2711 = vmatpush1.xpose.msra.mxu0 0.0
        %2712 = vmatprep.subr.mxu0 0.0
        %2713 = vmatpush1.xpose.msra.mxu0 0.0
        %2714 = vmatprep.subr.mxu0 0.0
        %2715 = vmatpush1.xpose.msra.mxu0 0.0
        %2716 = vmatprep.subr.mxu0 0.0
        %2717 = vmatpush1.xpose.msra.mxu0 0.0
        %2718 = vmatprep.subr.mxu0 0.0
        %2719 = vmatpush1.xpose.msra.mxu0 0.0
        %2720 = vmatprep.subr.mxu0 0.0
        %2721 = vmatpush1.xpose.msra.mxu0 0.0
        %2722 = vmatprep.subr.mxu0 0.0
        %2723 = vmatpush1.xpose.msra.mxu0 0.0
        %2724 = vmatprep.subr.mxu0 0.0
        %2725 = vmatpush1.xpose.msra.mxu0 0.0
        %2726 = vmatprep.subr.mxu0 0.0
        %2727 = vmatpush1.xpose.msra.mxu0 0.0
        %2728 = vmatprep.subr.mxu0 0.0
        %2729 = vmatpush1.xpose.msra.mxu0 0.0
        %2730 = vmatprep.subr.mxu0 0.0
        %2731 = vmatpush1.xpose.msra.mxu0 0.0
        %2732 = vmatprep.subr.mxu0 0.0
        %2733 = vmatpush1.xpose.msra.mxu0 0.0
        %2734 = vmatprep.subr.mxu0 0.0
        %2735 = vmatpush1.xpose.msra.mxu0 0.0
        %2736 = vmatprep.subr.mxu0 0.0
        %2737 = vmatpush1.xpose.msra.mxu0 0.0
        %2738 = vmatprep.subr.mxu0 0.0
        %2739 = vmatpush1.xpose.msra.mxu0 0.0
        %2740 = vmatprep.subr.mxu0 0.0
        %2741 = vmatpush1.xpose.msra.mxu0 0.0
        %2742 = vmatprep.subr.mxu0 0.0
        %2743 = vmatpush1.xpose.msra.mxu0 0.0
        %2744 = vmatprep.subr.mxu0 0.0
        %2745 = vmatpush1.xpose.msra.mxu0 0.0
        %2746 = vmatprep.subr.mxu0 0.0
        %2747 = vmatpush1.xpose.msra.mxu0 0.0
        %2748 = vmatprep.subr.mxu0 0.0
        %2749 = vmatpush1.xpose.msra.mxu0 0.0
        %2750 = vmatprep.subr.mxu0 0.0
        %2751 = vmatpush1.xpose.msra.mxu0 0.0
        %2752 = vmatprep.subr.mxu0 0.0
        %2753 = vmatpush1.xpose.msra.mxu0 0.0
        %2754 = vmatprep.subr.mxu0 0.0
        %2755 = vmatpush1.xpose.msra.mxu0 0.0
        %2756 = vmatprep.subr.mxu0 0.0
        %2757 = vmatpush1.xpose.msra.mxu0 0.0
        %2758 = vmatprep.subr.mxu0 0.0
        %2759 = vmatpush1.xpose.msra.mxu0 0.0
        %2760 = vmatprep.subr.mxu0 0.0
        %2761 = vmatpush1.xpose.msra.mxu0 0.0
        %2762 = vmatprep.subr.mxu0 0.0
        %2763 = vmatpush1.xpose.msra.mxu0 0.0
        %2764 = vmatprep.mubr.f32.mxu0 0.0
        %2765 = vmatmul.mubr.f32.gmra.mrb[0].mxu0 %v2696
        %v2766 = vpop.f32.mrb[0].mxu0
        %v2767 = vadd.f32 0.0, %v2766
        %v2768 = vpop.f32.mrb[0].mxu0
        %2769 = vdwg.mxu0
        %v2770 = vsub.f32 %v2767, %v1623
        %v2771 = vand.u32 2147483647, %v2770
        %v2772 = vsel %vm2473, 1e+30, %v1590
        %v2773 = vsel %vm2474, 1e+30, %v1591
        %v2774 = vsel %vm2475, 1e+30, %v1592
        %v2775 = vsel %vm2476, 1e+30, %v1593
        %v2776 = vsel %vm2477, 1e+30, %v1594
        %v2777 = vsel %vm2478, 1e+30, %v1595
        %v2778 = vsel %vm2479, 1e+30, %v1596
        %v2779 = vsel %vm2480, 1e+30, %v1597
        %v2780 = vsel %vm2481, 1e+30, %v1598
        %v2781 = vsel %vm2482, 1e+30, %v1599
        %v2782 = vsel %vm2483, 1e+30, %v1600
        %v2783 = vsel %vm2484, 1e+30, %v1601
        %v2784 = vsel %vm2485, 1e+30, %v1602
        %v2785 = vsel %vm2486, 1e+30, %v1603
        %v2786 = vsel %vm2487, 1e+30, %v1604
        %v2787 = vsel %vm2488, 1e+30, %v1605
        %v2788 = vsel %vm2489, 1e+30, %v1606
        %v2789 = vsel %vm2490, 1e+30, %v1607
        %v2790 = vsel %vm2491, 1e+30, %v1608
        %v2791 = vsel %vm2492, 1e+30, %v1609
        %v2792 = vsel %vm2493, 1e+30, %v1610
        %v2793 = vsel %vm2494, 1e+30, %v1611
        %v2794 = vsel %vm2495, 1e+30, %v1612
        %v2795 = vsel %vm2496, 1e+30, %v1613
        %v2796 = vsel %vm2497, 1e+30, %v1614
        %v2797 = vsel %vm2498, 1e+30, %v1615
        %v2798 = vsel %vm2499, 1e+30, %v1616
        %v2799 = vsel %vm2500, 1e+30, %v1617
        %v2800 = vsel %vm2501, 1e+30, %v1618
        %v2801 = vsel %vm2502, 1e+30, %v1619
        %v2802 = vsel %vm2503, 1e+30, %v1620
        %v2803 = vsel %vm2504, 1e+30, %v1621
        %v2804 = vsel %vm1624, %v2772, inf
        %2805 = vmin.xlane.f32.xlu0 %v2804
        %v2806 = vpop.xlane.xlu0 %2805
        %v2807 = vsel %vm1624, %v2773, inf
        %2808 = vmin.xlane.f32.xlu0 %v2807
        %v2809 = vpop.xlane.xlu0 %2808
        %v2810 = vsel %vm1624, %v2774, inf
        %2811 = vmin.xlane.f32.xlu0 %v2810
        %v2812 = vpop.xlane.xlu0 %2811
        %v2813 = vsel %vm948, %v2775, inf
        %2814 = vmin.xlane.f32.xlu0 %v2813
        %v2815 = vpop.xlane.xlu0 %2814
        %v2816 = vsel %vm1624, %v2776, inf
        %2817 = vmin.xlane.f32.xlu0 %v2816
        %v2818 = vpop.xlane.xlu0 %2817
        %v2819 = vsel %vm1624, %v2777, inf
        %2820 = vmin.xlane.f32.xlu0 %v2819
        %v2821 = vpop.xlane.xlu0 %2820
        %v2822 = vsel %vm1624, %v2778, inf
        %2823 = vmin.xlane.f32.xlu0 %v2822
        %v2824 = vpop.xlane.xlu0 %2823
        %v2825 = vsel %vm948, %v2779, inf
        %2826 = vmin.xlane.f32.xlu0 %v2825
        %v2827 = vpop.xlane.xlu0 %2826
        %v2828 = vsel %vm1624, %v2780, inf
        %2829 = vmin.xlane.f32.xlu0 %v2828
        %v2830 = vpop.xlane.xlu0 %2829
        %v2831 = vsel %vm1624, %v2781, inf
        %2832 = vmin.xlane.f32.xlu0 %v2831
        %v2833 = vpop.xlane.xlu0 %2832
        %v2834 = vsel %vm1624, %v2782, inf
        %2835 = vmin.xlane.f32.xlu0 %v2834
        %v2836 = vpop.xlane.xlu0 %2835
        %v2837 = vsel %vm948, %v2783, inf
        %2838 = vmin.xlane.f32.xlu0 %v2837
        %v2839 = vpop.xlane.xlu0 %2838
        %v2840 = vsel %vm1624, %v2784, inf
        %2841 = vmin.xlane.f32.xlu0 %v2840
        %v2842 = vpop.xlane.xlu0 %2841
        %v2843 = vsel %vm1624, %v2785, inf
        %2844 = vmin.xlane.f32.xlu0 %v2843
        %v2845 = vpop.xlane.xlu0 %2844
        %v2846 = vsel %vm1624, %v2786, inf
        %2847 = vmin.xlane.f32.xlu0 %v2846
        %v2848 = vpop.xlane.xlu0 %2847
        %v2849 = vsel %vm948, %v2787, inf
        %2850 = vmin.xlane.f32.xlu0 %v2849
        %v2851 = vpop.xlane.xlu0 %2850
        %v2852 = vsel %vm1624, %v2788, inf
        %2853 = vmin.xlane.f32.xlu0 %v2852
        %v2854 = vpop.xlane.xlu0 %2853
        %v2855 = vsel %vm1624, %v2789, inf
        %2856 = vmin.xlane.f32.xlu0 %v2855
        %v2857 = vpop.xlane.xlu0 %2856
        %v2858 = vsel %vm1624, %v2790, inf
        %2859 = vmin.xlane.f32.xlu0 %v2858
        %v2860 = vpop.xlane.xlu0 %2859
        %v2861 = vsel %vm948, %v2791, inf
        %2862 = vmin.xlane.f32.xlu0 %v2861
        %v2863 = vpop.xlane.xlu0 %2862
        %v2864 = vsel %vm1624, %v2792, inf
        %2865 = vmin.xlane.f32.xlu0 %v2864
        %v2866 = vpop.xlane.xlu0 %2865
        %v2867 = vsel %vm1624, %v2793, inf
        %2868 = vmin.xlane.f32.xlu0 %v2867
        %v2869 = vpop.xlane.xlu0 %2868
        %v2870 = vsel %vm1624, %v2794, inf
        %2871 = vmin.xlane.f32.xlu0 %v2870
        %v2872 = vpop.xlane.xlu0 %2871
        %v2873 = vsel %vm948, %v2795, inf
        %2874 = vmin.xlane.f32.xlu0 %v2873
        %v2875 = vpop.xlane.xlu0 %2874
        %v2876 = vsel %vm1624, %v2796, inf
        %2877 = vmin.xlane.f32.xlu0 %v2876
        %v2878 = vpop.xlane.xlu0 %2877
        %v2879 = vsel %vm1624, %v2797, inf
        %2880 = vmin.xlane.f32.xlu0 %v2879
        %v2881 = vpop.xlane.xlu0 %2880
        %v2882 = vsel %vm1624, %v2798, inf
        %2883 = vmin.xlane.f32.xlu0 %v2882
        %v2884 = vpop.xlane.xlu0 %2883
        %v2885 = vsel %vm948, %v2799, inf
        %2886 = vmin.xlane.f32.xlu0 %v2885
        %v2887 = vpop.xlane.xlu0 %2886
        %v2888 = vsel %vm1624, %v2800, inf
        %2889 = vmin.xlane.f32.xlu0 %v2888
        %v2890 = vpop.xlane.xlu0 %2889
        %v2891 = vsel %vm1624, %v2801, inf
        %2892 = vmin.xlane.f32.xlu0 %v2891
        %v2893 = vpop.xlane.xlu0 %2892
        %v2894 = vsel %vm1624, %v2802, inf
        %2895 = vmin.xlane.f32.xlu0 %v2894
        %v2896 = vpop.xlane.xlu0 %2895
        %v2897 = vsel %vm948, %v2803, inf
        %2898 = vmin.xlane.f32.xlu0 %v2897
        %v2899 = vpop.xlane.xlu0 %2898
        %v2900 = vmin.f32 %v2806, %v2809
        %v2901 = vmin.f32 %v2900, %v2812
        %v2902 = vsel %vm425, %v2815, inf
        %v2903 = vmin.f32 %v2901, %v2902
        %v2904 = vrot.slane %v2903, 4
        %v2905 = vmin.f32 %v2903, %v2904
        %v2906 = vrot.slane %v2905, 2
        %v2907 = vmin.f32 %v2905, %v2906
        %v2908 = vrot.slane %v2907, 1
        %v2909 = vmin.f32 %v2907, %v2908
        %v2910 = vmin.f32 %v2818, %v2821
        %v2911 = vmin.f32 %v2910, %v2824
        %v2912 = vsel %vm425, %v2827, inf
        %v2913 = vmin.f32 %v2911, %v2912
        %v2914 = vrot.slane %v2913, 4
        %v2915 = vmin.f32 %v2913, %v2914
        %v2916 = vrot.slane %v2915, 2
        %v2917 = vmin.f32 %v2915, %v2916
        %v2918 = vrot.slane %v2917, 1
        %v2919 = vmin.f32 %v2917, %v2918
        %v2920 = vmin.f32 %v2830, %v2833
        %v2921 = vmin.f32 %v2920, %v2836
        %v2922 = vsel %vm425, %v2839, inf
        %v2923 = vmin.f32 %v2921, %v2922
        %v2924 = vrot.slane %v2923, 4
        %v2925 = vmin.f32 %v2923, %v2924
        %v2926 = vrot.slane %v2925, 2
        %v2927 = vmin.f32 %v2925, %v2926
        %v2928 = vrot.slane %v2927, 1
        %v2929 = vmin.f32 %v2927, %v2928
        %v2930 = vmin.f32 %v2842, %v2845
        %v2931 = vmin.f32 %v2930, %v2848
        %v2932 = vsel %vm425, %v2851, inf
        %v2933 = vmin.f32 %v2931, %v2932
        %v2934 = vrot.slane %v2933, 4
        %v2935 = vmin.f32 %v2933, %v2934
        %v2936 = vrot.slane %v2935, 2
        %v2937 = vmin.f32 %v2935, %v2936
        %v2938 = vrot.slane %v2937, 1
        %v2939 = vmin.f32 %v2937, %v2938
        %v2940 = vmin.f32 %v2854, %v2857
        %v2941 = vmin.f32 %v2940, %v2860
        %v2942 = vsel %vm425, %v2863, inf
        %v2943 = vmin.f32 %v2941, %v2942
        %v2944 = vrot.slane %v2943, 4
        %v2945 = vmin.f32 %v2943, %v2944
        %v2946 = vrot.slane %v2945, 2
        %v2947 = vmin.f32 %v2945, %v2946
        %v2948 = vrot.slane %v2947, 1
        %v2949 = vmin.f32 %v2947, %v2948
        %v2950 = vmin.f32 %v2866, %v2869
        %v2951 = vmin.f32 %v2950, %v2872
        %v2952 = vsel %vm425, %v2875, inf
        %v2953 = vmin.f32 %v2951, %v2952
        %v2954 = vrot.slane %v2953, 4
        %v2955 = vmin.f32 %v2953, %v2954
        %v2956 = vrot.slane %v2955, 2
        %v2957 = vmin.f32 %v2955, %v2956
        %v2958 = vrot.slane %v2957, 1
        %v2959 = vmin.f32 %v2957, %v2958
        %v2960 = vmin.f32 %v2878, %v2881
        %v2961 = vmin.f32 %v2960, %v2884
        %v2962 = vsel %vm425, %v2887, inf
        %v2963 = vmin.f32 %v2961, %v2962
        %v2964 = vrot.slane %v2963, 4
        %v2965 = vmin.f32 %v2963, %v2964
        %v2966 = vrot.slane %v2965, 2
        %v2967 = vmin.f32 %v2965, %v2966
        %v2968 = vrot.slane %v2967, 1
        %v2969 = vmin.f32 %v2967, %v2968
        %v2970 = vmin.f32 %v2890, %v2893
        %v2971 = vmin.f32 %v2970, %v2896
        %v2972 = vsel %vm425, %v2899, inf
        %v2973 = vmin.f32 %v2971, %v2972
        %v2974 = vrot.slane %v2973, 4
        %v2975 = vmin.f32 %v2973, %v2974
        %v2976 = vrot.slane %v2975, 2
        %v2977 = vmin.f32 %v2975, %v2976
        %v2978 = vrot.slane %v2977, 1
        %v2979 = vmin.f32 %v2977, %v2978
        %vm2980 = vcmp.eq.f32.partialorder %v2772, %v2909
        %vm2981 = vcmp.eq.f32.partialorder %v2773, %v2909
        %vm2982 = vcmp.eq.f32.partialorder %v2774, %v2909
        %vm2983 = vcmp.eq.f32.partialorder %v2775, %v2909
        %vm2984 = vcmp.eq.f32.partialorder %v2776, %v2919
        %vm2985 = vcmp.eq.f32.partialorder %v2777, %v2919
        %vm2986 = vcmp.eq.f32.partialorder %v2778, %v2919
        %vm2987 = vcmp.eq.f32.partialorder %v2779, %v2919
        %vm2988 = vcmp.eq.f32.partialorder %v2780, %v2929
        %vm2989 = vcmp.eq.f32.partialorder %v2781, %v2929
        %vm2990 = vcmp.eq.f32.partialorder %v2782, %v2929
        %vm2991 = vcmp.eq.f32.partialorder %v2783, %v2929
        %vm2992 = vcmp.eq.f32.partialorder %v2784, %v2939
        %vm2993 = vcmp.eq.f32.partialorder %v2785, %v2939
        %vm2994 = vcmp.eq.f32.partialorder %v2786, %v2939
        %vm2995 = vcmp.eq.f32.partialorder %v2787, %v2939
        %vm2996 = vcmp.eq.f32.partialorder %v2788, %v2949
        %vm2997 = vcmp.eq.f32.partialorder %v2789, %v2949
        %vm2998 = vcmp.eq.f32.partialorder %v2790, %v2949
        %vm2999 = vcmp.eq.f32.partialorder %v2791, %v2949
        %vm3000 = vcmp.eq.f32.partialorder %v2792, %v2959
        %vm3001 = vcmp.eq.f32.partialorder %v2793, %v2959
        %vm3002 = vcmp.eq.f32.partialorder %v2794, %v2959
        %vm3003 = vcmp.eq.f32.partialorder %v2795, %v2959
        %vm3004 = vcmp.eq.f32.partialorder %v2796, %v2969
        %vm3005 = vcmp.eq.f32.partialorder %v2797, %v2969
        %vm3006 = vcmp.eq.f32.partialorder %v2798, %v2969
        %vm3007 = vcmp.eq.f32.partialorder %v2799, %v2969
        %vm3008 = vcmp.eq.f32.partialorder %v2800, %v2979
        %vm3009 = vcmp.eq.f32.partialorder %v2801, %v2979
        %vm3010 = vcmp.eq.f32.partialorder %v2802, %v2979
        %vm3011 = vcmp.eq.f32.partialorder %v2803, %v2979
        %v3012 = vsel %vm2980, %v1301, 216
        %v3013 = vsel %vm2981, %v1302, 216
        %v3014 = vsel %vm2982, %v1303, 216
        %v3015 = vsel %vm2983, %v1304, 216
        %v3016 = vsel %vm2984, %v1301, 216
        %v3017 = vsel %vm2985, %v1302, 216
        %v3018 = vsel %vm2986, %v1303, 216
        %v3019 = vsel %vm2987, %v1304, 216
        %v3020 = vsel %vm2988, %v1301, 216
        %v3021 = vsel %vm2989, %v1302, 216
        %v3022 = vsel %vm2990, %v1303, 216
        %v3023 = vsel %vm2991, %v1304, 216
        %v3024 = vsel %vm2992, %v1301, 216
        %v3025 = vsel %vm2993, %v1302, 216
        %v3026 = vsel %vm2994, %v1303, 216
        %v3027 = vsel %vm2995, %v1304, 216
        %v3028 = vsel %vm2996, %v1301, 216
        %v3029 = vsel %vm2997, %v1302, 216
        %v3030 = vsel %vm2998, %v1303, 216
        %v3031 = vsel %vm2999, %v1304, 216
        %v3032 = vsel %vm3000, %v1301, 216
        %v3033 = vsel %vm3001, %v1302, 216
        %v3034 = vsel %vm3002, %v1303, 216
        %v3035 = vsel %vm3003, %v1304, 216
        %v3036 = vsel %vm3004, %v1301, 216
        %v3037 = vsel %vm3005, %v1302, 216
        %v3038 = vsel %vm3006, %v1303, 216
        %v3039 = vsel %vm3007, %v1304, 216
        %v3040 = vsel %vm3008, %v1301, 216
        %v3041 = vsel %vm3009, %v1302, 216
        %v3042 = vsel %vm3010, %v1303, 216
        %v3043 = vsel %vm3011, %v1304, 216
        %v3044 = vsel %vm1624, %v3012, 2147483647
        %v3045 = vand.u32 %v3044, 65535
        %v3046 = vshra.s32 %v3044, 16
        %v3047 = vcvt.s32.f32 %v3045
        %v3048 = vcvt.s32.f32 %v3046
        %3049 = vmin.xlane.f32.xlu0 %v3048
        %v3050 = vpop.xlane.xlu0 %3049
        %vm3051 = vcmp.eq.f32.partialorder %v3048, %v3050
        %v3052 = vsel %vm3051, %v3047, inf
        %3053 = vmin.xlane.f32.xlu0 %v3052
        %v3054 = vpop.xlane.xlu0 %3053
        %v3055 = vcvt.f32.s32 %v3054
        %v3056 = vcvt.f32.s32 %v3050
        %v3057 = vshll.u32 %v3056, 16
        %v3058 = vadd.s32 %v3057, %v3055
        %v3059 = vsel %vm1624, %v3013, 2147483647
        %v3060 = vand.u32 %v3059, 65535
        %v3061 = vshra.s32 %v3059, 16
        %v3062 = vcvt.s32.f32 %v3060
        %v3063 = vcvt.s32.f32 %v3061
        %3064 = vmin.xlane.f32.xlu0 %v3063
        %v3065 = vpop.xlane.xlu0 %3064
        %vm3066 = vcmp.eq.f32.partialorder %v3063, %v3065
        %v3067 = vsel %vm3066, %v3062, inf
        %3068 = vmin.xlane.f32.xlu0 %v3067
        %v3069 = vpop.xlane.xlu0 %3068
        %v3070 = vcvt.f32.s32 %v3069
        %v3071 = vcvt.f32.s32 %v3065
        %v3072 = vshll.u32 %v3071, 16
        %v3073 = vadd.s32 %v3072, %v3070
        %v3074 = vsel %vm1624, %v3014, 2147483647
        %v3075 = vand.u32 %v3074, 65535
        %v3076 = vshra.s32 %v3074, 16
        %v3077 = vcvt.s32.f32 %v3075
        %v3078 = vcvt.s32.f32 %v3076
        %3079 = vmin.xlane.f32.xlu0 %v3078
        %v3080 = vpop.xlane.xlu0 %3079
        %vm3081 = vcmp.eq.f32.partialorder %v3078, %v3080
        %v3082 = vsel %vm3081, %v3077, inf
        %3083 = vmin.xlane.f32.xlu0 %v3082
        %v3084 = vpop.xlane.xlu0 %3083
        %v3085 = vcvt.f32.s32 %v3084
        %v3086 = vcvt.f32.s32 %v3080
        %v3087 = vshll.u32 %v3086, 16
        %v3088 = vadd.s32 %v3087, %v3085
        %v3089 = vsel %vm948, %v3015, 2147483647
        %v3090 = vand.u32 %v3089, 65535
        %v3091 = vshra.s32 %v3089, 16
        %v3092 = vcvt.s32.f32 %v3090
        %v3093 = vcvt.s32.f32 %v3091
        %3094 = vmin.xlane.f32.xlu0 %v3093
        %v3095 = vpop.xlane.xlu0 %3094
        %vm3096 = vcmp.eq.f32.partialorder %v3093, %v3095
        %v3097 = vsel %vm3096, %v3092, inf
        %3098 = vmin.xlane.f32.xlu0 %v3097
        %v3099 = vpop.xlane.xlu0 %3098
        %v3100 = vcvt.f32.s32 %v3099
        %v3101 = vcvt.f32.s32 %v3095
        %v3102 = vshll.u32 %v3101, 16
        %v3103 = vadd.s32 %v3102, %v3100
        %v3104 = vsel %vm1624, %v3016, 2147483647
        %v3105 = vand.u32 %v3104, 65535
        %v3106 = vshra.s32 %v3104, 16
        %v3107 = vcvt.s32.f32 %v3105
        %v3108 = vcvt.s32.f32 %v3106
        %3109 = vmin.xlane.f32.xlu0 %v3108
        %v3110 = vpop.xlane.xlu0 %3109
        %vm3111 = vcmp.eq.f32.partialorder %v3108, %v3110
        %v3112 = vsel %vm3111, %v3107, inf
        %3113 = vmin.xlane.f32.xlu0 %v3112
        %v3114 = vpop.xlane.xlu0 %3113
        %v3115 = vcvt.f32.s32 %v3114
        %v3116 = vcvt.f32.s32 %v3110
        %v3117 = vshll.u32 %v3116, 16
        %v3118 = vadd.s32 %v3117, %v3115
        %v3119 = vsel %vm1624, %v3017, 2147483647
        %v3120 = vand.u32 %v3119, 65535
        %v3121 = vshra.s32 %v3119, 16
        %v3122 = vcvt.s32.f32 %v3120
        %v3123 = vcvt.s32.f32 %v3121
        %3124 = vmin.xlane.f32.xlu0 %v3123
        %v3125 = vpop.xlane.xlu0 %3124
        %vm3126 = vcmp.eq.f32.partialorder %v3123, %v3125
        %v3127 = vsel %vm3126, %v3122, inf
        %3128 = vmin.xlane.f32.xlu0 %v3127
        %v3129 = vpop.xlane.xlu0 %3128
        %v3130 = vcvt.f32.s32 %v3129
        %v3131 = vcvt.f32.s32 %v3125
        %v3132 = vshll.u32 %v3131, 16
        %v3133 = vadd.s32 %v3132, %v3130
        %v3134 = vsel %vm1624, %v3018, 2147483647
        %v3135 = vand.u32 %v3134, 65535
        %v3136 = vshra.s32 %v3134, 16
        %v3137 = vcvt.s32.f32 %v3135
        %v3138 = vcvt.s32.f32 %v3136
        %3139 = vmin.xlane.f32.xlu0 %v3138
        %v3140 = vpop.xlane.xlu0 %3139
        %vm3141 = vcmp.eq.f32.partialorder %v3138, %v3140
        %v3142 = vsel %vm3141, %v3137, inf
        %3143 = vmin.xlane.f32.xlu0 %v3142
        %v3144 = vpop.xlane.xlu0 %3143
        %v3145 = vcvt.f32.s32 %v3144
        %v3146 = vcvt.f32.s32 %v3140
        %v3147 = vshll.u32 %v3146, 16
        %v3148 = vadd.s32 %v3147, %v3145
        %v3149 = vsel %vm948, %v3019, 2147483647
        %v3150 = vand.u32 %v3149, 65535
        %v3151 = vshra.s32 %v3149, 16
        %v3152 = vcvt.s32.f32 %v3150
        %v3153 = vcvt.s32.f32 %v3151
        %3154 = vmin.xlane.f32.xlu0 %v3153
        %v3155 = vpop.xlane.xlu0 %3154
        %vm3156 = vcmp.eq.f32.partialorder %v3153, %v3155
        %v3157 = vsel %vm3156, %v3152, inf
        %3158 = vmin.xlane.f32.xlu0 %v3157
        %v3159 = vpop.xlane.xlu0 %3158
        %v3160 = vcvt.f32.s32 %v3159
        %v3161 = vcvt.f32.s32 %v3155
        %v3162 = vshll.u32 %v3161, 16
        %v3163 = vadd.s32 %v3162, %v3160
        %v3164 = vsel %vm1624, %v3020, 2147483647
        %v3165 = vand.u32 %v3164, 65535
        %v3166 = vshra.s32 %v3164, 16
        %v3167 = vcvt.s32.f32 %v3165
        %v3168 = vcvt.s32.f32 %v3166
        %3169 = vmin.xlane.f32.xlu0 %v3168
        %v3170 = vpop.xlane.xlu0 %3169
        %vm3171 = vcmp.eq.f32.partialorder %v3168, %v3170
        %v3172 = vsel %vm3171, %v3167, inf
        %3173 = vmin.xlane.f32.xlu0 %v3172
        %v3174 = vpop.xlane.xlu0 %3173
        %v3175 = vcvt.f32.s32 %v3174
        %v3176 = vcvt.f32.s32 %v3170
        %v3177 = vshll.u32 %v3176, 16
        %v3178 = vadd.s32 %v3177, %v3175
        %v3179 = vsel %vm1624, %v3021, 2147483647
        %v3180 = vand.u32 %v3179, 65535
        %v3181 = vshra.s32 %v3179, 16
        %v3182 = vcvt.s32.f32 %v3180
        %v3183 = vcvt.s32.f32 %v3181
        %3184 = vmin.xlane.f32.xlu0 %v3183
        %v3185 = vpop.xlane.xlu0 %3184
        %vm3186 = vcmp.eq.f32.partialorder %v3183, %v3185
        %v3187 = vsel %vm3186, %v3182, inf
        %3188 = vmin.xlane.f32.xlu0 %v3187
        %v3189 = vpop.xlane.xlu0 %3188
        %v3190 = vcvt.f32.s32 %v3189
        %v3191 = vcvt.f32.s32 %v3185
        %v3192 = vshll.u32 %v3191, 16
        %v3193 = vadd.s32 %v3192, %v3190
        %v3194 = vsel %vm1624, %v3022, 2147483647
        %v3195 = vand.u32 %v3194, 65535
        %v3196 = vshra.s32 %v3194, 16
        %v3197 = vcvt.s32.f32 %v3195
        %v3198 = vcvt.s32.f32 %v3196
        %3199 = vmin.xlane.f32.xlu0 %v3198
        %v3200 = vpop.xlane.xlu0 %3199
        %vm3201 = vcmp.eq.f32.partialorder %v3198, %v3200
        %v3202 = vsel %vm3201, %v3197, inf
        %3203 = vmin.xlane.f32.xlu0 %v3202
        %v3204 = vpop.xlane.xlu0 %3203
        %v3205 = vcvt.f32.s32 %v3204
        %v3206 = vcvt.f32.s32 %v3200
        %v3207 = vshll.u32 %v3206, 16
        %v3208 = vadd.s32 %v3207, %v3205
        %v3209 = vsel %vm948, %v3023, 2147483647
        %v3210 = vand.u32 %v3209, 65535
        %v3211 = vshra.s32 %v3209, 16
        %v3212 = vcvt.s32.f32 %v3210
        %v3213 = vcvt.s32.f32 %v3211
        %3214 = vmin.xlane.f32.xlu0 %v3213
        %v3215 = vpop.xlane.xlu0 %3214
        %vm3216 = vcmp.eq.f32.partialorder %v3213, %v3215
        %v3217 = vsel %vm3216, %v3212, inf
        %3218 = vmin.xlane.f32.xlu0 %v3217
        %v3219 = vpop.xlane.xlu0 %3218
        %v3220 = vcvt.f32.s32 %v3219
        %v3221 = vcvt.f32.s32 %v3215
        %v3222 = vshll.u32 %v3221, 16
        %v3223 = vadd.s32 %v3222, %v3220
        %v3224 = vsel %vm1624, %v3024, 2147483647
        %v3225 = vand.u32 %v3224, 65535
        %v3226 = vshra.s32 %v3224, 16
        %v3227 = vcvt.s32.f32 %v3225
        %v3228 = vcvt.s32.f32 %v3226
        %3229 = vmin.xlane.f32.xlu0 %v3228
        %v3230 = vpop.xlane.xlu0 %3229
        %vm3231 = vcmp.eq.f32.partialorder %v3228, %v3230
        %v3232 = vsel %vm3231, %v3227, inf
        %3233 = vmin.xlane.f32.xlu0 %v3232
        %v3234 = vpop.xlane.xlu0 %3233
        %v3235 = vcvt.f32.s32 %v3234
        %v3236 = vcvt.f32.s32 %v3230
        %v3237 = vshll.u32 %v3236, 16
        %v3238 = vadd.s32 %v3237, %v3235
        %v3239 = vsel %vm1624, %v3025, 2147483647
        %v3240 = vand.u32 %v3239, 65535
        %v3241 = vshra.s32 %v3239, 16
        %v3242 = vcvt.s32.f32 %v3240
        %v3243 = vcvt.s32.f32 %v3241
        %3244 = vmin.xlane.f32.xlu0 %v3243
        %v3245 = vpop.xlane.xlu0 %3244
        %vm3246 = vcmp.eq.f32.partialorder %v3243, %v3245
        %v3247 = vsel %vm3246, %v3242, inf
        %3248 = vmin.xlane.f32.xlu0 %v3247
        %v3249 = vpop.xlane.xlu0 %3248
        %v3250 = vcvt.f32.s32 %v3249
        %v3251 = vcvt.f32.s32 %v3245
        %v3252 = vshll.u32 %v3251, 16
        %v3253 = vadd.s32 %v3252, %v3250
        %v3254 = vsel %vm1624, %v3026, 2147483647
        %v3255 = vand.u32 %v3254, 65535
        %v3256 = vshra.s32 %v3254, 16
        %v3257 = vcvt.s32.f32 %v3255
        %v3258 = vcvt.s32.f32 %v3256
        %3259 = vmin.xlane.f32.xlu0 %v3258
        %v3260 = vpop.xlane.xlu0 %3259
        %vm3261 = vcmp.eq.f32.partialorder %v3258, %v3260
        %v3262 = vsel %vm3261, %v3257, inf
        %3263 = vmin.xlane.f32.xlu0 %v3262
        %v3264 = vpop.xlane.xlu0 %3263
        %v3265 = vcvt.f32.s32 %v3264
        %v3266 = vcvt.f32.s32 %v3260
        %v3267 = vshll.u32 %v3266, 16
        %v3268 = vadd.s32 %v3267, %v3265
        %v3269 = vsel %vm948, %v3027, 2147483647
        %v3270 = vand.u32 %v3269, 65535
        %v3271 = vshra.s32 %v3269, 16
        %v3272 = vcvt.s32.f32 %v3270
        %v3273 = vcvt.s32.f32 %v3271
        %3274 = vmin.xlane.f32.xlu0 %v3273
        %v3275 = vpop.xlane.xlu0 %3274
        %vm3276 = vcmp.eq.f32.partialorder %v3273, %v3275
        %v3277 = vsel %vm3276, %v3272, inf
        %3278 = vmin.xlane.f32.xlu0 %v3277
        %v3279 = vpop.xlane.xlu0 %3278
        %v3280 = vcvt.f32.s32 %v3279
        %v3281 = vcvt.f32.s32 %v3275
        %v3282 = vshll.u32 %v3281, 16
        %v3283 = vadd.s32 %v3282, %v3280
        %v3284 = vsel %vm1624, %v3028, 2147483647
        %v3285 = vand.u32 %v3284, 65535
        %v3286 = vshra.s32 %v3284, 16
        %v3287 = vcvt.s32.f32 %v3285
        %v3288 = vcvt.s32.f32 %v3286
        %3289 = vmin.xlane.f32.xlu0 %v3288
        %v3290 = vpop.xlane.xlu0 %3289
        %vm3291 = vcmp.eq.f32.partialorder %v3288, %v3290
        %v3292 = vsel %vm3291, %v3287, inf
        %3293 = vmin.xlane.f32.xlu0 %v3292
        %v3294 = vpop.xlane.xlu0 %3293
        %v3295 = vcvt.f32.s32 %v3294
        %v3296 = vcvt.f32.s32 %v3290
        %v3297 = vshll.u32 %v3296, 16
        %v3298 = vadd.s32 %v3297, %v3295
        %v3299 = vsel %vm1624, %v3029, 2147483647
        %v3300 = vand.u32 %v3299, 65535
        %v3301 = vshra.s32 %v3299, 16
        %v3302 = vcvt.s32.f32 %v3300
        %v3303 = vcvt.s32.f32 %v3301
        %3304 = vmin.xlane.f32.xlu0 %v3303
        %v3305 = vpop.xlane.xlu0 %3304
        %vm3306 = vcmp.eq.f32.partialorder %v3303, %v3305
        %v3307 = vsel %vm3306, %v3302, inf
        %3308 = vmin.xlane.f32.xlu0 %v3307
        %v3309 = vpop.xlane.xlu0 %3308
        %v3310 = vcvt.f32.s32 %v3309
        %v3311 = vcvt.f32.s32 %v3305
        %v3312 = vshll.u32 %v3311, 16
        %v3313 = vadd.s32 %v3312, %v3310
        %v3314 = vsel %vm1624, %v3030, 2147483647
        %v3315 = vand.u32 %v3314, 65535
        %v3316 = vshra.s32 %v3314, 16
        %v3317 = vcvt.s32.f32 %v3315
        %v3318 = vcvt.s32.f32 %v3316
        %3319 = vmin.xlane.f32.xlu0 %v3318
        %v3320 = vpop.xlane.xlu0 %3319
        %vm3321 = vcmp.eq.f32.partialorder %v3318, %v3320
        %v3322 = vsel %vm3321, %v3317, inf
        %3323 = vmin.xlane.f32.xlu0 %v3322
        %v3324 = vpop.xlane.xlu0 %3323
        %v3325 = vcvt.f32.s32 %v3324
        %v3326 = vcvt.f32.s32 %v3320
        %v3327 = vshll.u32 %v3326, 16
        %v3328 = vadd.s32 %v3327, %v3325
        %v3329 = vsel %vm948, %v3031, 2147483647
        %v3330 = vand.u32 %v3329, 65535
        %v3331 = vshra.s32 %v3329, 16
        %v3332 = vcvt.s32.f32 %v3330
        %v3333 = vcvt.s32.f32 %v3331
        %3334 = vmin.xlane.f32.xlu0 %v3333
        %v3335 = vpop.xlane.xlu0 %3334
        %vm3336 = vcmp.eq.f32.partialorder %v3333, %v3335
        %v3337 = vsel %vm3336, %v3332, inf
        %3338 = vmin.xlane.f32.xlu0 %v3337
        %v3339 = vpop.xlane.xlu0 %3338
        %v3340 = vcvt.f32.s32 %v3339
        %v3341 = vcvt.f32.s32 %v3335
        %v3342 = vshll.u32 %v3341, 16
        %v3343 = vadd.s32 %v3342, %v3340
        %v3344 = vsel %vm1624, %v3032, 2147483647
        %v3345 = vand.u32 %v3344, 65535
        %v3346 = vshra.s32 %v3344, 16
        %v3347 = vcvt.s32.f32 %v3345
        %v3348 = vcvt.s32.f32 %v3346
        %3349 = vmin.xlane.f32.xlu0 %v3348
        %v3350 = vpop.xlane.xlu0 %3349
        %vm3351 = vcmp.eq.f32.partialorder %v3348, %v3350
        %v3352 = vsel %vm3351, %v3347, inf
        %3353 = vmin.xlane.f32.xlu0 %v3352
        %v3354 = vpop.xlane.xlu0 %3353
        %v3355 = vcvt.f32.s32 %v3354
        %v3356 = vcvt.f32.s32 %v3350
        %v3357 = vshll.u32 %v3356, 16
        %v3358 = vadd.s32 %v3357, %v3355
        %v3359 = vsel %vm1624, %v3033, 2147483647
        %v3360 = vand.u32 %v3359, 65535
        %v3361 = vshra.s32 %v3359, 16
        %v3362 = vcvt.s32.f32 %v3360
        %v3363 = vcvt.s32.f32 %v3361
        %3364 = vmin.xlane.f32.xlu0 %v3363
        %v3365 = vpop.xlane.xlu0 %3364
        %vm3366 = vcmp.eq.f32.partialorder %v3363, %v3365
        %v3367 = vsel %vm3366, %v3362, inf
        %3368 = vmin.xlane.f32.xlu0 %v3367
        %v3369 = vpop.xlane.xlu0 %3368
        %v3370 = vcvt.f32.s32 %v3369
        %v3371 = vcvt.f32.s32 %v3365
        %v3372 = vshll.u32 %v3371, 16
        %v3373 = vadd.s32 %v3372, %v3370
        %v3374 = vsel %vm1624, %v3034, 2147483647
        %v3375 = vand.u32 %v3374, 65535
        %v3376 = vshra.s32 %v3374, 16
        %v3377 = vcvt.s32.f32 %v3375
        %v3378 = vcvt.s32.f32 %v3376
        %3379 = vmin.xlane.f32.xlu0 %v3378
        %v3380 = vpop.xlane.xlu0 %3379
        %vm3381 = vcmp.eq.f32.partialorder %v3378, %v3380
        %v3382 = vsel %vm3381, %v3377, inf
        %3383 = vmin.xlane.f32.xlu0 %v3382
        %v3384 = vpop.xlane.xlu0 %3383
        %v3385 = vcvt.f32.s32 %v3384
        %v3386 = vcvt.f32.s32 %v3380
        %v3387 = vshll.u32 %v3386, 16
        %v3388 = vadd.s32 %v3387, %v3385
        %v3389 = vsel %vm948, %v3035, 2147483647
        %v3390 = vand.u32 %v3389, 65535
        %v3391 = vshra.s32 %v3389, 16
        %v3392 = vcvt.s32.f32 %v3390
        %v3393 = vcvt.s32.f32 %v3391
        %3394 = vmin.xlane.f32.xlu0 %v3393
        %v3395 = vpop.xlane.xlu0 %3394
        %vm3396 = vcmp.eq.f32.partialorder %v3393, %v3395
        %v3397 = vsel %vm3396, %v3392, inf
        %3398 = vmin.xlane.f32.xlu0 %v3397
        %v3399 = vpop.xlane.xlu0 %3398
        %v3400 = vcvt.f32.s32 %v3399
        %v3401 = vcvt.f32.s32 %v3395
        %v3402 = vshll.u32 %v3401, 16
        %v3403 = vadd.s32 %v3402, %v3400
        %v3404 = vsel %vm1624, %v3036, 2147483647
        %v3405 = vand.u32 %v3404, 65535
        %v3406 = vshra.s32 %v3404, 16
        %v3407 = vcvt.s32.f32 %v3405
        %v3408 = vcvt.s32.f32 %v3406
        %3409 = vmin.xlane.f32.xlu0 %v3408
        %v3410 = vpop.xlane.xlu0 %3409
        %vm3411 = vcmp.eq.f32.partialorder %v3408, %v3410
        %v3412 = vsel %vm3411, %v3407, inf
        %3413 = vmin.xlane.f32.xlu0 %v3412
        %v3414 = vpop.xlane.xlu0 %3413
        %v3415 = vcvt.f32.s32 %v3414
        %v3416 = vcvt.f32.s32 %v3410
        %v3417 = vshll.u32 %v3416, 16
        %v3418 = vadd.s32 %v3417, %v3415
        %v3419 = vsel %vm1624, %v3037, 2147483647
        %v3420 = vand.u32 %v3419, 65535
        %v3421 = vshra.s32 %v3419, 16
        %v3422 = vcvt.s32.f32 %v3420
        %v3423 = vcvt.s32.f32 %v3421
        %3424 = vmin.xlane.f32.xlu0 %v3423
        %v3425 = vpop.xlane.xlu0 %3424
        %vm3426 = vcmp.eq.f32.partialorder %v3423, %v3425
        %v3427 = vsel %vm3426, %v3422, inf
        %3428 = vmin.xlane.f32.xlu0 %v3427
        %v3429 = vpop.xlane.xlu0 %3428
        %v3430 = vcvt.f32.s32 %v3429
        %v3431 = vcvt.f32.s32 %v3425
        %v3432 = vshll.u32 %v3431, 16
        %v3433 = vadd.s32 %v3432, %v3430
        %v3434 = vsel %vm1624, %v3038, 2147483647
        %v3435 = vand.u32 %v3434, 65535
        %v3436 = vshra.s32 %v3434, 16
        %v3437 = vcvt.s32.f32 %v3435
        %v3438 = vcvt.s32.f32 %v3436
        %3439 = vmin.xlane.f32.xlu0 %v3438
        %v3440 = vpop.xlane.xlu0 %3439
        %vm3441 = vcmp.eq.f32.partialorder %v3438, %v3440
        %v3442 = vsel %vm3441, %v3437, inf
        %3443 = vmin.xlane.f32.xlu0 %v3442
        %v3444 = vpop.xlane.xlu0 %3443
        %v3445 = vcvt.f32.s32 %v3444
        %v3446 = vcvt.f32.s32 %v3440
        %v3447 = vshll.u32 %v3446, 16
        %v3448 = vadd.s32 %v3447, %v3445
        %v3449 = vsel %vm948, %v3039, 2147483647
        %v3450 = vand.u32 %v3449, 65535
        %v3451 = vshra.s32 %v3449, 16
        %v3452 = vcvt.s32.f32 %v3450
        %v3453 = vcvt.s32.f32 %v3451
        %3454 = vmin.xlane.f32.xlu0 %v3453
        %v3455 = vpop.xlane.xlu0 %3454
        %vm3456 = vcmp.eq.f32.partialorder %v3453, %v3455
        %v3457 = vsel %vm3456, %v3452, inf
        %3458 = vmin.xlane.f32.xlu0 %v3457
        %v3459 = vpop.xlane.xlu0 %3458
        %v3460 = vcvt.f32.s32 %v3459
        %v3461 = vcvt.f32.s32 %v3455
        %v3462 = vshll.u32 %v3461, 16
        %v3463 = vadd.s32 %v3462, %v3460
        %v3464 = vsel %vm1624, %v3040, 2147483647
        %v3465 = vand.u32 %v3464, 65535
        %v3466 = vshra.s32 %v3464, 16
        %v3467 = vcvt.s32.f32 %v3465
        %v3468 = vcvt.s32.f32 %v3466
        %3469 = vmin.xlane.f32.xlu0 %v3468
        %v3470 = vpop.xlane.xlu0 %3469
        %vm3471 = vcmp.eq.f32.partialorder %v3468, %v3470
        %v3472 = vsel %vm3471, %v3467, inf
        %3473 = vmin.xlane.f32.xlu0 %v3472
        %v3474 = vpop.xlane.xlu0 %3473
        %v3475 = vcvt.f32.s32 %v3474
        %v3476 = vcvt.f32.s32 %v3470
        %v3477 = vshll.u32 %v3476, 16
        %v3478 = vadd.s32 %v3477, %v3475
        %v3479 = vsel %vm1624, %v3041, 2147483647
        %v3480 = vand.u32 %v3479, 65535
        %v3481 = vshra.s32 %v3479, 16
        %v3482 = vcvt.s32.f32 %v3480
        %v3483 = vcvt.s32.f32 %v3481
        %3484 = vmin.xlane.f32.xlu0 %v3483
        %v3485 = vpop.xlane.xlu0 %3484
        %vm3486 = vcmp.eq.f32.partialorder %v3483, %v3485
        %v3487 = vsel %vm3486, %v3482, inf
        %3488 = vmin.xlane.f32.xlu0 %v3487
        %v3489 = vpop.xlane.xlu0 %3488
        %v3490 = vcvt.f32.s32 %v3489
        %v3491 = vcvt.f32.s32 %v3485
        %v3492 = vshll.u32 %v3491, 16
        %v3493 = vadd.s32 %v3492, %v3490
        %v3494 = vsel %vm1624, %v3042, 2147483647
        %v3495 = vand.u32 %v3494, 65535
        %v3496 = vshra.s32 %v3494, 16
        %v3497 = vcvt.s32.f32 %v3495
        %v3498 = vcvt.s32.f32 %v3496
        %3499 = vmin.xlane.f32.xlu0 %v3498
        %v3500 = vpop.xlane.xlu0 %3499
        %vm3501 = vcmp.eq.f32.partialorder %v3498, %v3500
        %v3502 = vsel %vm3501, %v3497, inf
        %3503 = vmin.xlane.f32.xlu0 %v3502
        %v3504 = vpop.xlane.xlu0 %3503
        %v3505 = vcvt.f32.s32 %v3504
        %v3506 = vcvt.f32.s32 %v3500
        %v3507 = vshll.u32 %v3506, 16
        %v3508 = vadd.s32 %v3507, %v3505
        %v3509 = vsel %vm948, %v3043, 2147483647
        %v3510 = vand.u32 %v3509, 65535
        %v3511 = vshra.s32 %v3509, 16
        %v3512 = vcvt.s32.f32 %v3510
        %v3513 = vcvt.s32.f32 %v3511
        %3514 = vmin.xlane.f32.xlu0 %v3513
        %v3515 = vpop.xlane.xlu0 %3514
        %vm3516 = vcmp.eq.f32.partialorder %v3513, %v3515
        %v3517 = vsel %vm3516, %v3512, inf
        %3518 = vmin.xlane.f32.xlu0 %v3517
        %v3519 = vpop.xlane.xlu0 %3518
        %v3520 = vcvt.f32.s32 %v3519
        %v3521 = vcvt.f32.s32 %v3515
        %v3522 = vshll.u32 %v3521, 16
        %v3523 = vadd.s32 %v3522, %v3520
        %vm3524 = vcmp.lt.s32.totalorder %v3058, %v3073
        %v3525 = vsel %vm3524, %v3058, %v3073
        %vm3526 = vcmp.lt.s32.totalorder %v3525, %v3088
        %v3527 = vsel %vm3526, %v3525, %v3088
        %v3528 = vsel %vm425, %v3103, 2147483647
        %vm3529 = vcmp.lt.s32.totalorder %v3527, %v3528
        %v3530 = vsel %vm3529, %v3527, %v3528
        %v3531 = vrot.slane %v3530, 4
        %vm3532 = vcmp.lt.s32.totalorder %v3530, %v3531
        %v3533 = vsel %vm3532, %v3530, %v3531
        %v3534 = vrot.slane %v3533, 2
        %vm3535 = vcmp.lt.s32.totalorder %v3533, %v3534
        %v3536 = vsel %vm3535, %v3533, %v3534
        %v3537 = vrot.slane %v3536, 1
        %vm3538 = vcmp.lt.s32.totalorder %v3536, %v3537
        %v3539 = vsel %vm3538, %v3536, %v3537
        %vm3540 = vcmp.lt.s32.totalorder %v3118, %v3133
        %v3541 = vsel %vm3540, %v3118, %v3133
        %vm3542 = vcmp.lt.s32.totalorder %v3541, %v3148
        %v3543 = vsel %vm3542, %v3541, %v3148
        %v3544 = vsel %vm425, %v3163, 2147483647
        %vm3545 = vcmp.lt.s32.totalorder %v3543, %v3544
        %v3546 = vsel %vm3545, %v3543, %v3544
        %v3547 = vrot.slane %v3546, 4
        %vm3548 = vcmp.lt.s32.totalorder %v3546, %v3547
        %v3549 = vsel %vm3548, %v3546, %v3547
        %v3550 = vrot.slane %v3549, 2
        %vm3551 = vcmp.lt.s32.totalorder %v3549, %v3550
        %v3552 = vsel %vm3551, %v3549, %v3550
        %v3553 = vrot.slane %v3552, 1
        %vm3554 = vcmp.lt.s32.totalorder %v3552, %v3553
        %v3555 = vsel %vm3554, %v3552, %v3553
        %vm3556 = vcmp.lt.s32.totalorder %v3178, %v3193
        %v3557 = vsel %vm3556, %v3178, %v3193
        %vm3558 = vcmp.lt.s32.totalorder %v3557, %v3208
        %v3559 = vsel %vm3558, %v3557, %v3208
        %v3560 = vsel %vm425, %v3223, 2147483647
        %vm3561 = vcmp.lt.s32.totalorder %v3559, %v3560
        %v3562 = vsel %vm3561, %v3559, %v3560
        %v3563 = vrot.slane %v3562, 4
        %vm3564 = vcmp.lt.s32.totalorder %v3562, %v3563
        %v3565 = vsel %vm3564, %v3562, %v3563
        %v3566 = vrot.slane %v3565, 2
        %vm3567 = vcmp.lt.s32.totalorder %v3565, %v3566
        %v3568 = vsel %vm3567, %v3565, %v3566
        %v3569 = vrot.slane %v3568, 1
        %vm3570 = vcmp.lt.s32.totalorder %v3568, %v3569
        %v3571 = vsel %vm3570, %v3568, %v3569
        %vm3572 = vcmp.lt.s32.totalorder %v3238, %v3253
        %v3573 = vsel %vm3572, %v3238, %v3253
        %vm3574 = vcmp.lt.s32.totalorder %v3573, %v3268
        %v3575 = vsel %vm3574, %v3573, %v3268
        %v3576 = vsel %vm425, %v3283, 2147483647
        %vm3577 = vcmp.lt.s32.totalorder %v3575, %v3576
        %v3578 = vsel %vm3577, %v3575, %v3576
        %v3579 = vrot.slane %v3578, 4
        %vm3580 = vcmp.lt.s32.totalorder %v3578, %v3579
        %v3581 = vsel %vm3580, %v3578, %v3579
        %v3582 = vrot.slane %v3581, 2
        %vm3583 = vcmp.lt.s32.totalorder %v3581, %v3582
        %v3584 = vsel %vm3583, %v3581, %v3582
        %v3585 = vrot.slane %v3584, 1
        %vm3586 = vcmp.lt.s32.totalorder %v3584, %v3585
        %v3587 = vsel %vm3586, %v3584, %v3585
        %vm3588 = vcmp.lt.s32.totalorder %v3298, %v3313
        %v3589 = vsel %vm3588, %v3298, %v3313
        %vm3590 = vcmp.lt.s32.totalorder %v3589, %v3328
        %v3591 = vsel %vm3590, %v3589, %v3328
        %v3592 = vsel %vm425, %v3343, 2147483647
        %vm3593 = vcmp.lt.s32.totalorder %v3591, %v3592
        %v3594 = vsel %vm3593, %v3591, %v3592
        %v3595 = vrot.slane %v3594, 4
        %vm3596 = vcmp.lt.s32.totalorder %v3594, %v3595
        %v3597 = vsel %vm3596, %v3594, %v3595
        %v3598 = vrot.slane %v3597, 2
        %vm3599 = vcmp.lt.s32.totalorder %v3597, %v3598
        %v3600 = vsel %vm3599, %v3597, %v3598
        %v3601 = vrot.slane %v3600, 1
        %vm3602 = vcmp.lt.s32.totalorder %v3600, %v3601
        %v3603 = vsel %vm3602, %v3600, %v3601
        %vm3604 = vcmp.lt.s32.totalorder %v3358, %v3373
        %v3605 = vsel %vm3604, %v3358, %v3373
        %vm3606 = vcmp.lt.s32.totalorder %v3605, %v3388
        %v3607 = vsel %vm3606, %v3605, %v3388
        %v3608 = vsel %vm425, %v3403, 2147483647
        %vm3609 = vcmp.lt.s32.totalorder %v3607, %v3608
        %v3610 = vsel %vm3609, %v3607, %v3608
        %v3611 = vrot.slane %v3610, 4
        %vm3612 = vcmp.lt.s32.totalorder %v3610, %v3611
        %v3613 = vsel %vm3612, %v3610, %v3611
        %v3614 = vrot.slane %v3613, 2
        %vm3615 = vcmp.lt.s32.totalorder %v3613, %v3614
        %v3616 = vsel %vm3615, %v3613, %v3614
        %v3617 = vrot.slane %v3616, 1
        %vm3618 = vcmp.lt.s32.totalorder %v3616, %v3617
        %v3619 = vsel %vm3618, %v3616, %v3617
        %vm3620 = vcmp.lt.s32.totalorder %v3418, %v3433
        %v3621 = vsel %vm3620, %v3418, %v3433
        %vm3622 = vcmp.lt.s32.totalorder %v3621, %v3448
        %v3623 = vsel %vm3622, %v3621, %v3448
        %v3624 = vsel %vm425, %v3463, 2147483647
        %vm3625 = vcmp.lt.s32.totalorder %v3623, %v3624
        %v3626 = vsel %vm3625, %v3623, %v3624
        %v3627 = vrot.slane %v3626, 4
        %vm3628 = vcmp.lt.s32.totalorder %v3626, %v3627
        %v3629 = vsel %vm3628, %v3626, %v3627
        %v3630 = vrot.slane %v3629, 2
        %vm3631 = vcmp.lt.s32.totalorder %v3629, %v3630
        %v3632 = vsel %vm3631, %v3629, %v3630
        %v3633 = vrot.slane %v3632, 1
        %vm3634 = vcmp.lt.s32.totalorder %v3632, %v3633
        %v3635 = vsel %vm3634, %v3632, %v3633
        %vm3636 = vcmp.lt.s32.totalorder %v3478, %v3493
        %v3637 = vsel %vm3636, %v3478, %v3493
        %vm3638 = vcmp.lt.s32.totalorder %v3637, %v3508
        %v3639 = vsel %vm3638, %v3637, %v3508
        %v3640 = vsel %vm425, %v3523, 2147483647
        %vm3641 = vcmp.lt.s32.totalorder %v3639, %v3640
        %v3642 = vsel %vm3641, %v3639, %v3640
        %v3643 = vrot.slane %v3642, 4
        %vm3644 = vcmp.lt.s32.totalorder %v3642, %v3643
        %v3645 = vsel %vm3644, %v3642, %v3643
        %v3646 = vrot.slane %v3645, 2
        %vm3647 = vcmp.lt.s32.totalorder %v3645, %v3646
        %v3648 = vsel %vm3647, %v3645, %v3646
        %v3649 = vrot.slane %v3648, 1
        %vm3650 = vcmp.lt.s32.totalorder %v3648, %v3649
        %v3651 = vsel %vm3650, %v3648, %v3649
        %vm3652 = vcmp.eq.s32.totalorder %v1301, %v3539
        %vm3653 = vcmp.eq.s32.totalorder %v1302, %v3539
        %vm3654 = vcmp.eq.s32.totalorder %v1303, %v3539
        %vm3655 = vcmp.eq.s32.totalorder %v1304, %v3539
        %vm3656 = vcmp.eq.s32.totalorder %v1301, %v3555
        %vm3657 = vcmp.eq.s32.totalorder %v1302, %v3555
        %vm3658 = vcmp.eq.s32.totalorder %v1303, %v3555
        %vm3659 = vcmp.eq.s32.totalorder %v1304, %v3555
        %vm3660 = vcmp.eq.s32.totalorder %v1301, %v3571
        %vm3661 = vcmp.eq.s32.totalorder %v1302, %v3571
        %vm3662 = vcmp.eq.s32.totalorder %v1303, %v3571
        %vm3663 = vcmp.eq.s32.totalorder %v1304, %v3571
        %vm3664 = vcmp.eq.s32.totalorder %v1301, %v3587
        %vm3665 = vcmp.eq.s32.totalorder %v1302, %v3587
        %vm3666 = vcmp.eq.s32.totalorder %v1303, %v3587
        %vm3667 = vcmp.eq.s32.totalorder %v1304, %v3587
        %vm3668 = vcmp.eq.s32.totalorder %v1301, %v3603
        %vm3669 = vcmp.eq.s32.totalorder %v1302, %v3603
        %vm3670 = vcmp.eq.s32.totalorder %v1303, %v3603
        %vm3671 = vcmp.eq.s32.totalorder %v1304, %v3603
        %vm3672 = vcmp.eq.s32.totalorder %v1301, %v3619
        %vm3673 = vcmp.eq.s32.totalorder %v1302, %v3619
        %vm3674 = vcmp.eq.s32.totalorder %v1303, %v3619
        %vm3675 = vcmp.eq.s32.totalorder %v1304, %v3619
        %vm3676 = vcmp.eq.s32.totalorder %v1301, %v3635
        %vm3677 = vcmp.eq.s32.totalorder %v1302, %v3635
        %vm3678 = vcmp.eq.s32.totalorder %v1303, %v3635
        %vm3679 = vcmp.eq.s32.totalorder %v1304, %v3635
        %vm3680 = vcmp.eq.s32.totalorder %v1301, %v3651
        %vm3681 = vcmp.eq.s32.totalorder %v1302, %v3651
        %vm3682 = vcmp.eq.s32.totalorder %v1303, %v3651
        %vm3683 = vcmp.eq.s32.totalorder %v1304, %v3651
        %v3684 = vsel %vm3652, 1, 0
        %v3685 = vsel %vm3653, 1, 0
        %v3686 = vsel %vm3654, 1, 0
        %v3687 = vsel %vm3655, 1, 0
        %v3688 = vsel %vm3656, 1, 0
        %v3689 = vsel %vm3657, 1, 0
        %v3690 = vsel %vm3658, 1, 0
        %v3691 = vsel %vm3659, 1, 0
        %v3692 = vsel %vm3660, 1, 0
        %v3693 = vsel %vm3661, 1, 0
        %v3694 = vsel %vm3662, 1, 0
        %v3695 = vsel %vm3663, 1, 0
        %v3696 = vsel %vm3664, 1, 0
        %v3697 = vsel %vm3665, 1, 0
        %v3698 = vsel %vm3666, 1, 0
        %v3699 = vsel %vm3667, 1, 0
        %v3700 = vsel %vm3668, 1, 0
        %v3701 = vsel %vm3669, 1, 0
        %v3702 = vsel %vm3670, 1, 0
        %v3703 = vsel %vm3671, 1, 0
        %v3704 = vsel %vm3672, 1, 0
        %v3705 = vsel %vm3673, 1, 0
        %v3706 = vsel %vm3674, 1, 0
        %v3707 = vsel %vm3675, 1, 0
        %v3708 = vsel %vm3676, 1, 0
        %v3709 = vsel %vm3677, 1, 0
        %v3710 = vsel %vm3678, 1, 0
        %v3711 = vsel %vm3679, 1, 0
        %v3712 = vsel %vm3680, 1, 0
        %v3713 = vsel %vm3681, 1, 0
        %v3714 = vsel %vm3682, 1, 0
        %v3715 = vsel %vm3683, 1, 0
        %v3716 = vcvt.s32.f32 %v3684
        %v3717 = vcvt.s32.f32 %v3685
        %v3718 = vcvt.s32.f32 %v3686
        %v3719 = vcvt.s32.f32 %v3687
        %v3720 = vcvt.s32.f32 %v3688
        %v3721 = vcvt.s32.f32 %v3689
        %v3722 = vcvt.s32.f32 %v3690
        %v3723 = vcvt.s32.f32 %v3691
        %v3724 = vcvt.s32.f32 %v3692
        %v3725 = vcvt.s32.f32 %v3693
        %v3726 = vcvt.s32.f32 %v3694
        %v3727 = vcvt.s32.f32 %v3695
        %v3728 = vcvt.s32.f32 %v3696
        %v3729 = vcvt.s32.f32 %v3697
        %v3730 = vcvt.s32.f32 %v3698
        %v3731 = vcvt.s32.f32 %v3699
        %v3732 = vcvt.s32.f32 %v3700
        %v3733 = vcvt.s32.f32 %v3701
        %v3734 = vcvt.s32.f32 %v3702
        %v3735 = vcvt.s32.f32 %v3703
        %v3736 = vcvt.s32.f32 %v3704
        %v3737 = vcvt.s32.f32 %v3705
        %v3738 = vcvt.s32.f32 %v3706
        %v3739 = vcvt.s32.f32 %v3707
        %v3740 = vcvt.s32.f32 %v3708
        %v3741 = vcvt.s32.f32 %v3709
        %v3742 = vcvt.s32.f32 %v3710
        %v3743 = vcvt.s32.f32 %v3711
        %v3744 = vcvt.s32.f32 %v3712
        %v3745 = vcvt.s32.f32 %v3713
        %v3746 = vcvt.s32.f32 %v3714
        %v3747 = vcvt.s32.f32 %v3715
        %v3748 = vsel %vm1624, %v3716, 0.0
        %v3749 = vsel %vm1624, %v3717, 0.0
        %v3750 = vadd.f32 %v3748, %v3749
        %v3751 = vsel %vm1624, %v3718, 0.0
        %v3752 = vadd.f32 %v3750, %v3751
        %v3753 = vsel %vm948, %v3719, 0.0
        %v3754 = vadd.f32 %v3752, %v3753
        %v3755 = vrot.slane %v3754, 4
        %v3756 = vadd.f32 %v3754, %v3755
        %v3757 = vrot.slane %v3756, 2
        %v3758 = vadd.f32 %v3756, %v3757
        %v3759 = vrot.slane %v3758, 1
        %v3760 = vadd.f32 %v3758, %v3759
        %v3761 = vsel %vm1624, %v3720, 0.0
        %v3762 = vsel %vm1624, %v3721, 0.0
        %v3763 = vadd.f32 %v3761, %v3762
        %v3764 = vsel %vm1624, %v3722, 0.0
        %v3765 = vadd.f32 %v3763, %v3764
        %v3766 = vsel %vm948, %v3723, 0.0
        %v3767 = vadd.f32 %v3765, %v3766
        %v3768 = vrot.slane %v3767, 4
        %v3769 = vadd.f32 %v3767, %v3768
        %v3770 = vrot.slane %v3769, 2
        %v3771 = vadd.f32 %v3769, %v3770
        %v3772 = vrot.slane %v3771, 1
        %v3773 = vadd.f32 %v3771, %v3772
        %v3774 = vsel %vm1624, %v3724, 0.0
        %v3775 = vsel %vm1624, %v3725, 0.0
        %v3776 = vadd.f32 %v3774, %v3775
        %v3777 = vsel %vm1624, %v3726, 0.0
        %v3778 = vadd.f32 %v3776, %v3777
        %v3779 = vsel %vm948, %v3727, 0.0
        %v3780 = vadd.f32 %v3778, %v3779
        %v3781 = vrot.slane %v3780, 4
        %v3782 = vadd.f32 %v3780, %v3781
        %v3783 = vrot.slane %v3782, 2
        %v3784 = vadd.f32 %v3782, %v3783
        %v3785 = vrot.slane %v3784, 1
        %v3786 = vadd.f32 %v3784, %v3785
        %v3787 = vsel %vm1624, %v3728, 0.0
        %v3788 = vsel %vm1624, %v3729, 0.0
        %v3789 = vadd.f32 %v3787, %v3788
        %v3790 = vsel %vm1624, %v3730, 0.0
        %v3791 = vadd.f32 %v3789, %v3790
        %v3792 = vsel %vm948, %v3731, 0.0
        %v3793 = vadd.f32 %v3791, %v3792
        %v3794 = vrot.slane %v3793, 4
        %v3795 = vadd.f32 %v3793, %v3794
        %v3796 = vrot.slane %v3795, 2
        %v3797 = vadd.f32 %v3795, %v3796
        %v3798 = vrot.slane %v3797, 1
        %v3799 = vadd.f32 %v3797, %v3798
        %v3800 = vsel %vm1624, %v3732, 0.0
        %v3801 = vsel %vm1624, %v3733, 0.0
        %v3802 = vadd.f32 %v3800, %v3801
        %v3803 = vsel %vm1624, %v3734, 0.0
        %v3804 = vadd.f32 %v3802, %v3803
        %v3805 = vsel %vm948, %v3735, 0.0
        %v3806 = vadd.f32 %v3804, %v3805
        %v3807 = vrot.slane %v3806, 4
        %v3808 = vadd.f32 %v3806, %v3807
        %v3809 = vrot.slane %v3808, 2
        %v3810 = vadd.f32 %v3808, %v3809
        %v3811 = vrot.slane %v3810, 1
        %v3812 = vadd.f32 %v3810, %v3811
        %v3813 = vsel %vm1624, %v3736, 0.0
        %v3814 = vsel %vm1624, %v3737, 0.0
        %v3815 = vadd.f32 %v3813, %v3814
        %v3816 = vsel %vm1624, %v3738, 0.0
        %v3817 = vadd.f32 %v3815, %v3816
        %v3818 = vsel %vm948, %v3739, 0.0
        %v3819 = vadd.f32 %v3817, %v3818
        %v3820 = vrot.slane %v3819, 4
        %v3821 = vadd.f32 %v3819, %v3820
        %v3822 = vrot.slane %v3821, 2
        %v3823 = vadd.f32 %v3821, %v3822
        %v3824 = vrot.slane %v3823, 1
        %v3825 = vadd.f32 %v3823, %v3824
        %v3826 = vsel %vm1624, %v3740, 0.0
        %v3827 = vsel %vm1624, %v3741, 0.0
        %v3828 = vadd.f32 %v3826, %v3827
        %v3829 = vsel %vm1624, %v3742, 0.0
        %v3830 = vadd.f32 %v3828, %v3829
        %v3831 = vsel %vm948, %v3743, 0.0
        %v3832 = vadd.f32 %v3830, %v3831
        %v3833 = vrot.slane %v3832, 4
        %v3834 = vadd.f32 %v3832, %v3833
        %v3835 = vrot.slane %v3834, 2
        %v3836 = vadd.f32 %v3834, %v3835
        %v3837 = vrot.slane %v3836, 1
        %v3838 = vadd.f32 %v3836, %v3837
        %v3839 = vsel %vm1624, %v3744, 0.0
        %v3840 = vsel %vm1624, %v3745, 0.0
        %v3841 = vadd.f32 %v3839, %v3840
        %v3842 = vsel %vm1624, %v3746, 0.0
        %v3843 = vadd.f32 %v3841, %v3842
        %v3844 = vsel %vm948, %v3747, 0.0
        %v3845 = vadd.f32 %v3843, %v3844
        %v3846 = vrot.slane %v3845, 4
        %v3847 = vadd.f32 %v3845, %v3846
        %v3848 = vrot.slane %v3847, 2
        %v3849 = vadd.f32 %v3847, %v3848
        %v3850 = vrot.slane %v3849, 1
        %v3851 = vadd.f32 %v3849, %v3850
        %v3860 = vsel %vm2681, %v3773, %v3760
        %v3861 = vsel %vm2683, %v3786, %v3860
        %v3862 = vsel %vm2685, %v3799, %v3861
        %v3863 = vsel %vm2687, %v3812, %v3862
        %v3864 = vsel %vm2689, %v3825, %v3863
        %v3865 = vsel %vm2691, %v3838, %v3864
        %v3866 = vsel %vm2693, %v3851, %v3865
        %v3867 = vsel %vm1624, %v3866, 0
        %3869 = vmatprep.subr.mxu0 0.0
        %3870 = vmatpush1.xpose.msra.mxu0 %v3867
        %3871 = vmatprep.subr.mxu0 0.0
        %3872 = vmatpush1.xpose.msra.mxu0 0.0
        %3873 = vmatprep.subr.mxu0 0.0
        %3874 = vmatpush1.xpose.msra.mxu0 0.0
        %3875 = vmatprep.subr.mxu0 0.0
        %3876 = vmatpush1.xpose.msra.mxu0 0.0
        %3877 = vmatprep.subr.mxu0 0.0
        %3878 = vmatpush1.xpose.msra.mxu0 0.0
        %3879 = vmatprep.subr.mxu0 0.0
        %3880 = vmatpush1.xpose.msra.mxu0 0.0
        %3881 = vmatprep.subr.mxu0 0.0
        %3882 = vmatpush1.xpose.msra.mxu0 0.0
        %3883 = vmatprep.subr.mxu0 0.0
        %3884 = vmatpush1.xpose.msra.mxu0 0.0
        %3885 = vmatprep.subr.mxu0 0.0
        %3886 = vmatpush1.xpose.msra.mxu0 0.0
        %3887 = vmatprep.subr.mxu0 0.0
        %3888 = vmatpush1.xpose.msra.mxu0 0.0
        %3889 = vmatprep.subr.mxu0 0.0
        %3890 = vmatpush1.xpose.msra.mxu0 0.0
        %3891 = vmatprep.subr.mxu0 0.0
        %3892 = vmatpush1.xpose.msra.mxu0 0.0
        %3893 = vmatprep.subr.mxu0 0.0
        %3894 = vmatpush1.xpose.msra.mxu0 0.0
        %3895 = vmatprep.subr.mxu0 0.0
        %3896 = vmatpush1.xpose.msra.mxu0 0.0
        %3897 = vmatprep.subr.mxu0 0.0
        %3898 = vmatpush1.xpose.msra.mxu0 0.0
        %3899 = vmatprep.subr.mxu0 0.0
        %3900 = vmatpush1.xpose.msra.mxu0 0.0
        %3901 = vmatprep.subr.mxu0 0.0
        %3902 = vmatpush1.xpose.msra.mxu0 0.0
        %3903 = vmatprep.subr.mxu0 0.0
        %3904 = vmatpush1.xpose.msra.mxu0 0.0
        %3905 = vmatprep.subr.mxu0 0.0
        %3906 = vmatpush1.xpose.msra.mxu0 0.0
        %3907 = vmatprep.subr.mxu0 0.0
        %3908 = vmatpush1.xpose.msra.mxu0 0.0
        %3909 = vmatprep.subr.mxu0 0.0
        %3910 = vmatpush1.xpose.msra.mxu0 0.0
        %3911 = vmatprep.subr.mxu0 0.0
        %3912 = vmatpush1.xpose.msra.mxu0 0.0
        %3913 = vmatprep.subr.mxu0 0.0
        %3914 = vmatpush1.xpose.msra.mxu0 0.0
        %3915 = vmatprep.subr.mxu0 0.0
        %3916 = vmatpush1.xpose.msra.mxu0 0.0
        %3917 = vmatprep.subr.mxu0 0.0
        %3918 = vmatpush1.xpose.msra.mxu0 0.0
        %3919 = vmatprep.subr.mxu0 0.0
        %3920 = vmatpush1.xpose.msra.mxu0 0.0
        %3921 = vmatprep.subr.mxu0 0.0
        %3922 = vmatpush1.xpose.msra.mxu0 0.0
        %3923 = vmatprep.subr.mxu0 0.0
        %3924 = vmatpush1.xpose.msra.mxu0 0.0
        %3925 = vmatprep.subr.mxu0 0.0
        %3926 = vmatpush1.xpose.msra.mxu0 0.0
        %3927 = vmatprep.subr.mxu0 0.0
        %3928 = vmatpush1.xpose.msra.mxu0 0.0
        %3929 = vmatprep.subr.mxu0 0.0
        %3930 = vmatpush1.xpose.msra.mxu0 0.0
        %3931 = vmatprep.subr.mxu0 0.0
        %3932 = vmatpush1.xpose.msra.mxu0 0.0
        %3933 = vmatprep.mubr.f32.mxu0 0.0
        %3934 = vmatmul.mubr.f32.gmra.mrb[0].mxu0 %v2696
        %v3935 = vpop.f32.mrb[0].mxu0
        %v3936 = vadd.f32 0.0, %v3935
        %v3937 = vpop.f32.mrb[0].mxu0
        %3938 = vdwg.mxu0
        %v3939 = vsub.f32 %v3936, %v1623
        %v3940 = vand.u32 2147483647, %v3939
        %v3941 = vsel %vm3652, 1e+30, %v2772
        %v3942 = vsel %vm3653, 1e+30, %v2773
        %v3943 = vsel %vm3654, 1e+30, %v2774
        %v3944 = vsel %vm3655, 1e+30, %v2775
        %v3945 = vsel %vm3656, 1e+30, %v2776
        %v3946 = vsel %vm3657, 1e+30, %v2777
        %v3947 = vsel %vm3658, 1e+30, %v2778
        %v3948 = vsel %vm3659, 1e+30, %v2779
        %v3949 = vsel %vm3660, 1e+30, %v2780
        %v3950 = vsel %vm3661, 1e+30, %v2781
        %v3951 = vsel %vm3662, 1e+30, %v2782
        %v3952 = vsel %vm3663, 1e+30, %v2783
        %v3953 = vsel %vm3664, 1e+30, %v2784
        %v3954 = vsel %vm3665, 1e+30, %v2785
        %v3955 = vsel %vm3666, 1e+30, %v2786
        %v3956 = vsel %vm3667, 1e+30, %v2787
        %v3957 = vsel %vm3668, 1e+30, %v2788
        %v3958 = vsel %vm3669, 1e+30, %v2789
        %v3959 = vsel %vm3670, 1e+30, %v2790
        %v3960 = vsel %vm3671, 1e+30, %v2791
        %v3961 = vsel %vm3672, 1e+30, %v2792
        %v3962 = vsel %vm3673, 1e+30, %v2793
        %v3963 = vsel %vm3674, 1e+30, %v2794
        %v3964 = vsel %vm3675, 1e+30, %v2795
        %v3965 = vsel %vm3676, 1e+30, %v2796
        %v3966 = vsel %vm3677, 1e+30, %v2797
        %v3967 = vsel %vm3678, 1e+30, %v2798
        %v3968 = vsel %vm3679, 1e+30, %v2799
        %v3969 = vsel %vm3680, 1e+30, %v2800
        %v3970 = vsel %vm3681, 1e+30, %v2801
        %v3971 = vsel %vm3682, 1e+30, %v2802
        %v3972 = vsel %vm3683, 1e+30, %v2803
        %v3973 = vsel %vm1624, %v3941, inf
        %3974 = vmin.xlane.f32.xlu0 %v3973
        %v3975 = vpop.xlane.xlu0 %3974
        %v3976 = vsel %vm1624, %v3942, inf
        %3977 = vmin.xlane.f32.xlu0 %v3976
        %v3978 = vpop.xlane.xlu0 %3977
        %v3979 = vsel %vm1624, %v3943, inf
        %3980 = vmin.xlane.f32.xlu0 %v3979
        %v3981 = vpop.xlane.xlu0 %3980
        %v3982 = vsel %vm948, %v3944, inf
        %3983 = vmin.xlane.f32.xlu0 %v3982
        %v3984 = vpop.xlane.xlu0 %3983
        %v3985 = vsel %vm1624, %v3945, inf
        %3986 = vmin.xlane.f32.xlu0 %v3985
        %v3987 = vpop.xlane.xlu0 %3986
        %v3988 = vsel %vm1624, %v3946, inf
        %3989 = vmin.xlane.f32.xlu0 %v3988
        %v3990 = vpop.xlane.xlu0 %3989
        %v3991 = vsel %vm1624, %v3947, inf
        %3992 = vmin.xlane.f32.xlu0 %v3991
        %v3993 = vpop.xlane.xlu0 %3992
        %v3994 = vsel %vm948, %v3948, inf
        %3995 = vmin.xlane.f32.xlu0 %v3994
        %v3996 = vpop.xlane.xlu0 %3995
        %v3997 = vsel %vm1624, %v3949, inf
        %3998 = vmin.xlane.f32.xlu0 %v3997
        %v3999 = vpop.xlane.xlu0 %3998
        %v4000 = vsel %vm1624, %v3950, inf
        %4001 = vmin.xlane.f32.xlu0 %v4000
        %v4002 = vpop.xlane.xlu0 %4001
        %v4003 = vsel %vm1624, %v3951, inf
        %4004 = vmin.xlane.f32.xlu0 %v4003
        %v4005 = vpop.xlane.xlu0 %4004
        %v4006 = vsel %vm948, %v3952, inf
        %4007 = vmin.xlane.f32.xlu0 %v4006
        %v4008 = vpop.xlane.xlu0 %4007
        %v4009 = vsel %vm1624, %v3953, inf
        %4010 = vmin.xlane.f32.xlu0 %v4009
        %v4011 = vpop.xlane.xlu0 %4010
        %v4012 = vsel %vm1624, %v3954, inf
        %4013 = vmin.xlane.f32.xlu0 %v4012
        %v4014 = vpop.xlane.xlu0 %4013
        %v4015 = vsel %vm1624, %v3955, inf
        %4016 = vmin.xlane.f32.xlu0 %v4015
        %v4017 = vpop.xlane.xlu0 %4016
        %v4018 = vsel %vm948, %v3956, inf
        %4019 = vmin.xlane.f32.xlu0 %v4018
        %v4020 = vpop.xlane.xlu0 %4019
        %v4021 = vsel %vm1624, %v3957, inf
        %4022 = vmin.xlane.f32.xlu0 %v4021
        %v4023 = vpop.xlane.xlu0 %4022
        %v4024 = vsel %vm1624, %v3958, inf
        %4025 = vmin.xlane.f32.xlu0 %v4024
        %v4026 = vpop.xlane.xlu0 %4025
        %v4027 = vsel %vm1624, %v3959, inf
        %4028 = vmin.xlane.f32.xlu0 %v4027
        %v4029 = vpop.xlane.xlu0 %4028
        %v4030 = vsel %vm948, %v3960, inf
        %4031 = vmin.xlane.f32.xlu0 %v4030
        %v4032 = vpop.xlane.xlu0 %4031
        %v4033 = vsel %vm1624, %v3961, inf
        %4034 = vmin.xlane.f32.xlu0 %v4033
        %v4035 = vpop.xlane.xlu0 %4034
        %v4036 = vsel %vm1624, %v3962, inf
        %4037 = vmin.xlane.f32.xlu0 %v4036
        %v4038 = vpop.xlane.xlu0 %4037
        %v4039 = vsel %vm1624, %v3963, inf
        %4040 = vmin.xlane.f32.xlu0 %v4039
        %v4041 = vpop.xlane.xlu0 %4040
        %v4042 = vsel %vm948, %v3964, inf
        %4043 = vmin.xlane.f32.xlu0 %v4042
        %v4044 = vpop.xlane.xlu0 %4043
        %v4045 = vsel %vm1624, %v3965, inf
        %4046 = vmin.xlane.f32.xlu0 %v4045
        %v4047 = vpop.xlane.xlu0 %4046
        %v4048 = vsel %vm1624, %v3966, inf
        %4049 = vmin.xlane.f32.xlu0 %v4048
        %v4050 = vpop.xlane.xlu0 %4049
        %v4051 = vsel %vm1624, %v3967, inf
        %4052 = vmin.xlane.f32.xlu0 %v4051
        %v4053 = vpop.xlane.xlu0 %4052
        %v4054 = vsel %vm948, %v3968, inf
        %4055 = vmin.xlane.f32.xlu0 %v4054
        %v4056 = vpop.xlane.xlu0 %4055
        %v4057 = vsel %vm1624, %v3969, inf
        %4058 = vmin.xlane.f32.xlu0 %v4057
        %v4059 = vpop.xlane.xlu0 %4058
        %v4060 = vsel %vm1624, %v3970, inf
        %4061 = vmin.xlane.f32.xlu0 %v4060
        %v4062 = vpop.xlane.xlu0 %4061
        %v4063 = vsel %vm1624, %v3971, inf
        %4064 = vmin.xlane.f32.xlu0 %v4063
        %v4065 = vpop.xlane.xlu0 %4064
        %v4066 = vsel %vm948, %v3972, inf
        %4067 = vmin.xlane.f32.xlu0 %v4066
        %v4068 = vpop.xlane.xlu0 %4067
        %v4069 = vmin.f32 %v3975, %v3978
        %v4070 = vmin.f32 %v4069, %v3981
        %v4071 = vsel %vm425, %v3984, inf
        %v4072 = vmin.f32 %v4070, %v4071
        %v4073 = vrot.slane %v4072, 4
        %v4074 = vmin.f32 %v4072, %v4073
        %v4075 = vrot.slane %v4074, 2
        %v4076 = vmin.f32 %v4074, %v4075
        %v4077 = vrot.slane %v4076, 1
        %v4078 = vmin.f32 %v4076, %v4077
        %v4079 = vmin.f32 %v3987, %v3990
        %v4080 = vmin.f32 %v4079, %v3993
        %v4081 = vsel %vm425, %v3996, inf
        %v4082 = vmin.f32 %v4080, %v4081
        %v4083 = vrot.slane %v4082, 4
        %v4084 = vmin.f32 %v4082, %v4083
        %v4085 = vrot.slane %v4084, 2
        %v4086 = vmin.f32 %v4084, %v4085
        %v4087 = vrot.slane %v4086, 1
        %v4088 = vmin.f32 %v4086, %v4087
        %v4089 = vmin.f32 %v3999, %v4002
        %v4090 = vmin.f32 %v4089, %v4005
        %v4091 = vsel %vm425, %v4008, inf
        %v4092 = vmin.f32 %v4090, %v4091
        %v4093 = vrot.slane %v4092, 4
        %v4094 = vmin.f32 %v4092, %v4093
        %v4095 = vrot.slane %v4094, 2
        %v4096 = vmin.f32 %v4094, %v4095
        %v4097 = vrot.slane %v4096, 1
        %v4098 = vmin.f32 %v4096, %v4097
        %v4099 = vmin.f32 %v4011, %v4014
        %v4100 = vmin.f32 %v4099, %v4017
        %v4101 = vsel %vm425, %v4020, inf
        %v4102 = vmin.f32 %v4100, %v4101
        %v4103 = vrot.slane %v4102, 4
        %v4104 = vmin.f32 %v4102, %v4103
        %v4105 = vrot.slane %v4104, 2
        %v4106 = vmin.f32 %v4104, %v4105
        %v4107 = vrot.slane %v4106, 1
        %v4108 = vmin.f32 %v4106, %v4107
        %v4109 = vmin.f32 %v4023, %v4026
        %v4110 = vmin.f32 %v4109, %v4029
        %v4111 = vsel %vm425, %v4032, inf
        %v4112 = vmin.f32 %v4110, %v4111
        %v4113 = vrot.slane %v4112, 4
        %v4114 = vmin.f32 %v4112, %v4113
        %v4115 = vrot.slane %v4114, 2
        %v4116 = vmin.f32 %v4114, %v4115
        %v4117 = vrot.slane %v4116, 1
        %v4118 = vmin.f32 %v4116, %v4117
        %v4119 = vmin.f32 %v4035, %v4038
        %v4120 = vmin.f32 %v4119, %v4041
        %v4121 = vsel %vm425, %v4044, inf
        %v4122 = vmin.f32 %v4120, %v4121
        %v4123 = vrot.slane %v4122, 4
        %v4124 = vmin.f32 %v4122, %v4123
        %v4125 = vrot.slane %v4124, 2
        %v4126 = vmin.f32 %v4124, %v4125
        %v4127 = vrot.slane %v4126, 1
        %v4128 = vmin.f32 %v4126, %v4127
        %v4129 = vmin.f32 %v4047, %v4050
        %v4130 = vmin.f32 %v4129, %v4053
        %v4131 = vsel %vm425, %v4056, inf
        %v4132 = vmin.f32 %v4130, %v4131
        %v4133 = vrot.slane %v4132, 4
        %v4134 = vmin.f32 %v4132, %v4133
        %v4135 = vrot.slane %v4134, 2
        %v4136 = vmin.f32 %v4134, %v4135
        %v4137 = vrot.slane %v4136, 1
        %v4138 = vmin.f32 %v4136, %v4137
        %v4139 = vmin.f32 %v4059, %v4062
        %v4140 = vmin.f32 %v4139, %v4065
        %v4141 = vsel %vm425, %v4068, inf
        %v4142 = vmin.f32 %v4140, %v4141
        %v4143 = vrot.slane %v4142, 4
        %v4144 = vmin.f32 %v4142, %v4143
        %v4145 = vrot.slane %v4144, 2
        %v4146 = vmin.f32 %v4144, %v4145
        %v4147 = vrot.slane %v4146, 1
        %v4148 = vmin.f32 %v4146, %v4147
        %vm4149 = vcmp.eq.f32.partialorder %v3941, %v4078
        %vm4150 = vcmp.eq.f32.partialorder %v3942, %v4078
        %vm4151 = vcmp.eq.f32.partialorder %v3943, %v4078
        %vm4152 = vcmp.eq.f32.partialorder %v3944, %v4078
        %vm4153 = vcmp.eq.f32.partialorder %v3945, %v4088
        %vm4154 = vcmp.eq.f32.partialorder %v3946, %v4088
        %vm4155 = vcmp.eq.f32.partialorder %v3947, %v4088
        %vm4156 = vcmp.eq.f32.partialorder %v3948, %v4088
        %vm4157 = vcmp.eq.f32.partialorder %v3949, %v4098
        %vm4158 = vcmp.eq.f32.partialorder %v3950, %v4098
        %vm4159 = vcmp.eq.f32.partialorder %v3951, %v4098
        %vm4160 = vcmp.eq.f32.partialorder %v3952, %v4098
        %vm4161 = vcmp.eq.f32.partialorder %v3953, %v4108
        %vm4162 = vcmp.eq.f32.partialorder %v3954, %v4108
        %vm4163 = vcmp.eq.f32.partialorder %v3955, %v4108
        %vm4164 = vcmp.eq.f32.partialorder %v3956, %v4108
        %vm4165 = vcmp.eq.f32.partialorder %v3957, %v4118
        %vm4166 = vcmp.eq.f32.partialorder %v3958, %v4118
        %vm4167 = vcmp.eq.f32.partialorder %v3959, %v4118
        %vm4168 = vcmp.eq.f32.partialorder %v3960, %v4118
        %vm4169 = vcmp.eq.f32.partialorder %v3961, %v4128
        %vm4170 = vcmp.eq.f32.partialorder %v3962, %v4128
        %vm4171 = vcmp.eq.f32.partialorder %v3963, %v4128
        %vm4172 = vcmp.eq.f32.partialorder %v3964, %v4128
        %vm4173 = vcmp.eq.f32.partialorder %v3965, %v4138
        %vm4174 = vcmp.eq.f32.partialorder %v3966, %v4138
        %vm4175 = vcmp.eq.f32.partialorder %v3967, %v4138
        %vm4176 = vcmp.eq.f32.partialorder %v3968, %v4138
        %vm4177 = vcmp.eq.f32.partialorder %v3969, %v4148
        %vm4178 = vcmp.eq.f32.partialorder %v3970, %v4148
        %vm4179 = vcmp.eq.f32.partialorder %v3971, %v4148
        %vm4180 = vcmp.eq.f32.partialorder %v3972, %v4148
        %v4181 = vsel %vm4149, %v1301, 216
        %v4182 = vsel %vm4150, %v1302, 216
        %v4183 = vsel %vm4151, %v1303, 216
        %v4184 = vsel %vm4152, %v1304, 216
        %v4185 = vsel %vm4153, %v1301, 216
        %v4186 = vsel %vm4154, %v1302, 216
        %v4187 = vsel %vm4155, %v1303, 216
        %v4188 = vsel %vm4156, %v1304, 216
        %v4189 = vsel %vm4157, %v1301, 216
        %v4190 = vsel %vm4158, %v1302, 216
        %v4191 = vsel %vm4159, %v1303, 216
        %v4192 = vsel %vm4160, %v1304, 216
        %v4193 = vsel %vm4161, %v1301, 216
        %v4194 = vsel %vm4162, %v1302, 216
        %v4195 = vsel %vm4163, %v1303, 216
        %v4196 = vsel %vm4164, %v1304, 216
        %v4197 = vsel %vm4165, %v1301, 216
        %v4198 = vsel %vm4166, %v1302, 216
        %v4199 = vsel %vm4167, %v1303, 216
        %v4200 = vsel %vm4168, %v1304, 216
        %v4201 = vsel %vm4169, %v1301, 216
        %v4202 = vsel %vm4170, %v1302, 216
        %v4203 = vsel %vm4171, %v1303, 216
        %v4204 = vsel %vm4172, %v1304, 216
        %v4205 = vsel %vm4173, %v1301, 216
        %v4206 = vsel %vm4174, %v1302, 216
        %v4207 = vsel %vm4175, %v1303, 216
        %v4208 = vsel %vm4176, %v1304, 216
        %v4209 = vsel %vm4177, %v1301, 216
        %v4210 = vsel %vm4178, %v1302, 216
        %v4211 = vsel %vm4179, %v1303, 216
        %v4212 = vsel %vm4180, %v1304, 216
        %v4213 = vsel %vm1624, %v4181, 2147483647
        %v4214 = vand.u32 %v4213, 65535
        %v4215 = vshra.s32 %v4213, 16
        %v4216 = vcvt.s32.f32 %v4214
        %v4217 = vcvt.s32.f32 %v4215
        %4218 = vmin.xlane.f32.xlu0 %v4217
        %v4219 = vpop.xlane.xlu0 %4218
        %vm4220 = vcmp.eq.f32.partialorder %v4217, %v4219
        %v4221 = vsel %vm4220, %v4216, inf
        %4222 = vmin.xlane.f32.xlu0 %v4221
        %v4223 = vpop.xlane.xlu0 %4222
        %v4224 = vcvt.f32.s32 %v4223
        %v4225 = vcvt.f32.s32 %v4219
        %v4226 = vshll.u32 %v4225, 16
        %v4227 = vadd.s32 %v4226, %v4224
        %v4228 = vsel %vm1624, %v4182, 2147483647
        %v4229 = vand.u32 %v4228, 65535
        %v4230 = vshra.s32 %v4228, 16
        %v4231 = vcvt.s32.f32 %v4229
        %v4232 = vcvt.s32.f32 %v4230
        %4233 = vmin.xlane.f32.xlu0 %v4232
        %v4234 = vpop.xlane.xlu0 %4233
        %vm4235 = vcmp.eq.f32.partialorder %v4232, %v4234
        %v4236 = vsel %vm4235, %v4231, inf
        %4237 = vmin.xlane.f32.xlu0 %v4236
        %v4238 = vpop.xlane.xlu0 %4237
        %v4239 = vcvt.f32.s32 %v4238
        %v4240 = vcvt.f32.s32 %v4234
        %v4241 = vshll.u32 %v4240, 16
        %v4242 = vadd.s32 %v4241, %v4239
        %v4243 = vsel %vm1624, %v4183, 2147483647
        %v4244 = vand.u32 %v4243, 65535
        %v4245 = vshra.s32 %v4243, 16
        %v4246 = vcvt.s32.f32 %v4244
        %v4247 = vcvt.s32.f32 %v4245
        %4248 = vmin.xlane.f32.xlu0 %v4247
        %v4249 = vpop.xlane.xlu0 %4248
        %vm4250 = vcmp.eq.f32.partialorder %v4247, %v4249
        %v4251 = vsel %vm4250, %v4246, inf
        %4252 = vmin.xlane.f32.xlu0 %v4251
        %v4253 = vpop.xlane.xlu0 %4252
        %v4254 = vcvt.f32.s32 %v4253
        %v4255 = vcvt.f32.s32 %v4249
        %v4256 = vshll.u32 %v4255, 16
        %v4257 = vadd.s32 %v4256, %v4254
        %v4258 = vsel %vm948, %v4184, 2147483647
        %v4259 = vand.u32 %v4258, 65535
        %v4260 = vshra.s32 %v4258, 16
        %v4261 = vcvt.s32.f32 %v4259
        %v4262 = vcvt.s32.f32 %v4260
        %4263 = vmin.xlane.f32.xlu0 %v4262
        %v4264 = vpop.xlane.xlu0 %4263
        %vm4265 = vcmp.eq.f32.partialorder %v4262, %v4264
        %v4266 = vsel %vm4265, %v4261, inf
        %4267 = vmin.xlane.f32.xlu0 %v4266
        %v4268 = vpop.xlane.xlu0 %4267
        %v4269 = vcvt.f32.s32 %v4268
        %v4270 = vcvt.f32.s32 %v4264
        %v4271 = vshll.u32 %v4270, 16
        %v4272 = vadd.s32 %v4271, %v4269
        %v4273 = vsel %vm1624, %v4185, 2147483647
        %v4274 = vand.u32 %v4273, 65535
        %v4275 = vshra.s32 %v4273, 16
        %v4276 = vcvt.s32.f32 %v4274
        %v4277 = vcvt.s32.f32 %v4275
        %4278 = vmin.xlane.f32.xlu0 %v4277
        %v4279 = vpop.xlane.xlu0 %4278
        %vm4280 = vcmp.eq.f32.partialorder %v4277, %v4279
        %v4281 = vsel %vm4280, %v4276, inf
        %4282 = vmin.xlane.f32.xlu0 %v4281
        %v4283 = vpop.xlane.xlu0 %4282
        %v4284 = vcvt.f32.s32 %v4283
        %v4285 = vcvt.f32.s32 %v4279
        %v4286 = vshll.u32 %v4285, 16
        %v4287 = vadd.s32 %v4286, %v4284
        %v4288 = vsel %vm1624, %v4186, 2147483647
        %v4289 = vand.u32 %v4288, 65535
        %v4290 = vshra.s32 %v4288, 16
        %v4291 = vcvt.s32.f32 %v4289
        %v4292 = vcvt.s32.f32 %v4290
        %4293 = vmin.xlane.f32.xlu0 %v4292
        %v4294 = vpop.xlane.xlu0 %4293
        %vm4295 = vcmp.eq.f32.partialorder %v4292, %v4294
        %v4296 = vsel %vm4295, %v4291, inf
        %4297 = vmin.xlane.f32.xlu0 %v4296
        %v4298 = vpop.xlane.xlu0 %4297
        %v4299 = vcvt.f32.s32 %v4298
        %v4300 = vcvt.f32.s32 %v4294
        %v4301 = vshll.u32 %v4300, 16
        %v4302 = vadd.s32 %v4301, %v4299
        %v4303 = vsel %vm1624, %v4187, 2147483647
        %v4304 = vand.u32 %v4303, 65535
        %v4305 = vshra.s32 %v4303, 16
        %v4306 = vcvt.s32.f32 %v4304
        %v4307 = vcvt.s32.f32 %v4305
        %4308 = vmin.xlane.f32.xlu0 %v4307
        %v4309 = vpop.xlane.xlu0 %4308
        %vm4310 = vcmp.eq.f32.partialorder %v4307, %v4309
        %v4311 = vsel %vm4310, %v4306, inf
        %4312 = vmin.xlane.f32.xlu0 %v4311
        %v4313 = vpop.xlane.xlu0 %4312
        %v4314 = vcvt.f32.s32 %v4313
        %v4315 = vcvt.f32.s32 %v4309
        %v4316 = vshll.u32 %v4315, 16
        %v4317 = vadd.s32 %v4316, %v4314
        %v4318 = vsel %vm948, %v4188, 2147483647
        %v4319 = vand.u32 %v4318, 65535
        %v4320 = vshra.s32 %v4318, 16
        %v4321 = vcvt.s32.f32 %v4319
        %v4322 = vcvt.s32.f32 %v4320
        %4323 = vmin.xlane.f32.xlu0 %v4322
        %v4324 = vpop.xlane.xlu0 %4323
        %vm4325 = vcmp.eq.f32.partialorder %v4322, %v4324
        %v4326 = vsel %vm4325, %v4321, inf
        %4327 = vmin.xlane.f32.xlu0 %v4326
        %v4328 = vpop.xlane.xlu0 %4327
        %v4329 = vcvt.f32.s32 %v4328
        %v4330 = vcvt.f32.s32 %v4324
        %v4331 = vshll.u32 %v4330, 16
        %v4332 = vadd.s32 %v4331, %v4329
        %v4333 = vsel %vm1624, %v4189, 2147483647
        %v4334 = vand.u32 %v4333, 65535
        %v4335 = vshra.s32 %v4333, 16
        %v4336 = vcvt.s32.f32 %v4334
        %v4337 = vcvt.s32.f32 %v4335
        %4338 = vmin.xlane.f32.xlu0 %v4337
        %v4339 = vpop.xlane.xlu0 %4338
        %vm4340 = vcmp.eq.f32.partialorder %v4337, %v4339
        %v4341 = vsel %vm4340, %v4336, inf
        %4342 = vmin.xlane.f32.xlu0 %v4341
        %v4343 = vpop.xlane.xlu0 %4342
        %v4344 = vcvt.f32.s32 %v4343
        %v4345 = vcvt.f32.s32 %v4339
        %v4346 = vshll.u32 %v4345, 16
        %v4347 = vadd.s32 %v4346, %v4344
        %v4348 = vsel %vm1624, %v4190, 2147483647
        %v4349 = vand.u32 %v4348, 65535
        %v4350 = vshra.s32 %v4348, 16
        %v4351 = vcvt.s32.f32 %v4349
        %v4352 = vcvt.s32.f32 %v4350
        %4353 = vmin.xlane.f32.xlu0 %v4352
        %v4354 = vpop.xlane.xlu0 %4353
        %vm4355 = vcmp.eq.f32.partialorder %v4352, %v4354
        %v4356 = vsel %vm4355, %v4351, inf
        %4357 = vmin.xlane.f32.xlu0 %v4356
        %v4358 = vpop.xlane.xlu0 %4357
        %v4359 = vcvt.f32.s32 %v4358
        %v4360 = vcvt.f32.s32 %v4354
        %v4361 = vshll.u32 %v4360, 16
        %v4362 = vadd.s32 %v4361, %v4359
        %v4363 = vsel %vm1624, %v4191, 2147483647
        %v4364 = vand.u32 %v4363, 65535
        %v4365 = vshra.s32 %v4363, 16
        %v4366 = vcvt.s32.f32 %v4364
        %v4367 = vcvt.s32.f32 %v4365
        %4368 = vmin.xlane.f32.xlu0 %v4367
        %v4369 = vpop.xlane.xlu0 %4368
        %vm4370 = vcmp.eq.f32.partialorder %v4367, %v4369
        %v4371 = vsel %vm4370, %v4366, inf
        %4372 = vmin.xlane.f32.xlu0 %v4371
        %v4373 = vpop.xlane.xlu0 %4372
        %v4374 = vcvt.f32.s32 %v4373
        %v4375 = vcvt.f32.s32 %v4369
        %v4376 = vshll.u32 %v4375, 16
        %v4377 = vadd.s32 %v4376, %v4374
        %v4378 = vsel %vm948, %v4192, 2147483647
        %v4379 = vand.u32 %v4378, 65535
        %v4380 = vshra.s32 %v4378, 16
        %v4381 = vcvt.s32.f32 %v4379
        %v4382 = vcvt.s32.f32 %v4380
        %4383 = vmin.xlane.f32.xlu0 %v4382
        %v4384 = vpop.xlane.xlu0 %4383
        %vm4385 = vcmp.eq.f32.partialorder %v4382, %v4384
        %v4386 = vsel %vm4385, %v4381, inf
        %4387 = vmin.xlane.f32.xlu0 %v4386
        %v4388 = vpop.xlane.xlu0 %4387
        %v4389 = vcvt.f32.s32 %v4388
        %v4390 = vcvt.f32.s32 %v4384
        %v4391 = vshll.u32 %v4390, 16
        %v4392 = vadd.s32 %v4391, %v4389
        %v4393 = vsel %vm1624, %v4193, 2147483647
        %v4394 = vand.u32 %v4393, 65535
        %v4395 = vshra.s32 %v4393, 16
        %v4396 = vcvt.s32.f32 %v4394
        %v4397 = vcvt.s32.f32 %v4395
        %4398 = vmin.xlane.f32.xlu0 %v4397
        %v4399 = vpop.xlane.xlu0 %4398
        %vm4400 = vcmp.eq.f32.partialorder %v4397, %v4399
        %v4401 = vsel %vm4400, %v4396, inf
        %4402 = vmin.xlane.f32.xlu0 %v4401
        %v4403 = vpop.xlane.xlu0 %4402
        %v4404 = vcvt.f32.s32 %v4403
        %v4405 = vcvt.f32.s32 %v4399
        %v4406 = vshll.u32 %v4405, 16
        %v4407 = vadd.s32 %v4406, %v4404
        %v4408 = vsel %vm1624, %v4194, 2147483647
        %v4409 = vand.u32 %v4408, 65535
        %v4410 = vshra.s32 %v4408, 16
        %v4411 = vcvt.s32.f32 %v4409
        %v4412 = vcvt.s32.f32 %v4410
        %4413 = vmin.xlane.f32.xlu0 %v4412
        %v4414 = vpop.xlane.xlu0 %4413
        %vm4415 = vcmp.eq.f32.partialorder %v4412, %v4414
        %v4416 = vsel %vm4415, %v4411, inf
        %4417 = vmin.xlane.f32.xlu0 %v4416
        %v4418 = vpop.xlane.xlu0 %4417
        %v4419 = vcvt.f32.s32 %v4418
        %v4420 = vcvt.f32.s32 %v4414
        %v4421 = vshll.u32 %v4420, 16
        %v4422 = vadd.s32 %v4421, %v4419
        %v4423 = vsel %vm1624, %v4195, 2147483647
        %v4424 = vand.u32 %v4423, 65535
        %v4425 = vshra.s32 %v4423, 16
        %v4426 = vcvt.s32.f32 %v4424
        %v4427 = vcvt.s32.f32 %v4425
        %4428 = vmin.xlane.f32.xlu0 %v4427
        %v4429 = vpop.xlane.xlu0 %4428
        %vm4430 = vcmp.eq.f32.partialorder %v4427, %v4429
        %v4431 = vsel %vm4430, %v4426, inf
        %4432 = vmin.xlane.f32.xlu0 %v4431
        %v4433 = vpop.xlane.xlu0 %4432
        %v4434 = vcvt.f32.s32 %v4433
        %v4435 = vcvt.f32.s32 %v4429
        %v4436 = vshll.u32 %v4435, 16
        %v4437 = vadd.s32 %v4436, %v4434
        %v4438 = vsel %vm948, %v4196, 2147483647
        %v4439 = vand.u32 %v4438, 65535
        %v4440 = vshra.s32 %v4438, 16
        %v4441 = vcvt.s32.f32 %v4439
        %v4442 = vcvt.s32.f32 %v4440
        %4443 = vmin.xlane.f32.xlu0 %v4442
        %v4444 = vpop.xlane.xlu0 %4443
        %vm4445 = vcmp.eq.f32.partialorder %v4442, %v4444
        %v4446 = vsel %vm4445, %v4441, inf
        %4447 = vmin.xlane.f32.xlu0 %v4446
        %v4448 = vpop.xlane.xlu0 %4447
        %v4449 = vcvt.f32.s32 %v4448
        %v4450 = vcvt.f32.s32 %v4444
        %v4451 = vshll.u32 %v4450, 16
        %v4452 = vadd.s32 %v4451, %v4449
        %v4453 = vsel %vm1624, %v4197, 2147483647
        %v4454 = vand.u32 %v4453, 65535
        %v4455 = vshra.s32 %v4453, 16
        %v4456 = vcvt.s32.f32 %v4454
        %v4457 = vcvt.s32.f32 %v4455
        %4458 = vmin.xlane.f32.xlu0 %v4457
        %v4459 = vpop.xlane.xlu0 %4458
        %vm4460 = vcmp.eq.f32.partialorder %v4457, %v4459
        %v4461 = vsel %vm4460, %v4456, inf
        %4462 = vmin.xlane.f32.xlu0 %v4461
        %v4463 = vpop.xlane.xlu0 %4462
        %v4464 = vcvt.f32.s32 %v4463
        %v4465 = vcvt.f32.s32 %v4459
        %v4466 = vshll.u32 %v4465, 16
        %v4467 = vadd.s32 %v4466, %v4464
        %v4468 = vsel %vm1624, %v4198, 2147483647
        %v4469 = vand.u32 %v4468, 65535
        %v4470 = vshra.s32 %v4468, 16
        %v4471 = vcvt.s32.f32 %v4469
        %v4472 = vcvt.s32.f32 %v4470
        %4473 = vmin.xlane.f32.xlu0 %v4472
        %v4474 = vpop.xlane.xlu0 %4473
        %vm4475 = vcmp.eq.f32.partialorder %v4472, %v4474
        %v4476 = vsel %vm4475, %v4471, inf
        %4477 = vmin.xlane.f32.xlu0 %v4476
        %v4478 = vpop.xlane.xlu0 %4477
        %v4479 = vcvt.f32.s32 %v4478
        %v4480 = vcvt.f32.s32 %v4474
        %v4481 = vshll.u32 %v4480, 16
        %v4482 = vadd.s32 %v4481, %v4479
        %v4483 = vsel %vm1624, %v4199, 2147483647
        %v4484 = vand.u32 %v4483, 65535
        %v4485 = vshra.s32 %v4483, 16
        %v4486 = vcvt.s32.f32 %v4484
        %v4487 = vcvt.s32.f32 %v4485
        %4488 = vmin.xlane.f32.xlu0 %v4487
        %v4489 = vpop.xlane.xlu0 %4488
        %vm4490 = vcmp.eq.f32.partialorder %v4487, %v4489
        %v4491 = vsel %vm4490, %v4486, inf
        %4492 = vmin.xlane.f32.xlu0 %v4491
        %v4493 = vpop.xlane.xlu0 %4492
        %v4494 = vcvt.f32.s32 %v4493
        %v4495 = vcvt.f32.s32 %v4489
        %v4496 = vshll.u32 %v4495, 16
        %v4497 = vadd.s32 %v4496, %v4494
        %v4498 = vsel %vm948, %v4200, 2147483647
        %v4499 = vand.u32 %v4498, 65535
        %v4500 = vshra.s32 %v4498, 16
        %v4501 = vcvt.s32.f32 %v4499
        %v4502 = vcvt.s32.f32 %v4500
        %4503 = vmin.xlane.f32.xlu0 %v4502
        %v4504 = vpop.xlane.xlu0 %4503
        %vm4505 = vcmp.eq.f32.partialorder %v4502, %v4504
        %v4506 = vsel %vm4505, %v4501, inf
        %4507 = vmin.xlane.f32.xlu0 %v4506
        %v4508 = vpop.xlane.xlu0 %4507
        %v4509 = vcvt.f32.s32 %v4508
        %v4510 = vcvt.f32.s32 %v4504
        %v4511 = vshll.u32 %v4510, 16
        %v4512 = vadd.s32 %v4511, %v4509
        %v4513 = vsel %vm1624, %v4201, 2147483647
        %v4514 = vand.u32 %v4513, 65535
        %v4515 = vshra.s32 %v4513, 16
        %v4516 = vcvt.s32.f32 %v4514
        %v4517 = vcvt.s32.f32 %v4515
        %4518 = vmin.xlane.f32.xlu0 %v4517
        %v4519 = vpop.xlane.xlu0 %4518
        %vm4520 = vcmp.eq.f32.partialorder %v4517, %v4519
        %v4521 = vsel %vm4520, %v4516, inf
        %4522 = vmin.xlane.f32.xlu0 %v4521
        %v4523 = vpop.xlane.xlu0 %4522
        %v4524 = vcvt.f32.s32 %v4523
        %v4525 = vcvt.f32.s32 %v4519
        %v4526 = vshll.u32 %v4525, 16
        %v4527 = vadd.s32 %v4526, %v4524
        %v4528 = vsel %vm1624, %v4202, 2147483647
        %v4529 = vand.u32 %v4528, 65535
        %v4530 = vshra.s32 %v4528, 16
        %v4531 = vcvt.s32.f32 %v4529
        %v4532 = vcvt.s32.f32 %v4530
        %4533 = vmin.xlane.f32.xlu0 %v4532
        %v4534 = vpop.xlane.xlu0 %4533
        %vm4535 = vcmp.eq.f32.partialorder %v4532, %v4534
        %v4536 = vsel %vm4535, %v4531, inf
        %4537 = vmin.xlane.f32.xlu0 %v4536
        %v4538 = vpop.xlane.xlu0 %4537
        %v4539 = vcvt.f32.s32 %v4538
        %v4540 = vcvt.f32.s32 %v4534
        %v4541 = vshll.u32 %v4540, 16
        %v4542 = vadd.s32 %v4541, %v4539
        %v4543 = vsel %vm1624, %v4203, 2147483647
        %v4544 = vand.u32 %v4543, 65535
        %v4545 = vshra.s32 %v4543, 16
        %v4546 = vcvt.s32.f32 %v4544
        %v4547 = vcvt.s32.f32 %v4545
        %4548 = vmin.xlane.f32.xlu0 %v4547
        %v4549 = vpop.xlane.xlu0 %4548
        %vm4550 = vcmp.eq.f32.partialorder %v4547, %v4549
        %v4551 = vsel %vm4550, %v4546, inf
        %4552 = vmin.xlane.f32.xlu0 %v4551
        %v4553 = vpop.xlane.xlu0 %4552
        %v4554 = vcvt.f32.s32 %v4553
        %v4555 = vcvt.f32.s32 %v4549
        %v4556 = vshll.u32 %v4555, 16
        %v4557 = vadd.s32 %v4556, %v4554
        %v4558 = vsel %vm948, %v4204, 2147483647
        %v4559 = vand.u32 %v4558, 65535
        %v4560 = vshra.s32 %v4558, 16
        %v4561 = vcvt.s32.f32 %v4559
        %v4562 = vcvt.s32.f32 %v4560
        %4563 = vmin.xlane.f32.xlu0 %v4562
        %v4564 = vpop.xlane.xlu0 %4563
        %vm4565 = vcmp.eq.f32.partialorder %v4562, %v4564
        %v4566 = vsel %vm4565, %v4561, inf
        %4567 = vmin.xlane.f32.xlu0 %v4566
        %v4568 = vpop.xlane.xlu0 %4567
        %v4569 = vcvt.f32.s32 %v4568
        %v4570 = vcvt.f32.s32 %v4564
        %v4571 = vshll.u32 %v4570, 16
        %v4572 = vadd.s32 %v4571, %v4569
        %v4573 = vsel %vm1624, %v4205, 2147483647
        %v4574 = vand.u32 %v4573, 65535
        %v4575 = vshra.s32 %v4573, 16
        %v4576 = vcvt.s32.f32 %v4574
        %v4577 = vcvt.s32.f32 %v4575
        %4578 = vmin.xlane.f32.xlu0 %v4577
        %v4579 = vpop.xlane.xlu0 %4578
        %vm4580 = vcmp.eq.f32.partialorder %v4577, %v4579
        %v4581 = vsel %vm4580, %v4576, inf
        %4582 = vmin.xlane.f32.xlu0 %v4581
        %v4583 = vpop.xlane.xlu0 %4582
        %v4584 = vcvt.f32.s32 %v4583
        %v4585 = vcvt.f32.s32 %v4579
        %v4586 = vshll.u32 %v4585, 16
        %v4587 = vadd.s32 %v4586, %v4584
        %v4588 = vsel %vm1624, %v4206, 2147483647
        %v4589 = vand.u32 %v4588, 65535
        %v4590 = vshra.s32 %v4588, 16
        %v4591 = vcvt.s32.f32 %v4589
        %v4592 = vcvt.s32.f32 %v4590
        %4593 = vmin.xlane.f32.xlu0 %v4592
        %v4594 = vpop.xlane.xlu0 %4593
        %vm4595 = vcmp.eq.f32.partialorder %v4592, %v4594
        %v4596 = vsel %vm4595, %v4591, inf
        %4597 = vmin.xlane.f32.xlu0 %v4596
        %v4598 = vpop.xlane.xlu0 %4597
        %v4599 = vcvt.f32.s32 %v4598
        %v4600 = vcvt.f32.s32 %v4594
        %v4601 = vshll.u32 %v4600, 16
        %v4602 = vadd.s32 %v4601, %v4599
        %v4603 = vsel %vm1624, %v4207, 2147483647
        %v4604 = vand.u32 %v4603, 65535
        %v4605 = vshra.s32 %v4603, 16
        %v4606 = vcvt.s32.f32 %v4604
        %v4607 = vcvt.s32.f32 %v4605
        %4608 = vmin.xlane.f32.xlu0 %v4607
        %v4609 = vpop.xlane.xlu0 %4608
        %vm4610 = vcmp.eq.f32.partialorder %v4607, %v4609
        %v4611 = vsel %vm4610, %v4606, inf
        %4612 = vmin.xlane.f32.xlu0 %v4611
        %v4613 = vpop.xlane.xlu0 %4612
        %v4614 = vcvt.f32.s32 %v4613
        %v4615 = vcvt.f32.s32 %v4609
        %v4616 = vshll.u32 %v4615, 16
        %v4617 = vadd.s32 %v4616, %v4614
        %v4618 = vsel %vm948, %v4208, 2147483647
        %v4619 = vand.u32 %v4618, 65535
        %v4620 = vshra.s32 %v4618, 16
        %v4621 = vcvt.s32.f32 %v4619
        %v4622 = vcvt.s32.f32 %v4620
        %4623 = vmin.xlane.f32.xlu0 %v4622
        %v4624 = vpop.xlane.xlu0 %4623
        %vm4625 = vcmp.eq.f32.partialorder %v4622, %v4624
        %v4626 = vsel %vm4625, %v4621, inf
        %4627 = vmin.xlane.f32.xlu0 %v4626
        %v4628 = vpop.xlane.xlu0 %4627
        %v4629 = vcvt.f32.s32 %v4628
        %v4630 = vcvt.f32.s32 %v4624
        %v4631 = vshll.u32 %v4630, 16
        %v4632 = vadd.s32 %v4631, %v4629
        %v4633 = vsel %vm1624, %v4209, 2147483647
        %v4634 = vand.u32 %v4633, 65535
        %v4635 = vshra.s32 %v4633, 16
        %v4636 = vcvt.s32.f32 %v4634
        %v4637 = vcvt.s32.f32 %v4635
        %4638 = vmin.xlane.f32.xlu0 %v4637
        %v4639 = vpop.xlane.xlu0 %4638
        %vm4640 = vcmp.eq.f32.partialorder %v4637, %v4639
        %v4641 = vsel %vm4640, %v4636, inf
        %4642 = vmin.xlane.f32.xlu0 %v4641
        %v4643 = vpop.xlane.xlu0 %4642
        %v4644 = vcvt.f32.s32 %v4643
        %v4645 = vcvt.f32.s32 %v4639
        %v4646 = vshll.u32 %v4645, 16
        %v4647 = vadd.s32 %v4646, %v4644
        %v4648 = vsel %vm1624, %v4210, 2147483647
        %v4649 = vand.u32 %v4648, 65535
        %v4650 = vshra.s32 %v4648, 16
        %v4651 = vcvt.s32.f32 %v4649
        %v4652 = vcvt.s32.f32 %v4650
        %4653 = vmin.xlane.f32.xlu0 %v4652
        %v4654 = vpop.xlane.xlu0 %4653
        %vm4655 = vcmp.eq.f32.partialorder %v4652, %v4654
        %v4656 = vsel %vm4655, %v4651, inf
        %4657 = vmin.xlane.f32.xlu0 %v4656
        %v4658 = vpop.xlane.xlu0 %4657
        %v4659 = vcvt.f32.s32 %v4658
        %v4660 = vcvt.f32.s32 %v4654
        %v4661 = vshll.u32 %v4660, 16
        %v4662 = vadd.s32 %v4661, %v4659
        %v4663 = vsel %vm1624, %v4211, 2147483647
        %v4664 = vand.u32 %v4663, 65535
        %v4665 = vshra.s32 %v4663, 16
        %v4666 = vcvt.s32.f32 %v4664
        %v4667 = vcvt.s32.f32 %v4665
        %4668 = vmin.xlane.f32.xlu0 %v4667
        %v4669 = vpop.xlane.xlu0 %4668
        %vm4670 = vcmp.eq.f32.partialorder %v4667, %v4669
        %v4671 = vsel %vm4670, %v4666, inf
        %4672 = vmin.xlane.f32.xlu0 %v4671
        %v4673 = vpop.xlane.xlu0 %4672
        %v4674 = vcvt.f32.s32 %v4673
        %v4675 = vcvt.f32.s32 %v4669
        %v4676 = vshll.u32 %v4675, 16
        %v4677 = vadd.s32 %v4676, %v4674
        %v4678 = vsel %vm948, %v4212, 2147483647
        %v4679 = vand.u32 %v4678, 65535
        %v4680 = vshra.s32 %v4678, 16
        %v4681 = vcvt.s32.f32 %v4679
        %v4682 = vcvt.s32.f32 %v4680
        %4683 = vmin.xlane.f32.xlu0 %v4682
        %v4684 = vpop.xlane.xlu0 %4683
        %vm4685 = vcmp.eq.f32.partialorder %v4682, %v4684
        %v4686 = vsel %vm4685, %v4681, inf
        %4687 = vmin.xlane.f32.xlu0 %v4686
        %v4688 = vpop.xlane.xlu0 %4687
        %v4689 = vcvt.f32.s32 %v4688
        %v4690 = vcvt.f32.s32 %v4684
        %v4691 = vshll.u32 %v4690, 16
        %v4692 = vadd.s32 %v4691, %v4689
        %vm4693 = vcmp.lt.s32.totalorder %v4227, %v4242
        %v4694 = vsel %vm4693, %v4227, %v4242
        %vm4695 = vcmp.lt.s32.totalorder %v4694, %v4257
        %v4696 = vsel %vm4695, %v4694, %v4257
        %v4697 = vsel %vm425, %v4272, 2147483647
        %vm4698 = vcmp.lt.s32.totalorder %v4696, %v4697
        %v4699 = vsel %vm4698, %v4696, %v4697
        %v4700 = vrot.slane %v4699, 4
        %vm4701 = vcmp.lt.s32.totalorder %v4699, %v4700
        %v4702 = vsel %vm4701, %v4699, %v4700
        %v4703 = vrot.slane %v4702, 2
        %vm4704 = vcmp.lt.s32.totalorder %v4702, %v4703
        %v4705 = vsel %vm4704, %v4702, %v4703
        %v4706 = vrot.slane %v4705, 1
        %vm4707 = vcmp.lt.s32.totalorder %v4705, %v4706
        %v4708 = vsel %vm4707, %v4705, %v4706
        %vm4709 = vcmp.lt.s32.totalorder %v4287, %v4302
        %v4710 = vsel %vm4709, %v4287, %v4302
        %vm4711 = vcmp.lt.s32.totalorder %v4710, %v4317
        %v4712 = vsel %vm4711, %v4710, %v4317
        %v4713 = vsel %vm425, %v4332, 2147483647
        %vm4714 = vcmp.lt.s32.totalorder %v4712, %v4713
        %v4715 = vsel %vm4714, %v4712, %v4713
        %v4716 = vrot.slane %v4715, 4
        %vm4717 = vcmp.lt.s32.totalorder %v4715, %v4716
        %v4718 = vsel %vm4717, %v4715, %v4716
        %v4719 = vrot.slane %v4718, 2
        %vm4720 = vcmp.lt.s32.totalorder %v4718, %v4719
        %v4721 = vsel %vm4720, %v4718, %v4719
        %v4722 = vrot.slane %v4721, 1
        %vm4723 = vcmp.lt.s32.totalorder %v4721, %v4722
        %v4724 = vsel %vm4723, %v4721, %v4722
        %vm4725 = vcmp.lt.s32.totalorder %v4347, %v4362
        %v4726 = vsel %vm4725, %v4347, %v4362
        %vm4727 = vcmp.lt.s32.totalorder %v4726, %v4377
        %v4728 = vsel %vm4727, %v4726, %v4377
        %v4729 = vsel %vm425, %v4392, 2147483647
        %vm4730 = vcmp.lt.s32.totalorder %v4728, %v4729
        %v4731 = vsel %vm4730, %v4728, %v4729
        %v4732 = vrot.slane %v4731, 4
        %vm4733 = vcmp.lt.s32.totalorder %v4731, %v4732
        %v4734 = vsel %vm4733, %v4731, %v4732
        %v4735 = vrot.slane %v4734, 2
        %vm4736 = vcmp.lt.s32.totalorder %v4734, %v4735
        %v4737 = vsel %vm4736, %v4734, %v4735
        %v4738 = vrot.slane %v4737, 1
        %vm4739 = vcmp.lt.s32.totalorder %v4737, %v4738
        %v4740 = vsel %vm4739, %v4737, %v4738
        %vm4741 = vcmp.lt.s32.totalorder %v4407, %v4422
        %v4742 = vsel %vm4741, %v4407, %v4422
        %vm4743 = vcmp.lt.s32.totalorder %v4742, %v4437
        %v4744 = vsel %vm4743, %v4742, %v4437
        %v4745 = vsel %vm425, %v4452, 2147483647
        %vm4746 = vcmp.lt.s32.totalorder %v4744, %v4745
        %v4747 = vsel %vm4746, %v4744, %v4745
        %v4748 = vrot.slane %v4747, 4
        %vm4749 = vcmp.lt.s32.totalorder %v4747, %v4748
        %v4750 = vsel %vm4749, %v4747, %v4748
        %v4751 = vrot.slane %v4750, 2
        %vm4752 = vcmp.lt.s32.totalorder %v4750, %v4751
        %v4753 = vsel %vm4752, %v4750, %v4751
        %v4754 = vrot.slane %v4753, 1
        %vm4755 = vcmp.lt.s32.totalorder %v4753, %v4754
        %v4756 = vsel %vm4755, %v4753, %v4754
        %vm4757 = vcmp.lt.s32.totalorder %v4467, %v4482
        %v4758 = vsel %vm4757, %v4467, %v4482
        %vm4759 = vcmp.lt.s32.totalorder %v4758, %v4497
        %v4760 = vsel %vm4759, %v4758, %v4497
        %v4761 = vsel %vm425, %v4512, 2147483647
        %vm4762 = vcmp.lt.s32.totalorder %v4760, %v4761
        %v4763 = vsel %vm4762, %v4760, %v4761
        %v4764 = vrot.slane %v4763, 4
        %vm4765 = vcmp.lt.s32.totalorder %v4763, %v4764
        %v4766 = vsel %vm4765, %v4763, %v4764
        %v4767 = vrot.slane %v4766, 2
        %vm4768 = vcmp.lt.s32.totalorder %v4766, %v4767
        %v4769 = vsel %vm4768, %v4766, %v4767
        %v4770 = vrot.slane %v4769, 1
        %vm4771 = vcmp.lt.s32.totalorder %v4769, %v4770
        %v4772 = vsel %vm4771, %v4769, %v4770
        %vm4773 = vcmp.lt.s32.totalorder %v4527, %v4542
        %v4774 = vsel %vm4773, %v4527, %v4542
        %vm4775 = vcmp.lt.s32.totalorder %v4774, %v4557
        %v4776 = vsel %vm4775, %v4774, %v4557
        %v4777 = vsel %vm425, %v4572, 2147483647
        %vm4778 = vcmp.lt.s32.totalorder %v4776, %v4777
        %v4779 = vsel %vm4778, %v4776, %v4777
        %v4780 = vrot.slane %v4779, 4
        %vm4781 = vcmp.lt.s32.totalorder %v4779, %v4780
        %v4782 = vsel %vm4781, %v4779, %v4780
        %v4783 = vrot.slane %v4782, 2
        %vm4784 = vcmp.lt.s32.totalorder %v4782, %v4783
        %v4785 = vsel %vm4784, %v4782, %v4783
        %v4786 = vrot.slane %v4785, 1
        %vm4787 = vcmp.lt.s32.totalorder %v4785, %v4786
        %v4788 = vsel %vm4787, %v4785, %v4786
        %vm4789 = vcmp.lt.s32.totalorder %v4587, %v4602
        %v4790 = vsel %vm4789, %v4587, %v4602
        %vm4791 = vcmp.lt.s32.totalorder %v4790, %v4617
        %v4792 = vsel %vm4791, %v4790, %v4617
        %v4793 = vsel %vm425, %v4632, 2147483647
        %vm4794 = vcmp.lt.s32.totalorder %v4792, %v4793
        %v4795 = vsel %vm4794, %v4792, %v4793
        %v4796 = vrot.slane %v4795, 4
        %vm4797 = vcmp.lt.s32.totalorder %v4795, %v4796
        %v4798 = vsel %vm4797, %v4795, %v4796
        %v4799 = vrot.slane %v4798, 2
        %vm4800 = vcmp.lt.s32.totalorder %v4798, %v4799
        %v4801 = vsel %vm4800, %v4798, %v4799
        %v4802 = vrot.slane %v4801, 1
        %vm4803 = vcmp.lt.s32.totalorder %v4801, %v4802
        %v4804 = vsel %vm4803, %v4801, %v4802
        %vm4805 = vcmp.lt.s32.totalorder %v4647, %v4662
        %v4806 = vsel %vm4805, %v4647, %v4662
        %vm4807 = vcmp.lt.s32.totalorder %v4806, %v4677
        %v4808 = vsel %vm4807, %v4806, %v4677
        %v4809 = vsel %vm425, %v4692, 2147483647
        %vm4810 = vcmp.lt.s32.totalorder %v4808, %v4809
        %v4811 = vsel %vm4810, %v4808, %v4809
        %v4812 = vrot.slane %v4811, 4
        %vm4813 = vcmp.lt.s32.totalorder %v4811, %v4812
        %v4814 = vsel %vm4813, %v4811, %v4812
        %v4815 = vrot.slane %v4814, 2
        %vm4816 = vcmp.lt.s32.totalorder %v4814, %v4815
        %v4817 = vsel %vm4816, %v4814, %v4815
        %v4818 = vrot.slane %v4817, 1
        %vm4819 = vcmp.lt.s32.totalorder %v4817, %v4818
        %v4820 = vsel %vm4819, %v4817, %v4818
        %vm4821 = vcmp.eq.s32.totalorder %v1301, %v4708
        %vm4822 = vcmp.eq.s32.totalorder %v1302, %v4708
        %vm4823 = vcmp.eq.s32.totalorder %v1303, %v4708
        %vm4824 = vcmp.eq.s32.totalorder %v1304, %v4708
        %vm4825 = vcmp.eq.s32.totalorder %v1301, %v4724
        %vm4826 = vcmp.eq.s32.totalorder %v1302, %v4724
        %vm4827 = vcmp.eq.s32.totalorder %v1303, %v4724
        %vm4828 = vcmp.eq.s32.totalorder %v1304, %v4724
        %vm4829 = vcmp.eq.s32.totalorder %v1301, %v4740
        %vm4830 = vcmp.eq.s32.totalorder %v1302, %v4740
        %vm4831 = vcmp.eq.s32.totalorder %v1303, %v4740
        %vm4832 = vcmp.eq.s32.totalorder %v1304, %v4740
        %vm4833 = vcmp.eq.s32.totalorder %v1301, %v4756
        %vm4834 = vcmp.eq.s32.totalorder %v1302, %v4756
        %vm4835 = vcmp.eq.s32.totalorder %v1303, %v4756
        %vm4836 = vcmp.eq.s32.totalorder %v1304, %v4756
        %vm4837 = vcmp.eq.s32.totalorder %v1301, %v4772
        %vm4838 = vcmp.eq.s32.totalorder %v1302, %v4772
        %vm4839 = vcmp.eq.s32.totalorder %v1303, %v4772
        %vm4840 = vcmp.eq.s32.totalorder %v1304, %v4772
        %vm4841 = vcmp.eq.s32.totalorder %v1301, %v4788
        %vm4842 = vcmp.eq.s32.totalorder %v1302, %v4788
        %vm4843 = vcmp.eq.s32.totalorder %v1303, %v4788
        %vm4844 = vcmp.eq.s32.totalorder %v1304, %v4788
        %vm4845 = vcmp.eq.s32.totalorder %v1301, %v4804
        %vm4846 = vcmp.eq.s32.totalorder %v1302, %v4804
        %vm4847 = vcmp.eq.s32.totalorder %v1303, %v4804
        %vm4848 = vcmp.eq.s32.totalorder %v1304, %v4804
        %vm4849 = vcmp.eq.s32.totalorder %v1301, %v4820
        %vm4850 = vcmp.eq.s32.totalorder %v1302, %v4820
        %vm4851 = vcmp.eq.s32.totalorder %v1303, %v4820
        %vm4852 = vcmp.eq.s32.totalorder %v1304, %v4820
        %v4853 = vsel %vm4821, 1, 0
        %v4854 = vsel %vm4822, 1, 0
        %v4855 = vsel %vm4823, 1, 0
        %v4856 = vsel %vm4824, 1, 0
        %v4857 = vsel %vm4825, 1, 0
        %v4858 = vsel %vm4826, 1, 0
        %v4859 = vsel %vm4827, 1, 0
        %v4860 = vsel %vm4828, 1, 0
        %v4861 = vsel %vm4829, 1, 0
        %v4862 = vsel %vm4830, 1, 0
        %v4863 = vsel %vm4831, 1, 0
        %v4864 = vsel %vm4832, 1, 0
        %v4865 = vsel %vm4833, 1, 0
        %v4866 = vsel %vm4834, 1, 0
        %v4867 = vsel %vm4835, 1, 0
        %v4868 = vsel %vm4836, 1, 0
        %v4869 = vsel %vm4837, 1, 0
        %v4870 = vsel %vm4838, 1, 0
        %v4871 = vsel %vm4839, 1, 0
        %v4872 = vsel %vm4840, 1, 0
        %v4873 = vsel %vm4841, 1, 0
        %v4874 = vsel %vm4842, 1, 0
        %v4875 = vsel %vm4843, 1, 0
        %v4876 = vsel %vm4844, 1, 0
        %v4877 = vsel %vm4845, 1, 0
        %v4878 = vsel %vm4846, 1, 0
        %v4879 = vsel %vm4847, 1, 0
        %v4880 = vsel %vm4848, 1, 0
        %v4881 = vsel %vm4849, 1, 0
        %v4882 = vsel %vm4850, 1, 0
        %v4883 = vsel %vm4851, 1, 0
        %v4884 = vsel %vm4852, 1, 0
        %v4885 = vcvt.s32.f32 %v4853
        %v4886 = vcvt.s32.f32 %v4854
        %v4887 = vcvt.s32.f32 %v4855
        %v4888 = vcvt.s32.f32 %v4856
        %v4889 = vcvt.s32.f32 %v4857
        %v4890 = vcvt.s32.f32 %v4858
        %v4891 = vcvt.s32.f32 %v4859
        %v4892 = vcvt.s32.f32 %v4860
        %v4893 = vcvt.s32.f32 %v4861
        %v4894 = vcvt.s32.f32 %v4862
        %v4895 = vcvt.s32.f32 %v4863
        %v4896 = vcvt.s32.f32 %v4864
        %v4897 = vcvt.s32.f32 %v4865
        %v4898 = vcvt.s32.f32 %v4866
        %v4899 = vcvt.s32.f32 %v4867
        %v4900 = vcvt.s32.f32 %v4868
        %v4901 = vcvt.s32.f32 %v4869
        %v4902 = vcvt.s32.f32 %v4870
        %v4903 = vcvt.s32.f32 %v4871
        %v4904 = vcvt.s32.f32 %v4872
        %v4905 = vcvt.s32.f32 %v4873
        %v4906 = vcvt.s32.f32 %v4874
        %v4907 = vcvt.s32.f32 %v4875
        %v4908 = vcvt.s32.f32 %v4876
        %v4909 = vcvt.s32.f32 %v4877
        %v4910 = vcvt.s32.f32 %v4878
        %v4911 = vcvt.s32.f32 %v4879
        %v4912 = vcvt.s32.f32 %v4880
        %v4913 = vcvt.s32.f32 %v4881
        %v4914 = vcvt.s32.f32 %v4882
        %v4915 = vcvt.s32.f32 %v4883
        %v4916 = vcvt.s32.f32 %v4884
        %v4917 = vsel %vm1624, %v4885, 0.0
        %v4918 = vsel %vm1624, %v4886, 0.0
        %v4919 = vadd.f32 %v4917, %v4918
        %v4920 = vsel %vm1624, %v4887, 0.0
        %v4921 = vadd.f32 %v4919, %v4920
        %v4922 = vsel %vm948, %v4888, 0.0
        %v4923 = vadd.f32 %v4921, %v4922
        %v4924 = vrot.slane %v4923, 4
        %v4925 = vadd.f32 %v4923, %v4924
        %v4926 = vrot.slane %v4925, 2
        %v4927 = vadd.f32 %v4925, %v4926
        %v4928 = vrot.slane %v4927, 1
        %v4929 = vadd.f32 %v4927, %v4928
        %v4930 = vsel %vm1624, %v4889, 0.0
        %v4931 = vsel %vm1624, %v4890, 0.0
        %v4932 = vadd.f32 %v4930, %v4931
        %v4933 = vsel %vm1624, %v4891, 0.0
        %v4934 = vadd.f32 %v4932, %v4933
        %v4935 = vsel %vm948, %v4892, 0.0
        %v4936 = vadd.f32 %v4934, %v4935
        %v4937 = vrot.slane %v4936, 4
        %v4938 = vadd.f32 %v4936, %v4937
        %v4939 = vrot.slane %v4938, 2
        %v4940 = vadd.f32 %v4938, %v4939
        %v4941 = vrot.slane %v4940, 1
        %v4942 = vadd.f32 %v4940, %v4941
        %v4943 = vsel %vm1624, %v4893, 0.0
        %v4944 = vsel %vm1624, %v4894, 0.0
        %v4945 = vadd.f32 %v4943, %v4944
        %v4946 = vsel %vm1624, %v4895, 0.0
        %v4947 = vadd.f32 %v4945, %v4946
        %v4948 = vsel %vm948, %v4896, 0.0
        %v4949 = vadd.f32 %v4947, %v4948
        %v4950 = vrot.slane %v4949, 4
        %v4951 = vadd.f32 %v4949, %v4950
        %v4952 = vrot.slane %v4951, 2
        %v4953 = vadd.f32 %v4951, %v4952
        %v4954 = vrot.slane %v4953, 1
        %v4955 = vadd.f32 %v4953, %v4954
        %v4956 = vsel %vm1624, %v4897, 0.0
        %v4957 = vsel %vm1624, %v4898, 0.0
        %v4958 = vadd.f32 %v4956, %v4957
        %v4959 = vsel %vm1624, %v4899, 0.0
        %v4960 = vadd.f32 %v4958, %v4959
        %v4961 = vsel %vm948, %v4900, 0.0
        %v4962 = vadd.f32 %v4960, %v4961
        %v4963 = vrot.slane %v4962, 4
        %v4964 = vadd.f32 %v4962, %v4963
        %v4965 = vrot.slane %v4964, 2
        %v4966 = vadd.f32 %v4964, %v4965
        %v4967 = vrot.slane %v4966, 1
        %v4968 = vadd.f32 %v4966, %v4967
        %v4969 = vsel %vm1624, %v4901, 0.0
        %v4970 = vsel %vm1624, %v4902, 0.0
        %v4971 = vadd.f32 %v4969, %v4970
        %v4972 = vsel %vm1624, %v4903, 0.0
        %v4973 = vadd.f32 %v4971, %v4972
        %v4974 = vsel %vm948, %v4904, 0.0
        %v4975 = vadd.f32 %v4973, %v4974
        %v4976 = vrot.slane %v4975, 4
        %v4977 = vadd.f32 %v4975, %v4976
        %v4978 = vrot.slane %v4977, 2
        %v4979 = vadd.f32 %v4977, %v4978
        %v4980 = vrot.slane %v4979, 1
        %v4981 = vadd.f32 %v4979, %v4980
        %v4982 = vsel %vm1624, %v4905, 0.0
        %v4983 = vsel %vm1624, %v4906, 0.0
        %v4984 = vadd.f32 %v4982, %v4983
        %v4985 = vsel %vm1624, %v4907, 0.0
        %v4986 = vadd.f32 %v4984, %v4985
        %v4987 = vsel %vm948, %v4908, 0.0
        %v4988 = vadd.f32 %v4986, %v4987
        %v4989 = vrot.slane %v4988, 4
        %v4990 = vadd.f32 %v4988, %v4989
        %v4991 = vrot.slane %v4990, 2
        %v4992 = vadd.f32 %v4990, %v4991
        %v4993 = vrot.slane %v4992, 1
        %v4994 = vadd.f32 %v4992, %v4993
        %v4995 = vsel %vm1624, %v4909, 0.0
        %v4996 = vsel %vm1624, %v4910, 0.0
        %v4997 = vadd.f32 %v4995, %v4996
        %v4998 = vsel %vm1624, %v4911, 0.0
        %v4999 = vadd.f32 %v4997, %v4998
        %v5000 = vsel %vm948, %v4912, 0.0
        %v5001 = vadd.f32 %v4999, %v5000
        %v5002 = vrot.slane %v5001, 4
        %v5003 = vadd.f32 %v5001, %v5002
        %v5004 = vrot.slane %v5003, 2
        %v5005 = vadd.f32 %v5003, %v5004
        %v5006 = vrot.slane %v5005, 1
        %v5007 = vadd.f32 %v5005, %v5006
        %v5008 = vsel %vm1624, %v4913, 0.0
        %v5009 = vsel %vm1624, %v4914, 0.0
        %v5010 = vadd.f32 %v5008, %v5009
        %v5011 = vsel %vm1624, %v4915, 0.0
        %v5012 = vadd.f32 %v5010, %v5011
        %v5013 = vsel %vm948, %v4916, 0.0
        %v5014 = vadd.f32 %v5012, %v5013
        %v5015 = vrot.slane %v5014, 4
        %v5016 = vadd.f32 %v5014, %v5015
        %v5017 = vrot.slane %v5016, 2
        %v5018 = vadd.f32 %v5016, %v5017
        %v5019 = vrot.slane %v5018, 1
        %v5020 = vadd.f32 %v5018, %v5019
        %v5029 = vsel %vm2681, %v4942, %v4929
        %v5030 = vsel %vm2683, %v4955, %v5029
        %v5031 = vsel %vm2685, %v4968, %v5030
        %v5032 = vsel %vm2687, %v4981, %v5031
        %v5033 = vsel %vm2689, %v4994, %v5032
        %v5034 = vsel %vm2691, %v5007, %v5033
        %v5035 = vsel %vm2693, %v5020, %v5034
        %v5036 = vsel %vm1624, %v5035, 0
        %5038 = vmatprep.subr.mxu0 0.0
        %5039 = vmatpush1.xpose.msra.mxu0 %v5036
        %5040 = vmatprep.subr.mxu0 0.0
        %5041 = vmatpush1.xpose.msra.mxu0 0.0
        %5042 = vmatprep.subr.mxu0 0.0
        %5043 = vmatpush1.xpose.msra.mxu0 0.0
        %5044 = vmatprep.subr.mxu0 0.0
        %5045 = vmatpush1.xpose.msra.mxu0 0.0
        %5046 = vmatprep.subr.mxu0 0.0
        %5047 = vmatpush1.xpose.msra.mxu0 0.0
        %5048 = vmatprep.subr.mxu0 0.0
        %5049 = vmatpush1.xpose.msra.mxu0 0.0
        %5050 = vmatprep.subr.mxu0 0.0
        %5051 = vmatpush1.xpose.msra.mxu0 0.0
        %5052 = vmatprep.subr.mxu0 0.0
        %5053 = vmatpush1.xpose.msra.mxu0 0.0
        %5054 = vmatprep.subr.mxu0 0.0
        %5055 = vmatpush1.xpose.msra.mxu0 0.0
        %5056 = vmatprep.subr.mxu0 0.0
        %5057 = vmatpush1.xpose.msra.mxu0 0.0
        %5058 = vmatprep.subr.mxu0 0.0
        %5059 = vmatpush1.xpose.msra.mxu0 0.0
        %5060 = vmatprep.subr.mxu0 0.0
        %5061 = vmatpush1.xpose.msra.mxu0 0.0
        %5062 = vmatprep.subr.mxu0 0.0
        %5063 = vmatpush1.xpose.msra.mxu0 0.0
        %5064 = vmatprep.subr.mxu0 0.0
        %5065 = vmatpush1.xpose.msra.mxu0 0.0
        %5066 = vmatprep.subr.mxu0 0.0
        %5067 = vmatpush1.xpose.msra.mxu0 0.0
        %5068 = vmatprep.subr.mxu0 0.0
        %5069 = vmatpush1.xpose.msra.mxu0 0.0
        %5070 = vmatprep.subr.mxu0 0.0
        %5071 = vmatpush1.xpose.msra.mxu0 0.0
        %5072 = vmatprep.subr.mxu0 0.0
        %5073 = vmatpush1.xpose.msra.mxu0 0.0
        %5074 = vmatprep.subr.mxu0 0.0
        %5075 = vmatpush1.xpose.msra.mxu0 0.0
        %5076 = vmatprep.subr.mxu0 0.0
        %5077 = vmatpush1.xpose.msra.mxu0 0.0
        %5078 = vmatprep.subr.mxu0 0.0
        %5079 = vmatpush1.xpose.msra.mxu0 0.0
        %5080 = vmatprep.subr.mxu0 0.0
        %5081 = vmatpush1.xpose.msra.mxu0 0.0
        %5082 = vmatprep.subr.mxu0 0.0
        %5083 = vmatpush1.xpose.msra.mxu0 0.0
        %5084 = vmatprep.subr.mxu0 0.0
        %5085 = vmatpush1.xpose.msra.mxu0 0.0
        %5086 = vmatprep.subr.mxu0 0.0
        %5087 = vmatpush1.xpose.msra.mxu0 0.0
        %5088 = vmatprep.subr.mxu0 0.0
        %5089 = vmatpush1.xpose.msra.mxu0 0.0
        %5090 = vmatprep.subr.mxu0 0.0
        %5091 = vmatpush1.xpose.msra.mxu0 0.0
        %5092 = vmatprep.subr.mxu0 0.0
        %5093 = vmatpush1.xpose.msra.mxu0 0.0
        %5094 = vmatprep.subr.mxu0 0.0
        %5095 = vmatpush1.xpose.msra.mxu0 0.0
        %5096 = vmatprep.subr.mxu0 0.0
        %5097 = vmatpush1.xpose.msra.mxu0 0.0
        %5098 = vmatprep.subr.mxu0 0.0
        %5099 = vmatpush1.xpose.msra.mxu0 0.0
        %5100 = vmatprep.subr.mxu0 0.0
        %5101 = vmatpush1.xpose.msra.mxu0 0.0
        %5102 = vmatprep.mubr.f32.mxu0 0.0
        %5103 = vmatmul.mubr.f32.gmra.mrb[0].mxu0 %v2696
        %v5104 = vpop.f32.mrb[0].mxu0
        %v5105 = vadd.f32 0.0, %v5104
        %v5106 = vpop.f32.mrb[0].mxu0
        %5107 = vdwg.mxu0
        %v5108 = vsub.f32 %v5105, %v1623
        %v5109 = vand.u32 2147483647, %v5108
        %v5110 = vsel %vm4821, 1e+30, %v3941
        %v5111 = vsel %vm4822, 1e+30, %v3942
        %v5112 = vsel %vm4823, 1e+30, %v3943
        %v5113 = vsel %vm4824, 1e+30, %v3944
        %v5114 = vsel %vm4825, 1e+30, %v3945
        %v5115 = vsel %vm4826, 1e+30, %v3946
        %v5116 = vsel %vm4827, 1e+30, %v3947
        %v5117 = vsel %vm4828, 1e+30, %v3948
        %v5118 = vsel %vm4829, 1e+30, %v3949
        %v5119 = vsel %vm4830, 1e+30, %v3950
        %v5120 = vsel %vm4831, 1e+30, %v3951
        %v5121 = vsel %vm4832, 1e+30, %v3952
        %v5122 = vsel %vm4833, 1e+30, %v3953
        %v5123 = vsel %vm4834, 1e+30, %v3954
        %v5124 = vsel %vm4835, 1e+30, %v3955
        %v5125 = vsel %vm4836, 1e+30, %v3956
        %v5126 = vsel %vm4837, 1e+30, %v3957
        %v5127 = vsel %vm4838, 1e+30, %v3958
        %v5128 = vsel %vm4839, 1e+30, %v3959
        %v5129 = vsel %vm4840, 1e+30, %v3960
        %v5130 = vsel %vm4841, 1e+30, %v3961
        %v5131 = vsel %vm4842, 1e+30, %v3962
        %v5132 = vsel %vm4843, 1e+30, %v3963
        %v5133 = vsel %vm4844, 1e+30, %v3964
        %v5134 = vsel %vm4845, 1e+30, %v3965
        %v5135 = vsel %vm4846, 1e+30, %v3966
        %v5136 = vsel %vm4847, 1e+30, %v3967
        %v5137 = vsel %vm4848, 1e+30, %v3968
        %v5138 = vsel %vm4849, 1e+30, %v3969
        %v5139 = vsel %vm4850, 1e+30, %v3970
        %v5140 = vsel %vm4851, 1e+30, %v3971
        %v5141 = vsel %vm4852, 1e+30, %v3972
        %v5142 = vsel %vm1624, %v5110, inf
        %5143 = vmin.xlane.f32.xlu0 %v5142
        %v5144 = vpop.xlane.xlu0 %5143
        %v5145 = vsel %vm1624, %v5111, inf
        %5146 = vmin.xlane.f32.xlu0 %v5145
        %v5147 = vpop.xlane.xlu0 %5146
        %v5148 = vsel %vm1624, %v5112, inf
        %5149 = vmin.xlane.f32.xlu0 %v5148
        %v5150 = vpop.xlane.xlu0 %5149
        %v5151 = vsel %vm948, %v5113, inf
        %5152 = vmin.xlane.f32.xlu0 %v5151
        %v5153 = vpop.xlane.xlu0 %5152
        %v5154 = vsel %vm1624, %v5114, inf
        %5155 = vmin.xlane.f32.xlu0 %v5154
        %v5156 = vpop.xlane.xlu0 %5155
        %v5157 = vsel %vm1624, %v5115, inf
        %5158 = vmin.xlane.f32.xlu0 %v5157
        %v5159 = vpop.xlane.xlu0 %5158
        %v5160 = vsel %vm1624, %v5116, inf
        %5161 = vmin.xlane.f32.xlu0 %v5160
        %v5162 = vpop.xlane.xlu0 %5161
        %v5163 = vsel %vm948, %v5117, inf
        %5164 = vmin.xlane.f32.xlu0 %v5163
        %v5165 = vpop.xlane.xlu0 %5164
        %v5166 = vsel %vm1624, %v5118, inf
        %5167 = vmin.xlane.f32.xlu0 %v5166
        %v5168 = vpop.xlane.xlu0 %5167
        %v5169 = vsel %vm1624, %v5119, inf
        %5170 = vmin.xlane.f32.xlu0 %v5169
        %v5171 = vpop.xlane.xlu0 %5170
        %v5172 = vsel %vm1624, %v5120, inf
        %5173 = vmin.xlane.f32.xlu0 %v5172
        %v5174 = vpop.xlane.xlu0 %5173
        %v5175 = vsel %vm948, %v5121, inf
        %5176 = vmin.xlane.f32.xlu0 %v5175
        %v5177 = vpop.xlane.xlu0 %5176
        %v5178 = vsel %vm1624, %v5122, inf
        %5179 = vmin.xlane.f32.xlu0 %v5178
        %v5180 = vpop.xlane.xlu0 %5179
        %v5181 = vsel %vm1624, %v5123, inf
        %5182 = vmin.xlane.f32.xlu0 %v5181
        %v5183 = vpop.xlane.xlu0 %5182
        %v5184 = vsel %vm1624, %v5124, inf
        %5185 = vmin.xlane.f32.xlu0 %v5184
        %v5186 = vpop.xlane.xlu0 %5185
        %v5187 = vsel %vm948, %v5125, inf
        %5188 = vmin.xlane.f32.xlu0 %v5187
        %v5189 = vpop.xlane.xlu0 %5188
        %v5190 = vsel %vm1624, %v5126, inf
        %5191 = vmin.xlane.f32.xlu0 %v5190
        %v5192 = vpop.xlane.xlu0 %5191
        %v5193 = vsel %vm1624, %v5127, inf
        %5194 = vmin.xlane.f32.xlu0 %v5193
        %v5195 = vpop.xlane.xlu0 %5194
        %v5196 = vsel %vm1624, %v5128, inf
        %5197 = vmin.xlane.f32.xlu0 %v5196
        %v5198 = vpop.xlane.xlu0 %5197
        %v5199 = vsel %vm948, %v5129, inf
        %5200 = vmin.xlane.f32.xlu0 %v5199
        %v5201 = vpop.xlane.xlu0 %5200
        %v5202 = vsel %vm1624, %v5130, inf
        %5203 = vmin.xlane.f32.xlu0 %v5202
        %v5204 = vpop.xlane.xlu0 %5203
        %v5205 = vsel %vm1624, %v5131, inf
        %5206 = vmin.xlane.f32.xlu0 %v5205
        %v5207 = vpop.xlane.xlu0 %5206
        %v5208 = vsel %vm1624, %v5132, inf
        %5209 = vmin.xlane.f32.xlu0 %v5208
        %v5210 = vpop.xlane.xlu0 %5209
        %v5211 = vsel %vm948, %v5133, inf
        %5212 = vmin.xlane.f32.xlu0 %v5211
        %v5213 = vpop.xlane.xlu0 %5212
        %v5214 = vsel %vm1624, %v5134, inf
        %5215 = vmin.xlane.f32.xlu0 %v5214
        %v5216 = vpop.xlane.xlu0 %5215
        %v5217 = vsel %vm1624, %v5135, inf
        %5218 = vmin.xlane.f32.xlu0 %v5217
        %v5219 = vpop.xlane.xlu0 %5218
        %v5220 = vsel %vm1624, %v5136, inf
        %5221 = vmin.xlane.f32.xlu0 %v5220
        %v5222 = vpop.xlane.xlu0 %5221
        %v5223 = vsel %vm948, %v5137, inf
        %5224 = vmin.xlane.f32.xlu0 %v5223
        %v5225 = vpop.xlane.xlu0 %5224
        %v5226 = vsel %vm1624, %v5138, inf
        %5227 = vmin.xlane.f32.xlu0 %v5226
        %v5228 = vpop.xlane.xlu0 %5227
        %v5229 = vsel %vm1624, %v5139, inf
        %5230 = vmin.xlane.f32.xlu0 %v5229
        %v5231 = vpop.xlane.xlu0 %5230
        %v5232 = vsel %vm1624, %v5140, inf
        %5233 = vmin.xlane.f32.xlu0 %v5232
        %v5234 = vpop.xlane.xlu0 %5233
        %v5235 = vsel %vm948, %v5141, inf
        %5236 = vmin.xlane.f32.xlu0 %v5235
        %v5237 = vpop.xlane.xlu0 %5236
        %v5238 = vmin.f32 %v5144, %v5147
        %v5239 = vmin.f32 %v5238, %v5150
        %v5240 = vsel %vm425, %v5153, inf
        %v5241 = vmin.f32 %v5239, %v5240
        %v5242 = vrot.slane %v5241, 4
        %v5243 = vmin.f32 %v5241, %v5242
        %v5244 = vrot.slane %v5243, 2
        %v5245 = vmin.f32 %v5243, %v5244
        %v5246 = vrot.slane %v5245, 1
        %v5247 = vmin.f32 %v5245, %v5246
        %v5248 = vmin.f32 %v5156, %v5159
        %v5249 = vmin.f32 %v5248, %v5162
        %v5250 = vsel %vm425, %v5165, inf
        %v5251 = vmin.f32 %v5249, %v5250
        %v5252 = vrot.slane %v5251, 4
        %v5253 = vmin.f32 %v5251, %v5252
        %v5254 = vrot.slane %v5253, 2
        %v5255 = vmin.f32 %v5253, %v5254
        %v5256 = vrot.slane %v5255, 1
        %v5257 = vmin.f32 %v5255, %v5256
        %v5258 = vmin.f32 %v5168, %v5171
        %v5259 = vmin.f32 %v5258, %v5174
        %v5260 = vsel %vm425, %v5177, inf
        %v5261 = vmin.f32 %v5259, %v5260
        %v5262 = vrot.slane %v5261, 4
        %v5263 = vmin.f32 %v5261, %v5262
        %v5264 = vrot.slane %v5263, 2
        %v5265 = vmin.f32 %v5263, %v5264
        %v5266 = vrot.slane %v5265, 1
        %v5267 = vmin.f32 %v5265, %v5266
        %v5268 = vmin.f32 %v5180, %v5183
        %v5269 = vmin.f32 %v5268, %v5186
        %v5270 = vsel %vm425, %v5189, inf
        %v5271 = vmin.f32 %v5269, %v5270
        %v5272 = vrot.slane %v5271, 4
        %v5273 = vmin.f32 %v5271, %v5272
        %v5274 = vrot.slane %v5273, 2
        %v5275 = vmin.f32 %v5273, %v5274
        %v5276 = vrot.slane %v5275, 1
        %v5277 = vmin.f32 %v5275, %v5276
        %v5278 = vmin.f32 %v5192, %v5195
        %v5279 = vmin.f32 %v5278, %v5198
        %v5280 = vsel %vm425, %v5201, inf
        %v5281 = vmin.f32 %v5279, %v5280
        %v5282 = vrot.slane %v5281, 4
        %v5283 = vmin.f32 %v5281, %v5282
        %v5284 = vrot.slane %v5283, 2
        %v5285 = vmin.f32 %v5283, %v5284
        %v5286 = vrot.slane %v5285, 1
        %v5287 = vmin.f32 %v5285, %v5286
        %v5288 = vmin.f32 %v5204, %v5207
        %v5289 = vmin.f32 %v5288, %v5210
        %v5290 = vsel %vm425, %v5213, inf
        %v5291 = vmin.f32 %v5289, %v5290
        %v5292 = vrot.slane %v5291, 4
        %v5293 = vmin.f32 %v5291, %v5292
        %v5294 = vrot.slane %v5293, 2
        %v5295 = vmin.f32 %v5293, %v5294
        %v5296 = vrot.slane %v5295, 1
        %v5297 = vmin.f32 %v5295, %v5296
        %v5298 = vmin.f32 %v5216, %v5219
        %v5299 = vmin.f32 %v5298, %v5222
        %v5300 = vsel %vm425, %v5225, inf
        %v5301 = vmin.f32 %v5299, %v5300
        %v5302 = vrot.slane %v5301, 4
        %v5303 = vmin.f32 %v5301, %v5302
        %v5304 = vrot.slane %v5303, 2
        %v5305 = vmin.f32 %v5303, %v5304
        %v5306 = vrot.slane %v5305, 1
        %v5307 = vmin.f32 %v5305, %v5306
        %v5308 = vmin.f32 %v5228, %v5231
        %v5309 = vmin.f32 %v5308, %v5234
        %v5310 = vsel %vm425, %v5237, inf
        %v5311 = vmin.f32 %v5309, %v5310
        %v5312 = vrot.slane %v5311, 4
        %v5313 = vmin.f32 %v5311, %v5312
        %v5314 = vrot.slane %v5313, 2
        %v5315 = vmin.f32 %v5313, %v5314
        %v5316 = vrot.slane %v5315, 1
        %v5317 = vmin.f32 %v5315, %v5316
        %vm5318 = vcmp.eq.f32.partialorder %v5110, %v5247
        %vm5319 = vcmp.eq.f32.partialorder %v5111, %v5247
        %vm5320 = vcmp.eq.f32.partialorder %v5112, %v5247
        %vm5321 = vcmp.eq.f32.partialorder %v5113, %v5247
        %vm5322 = vcmp.eq.f32.partialorder %v5114, %v5257
        %vm5323 = vcmp.eq.f32.partialorder %v5115, %v5257
        %vm5324 = vcmp.eq.f32.partialorder %v5116, %v5257
        %vm5325 = vcmp.eq.f32.partialorder %v5117, %v5257
        %vm5326 = vcmp.eq.f32.partialorder %v5118, %v5267
        %vm5327 = vcmp.eq.f32.partialorder %v5119, %v5267
        %vm5328 = vcmp.eq.f32.partialorder %v5120, %v5267
        %vm5329 = vcmp.eq.f32.partialorder %v5121, %v5267
        %vm5330 = vcmp.eq.f32.partialorder %v5122, %v5277
        %vm5331 = vcmp.eq.f32.partialorder %v5123, %v5277
        %vm5332 = vcmp.eq.f32.partialorder %v5124, %v5277
        %vm5333 = vcmp.eq.f32.partialorder %v5125, %v5277
        %vm5334 = vcmp.eq.f32.partialorder %v5126, %v5287
        %vm5335 = vcmp.eq.f32.partialorder %v5127, %v5287
        %vm5336 = vcmp.eq.f32.partialorder %v5128, %v5287
        %vm5337 = vcmp.eq.f32.partialorder %v5129, %v5287
        %vm5338 = vcmp.eq.f32.partialorder %v5130, %v5297
        %vm5339 = vcmp.eq.f32.partialorder %v5131, %v5297
        %vm5340 = vcmp.eq.f32.partialorder %v5132, %v5297
        %vm5341 = vcmp.eq.f32.partialorder %v5133, %v5297
        %vm5342 = vcmp.eq.f32.partialorder %v5134, %v5307
        %vm5343 = vcmp.eq.f32.partialorder %v5135, %v5307
        %vm5344 = vcmp.eq.f32.partialorder %v5136, %v5307
        %vm5345 = vcmp.eq.f32.partialorder %v5137, %v5307
        %vm5346 = vcmp.eq.f32.partialorder %v5138, %v5317
        %vm5347 = vcmp.eq.f32.partialorder %v5139, %v5317
        %vm5348 = vcmp.eq.f32.partialorder %v5140, %v5317
        %vm5349 = vcmp.eq.f32.partialorder %v5141, %v5317
        %v5350 = vsel %vm5318, %v1301, 216
        %v5351 = vsel %vm5319, %v1302, 216
        %v5352 = vsel %vm5320, %v1303, 216
        %v5353 = vsel %vm5321, %v1304, 216
        %v5354 = vsel %vm5322, %v1301, 216
        %v5355 = vsel %vm5323, %v1302, 216
        %v5356 = vsel %vm5324, %v1303, 216
        %v5357 = vsel %vm5325, %v1304, 216
        %v5358 = vsel %vm5326, %v1301, 216
        %v5359 = vsel %vm5327, %v1302, 216
        %v5360 = vsel %vm5328, %v1303, 216
        %v5361 = vsel %vm5329, %v1304, 216
        %v5362 = vsel %vm5330, %v1301, 216
        %v5363 = vsel %vm5331, %v1302, 216
        %v5364 = vsel %vm5332, %v1303, 216
        %v5365 = vsel %vm5333, %v1304, 216
        %v5366 = vsel %vm5334, %v1301, 216
        %v5367 = vsel %vm5335, %v1302, 216
        %v5368 = vsel %vm5336, %v1303, 216
        %v5369 = vsel %vm5337, %v1304, 216
        %v5370 = vsel %vm5338, %v1301, 216
        %v5371 = vsel %vm5339, %v1302, 216
        %v5372 = vsel %vm5340, %v1303, 216
        %v5373 = vsel %vm5341, %v1304, 216
        %v5374 = vsel %vm5342, %v1301, 216
        %v5375 = vsel %vm5343, %v1302, 216
        %v5376 = vsel %vm5344, %v1303, 216
        %v5377 = vsel %vm5345, %v1304, 216
        %v5378 = vsel %vm5346, %v1301, 216
        %v5379 = vsel %vm5347, %v1302, 216
        %v5380 = vsel %vm5348, %v1303, 216
        %v5381 = vsel %vm5349, %v1304, 216
        %v5382 = vsel %vm1624, %v5350, 2147483647
        %v5383 = vand.u32 %v5382, 65535
        %v5384 = vshra.s32 %v5382, 16
        %v5385 = vcvt.s32.f32 %v5383
        %v5386 = vcvt.s32.f32 %v5384
        %5387 = vmin.xlane.f32.xlu0 %v5386
        %v5388 = vpop.xlane.xlu0 %5387
        %vm5389 = vcmp.eq.f32.partialorder %v5386, %v5388
        %v5390 = vsel %vm5389, %v5385, inf
        %5391 = vmin.xlane.f32.xlu0 %v5390
        %v5392 = vpop.xlane.xlu0 %5391
        %v5393 = vcvt.f32.s32 %v5392
        %v5394 = vcvt.f32.s32 %v5388
        %v5395 = vshll.u32 %v5394, 16
        %v5396 = vadd.s32 %v5395, %v5393
        %v5397 = vsel %vm1624, %v5351, 2147483647
        %v5398 = vand.u32 %v5397, 65535
        %v5399 = vshra.s32 %v5397, 16
        %v5400 = vcvt.s32.f32 %v5398
        %v5401 = vcvt.s32.f32 %v5399
        %5402 = vmin.xlane.f32.xlu0 %v5401
        %v5403 = vpop.xlane.xlu0 %5402
        %vm5404 = vcmp.eq.f32.partialorder %v5401, %v5403
        %v5405 = vsel %vm5404, %v5400, inf
        %5406 = vmin.xlane.f32.xlu0 %v5405
        %v5407 = vpop.xlane.xlu0 %5406
        %v5408 = vcvt.f32.s32 %v5407
        %v5409 = vcvt.f32.s32 %v5403
        %v5410 = vshll.u32 %v5409, 16
        %v5411 = vadd.s32 %v5410, %v5408
        %v5412 = vsel %vm1624, %v5352, 2147483647
        %v5413 = vand.u32 %v5412, 65535
        %v5414 = vshra.s32 %v5412, 16
        %v5415 = vcvt.s32.f32 %v5413
        %v5416 = vcvt.s32.f32 %v5414
        %5417 = vmin.xlane.f32.xlu0 %v5416
        %v5418 = vpop.xlane.xlu0 %5417
        %vm5419 = vcmp.eq.f32.partialorder %v5416, %v5418
        %v5420 = vsel %vm5419, %v5415, inf
        %5421 = vmin.xlane.f32.xlu0 %v5420
        %v5422 = vpop.xlane.xlu0 %5421
        %v5423 = vcvt.f32.s32 %v5422
        %v5424 = vcvt.f32.s32 %v5418
        %v5425 = vshll.u32 %v5424, 16
        %v5426 = vadd.s32 %v5425, %v5423
        %v5427 = vsel %vm948, %v5353, 2147483647
        %v5428 = vand.u32 %v5427, 65535
        %v5429 = vshra.s32 %v5427, 16
        %v5430 = vcvt.s32.f32 %v5428
        %v5431 = vcvt.s32.f32 %v5429
        %5432 = vmin.xlane.f32.xlu0 %v5431
        %v5433 = vpop.xlane.xlu0 %5432
        %vm5434 = vcmp.eq.f32.partialorder %v5431, %v5433
        %v5435 = vsel %vm5434, %v5430, inf
        %5436 = vmin.xlane.f32.xlu0 %v5435
        %v5437 = vpop.xlane.xlu0 %5436
        %v5438 = vcvt.f32.s32 %v5437
        %v5439 = vcvt.f32.s32 %v5433
        %v5440 = vshll.u32 %v5439, 16
        %v5441 = vadd.s32 %v5440, %v5438
        %v5442 = vsel %vm1624, %v5354, 2147483647
        %v5443 = vand.u32 %v5442, 65535
        %v5444 = vshra.s32 %v5442, 16
        %v5445 = vcvt.s32.f32 %v5443
        %v5446 = vcvt.s32.f32 %v5444
        %5447 = vmin.xlane.f32.xlu0 %v5446
        %v5448 = vpop.xlane.xlu0 %5447
        %vm5449 = vcmp.eq.f32.partialorder %v5446, %v5448
        %v5450 = vsel %vm5449, %v5445, inf
        %5451 = vmin.xlane.f32.xlu0 %v5450
        %v5452 = vpop.xlane.xlu0 %5451
        %v5453 = vcvt.f32.s32 %v5452
        %v5454 = vcvt.f32.s32 %v5448
        %v5455 = vshll.u32 %v5454, 16
        %v5456 = vadd.s32 %v5455, %v5453
        %v5457 = vsel %vm1624, %v5355, 2147483647
        %v5458 = vand.u32 %v5457, 65535
        %v5459 = vshra.s32 %v5457, 16
        %v5460 = vcvt.s32.f32 %v5458
        %v5461 = vcvt.s32.f32 %v5459
        %5462 = vmin.xlane.f32.xlu0 %v5461
        %v5463 = vpop.xlane.xlu0 %5462
        %vm5464 = vcmp.eq.f32.partialorder %v5461, %v5463
        %v5465 = vsel %vm5464, %v5460, inf
        %5466 = vmin.xlane.f32.xlu0 %v5465
        %v5467 = vpop.xlane.xlu0 %5466
        %v5468 = vcvt.f32.s32 %v5467
        %v5469 = vcvt.f32.s32 %v5463
        %v5470 = vshll.u32 %v5469, 16
        %v5471 = vadd.s32 %v5470, %v5468
        %v5472 = vsel %vm1624, %v5356, 2147483647
        %v5473 = vand.u32 %v5472, 65535
        %v5474 = vshra.s32 %v5472, 16
        %v5475 = vcvt.s32.f32 %v5473
        %v5476 = vcvt.s32.f32 %v5474
        %5477 = vmin.xlane.f32.xlu0 %v5476
        %v5478 = vpop.xlane.xlu0 %5477
        %vm5479 = vcmp.eq.f32.partialorder %v5476, %v5478
        %v5480 = vsel %vm5479, %v5475, inf
        %5481 = vmin.xlane.f32.xlu0 %v5480
        %v5482 = vpop.xlane.xlu0 %5481
        %v5483 = vcvt.f32.s32 %v5482
        %v5484 = vcvt.f32.s32 %v5478
        %v5485 = vshll.u32 %v5484, 16
        %v5486 = vadd.s32 %v5485, %v5483
        %v5487 = vsel %vm948, %v5357, 2147483647
        %v5488 = vand.u32 %v5487, 65535
        %v5489 = vshra.s32 %v5487, 16
        %v5490 = vcvt.s32.f32 %v5488
        %v5491 = vcvt.s32.f32 %v5489
        %5492 = vmin.xlane.f32.xlu0 %v5491
        %v5493 = vpop.xlane.xlu0 %5492
        %vm5494 = vcmp.eq.f32.partialorder %v5491, %v5493
        %v5495 = vsel %vm5494, %v5490, inf
        %5496 = vmin.xlane.f32.xlu0 %v5495
        %v5497 = vpop.xlane.xlu0 %5496
        %v5498 = vcvt.f32.s32 %v5497
        %v5499 = vcvt.f32.s32 %v5493
        %v5500 = vshll.u32 %v5499, 16
        %v5501 = vadd.s32 %v5500, %v5498
        %v5502 = vsel %vm1624, %v5358, 2147483647
        %v5503 = vand.u32 %v5502, 65535
        %v5504 = vshra.s32 %v5502, 16
        %v5505 = vcvt.s32.f32 %v5503
        %v5506 = vcvt.s32.f32 %v5504
        %5507 = vmin.xlane.f32.xlu0 %v5506
        %v5508 = vpop.xlane.xlu0 %5507
        %vm5509 = vcmp.eq.f32.partialorder %v5506, %v5508
        %v5510 = vsel %vm5509, %v5505, inf
        %5511 = vmin.xlane.f32.xlu0 %v5510
        %v5512 = vpop.xlane.xlu0 %5511
        %v5513 = vcvt.f32.s32 %v5512
        %v5514 = vcvt.f32.s32 %v5508
        %v5515 = vshll.u32 %v5514, 16
        %v5516 = vadd.s32 %v5515, %v5513
        %v5517 = vsel %vm1624, %v5359, 2147483647
        %v5518 = vand.u32 %v5517, 65535
        %v5519 = vshra.s32 %v5517, 16
        %v5520 = vcvt.s32.f32 %v5518
        %v5521 = vcvt.s32.f32 %v5519
        %5522 = vmin.xlane.f32.xlu0 %v5521
        %v5523 = vpop.xlane.xlu0 %5522
        %vm5524 = vcmp.eq.f32.partialorder %v5521, %v5523
        %v5525 = vsel %vm5524, %v5520, inf
        %5526 = vmin.xlane.f32.xlu0 %v5525
        %v5527 = vpop.xlane.xlu0 %5526
        %v5528 = vcvt.f32.s32 %v5527
        %v5529 = vcvt.f32.s32 %v5523
        %v5530 = vshll.u32 %v5529, 16
        %v5531 = vadd.s32 %v5530, %v5528
        %v5532 = vsel %vm1624, %v5360, 2147483647
        %v5533 = vand.u32 %v5532, 65535
        %v5534 = vshra.s32 %v5532, 16
        %v5535 = vcvt.s32.f32 %v5533
        %v5536 = vcvt.s32.f32 %v5534
        %5537 = vmin.xlane.f32.xlu0 %v5536
        %v5538 = vpop.xlane.xlu0 %5537
        %vm5539 = vcmp.eq.f32.partialorder %v5536, %v5538
        %v5540 = vsel %vm5539, %v5535, inf
        %5541 = vmin.xlane.f32.xlu0 %v5540
        %v5542 = vpop.xlane.xlu0 %5541
        %v5543 = vcvt.f32.s32 %v5542
        %v5544 = vcvt.f32.s32 %v5538
        %v5545 = vshll.u32 %v5544, 16
        %v5546 = vadd.s32 %v5545, %v5543
        %v5547 = vsel %vm948, %v5361, 2147483647
        %v5548 = vand.u32 %v5547, 65535
        %v5549 = vshra.s32 %v5547, 16
        %v5550 = vcvt.s32.f32 %v5548
        %v5551 = vcvt.s32.f32 %v5549
        %5552 = vmin.xlane.f32.xlu0 %v5551
        %v5553 = vpop.xlane.xlu0 %5552
        %vm5554 = vcmp.eq.f32.partialorder %v5551, %v5553
        %v5555 = vsel %vm5554, %v5550, inf
        %5556 = vmin.xlane.f32.xlu0 %v5555
        %v5557 = vpop.xlane.xlu0 %5556
        %v5558 = vcvt.f32.s32 %v5557
        %v5559 = vcvt.f32.s32 %v5553
        %v5560 = vshll.u32 %v5559, 16
        %v5561 = vadd.s32 %v5560, %v5558
        %v5562 = vsel %vm1624, %v5362, 2147483647
        %v5563 = vand.u32 %v5562, 65535
        %v5564 = vshra.s32 %v5562, 16
        %v5565 = vcvt.s32.f32 %v5563
        %v5566 = vcvt.s32.f32 %v5564
        %5567 = vmin.xlane.f32.xlu0 %v5566
        %v5568 = vpop.xlane.xlu0 %5567
        %vm5569 = vcmp.eq.f32.partialorder %v5566, %v5568
        %v5570 = vsel %vm5569, %v5565, inf
        %5571 = vmin.xlane.f32.xlu0 %v5570
        %v5572 = vpop.xlane.xlu0 %5571
        %v5573 = vcvt.f32.s32 %v5572
        %v5574 = vcvt.f32.s32 %v5568
        %v5575 = vshll.u32 %v5574, 16
        %v5576 = vadd.s32 %v5575, %v5573
        %v5577 = vsel %vm1624, %v5363, 2147483647
        %v5578 = vand.u32 %v5577, 65535
        %v5579 = vshra.s32 %v5577, 16
        %v5580 = vcvt.s32.f32 %v5578
        %v5581 = vcvt.s32.f32 %v5579
        %5582 = vmin.xlane.f32.xlu0 %v5581
        %v5583 = vpop.xlane.xlu0 %5582
        %vm5584 = vcmp.eq.f32.partialorder %v5581, %v5583
        %v5585 = vsel %vm5584, %v5580, inf
        %5586 = vmin.xlane.f32.xlu0 %v5585
        %v5587 = vpop.xlane.xlu0 %5586
        %v5588 = vcvt.f32.s32 %v5587
        %v5589 = vcvt.f32.s32 %v5583
        %v5590 = vshll.u32 %v5589, 16
        %v5591 = vadd.s32 %v5590, %v5588
        %v5592 = vsel %vm1624, %v5364, 2147483647
        %v5593 = vand.u32 %v5592, 65535
        %v5594 = vshra.s32 %v5592, 16
        %v5595 = vcvt.s32.f32 %v5593
        %v5596 = vcvt.s32.f32 %v5594
        %5597 = vmin.xlane.f32.xlu0 %v5596
        %v5598 = vpop.xlane.xlu0 %5597
        %vm5599 = vcmp.eq.f32.partialorder %v5596, %v5598
        %v5600 = vsel %vm5599, %v5595, inf
        %5601 = vmin.xlane.f32.xlu0 %v5600
        %v5602 = vpop.xlane.xlu0 %5601
        %v5603 = vcvt.f32.s32 %v5602
        %v5604 = vcvt.f32.s32 %v5598
        %v5605 = vshll.u32 %v5604, 16
        %v5606 = vadd.s32 %v5605, %v5603
        %v5607 = vsel %vm948, %v5365, 2147483647
        %v5608 = vand.u32 %v5607, 65535
        %v5609 = vshra.s32 %v5607, 16
        %v5610 = vcvt.s32.f32 %v5608
        %v5611 = vcvt.s32.f32 %v5609
        %5612 = vmin.xlane.f32.xlu0 %v5611
        %v5613 = vpop.xlane.xlu0 %5612
        %vm5614 = vcmp.eq.f32.partialorder %v5611, %v5613
        %v5615 = vsel %vm5614, %v5610, inf
        %5616 = vmin.xlane.f32.xlu0 %v5615
        %v5617 = vpop.xlane.xlu0 %5616
        %v5618 = vcvt.f32.s32 %v5617
        %v5619 = vcvt.f32.s32 %v5613
        %v5620 = vshll.u32 %v5619, 16
        %v5621 = vadd.s32 %v5620, %v5618
        %v5622 = vsel %vm1624, %v5366, 2147483647
        %v5623 = vand.u32 %v5622, 65535
        %v5624 = vshra.s32 %v5622, 16
        %v5625 = vcvt.s32.f32 %v5623
        %v5626 = vcvt.s32.f32 %v5624
        %5627 = vmin.xlane.f32.xlu0 %v5626
        %v5628 = vpop.xlane.xlu0 %5627
        %vm5629 = vcmp.eq.f32.partialorder %v5626, %v5628
        %v5630 = vsel %vm5629, %v5625, inf
        %5631 = vmin.xlane.f32.xlu0 %v5630
        %v5632 = vpop.xlane.xlu0 %5631
        %v5633 = vcvt.f32.s32 %v5632
        %v5634 = vcvt.f32.s32 %v5628
        %v5635 = vshll.u32 %v5634, 16
        %v5636 = vadd.s32 %v5635, %v5633
        %v5637 = vsel %vm1624, %v5367, 2147483647
        %v5638 = vand.u32 %v5637, 65535
        %v5639 = vshra.s32 %v5637, 16
        %v5640 = vcvt.s32.f32 %v5638
        %v5641 = vcvt.s32.f32 %v5639
        %5642 = vmin.xlane.f32.xlu0 %v5641
        %v5643 = vpop.xlane.xlu0 %5642
        %vm5644 = vcmp.eq.f32.partialorder %v5641, %v5643
        %v5645 = vsel %vm5644, %v5640, inf
        %5646 = vmin.xlane.f32.xlu0 %v5645
        %v5647 = vpop.xlane.xlu0 %5646
        %v5648 = vcvt.f32.s32 %v5647
        %v5649 = vcvt.f32.s32 %v5643
        %v5650 = vshll.u32 %v5649, 16
        %v5651 = vadd.s32 %v5650, %v5648
        %v5652 = vsel %vm1624, %v5368, 2147483647
        %v5653 = vand.u32 %v5652, 65535
        %v5654 = vshra.s32 %v5652, 16
        %v5655 = vcvt.s32.f32 %v5653
        %v5656 = vcvt.s32.f32 %v5654
        %5657 = vmin.xlane.f32.xlu0 %v5656
        %v5658 = vpop.xlane.xlu0 %5657
        %vm5659 = vcmp.eq.f32.partialorder %v5656, %v5658
        %v5660 = vsel %vm5659, %v5655, inf
        %5661 = vmin.xlane.f32.xlu0 %v5660
        %v5662 = vpop.xlane.xlu0 %5661
        %v5663 = vcvt.f32.s32 %v5662
        %v5664 = vcvt.f32.s32 %v5658
        %v5665 = vshll.u32 %v5664, 16
        %v5666 = vadd.s32 %v5665, %v5663
        %v5667 = vsel %vm948, %v5369, 2147483647
        %v5668 = vand.u32 %v5667, 65535
        %v5669 = vshra.s32 %v5667, 16
        %v5670 = vcvt.s32.f32 %v5668
        %v5671 = vcvt.s32.f32 %v5669
        %5672 = vmin.xlane.f32.xlu0 %v5671
        %v5673 = vpop.xlane.xlu0 %5672
        %vm5674 = vcmp.eq.f32.partialorder %v5671, %v5673
        %v5675 = vsel %vm5674, %v5670, inf
        %5676 = vmin.xlane.f32.xlu0 %v5675
        %v5677 = vpop.xlane.xlu0 %5676
        %v5678 = vcvt.f32.s32 %v5677
        %v5679 = vcvt.f32.s32 %v5673
        %v5680 = vshll.u32 %v5679, 16
        %v5681 = vadd.s32 %v5680, %v5678
        %v5682 = vsel %vm1624, %v5370, 2147483647
        %v5683 = vand.u32 %v5682, 65535
        %v5684 = vshra.s32 %v5682, 16
        %v5685 = vcvt.s32.f32 %v5683
        %v5686 = vcvt.s32.f32 %v5684
        %5687 = vmin.xlane.f32.xlu0 %v5686
        %v5688 = vpop.xlane.xlu0 %5687
        %vm5689 = vcmp.eq.f32.partialorder %v5686, %v5688
        %v5690 = vsel %vm5689, %v5685, inf
        %5691 = vmin.xlane.f32.xlu0 %v5690
        %v5692 = vpop.xlane.xlu0 %5691
        %v5693 = vcvt.f32.s32 %v5692
        %v5694 = vcvt.f32.s32 %v5688
        %v5695 = vshll.u32 %v5694, 16
        %v5696 = vadd.s32 %v5695, %v5693
        %v5697 = vsel %vm1624, %v5371, 2147483647
        %v5698 = vand.u32 %v5697, 65535
        %v5699 = vshra.s32 %v5697, 16
        %v5700 = vcvt.s32.f32 %v5698
        %v5701 = vcvt.s32.f32 %v5699
        %5702 = vmin.xlane.f32.xlu0 %v5701
        %v5703 = vpop.xlane.xlu0 %5702
        %vm5704 = vcmp.eq.f32.partialorder %v5701, %v5703
        %v5705 = vsel %vm5704, %v5700, inf
        %5706 = vmin.xlane.f32.xlu0 %v5705
        %v5707 = vpop.xlane.xlu0 %5706
        %v5708 = vcvt.f32.s32 %v5707
        %v5709 = vcvt.f32.s32 %v5703
        %v5710 = vshll.u32 %v5709, 16
        %v5711 = vadd.s32 %v5710, %v5708
        %v5712 = vsel %vm1624, %v5372, 2147483647
        %v5713 = vand.u32 %v5712, 65535
        %v5714 = vshra.s32 %v5712, 16
        %v5715 = vcvt.s32.f32 %v5713
        %v5716 = vcvt.s32.f32 %v5714
        %5717 = vmin.xlane.f32.xlu0 %v5716
        %v5718 = vpop.xlane.xlu0 %5717
        %vm5719 = vcmp.eq.f32.partialorder %v5716, %v5718
        %v5720 = vsel %vm5719, %v5715, inf
        %5721 = vmin.xlane.f32.xlu0 %v5720
        %v5722 = vpop.xlane.xlu0 %5721
        %v5723 = vcvt.f32.s32 %v5722
        %v5724 = vcvt.f32.s32 %v5718
        %v5725 = vshll.u32 %v5724, 16
        %v5726 = vadd.s32 %v5725, %v5723
        %v5727 = vsel %vm948, %v5373, 2147483647
        %v5728 = vand.u32 %v5727, 65535
        %v5729 = vshra.s32 %v5727, 16
        %v5730 = vcvt.s32.f32 %v5728
        %v5731 = vcvt.s32.f32 %v5729
        %5732 = vmin.xlane.f32.xlu0 %v5731
        %v5733 = vpop.xlane.xlu0 %5732
        %vm5734 = vcmp.eq.f32.partialorder %v5731, %v5733
        %v5735 = vsel %vm5734, %v5730, inf
        %5736 = vmin.xlane.f32.xlu0 %v5735
        %v5737 = vpop.xlane.xlu0 %5736
        %v5738 = vcvt.f32.s32 %v5737
        %v5739 = vcvt.f32.s32 %v5733
        %v5740 = vshll.u32 %v5739, 16
        %v5741 = vadd.s32 %v5740, %v5738
        %v5742 = vsel %vm1624, %v5374, 2147483647
        %v5743 = vand.u32 %v5742, 65535
        %v5744 = vshra.s32 %v5742, 16
        %v5745 = vcvt.s32.f32 %v5743
        %v5746 = vcvt.s32.f32 %v5744
        %5747 = vmin.xlane.f32.xlu0 %v5746
        %v5748 = vpop.xlane.xlu0 %5747
        %vm5749 = vcmp.eq.f32.partialorder %v5746, %v5748
        %v5750 = vsel %vm5749, %v5745, inf
        %5751 = vmin.xlane.f32.xlu0 %v5750
        %v5752 = vpop.xlane.xlu0 %5751
        %v5753 = vcvt.f32.s32 %v5752
        %v5754 = vcvt.f32.s32 %v5748
        %v5755 = vshll.u32 %v5754, 16
        %v5756 = vadd.s32 %v5755, %v5753
        %v5757 = vsel %vm1624, %v5375, 2147483647
        %v5758 = vand.u32 %v5757, 65535
        %v5759 = vshra.s32 %v5757, 16
        %v5760 = vcvt.s32.f32 %v5758
        %v5761 = vcvt.s32.f32 %v5759
        %5762 = vmin.xlane.f32.xlu0 %v5761
        %v5763 = vpop.xlane.xlu0 %5762
        %vm5764 = vcmp.eq.f32.partialorder %v5761, %v5763
        %v5765 = vsel %vm5764, %v5760, inf
        %5766 = vmin.xlane.f32.xlu0 %v5765
        %v5767 = vpop.xlane.xlu0 %5766
        %v5768 = vcvt.f32.s32 %v5767
        %v5769 = vcvt.f32.s32 %v5763
        %v5770 = vshll.u32 %v5769, 16
        %v5771 = vadd.s32 %v5770, %v5768
        %v5772 = vsel %vm1624, %v5376, 2147483647
        %v5773 = vand.u32 %v5772, 65535
        %v5774 = vshra.s32 %v5772, 16
        %v5775 = vcvt.s32.f32 %v5773
        %v5776 = vcvt.s32.f32 %v5774
        %5777 = vmin.xlane.f32.xlu0 %v5776
        %v5778 = vpop.xlane.xlu0 %5777
        %vm5779 = vcmp.eq.f32.partialorder %v5776, %v5778
        %v5780 = vsel %vm5779, %v5775, inf
        %5781 = vmin.xlane.f32.xlu0 %v5780
        %v5782 = vpop.xlane.xlu0 %5781
        %v5783 = vcvt.f32.s32 %v5782
        %v5784 = vcvt.f32.s32 %v5778
        %v5785 = vshll.u32 %v5784, 16
        %v5786 = vadd.s32 %v5785, %v5783
        %v5787 = vsel %vm948, %v5377, 2147483647
        %v5788 = vand.u32 %v5787, 65535
        %v5789 = vshra.s32 %v5787, 16
        %v5790 = vcvt.s32.f32 %v5788
        %v5791 = vcvt.s32.f32 %v5789
        %5792 = vmin.xlane.f32.xlu0 %v5791
        %v5793 = vpop.xlane.xlu0 %5792
        %vm5794 = vcmp.eq.f32.partialorder %v5791, %v5793
        %v5795 = vsel %vm5794, %v5790, inf
        %5796 = vmin.xlane.f32.xlu0 %v5795
        %v5797 = vpop.xlane.xlu0 %5796
        %v5798 = vcvt.f32.s32 %v5797
        %v5799 = vcvt.f32.s32 %v5793
        %v5800 = vshll.u32 %v5799, 16
        %v5801 = vadd.s32 %v5800, %v5798
        %v5802 = vsel %vm1624, %v5378, 2147483647
        %v5803 = vand.u32 %v5802, 65535
        %v5804 = vshra.s32 %v5802, 16
        %v5805 = vcvt.s32.f32 %v5803
        %v5806 = vcvt.s32.f32 %v5804
        %5807 = vmin.xlane.f32.xlu0 %v5806
        %v5808 = vpop.xlane.xlu0 %5807
        %vm5809 = vcmp.eq.f32.partialorder %v5806, %v5808
        %v5810 = vsel %vm5809, %v5805, inf
        %5811 = vmin.xlane.f32.xlu0 %v5810
        %v5812 = vpop.xlane.xlu0 %5811
        %v5813 = vcvt.f32.s32 %v5812
        %v5814 = vcvt.f32.s32 %v5808
        %v5815 = vshll.u32 %v5814, 16
        %v5816 = vadd.s32 %v5815, %v5813
        %v5817 = vsel %vm1624, %v5379, 2147483647
        %v5818 = vand.u32 %v5817, 65535
        %v5819 = vshra.s32 %v5817, 16
        %v5820 = vcvt.s32.f32 %v5818
        %v5821 = vcvt.s32.f32 %v5819
        %5822 = vmin.xlane.f32.xlu0 %v5821
        %v5823 = vpop.xlane.xlu0 %5822
        %vm5824 = vcmp.eq.f32.partialorder %v5821, %v5823
        %v5825 = vsel %vm5824, %v5820, inf
        %5826 = vmin.xlane.f32.xlu0 %v5825
        %v5827 = vpop.xlane.xlu0 %5826
        %v5828 = vcvt.f32.s32 %v5827
        %v5829 = vcvt.f32.s32 %v5823
        %v5830 = vshll.u32 %v5829, 16
        %v5831 = vadd.s32 %v5830, %v5828
        %v5832 = vsel %vm1624, %v5380, 2147483647
        %v5833 = vand.u32 %v5832, 65535
        %v5834 = vshra.s32 %v5832, 16
        %v5835 = vcvt.s32.f32 %v5833
        %v5836 = vcvt.s32.f32 %v5834
        %5837 = vmin.xlane.f32.xlu0 %v5836
        %v5838 = vpop.xlane.xlu0 %5837
        %vm5839 = vcmp.eq.f32.partialorder %v5836, %v5838
        %v5840 = vsel %vm5839, %v5835, inf
        %5841 = vmin.xlane.f32.xlu0 %v5840
        %v5842 = vpop.xlane.xlu0 %5841
        %v5843 = vcvt.f32.s32 %v5842
        %v5844 = vcvt.f32.s32 %v5838
        %v5845 = vshll.u32 %v5844, 16
        %v5846 = vadd.s32 %v5845, %v5843
        %v5847 = vsel %vm948, %v5381, 2147483647
        %v5848 = vand.u32 %v5847, 65535
        %v5849 = vshra.s32 %v5847, 16
        %v5850 = vcvt.s32.f32 %v5848
        %v5851 = vcvt.s32.f32 %v5849
        %5852 = vmin.xlane.f32.xlu0 %v5851
        %v5853 = vpop.xlane.xlu0 %5852
        %vm5854 = vcmp.eq.f32.partialorder %v5851, %v5853
        %v5855 = vsel %vm5854, %v5850, inf
        %5856 = vmin.xlane.f32.xlu0 %v5855
        %v5857 = vpop.xlane.xlu0 %5856
        %v5858 = vcvt.f32.s32 %v5857
        %v5859 = vcvt.f32.s32 %v5853
        %v5860 = vshll.u32 %v5859, 16
        %v5861 = vadd.s32 %v5860, %v5858
        %vm5862 = vcmp.lt.s32.totalorder %v5396, %v5411
        %v5863 = vsel %vm5862, %v5396, %v5411
        %vm5864 = vcmp.lt.s32.totalorder %v5863, %v5426
        %v5865 = vsel %vm5864, %v5863, %v5426
        %v5866 = vsel %vm425, %v5441, 2147483647
        %vm5867 = vcmp.lt.s32.totalorder %v5865, %v5866
        %v5868 = vsel %vm5867, %v5865, %v5866
        %v5869 = vrot.slane %v5868, 4
        %vm5870 = vcmp.lt.s32.totalorder %v5868, %v5869
        %v5871 = vsel %vm5870, %v5868, %v5869
        %v5872 = vrot.slane %v5871, 2
        %vm5873 = vcmp.lt.s32.totalorder %v5871, %v5872
        %v5874 = vsel %vm5873, %v5871, %v5872
        %v5875 = vrot.slane %v5874, 1
        %vm5876 = vcmp.lt.s32.totalorder %v5874, %v5875
        %v5877 = vsel %vm5876, %v5874, %v5875
        %vm5878 = vcmp.lt.s32.totalorder %v5456, %v5471
        %v5879 = vsel %vm5878, %v5456, %v5471
        %vm5880 = vcmp.lt.s32.totalorder %v5879, %v5486
        %v5881 = vsel %vm5880, %v5879, %v5486
        %v5882 = vsel %vm425, %v5501, 2147483647
        %vm5883 = vcmp.lt.s32.totalorder %v5881, %v5882
        %v5884 = vsel %vm5883, %v5881, %v5882
        %v5885 = vrot.slane %v5884, 4
        %vm5886 = vcmp.lt.s32.totalorder %v5884, %v5885
        %v5887 = vsel %vm5886, %v5884, %v5885
        %v5888 = vrot.slane %v5887, 2
        %vm5889 = vcmp.lt.s32.totalorder %v5887, %v5888
        %v5890 = vsel %vm5889, %v5887, %v5888
        %v5891 = vrot.slane %v5890, 1
        %vm5892 = vcmp.lt.s32.totalorder %v5890, %v5891
        %v5893 = vsel %vm5892, %v5890, %v5891
        %vm5894 = vcmp.lt.s32.totalorder %v5516, %v5531
        %v5895 = vsel %vm5894, %v5516, %v5531
        %vm5896 = vcmp.lt.s32.totalorder %v5895, %v5546
        %v5897 = vsel %vm5896, %v5895, %v5546
        %v5898 = vsel %vm425, %v5561, 2147483647
        %vm5899 = vcmp.lt.s32.totalorder %v5897, %v5898
        %v5900 = vsel %vm5899, %v5897, %v5898
        %v5901 = vrot.slane %v5900, 4
        %vm5902 = vcmp.lt.s32.totalorder %v5900, %v5901
        %v5903 = vsel %vm5902, %v5900, %v5901
        %v5904 = vrot.slane %v5903, 2
        %vm5905 = vcmp.lt.s32.totalorder %v5903, %v5904
        %v5906 = vsel %vm5905, %v5903, %v5904
        %v5907 = vrot.slane %v5906, 1
        %vm5908 = vcmp.lt.s32.totalorder %v5906, %v5907
        %v5909 = vsel %vm5908, %v5906, %v5907
        %vm5910 = vcmp.lt.s32.totalorder %v5576, %v5591
        %v5911 = vsel %vm5910, %v5576, %v5591
        %vm5912 = vcmp.lt.s32.totalorder %v5911, %v5606
        %v5913 = vsel %vm5912, %v5911, %v5606
        %v5914 = vsel %vm425, %v5621, 2147483647
        %vm5915 = vcmp.lt.s32.totalorder %v5913, %v5914
        %v5916 = vsel %vm5915, %v5913, %v5914
        %v5917 = vrot.slane %v5916, 4
        %vm5918 = vcmp.lt.s32.totalorder %v5916, %v5917
        %v5919 = vsel %vm5918, %v5916, %v5917
        %v5920 = vrot.slane %v5919, 2
        %vm5921 = vcmp.lt.s32.totalorder %v5919, %v5920
        %v5922 = vsel %vm5921, %v5919, %v5920
        %v5923 = vrot.slane %v5922, 1
        %vm5924 = vcmp.lt.s32.totalorder %v5922, %v5923
        %v5925 = vsel %vm5924, %v5922, %v5923
        %vm5926 = vcmp.lt.s32.totalorder %v5636, %v5651
        %v5927 = vsel %vm5926, %v5636, %v5651
        %vm5928 = vcmp.lt.s32.totalorder %v5927, %v5666
        %v5929 = vsel %vm5928, %v5927, %v5666
        %v5930 = vsel %vm425, %v5681, 2147483647
        %vm5931 = vcmp.lt.s32.totalorder %v5929, %v5930
        %v5932 = vsel %vm5931, %v5929, %v5930
        %v5933 = vrot.slane %v5932, 4
        %vm5934 = vcmp.lt.s32.totalorder %v5932, %v5933
        %v5935 = vsel %vm5934, %v5932, %v5933
        %v5936 = vrot.slane %v5935, 2
        %vm5937 = vcmp.lt.s32.totalorder %v5935, %v5936
        %v5938 = vsel %vm5937, %v5935, %v5936
        %v5939 = vrot.slane %v5938, 1
        %vm5940 = vcmp.lt.s32.totalorder %v5938, %v5939
        %v5941 = vsel %vm5940, %v5938, %v5939
        %vm5942 = vcmp.lt.s32.totalorder %v5696, %v5711
        %v5943 = vsel %vm5942, %v5696, %v5711
        %vm5944 = vcmp.lt.s32.totalorder %v5943, %v5726
        %v5945 = vsel %vm5944, %v5943, %v5726
        %v5946 = vsel %vm425, %v5741, 2147483647
        %vm5947 = vcmp.lt.s32.totalorder %v5945, %v5946
        %v5948 = vsel %vm5947, %v5945, %v5946
        %v5949 = vrot.slane %v5948, 4
        %vm5950 = vcmp.lt.s32.totalorder %v5948, %v5949
        %v5951 = vsel %vm5950, %v5948, %v5949
        %v5952 = vrot.slane %v5951, 2
        %vm5953 = vcmp.lt.s32.totalorder %v5951, %v5952
        %v5954 = vsel %vm5953, %v5951, %v5952
        %v5955 = vrot.slane %v5954, 1
        %vm5956 = vcmp.lt.s32.totalorder %v5954, %v5955
        %v5957 = vsel %vm5956, %v5954, %v5955
        %vm5958 = vcmp.lt.s32.totalorder %v5756, %v5771
        %v5959 = vsel %vm5958, %v5756, %v5771
        %vm5960 = vcmp.lt.s32.totalorder %v5959, %v5786
        %v5961 = vsel %vm5960, %v5959, %v5786
        %v5962 = vsel %vm425, %v5801, 2147483647
        %vm5963 = vcmp.lt.s32.totalorder %v5961, %v5962
        %v5964 = vsel %vm5963, %v5961, %v5962
        %v5965 = vrot.slane %v5964, 4
        %vm5966 = vcmp.lt.s32.totalorder %v5964, %v5965
        %v5967 = vsel %vm5966, %v5964, %v5965
        %v5968 = vrot.slane %v5967, 2
        %vm5969 = vcmp.lt.s32.totalorder %v5967, %v5968
        %v5970 = vsel %vm5969, %v5967, %v5968
        %v5971 = vrot.slane %v5970, 1
        %vm5972 = vcmp.lt.s32.totalorder %v5970, %v5971
        %v5973 = vsel %vm5972, %v5970, %v5971
        %vm5974 = vcmp.lt.s32.totalorder %v5816, %v5831
        %v5975 = vsel %vm5974, %v5816, %v5831
        %vm5976 = vcmp.lt.s32.totalorder %v5975, %v5846
        %v5977 = vsel %vm5976, %v5975, %v5846
        %v5978 = vsel %vm425, %v5861, 2147483647
        %vm5979 = vcmp.lt.s32.totalorder %v5977, %v5978
        %v5980 = vsel %vm5979, %v5977, %v5978
        %v5981 = vrot.slane %v5980, 4
        %vm5982 = vcmp.lt.s32.totalorder %v5980, %v5981
        %v5983 = vsel %vm5982, %v5980, %v5981
        %v5984 = vrot.slane %v5983, 2
        %vm5985 = vcmp.lt.s32.totalorder %v5983, %v5984
        %v5986 = vsel %vm5985, %v5983, %v5984
        %v5987 = vrot.slane %v5986, 1
        %vm5988 = vcmp.lt.s32.totalorder %v5986, %v5987
        %v5989 = vsel %vm5988, %v5986, %v5987
        %vm5990 = vcmp.eq.s32.totalorder %v1301, %v5877
        %vm5991 = vcmp.eq.s32.totalorder %v1302, %v5877
        %vm5992 = vcmp.eq.s32.totalorder %v1303, %v5877
        %vm5993 = vcmp.eq.s32.totalorder %v1304, %v5877
        %vm5994 = vcmp.eq.s32.totalorder %v1301, %v5893
        %vm5995 = vcmp.eq.s32.totalorder %v1302, %v5893
        %vm5996 = vcmp.eq.s32.totalorder %v1303, %v5893
        %vm5997 = vcmp.eq.s32.totalorder %v1304, %v5893
        %vm5998 = vcmp.eq.s32.totalorder %v1301, %v5909
        %vm5999 = vcmp.eq.s32.totalorder %v1302, %v5909
        %vm6000 = vcmp.eq.s32.totalorder %v1303, %v5909
        %vm6001 = vcmp.eq.s32.totalorder %v1304, %v5909
        %vm6002 = vcmp.eq.s32.totalorder %v1301, %v5925
        %vm6003 = vcmp.eq.s32.totalorder %v1302, %v5925
        %vm6004 = vcmp.eq.s32.totalorder %v1303, %v5925
        %vm6005 = vcmp.eq.s32.totalorder %v1304, %v5925
        %vm6006 = vcmp.eq.s32.totalorder %v1301, %v5941
        %vm6007 = vcmp.eq.s32.totalorder %v1302, %v5941
        %vm6008 = vcmp.eq.s32.totalorder %v1303, %v5941
        %vm6009 = vcmp.eq.s32.totalorder %v1304, %v5941
        %vm6010 = vcmp.eq.s32.totalorder %v1301, %v5957
        %vm6011 = vcmp.eq.s32.totalorder %v1302, %v5957
        %vm6012 = vcmp.eq.s32.totalorder %v1303, %v5957
        %vm6013 = vcmp.eq.s32.totalorder %v1304, %v5957
        %vm6014 = vcmp.eq.s32.totalorder %v1301, %v5973
        %vm6015 = vcmp.eq.s32.totalorder %v1302, %v5973
        %vm6016 = vcmp.eq.s32.totalorder %v1303, %v5973
        %vm6017 = vcmp.eq.s32.totalorder %v1304, %v5973
        %vm6018 = vcmp.eq.s32.totalorder %v1301, %v5989
        %vm6019 = vcmp.eq.s32.totalorder %v1302, %v5989
        %vm6020 = vcmp.eq.s32.totalorder %v1303, %v5989
        %vm6021 = vcmp.eq.s32.totalorder %v1304, %v5989
        %v6022 = vsel %vm5990, 1, 0
        %v6023 = vsel %vm5991, 1, 0
        %v6024 = vsel %vm5992, 1, 0
        %v6025 = vsel %vm5993, 1, 0
        %v6026 = vsel %vm5994, 1, 0
        %v6027 = vsel %vm5995, 1, 0
        %v6028 = vsel %vm5996, 1, 0
        %v6029 = vsel %vm5997, 1, 0
        %v6030 = vsel %vm5998, 1, 0
        %v6031 = vsel %vm5999, 1, 0
        %v6032 = vsel %vm6000, 1, 0
        %v6033 = vsel %vm6001, 1, 0
        %v6034 = vsel %vm6002, 1, 0
        %v6035 = vsel %vm6003, 1, 0
        %v6036 = vsel %vm6004, 1, 0
        %v6037 = vsel %vm6005, 1, 0
        %v6038 = vsel %vm6006, 1, 0
        %v6039 = vsel %vm6007, 1, 0
        %v6040 = vsel %vm6008, 1, 0
        %v6041 = vsel %vm6009, 1, 0
        %v6042 = vsel %vm6010, 1, 0
        %v6043 = vsel %vm6011, 1, 0
        %v6044 = vsel %vm6012, 1, 0
        %v6045 = vsel %vm6013, 1, 0
        %v6046 = vsel %vm6014, 1, 0
        %v6047 = vsel %vm6015, 1, 0
        %v6048 = vsel %vm6016, 1, 0
        %v6049 = vsel %vm6017, 1, 0
        %v6050 = vsel %vm6018, 1, 0
        %v6051 = vsel %vm6019, 1, 0
        %v6052 = vsel %vm6020, 1, 0
        %v6053 = vsel %vm6021, 1, 0
        %v6054 = vcvt.s32.f32 %v6022
        %v6055 = vcvt.s32.f32 %v6023
        %v6056 = vcvt.s32.f32 %v6024
        %v6057 = vcvt.s32.f32 %v6025
        %v6058 = vcvt.s32.f32 %v6026
        %v6059 = vcvt.s32.f32 %v6027
        %v6060 = vcvt.s32.f32 %v6028
        %v6061 = vcvt.s32.f32 %v6029
        %v6062 = vcvt.s32.f32 %v6030
        %v6063 = vcvt.s32.f32 %v6031
        %v6064 = vcvt.s32.f32 %v6032
        %v6065 = vcvt.s32.f32 %v6033
        %v6066 = vcvt.s32.f32 %v6034
        %v6067 = vcvt.s32.f32 %v6035
        %v6068 = vcvt.s32.f32 %v6036
        %v6069 = vcvt.s32.f32 %v6037
        %v6070 = vcvt.s32.f32 %v6038
        %v6071 = vcvt.s32.f32 %v6039
        %v6072 = vcvt.s32.f32 %v6040
        %v6073 = vcvt.s32.f32 %v6041
        %v6074 = vcvt.s32.f32 %v6042
        %v6075 = vcvt.s32.f32 %v6043
        %v6076 = vcvt.s32.f32 %v6044
        %v6077 = vcvt.s32.f32 %v6045
        %v6078 = vcvt.s32.f32 %v6046
        %v6079 = vcvt.s32.f32 %v6047
        %v6080 = vcvt.s32.f32 %v6048
        %v6081 = vcvt.s32.f32 %v6049
        %v6082 = vcvt.s32.f32 %v6050
        %v6083 = vcvt.s32.f32 %v6051
        %v6084 = vcvt.s32.f32 %v6052
        %v6085 = vcvt.s32.f32 %v6053
        %v6086 = vsel %vm1624, %v6054, 0.0
        %v6087 = vsel %vm1624, %v6055, 0.0
        %v6088 = vadd.f32 %v6086, %v6087
        %v6089 = vsel %vm1624, %v6056, 0.0
        %v6090 = vadd.f32 %v6088, %v6089
        %v6091 = vsel %vm948, %v6057, 0.0
        %v6092 = vadd.f32 %v6090, %v6091
        %v6093 = vrot.slane %v6092, 4
        %v6094 = vadd.f32 %v6092, %v6093
        %v6095 = vrot.slane %v6094, 2
        %v6096 = vadd.f32 %v6094, %v6095
        %v6097 = vrot.slane %v6096, 1
        %v6098 = vadd.f32 %v6096, %v6097
        %v6099 = vsel %vm1624, %v6058, 0.0
        %v6100 = vsel %vm1624, %v6059, 0.0
        %v6101 = vadd.f32 %v6099, %v6100
        %v6102 = vsel %vm1624, %v6060, 0.0
        %v6103 = vadd.f32 %v6101, %v6102
        %v6104 = vsel %vm948, %v6061, 0.0
        %v6105 = vadd.f32 %v6103, %v6104
        %v6106 = vrot.slane %v6105, 4
        %v6107 = vadd.f32 %v6105, %v6106
        %v6108 = vrot.slane %v6107, 2
        %v6109 = vadd.f32 %v6107, %v6108
        %v6110 = vrot.slane %v6109, 1
        %v6111 = vadd.f32 %v6109, %v6110
        %v6112 = vsel %vm1624, %v6062, 0.0
        %v6113 = vsel %vm1624, %v6063, 0.0
        %v6114 = vadd.f32 %v6112, %v6113
        %v6115 = vsel %vm1624, %v6064, 0.0
        %v6116 = vadd.f32 %v6114, %v6115
        %v6117 = vsel %vm948, %v6065, 0.0
        %v6118 = vadd.f32 %v6116, %v6117
        %v6119 = vrot.slane %v6118, 4
        %v6120 = vadd.f32 %v6118, %v6119
        %v6121 = vrot.slane %v6120, 2
        %v6122 = vadd.f32 %v6120, %v6121
        %v6123 = vrot.slane %v6122, 1
        %v6124 = vadd.f32 %v6122, %v6123
        %v6125 = vsel %vm1624, %v6066, 0.0
        %v6126 = vsel %vm1624, %v6067, 0.0
        %v6127 = vadd.f32 %v6125, %v6126
        %v6128 = vsel %vm1624, %v6068, 0.0
        %v6129 = vadd.f32 %v6127, %v6128
        %v6130 = vsel %vm948, %v6069, 0.0
        %v6131 = vadd.f32 %v6129, %v6130
        %v6132 = vrot.slane %v6131, 4
        %v6133 = vadd.f32 %v6131, %v6132
        %v6134 = vrot.slane %v6133, 2
        %v6135 = vadd.f32 %v6133, %v6134
        %v6136 = vrot.slane %v6135, 1
        %v6137 = vadd.f32 %v6135, %v6136
        %v6138 = vsel %vm1624, %v6070, 0.0
        %v6139 = vsel %vm1624, %v6071, 0.0
        %v6140 = vadd.f32 %v6138, %v6139
        %v6141 = vsel %vm1624, %v6072, 0.0
        %v6142 = vadd.f32 %v6140, %v6141
        %v6143 = vsel %vm948, %v6073, 0.0
        %v6144 = vadd.f32 %v6142, %v6143
        %v6145 = vrot.slane %v6144, 4
        %v6146 = vadd.f32 %v6144, %v6145
        %v6147 = vrot.slane %v6146, 2
        %v6148 = vadd.f32 %v6146, %v6147
        %v6149 = vrot.slane %v6148, 1
        %v6150 = vadd.f32 %v6148, %v6149
        %v6151 = vsel %vm1624, %v6074, 0.0
        %v6152 = vsel %vm1624, %v6075, 0.0
        %v6153 = vadd.f32 %v6151, %v6152
        %v6154 = vsel %vm1624, %v6076, 0.0
        %v6155 = vadd.f32 %v6153, %v6154
        %v6156 = vsel %vm948, %v6077, 0.0
        %v6157 = vadd.f32 %v6155, %v6156
        %v6158 = vrot.slane %v6157, 4
        %v6159 = vadd.f32 %v6157, %v6158
        %v6160 = vrot.slane %v6159, 2
        %v6161 = vadd.f32 %v6159, %v6160
        %v6162 = vrot.slane %v6161, 1
        %v6163 = vadd.f32 %v6161, %v6162
        %v6164 = vsel %vm1624, %v6078, 0.0
        %v6165 = vsel %vm1624, %v6079, 0.0
        %v6166 = vadd.f32 %v6164, %v6165
        %v6167 = vsel %vm1624, %v6080, 0.0
        %v6168 = vadd.f32 %v6166, %v6167
        %v6169 = vsel %vm948, %v6081, 0.0
        %v6170 = vadd.f32 %v6168, %v6169
        %v6171 = vrot.slane %v6170, 4
        %v6172 = vadd.f32 %v6170, %v6171
        %v6173 = vrot.slane %v6172, 2
        %v6174 = vadd.f32 %v6172, %v6173
        %v6175 = vrot.slane %v6174, 1
        %v6176 = vadd.f32 %v6174, %v6175
        %v6177 = vsel %vm1624, %v6082, 0.0
        %v6178 = vsel %vm1624, %v6083, 0.0
        %v6179 = vadd.f32 %v6177, %v6178
        %v6180 = vsel %vm1624, %v6084, 0.0
        %v6181 = vadd.f32 %v6179, %v6180
        %v6182 = vsel %vm948, %v6085, 0.0
        %v6183 = vadd.f32 %v6181, %v6182
        %v6184 = vrot.slane %v6183, 4
        %v6185 = vadd.f32 %v6183, %v6184
        %v6186 = vrot.slane %v6185, 2
        %v6187 = vadd.f32 %v6185, %v6186
        %v6188 = vrot.slane %v6187, 1
        %v6189 = vadd.f32 %v6187, %v6188
        %v6198 = vsel %vm2681, %v6111, %v6098
        %v6199 = vsel %vm2683, %v6124, %v6198
        %v6200 = vsel %vm2685, %v6137, %v6199
        %v6201 = vsel %vm2687, %v6150, %v6200
        %v6202 = vsel %vm2689, %v6163, %v6201
        %v6203 = vsel %vm2691, %v6176, %v6202
        %v6204 = vsel %vm2693, %v6189, %v6203
        %v6205 = vsel %vm1624, %v6204, 0
        %6207 = vmatprep.subr.mxu0 0.0
        %6208 = vmatpush1.xpose.msra.mxu0 %v6205
        %6209 = vmatprep.subr.mxu0 0.0
        %6210 = vmatpush1.xpose.msra.mxu0 0.0
        %6211 = vmatprep.subr.mxu0 0.0
        %6212 = vmatpush1.xpose.msra.mxu0 0.0
        %6213 = vmatprep.subr.mxu0 0.0
        %6214 = vmatpush1.xpose.msra.mxu0 0.0
        %6215 = vmatprep.subr.mxu0 0.0
        %6216 = vmatpush1.xpose.msra.mxu0 0.0
        %6217 = vmatprep.subr.mxu0 0.0
        %6218 = vmatpush1.xpose.msra.mxu0 0.0
        %6219 = vmatprep.subr.mxu0 0.0
        %6220 = vmatpush1.xpose.msra.mxu0 0.0
        %6221 = vmatprep.subr.mxu0 0.0
        %6222 = vmatpush1.xpose.msra.mxu0 0.0
        %6223 = vmatprep.subr.mxu0 0.0
        %6224 = vmatpush1.xpose.msra.mxu0 0.0
        %6225 = vmatprep.subr.mxu0 0.0
        %6226 = vmatpush1.xpose.msra.mxu0 0.0
        %6227 = vmatprep.subr.mxu0 0.0
        %6228 = vmatpush1.xpose.msra.mxu0 0.0
        %6229 = vmatprep.subr.mxu0 0.0
        %6230 = vmatpush1.xpose.msra.mxu0 0.0
        %6231 = vmatprep.subr.mxu0 0.0
        %6232 = vmatpush1.xpose.msra.mxu0 0.0
        %6233 = vmatprep.subr.mxu0 0.0
        %6234 = vmatpush1.xpose.msra.mxu0 0.0
        %6235 = vmatprep.subr.mxu0 0.0
        %6236 = vmatpush1.xpose.msra.mxu0 0.0
        %6237 = vmatprep.subr.mxu0 0.0
        %6238 = vmatpush1.xpose.msra.mxu0 0.0
        %6239 = vmatprep.subr.mxu0 0.0
        %6240 = vmatpush1.xpose.msra.mxu0 0.0
        %6241 = vmatprep.subr.mxu0 0.0
        %6242 = vmatpush1.xpose.msra.mxu0 0.0
        %6243 = vmatprep.subr.mxu0 0.0
        %6244 = vmatpush1.xpose.msra.mxu0 0.0
        %6245 = vmatprep.subr.mxu0 0.0
        %6246 = vmatpush1.xpose.msra.mxu0 0.0
        %6247 = vmatprep.subr.mxu0 0.0
        %6248 = vmatpush1.xpose.msra.mxu0 0.0
        %6249 = vmatprep.subr.mxu0 0.0
        %6250 = vmatpush1.xpose.msra.mxu0 0.0
        %6251 = vmatprep.subr.mxu0 0.0
        %6252 = vmatpush1.xpose.msra.mxu0 0.0
        %6253 = vmatprep.subr.mxu0 0.0
        %6254 = vmatpush1.xpose.msra.mxu0 0.0
        %6255 = vmatprep.subr.mxu0 0.0
        %6256 = vmatpush1.xpose.msra.mxu0 0.0
        %6257 = vmatprep.subr.mxu0 0.0
        %6258 = vmatpush1.xpose.msra.mxu0 0.0
        %6259 = vmatprep.subr.mxu0 0.0
        %6260 = vmatpush1.xpose.msra.mxu0 0.0
        %6261 = vmatprep.subr.mxu0 0.0
        %6262 = vmatpush1.xpose.msra.mxu0 0.0
        %6263 = vmatprep.subr.mxu0 0.0
        %6264 = vmatpush1.xpose.msra.mxu0 0.0
        %6265 = vmatprep.subr.mxu0 0.0
        %6266 = vmatpush1.xpose.msra.mxu0 0.0
        %6267 = vmatprep.subr.mxu0 0.0
        %6268 = vmatpush1.xpose.msra.mxu0 0.0
        %6269 = vmatprep.subr.mxu0 0.0
        %6270 = vmatpush1.xpose.msra.mxu0 0.0
        %6271 = vmatprep.mubr.f32.mxu0 0.0
        %6272 = vmatmul.mubr.f32.gmra.mrb[0].mxu0 %v2696
        %v6273 = vpop.f32.mrb[0].mxu0
        %v6274 = vadd.f32 0.0, %v6273
        %v6275 = vpop.f32.mrb[0].mxu0
        %6276 = vdwg.mxu0
        %v6277 = vsub.f32 %v6274, %v1623
        %v6278 = vand.u32 2147483647, %v6277
        %v6280 = vrot.slane %v3940, 5
        %v6283 = vrot.slane %v5109, 2
        %v6286 = vrot.slane %v6278, 7
        %v6288 = vsel %vm425, %v2771, %v6280
        %vm6289 = vcmask 1045504
        %v6290 = vsel %vm6289, %v6288, %v6283
        %vm6291 = vcmask 1040384
        %v6292 = vsel %vm6291, %v6283, %v6286
        %v6293 = vadd.s32 %v1296, %v1305
        %vm6294 = vcmp.lt.s32.totalorder %v6293, %v1450
        %v6295 = vsel %vm6294, 1, 0
        %vm6296 = vcmp.eq.s32.totalorder %v6295, 1
        %v6297 = vsel %vm6296, %v6290, 0.0
        %v6298 = vsel %vm6296, %v6292, 0.0
        %6299 = vst.msk [vmem:[%s365] sm:$0xff] %vm1624, %v6297
        %vm6300 = vcmask 60416
        %6301 = vst.msk [vmem:[%s365 + $0x8] sm:$0xf] %vm6300, %v6298
      $region52: #{tpu_custom_call.1} parent=43 // pred_fallthru
        _
      %p6302 = scmp.lt.s32.totalorder %s28, 1
      %s6303 = scalar_select %p6302, %s28, 1
      %p6304 = scmp.lt.s32.totalorder %s29, 0
      %s6305 = scalar_select %p6304, %s29, 0
      %s6306 = smul.addr %s6303, 2
      %s6307 = sadd.s32 %s6305, %s6306
      %s6308 = smul.addr %s6307, 8
      %s6309 = scalar_lea.vmem %s7, %s6308
      // Predicated region
      $region53: #{tpu_custom_call.1} parent=43 // pred_check
        %p6310 = pneg %p211
      $region54: #{tpu_custom_call.1} parent=43 // pred_check_branch
        %6312 = sbr.rel (%p6310) target = $region56
      $region55: #{tpu_custom_call.1} parent=43 // pred_region
        _
      $region56: #{tpu_custom_call.1} parent=43 // pred_fallthru
        _
    $region44: #{tpu_custom_call.1} parent=5 // pred_fallthru
      _
    %p6313 = scmp.le.s32.totalorder 2, %s19
    // Predicated region
    $region57: #{tpu_custom_call.1} parent=5 // pred_check
      %p6314 = pneg %p6313
    $region58: #{tpu_custom_call.1} parent=5 // pred_check_branch
      %6316 = sbr.rel (%p6314) target = $region60
    $region59: #{tpu_custom_call.1} parent=5 // pred_region
      %s6317 = ssub.s32 %s19, 2
      // Predicated region
      $region61: #{tpu_custom_call.1} parent=59 // pred_check
        %p6318 = pneg %p217
      $region62: #{tpu_custom_call.1} parent=59 // pred_check_branch
        %6320 = sbr.rel (%p6318) target = $region64
      $region63: #{tpu_custom_call.1} parent=59 // pred_region
        %p6321 = scmp.lt.s32.totalorder %s30, 1
        %s6322 = scalar_select %p6321, %s30, 1
        %p6323 = scmp.lt.s32.totalorder %s31, 0
        %s6324 = scalar_select %p6323, %s31, 0
        %s6325 = smul.addr %s6322, 2
        %s6326 = sadd.s32 %s6324, %s6325
        %s6327 = smul.addr %s6326, 8
        %s6328 = scalar_lea.vmem %s7, %s6327
      $region64: #{tpu_custom_call.1} parent=59 // pred_fallthru
        _
    $region60: #{tpu_custom_call.1} parent=5 // pred_fallthru
      _
  $region6: #{tpu_custom_call.1} parent=0 // loop_footer
    %s23 = sadd.s32 1, %s19
  $region7: #{tpu_custom_call.1} parent=0 // loop_footer_branch
    %18 = sbr.rel target = $region3
  $region8: #{tpu_custom_call.1} parent=0 // loop_exit
    _

</llo_original>
